<compile_context>
chip_gen: v7x
topology: tpu7x:2x2x1
jax: 0.10.0
libtpu: 0.0.40
codegen_flags: <defaults>
</compile_context>

<pallas_src>
import jax
import jax.numpy as jnp
from jax.experimental import pallas as pl
from jax.experimental.pallas import tpu as pltpu

EPS = 1e-5

KD1_PAD = 32                    # conv1 contraction dim 25 -> 32
C2_PAD = 128                    # conv2 out channels 32 -> 128 (lane-dense)
O_PAD = 128                     # fc classes 10 -> 128 (lane-dense)
TM_CONV = 2048                  # conv M-tile (4 taps x 2 bufs x 2048x400xbf16 ~= 13 MiB)
TM_FC = 256                     # fc M-tile
VMEM_LIMIT = 48 * 1024 * 1024   # explicit, > 32 MiB scoped default, < v7x physical


def _round_up(x, m):
    return (x + m - 1) // m * m


# ----------------------------- Pallas kernels ------------------------------ #

def _conv_bn_relu_pool_kernel(p00_ref, p01_ref, p10_ref, p11_ref,
                              w_ref, scale_ref, shift_ref, o_ref):
    """Fused conv (im2col matmul, bf16->f32) + BN affine + 2x2 maxpool + ReLU."""
    w = w_ref[...]
    s = scale_ref[...]
    t = shift_ref[...]

    def tap(p_ref):
        acc = jnp.dot(p_ref[...], w, preferred_element_type=jnp.float32)
        return acc * s + t                       # f32 epilogue (v5e-safe)

    y = jnp.maximum(jnp.maximum(tap(p00_ref), tap(p01_ref)),
                    jnp.maximum(tap(p10_ref), tap(p11_ref)))
    # relu(max_i(affine_i)) == max_i(relu(affine_i)) since relu is monotone.
    o_ref[...] = jnp.maximum(y, 0.0).astype(o_ref.dtype)


def _linear_kernel(x_ref, w_ref, b_ref, o_ref):
    acc = jnp.dot(x_ref[...], w_ref[...], preferred_element_type=jnp.float32)
    o_ref[...] = (acc + b_ref[...]).astype(o_ref.dtype)


# ----------------------------- Pallas wrappers ----------------------------- #

def conv_bn_relu_pool(taps, w_mat, scale, shift, *, tm_max=TM_CONV):
    """taps: 4 x (M, Kd) bf16 patch matrices (one per 2x2 pool tap).

    Returns pooled+activated output (M, Cout) in bf16.
    """
    m, kd = taps[0].shape
    cout = w_mat.shape[1]
    tm = min(tm_max, _round_up(m, 16))
    m_pad = _round_up(m, tm)
    if m_pad != m:
        taps = [jnp.pad(p, ((0, m_pad - m), (0, 0))) for p in taps]

    patch_spec = pl.BlockSpec((tm, kd), lambda i: (i, 0))
    out = pl.pallas_call(
        _conv_bn_relu_pool_kernel,
        out_shape=jax.ShapeDtypeStruct((m_pad, cout), jnp.bfloat16),
        grid_spec=pl.GridSpec(
            grid=(m_pad // tm,),
            in_specs=[patch_spec, patch_spec, patch_spec, patch_spec,
                      pl.BlockSpec((kd, cout), lambda i: (0, 0)),   # resident
                      pl.BlockSpec((1, cout), lambda i: (0, 0)),    # resident
                      pl.BlockSpec((1, cout), lambda i: (0, 0))],   # resident
            out_specs=pl.BlockSpec((tm, cout), lambda i: (i, 0)),
        ),
        compiler_params=pltpu.CompilerParams(
            dimension_semantics=("parallel",),
            vmem_limit_bytes=VMEM_LIMIT),
    )(*taps, w_mat, scale, shift)
    return out[:m] if m_pad != m else out


def linear(x, w_mat, bias, *, tm_max=TM_FC):
    m, kd = x.shape
    o = w_mat.shape[1]
    tm = min(tm_max, _round_up(m, 16))
    m_pad = _round_up(m, tm)
    if m_pad != m:
        x = jnp.pad(x, ((0, m_pad - m), (0, 0)))
    out = pl.pallas_call(
        _linear_kernel,
        out_shape=jax.ShapeDtypeStruct((m_pad, o), jnp.float32),
        grid_spec=pl.GridSpec(
            grid=(m_pad // tm,),
            in_specs=[pl.BlockSpec((tm, kd), lambda i: (i, 0)),
                      pl.BlockSpec((kd, o), lambda i: (0, 0)),
                      pl.BlockSpec((1, o), lambda i: (0, 0))],
            out_specs=pl.BlockSpec((tm, o), lambda i: (i, 0)),
        ),
        compiler_params=pltpu.CompilerParams(
            dimension_semantics=("parallel",),
            vmem_limit_bytes=VMEM_LIMIT),
    )(x, w_mat, bias)
    return out[:m] if m_pad != m else out


# ------------------------------- glue (JAX) -------------------------------- #

def pool_tap_patches(x_nhwc, k=5, pad=2, kd_pad=None):
    """Per-pool-tap im2col for a k x k / stride-1 / pad-2 conv followed by a
    2x2 / stride-2 maxpool: returns 4 bf16 arrays of shape (N*Ho*Wo, k*k*C),
    (ky, kx) outer / Cin inner, matching conv_weight layout."""
    n, h, w, c = x_nhwc.shape
    ho, wo = h // 2, w // 2
    xp = jnp.pad(x_nhwc, ((0, 0), (pad, pad), (pad, pad), (0, 0)))
    kd = k * k * c
    taps = []
    for ty in range(2):
        for tx in range(2):
            cols = []
            for ky in range(k):
                for kx in range(k):
                    cols.append(xp[:, ty + ky: ty + ky + 2 * ho: 2,
                                   tx + kx: tx + kx + 2 * wo: 2, :])
            p = jnp.stack(cols, axis=3)              # (N, Ho, Wo, k*k, C)
            p = p.reshape(n * ho * wo, kd)
            if kd_pad is not None and kd_pad > kd:
                p = jnp.pad(p, ((0, 0), (0, kd_pad - kd)))
            taps.append(p.astype(jnp.bfloat16))
    return taps


def fold_bn(conv_bias, gamma, beta, mean, var):
    """Fold conv bias + eval-mode BatchNorm into per-channel scale & shift."""
    scale = gamma / jnp.sqrt(var + EPS)
    shift = beta + (conv_bias - mean) * scale
    c = scale.shape[0]
    return (scale.reshape(1, c).astype(jnp.float32),
            shift.reshape(1, c).astype(jnp.float32))


def prepare_params(p):
    """One-time transform of PyTorch-layout params into kernel-ready tensors
    (all reshapes / pads / bf16 casts hoisted out of the per-call path)."""
    q = {}
    # conv1: (16, 1, 5, 5) -> im2col weight (25 padded to 32, 16), bf16.
    w1 = jnp.transpose(p["w1"], (2, 3, 1, 0)).reshape(25 * 1, 16)
    q["w1"] = jnp.pad(w1, ((0, KD1_PAD - 25), (0, 0))).astype(jnp.bfloat16)
    q["s1"], q["t1"] = fold_bn(p["b1"], p["bn1_gamma"], p["bn1_beta"],
                               p["bn1_mean"], p["bn1_var"])

    # conv2: (32, 16, 5, 5) -> (400, 32 padded to 128), bf16.  BN scale/shift
    # padded with zeros so the 96 extra channels come out exactly zero.
    w2 = jnp.transpose(p["w2"], (2, 3, 1, 0)).reshape(25 * 16, 32)
    q["w2"] = jnp.pad(w2, ((0, 0), (0, C2_PAD - 32))).astype(jnp.bfloat16)
    s2, t2 = fold_bn(p["b2"], p["bn2_gamma"], p["bn2_beta"],
                     p["bn2_mean"], p["bn2_var"])
    q["s2"] = jnp.pad(s2, ((0, 0), (0, C2_PAD - 32)))
    q["t2"] = jnp.pad(t2, ((0, 0), (0, C2_PAD - 32)))

    # fc: PyTorch rows are (C=32, H=7, W=7)-ordered.  Re-order to the padded
    # NHWC flatten (H, W, C_pad=128) the conv2 kernel emits and pad classes
    # 10 -> 128, so the forward pass needs no activation transpose or slice.
    wfc = p["wfc"].reshape(10, 32, 7, 7)
    wfc = jnp.transpose(wfc, (2, 3, 1, 0))                        # (7, 7, 32, 10)
    wfc = jnp.pad(wfc, ((0, 0), (0, 0), (0, C2_PAD - 32), (0, 0)))
    wfc = wfc.reshape(7 * 7 * C2_PAD, 10)
    q["wfc"] = jnp.pad(wfc, ((0, 0), (0, O_PAD - 10))).astype(jnp.bfloat16)
    q["bfc"] = jnp.pad(p["bfc"].reshape(1, 10),
                       ((0, 0), (0, O_PAD - 10))).astype(jnp.float32)
    return q


def convnet_forward(x_nchw, q):
    n = x_nchw.shape[0]
    x = jnp.transpose(x_nchw, (0, 2, 3, 1))                       # NCHW -> NHWC

    # layer1: conv(1->16, k5, s1, p2) + BN + ReLU + maxpool(2,2), fused.
    taps1 = pool_tap_patches(x, kd_pad=KD1_PAD)                   # 4 x (N*196, 32)
    y1 = conv_bn_relu_pool(taps1, q["w1"], q["s1"], q["t1"])      # (N*196, 16) bf16
    y1 = y1.reshape(n, 14, 14, 16)

    # layer2: conv(16->32, k5, s1, p2) + BN + ReLU + maxpool(2,2), fused.
    taps2 = pool_tap_patches(y1)                                  # 4 x (N*49, 400)
    y2 = conv_bn_relu_pool(taps2, q["w2"], q["s2"], q["t2"])      # (N*49, 128) bf16

    # fc: weight rows pre-permuted to the padded NHWC flatten -> free reshape.
    flat = y2.reshape(n, 7 * 7 * C2_PAD)
    logits = linear(flat, q["wfc"], q["bfc"])                     # (N, 128) f32
    return logits[:, :10]


# ------------------------- pure-JAX reference check ------------------------ #

def reference_forward(x, p):
    def conv(x, w, b):
        y = jax.lax.conv_general_dilated(
            x, w, (1, 1), ((2, 2), (2, 2)),
            dimension_numbers=("NCHW", "OIHW", "NCHW"))
        return y + b.reshape(1, -1, 1, 1)

    def bn(x, g, bta, m, v):
        r = lambda a: a.reshape(1, -1, 1, 1)
        return (x - r(m)) / jnp.sqrt(r(v) + EPS) * r(g) + r(bta)

    def pool(x):
        n, c, h, w = x.shape
        return x.reshape(n, c, h // 2, 2, w // 2, 2).max(axis=(3, 5))

    y = pool(jnp.maximum(bn(conv(x, p["w1"], p["b1"]), p["bn1_gamma"],
                            p["bn1_beta"], p["bn1_mean"], p["bn1_var"]), 0.0))
    y = pool(jnp.maximum(bn(conv(y, p["w2"], p["b2"]), p["bn2_gamma"],
                            p["bn2_beta"], p["bn2_mean"], p["bn2_var"]), 0.0))
    flat = y.reshape(y.shape[0], -1)
    return flat @ p["wfc"].T + p["bfc"]


# --------------------------------- params ---------------------------------- #

def init_params(key):
    ks = jax.random.split(key, 16)
    p = {}
    p["w1"] = 0.1 * jax.random.normal(ks[0], (16, 1, 5, 5), jnp.float32)
    p["b1"] = 0.1 * jax.random.normal(ks[1], (16,), jnp.float32)
    p["bn1_gamma"] = 1.0 + 0.1 * jax.random.normal(ks[2], (16,), jnp.float32)
    p["bn1_beta"] = 0.1 * jax.random.normal(ks[3], (16,), jnp.float32)
    p["bn1_mean"] = 0.1 * jax.random.normal(ks[4], (16,), jnp.float32)
    p["bn1_var"] = 1.0 + 0.1 * jnp.abs(jax.random.normal(ks[5], (16,), jnp.float32))

    p["w2"] = 0.05 * jax.random.normal(ks[6], (32, 16, 5, 5), jnp.float32)
    p["b2"] = 0.1 * jax.random.normal(ks[7], (32,), jnp.float32)
    p["bn2_gamma"] = 1.0 + 0.1 * jax.random.normal(ks[8], (32,), jnp.float32)
    p["bn2_beta"] = 0.1 * jax.random.normal(ks[9], (32,), jnp.float32)
    p["bn2_mean"] = 0.1 * jax.random.normal(ks[10], (32,), jnp.float32)
    p["bn2_var"] = 1.0 + 0.1 * jnp.abs(jax.random.normal(ks[11], (32,), jnp.float32))

    p["wfc"] = 0.05 * jax.random.normal(ks[12], (10, 7 * 7 * 32), jnp.float32)
    p["bfc"] = 0.1 * jax.random.normal(ks[13], (10,), jnp.float32)
    return p


# ---------------------------------- main ------------------------------------ #

if __name__ == "__main__":
    key = jax.random.PRNGKey(0)
    k_x, k_p = jax.random.split(key)
    params = init_params(k_p)
    prepped = prepare_params(params)          # one-time weight prep (not per call)

    # MNIST-shaped input implied by the module (fc expects 7*7*32): NCHW.
    x = jax.random.normal(k_x, (2, 1, 28, 28), jnp.float32)

    out = jax.jit(convnet_forward)(x, prepped)
    out = jax.block_until_ready(out)
    assert out.shape == (2, 10) and out.dtype == jnp.float32

    ref = jax.block_until_ready(reference_forward(x, params))
    err = jnp.max(jnp.abs(out - ref))
    # bf16 MXU operands give ~1e-2 absolute error on O(1) logits; layout or
    # semantics bugs would show up as O(1) mismatches, so this still catches them.
    assert jnp.allclose(out, ref, atol=1e-1, rtol=1e-1), (
        f"mismatch: max abs err {err}")

    print("KERNEL_OK")
</pallas_src>

<mosaic_0001>
module attributes {stable_mosaic.version = 11 : i64} {
  func.func @_conv_bn_relu_pool_kernel(%arg0: i32, %arg1: memref<400x32xbf16, #tpu.memory_space<vmem>>, %arg2: memref<400x32xbf16, #tpu.memory_space<vmem>>, %arg3: memref<400x32xbf16, #tpu.memory_space<vmem>>, %arg4: memref<400x32xbf16, #tpu.memory_space<vmem>>, %arg5: memref<32x16xbf16, #tpu.memory_space<vmem>>, %arg6: memref<1x16xf32, #tpu.memory_space<vmem>>, %arg7: memref<1x16xf32, #tpu.memory_space<vmem>>, %arg8: memref<400x16xbf16, #tpu.memory_space<vmem>>) attributes {dimension_semantics = [#tpu.dimension_semantics<parallel>], iteration_bounds = array<i64: 1>, scalar_prefetch = 0 : i64, scratch_operands = 0 : i64, tpu.core_type = #tpu.core_type<tc>, window_params = [{transform_indices = @transform_0, window_bounds = array<i64: 400, 32>}, {transform_indices = @transform_1, window_bounds = array<i64: 400, 32>}, {transform_indices = @transform_2, window_bounds = array<i64: 400, 32>}, {transform_indices = @transform_3, window_bounds = array<i64: 400, 32>}, {pipeline_mode = #tpu.pipeline_mode<synchronous>, transform_indices = @transform_4, window_bounds = array<i64: 32, 16>}, {pipeline_mode = #tpu.pipeline_mode<synchronous>, transform_indices = @transform_5, window_bounds = array<i64: 1, 16>}, {pipeline_mode = #tpu.pipeline_mode<synchronous>, transform_indices = @transform_6, window_bounds = array<i64: 1, 16>}, {transform_indices = @transform_7, window_bounds = array<i64: 400, 16>}]} {
    %c0 = arith.constant 0 : index
    %c0_0 = arith.constant 0 : index
    %0 = vector.load %arg5[%c0, %c0_0] : memref<32x16xbf16, #tpu.memory_space<vmem>>, vector<32x16xbf16>
    %c0_1 = arith.constant 0 : index
    %c0_2 = arith.constant 0 : index
    %1 = vector.load %arg6[%c0_1, %c0_2] : memref<1x16xf32, #tpu.memory_space<vmem>>, vector<1x16xf32>
    %c0_3 = arith.constant 0 : index
    %c0_4 = arith.constant 0 : index
    %2 = vector.load %arg7[%c0_3, %c0_4] : memref<1x16xf32, #tpu.memory_space<vmem>>, vector<1x16xf32>
    %c0_5 = arith.constant 0 : index
    %c0_6 = arith.constant 0 : index
    %3 = vector.load %arg1[%c0_5, %c0_6] : memref<400x32xbf16, #tpu.memory_space<vmem>>, vector<400x32xbf16>
    %cst = arith.constant dense<0.000000e+00> : vector<400x16xf32>
    %4 = tpu.matmul %3, %0, %cst {dimension_numbers = #tpu.dot_dimension_numbers<[1], [0], [0], [1], [0, 0, 1, 1], [], []>} : vector<400x32xbf16>, vector<32x16xbf16>, vector<400x16xf32> -> vector<400x16xf32>
    %5 = vector.broadcast %1 : vector<1x16xf32> to vector<400x16xf32>
    %6 = arith.mulf %4, %5 : vector<400x16xf32>
    %7 = vector.broadcast %2 : vector<1x16xf32> to vector<400x16xf32>
    %8 = arith.addf %6, %7 : vector<400x16xf32>
    %c0_7 = arith.constant 0 : index
    %c0_8 = arith.constant 0 : index
    %9 = vector.load %arg2[%c0_7, %c0_8] : memref<400x32xbf16, #tpu.memory_space<vmem>>, vector<400x32xbf16>
    %cst_9 = arith.constant dense<0.000000e+00> : vector<400x16xf32>
    %10 = tpu.matmul %9, %0, %cst_9 {dimension_numbers = #tpu.dot_dimension_numbers<[1], [0], [0], [1], [0, 0, 1, 1], [], []>} : vector<400x32xbf16>, vector<32x16xbf16>, vector<400x16xf32> -> vector<400x16xf32>
    %11 = vector.broadcast %1 : vector<1x16xf32> to vector<400x16xf32>
    %12 = arith.mulf %10, %11 : vector<400x16xf32>
    %13 = vector.broadcast %2 : vector<1x16xf32> to vector<400x16xf32>
    %14 = arith.addf %12, %13 : vector<400x16xf32>
    %15 = arith.maximumf %8, %14 : vector<400x16xf32>
    %c0_10 = arith.constant 0 : index
    %c0_11 = arith.constant 0 : index
    %16 = vector.load %arg3[%c0_10, %c0_11] : memref<400x32xbf16, #tpu.memory_space<vmem>>, vector<400x32xbf16>
    %cst_12 = arith.constant dense<0.000000e+00> : vector<400x16xf32>
    %17 = tpu.matmul %16, %0, %cst_12 {dimension_numbers = #tpu.dot_dimension_numbers<[1], [0], [0], [1], [0, 0, 1, 1], [], []>} : vector<400x32xbf16>, vector<32x16xbf16>, vector<400x16xf32> -> vector<400x16xf32>
    %18 = vector.broadcast %1 : vector<1x16xf32> to vector<400x16xf32>
    %19 = arith.mulf %17, %18 : vector<400x16xf32>
    %20 = vector.broadcast %2 : vector<1x16xf32> to vector<400x16xf32>
    %21 = arith.addf %19, %20 : vector<400x16xf32>
    %c0_13 = arith.constant 0 : index
    %c0_14 = arith.constant 0 : index
    %22 = vector.load %arg4[%c0_13, %c0_14] : memref<400x32xbf16, #tpu.memory_space<vmem>>, vector<400x32xbf16>
    %cst_15 = arith.constant dense<0.000000e+00> : vector<400x16xf32>
    %23 = tpu.matmul %22, %0, %cst_15 {dimension_numbers = #tpu.dot_dimension_numbers<[1], [0], [0], [1], [0, 0, 1, 1], [], []>} : vector<400x32xbf16>, vector<32x16xbf16>, vector<400x16xf32> -> vector<400x16xf32>
    %24 = vector.broadcast %1 : vector<1x16xf32> to vector<400x16xf32>
    %25 = arith.mulf %23, %24 : vector<400x16xf32>
    %26 = vector.broadcast %2 : vector<1x16xf32> to vector<400x16xf32>
    %27 = arith.addf %25, %26 : vector<400x16xf32>
    %28 = arith.maximumf %21, %27 : vector<400x16xf32>
    %29 = arith.maximumf %15, %28 : vector<400x16xf32>
    %cst_16 = arith.constant 0.000000e+00 : f32
    %30 = vector.broadcast %cst_16 : f32 to vector<400x16xf32>
    %31 = arith.maximumf %29, %30 : vector<400x16xf32>
    %32 = arith.truncf %31 : vector<400x16xf32> to vector<400x16xbf16>
    %c0_17 = arith.constant 0 : index
    %c0_18 = arith.constant 0 : index
    %33 = vector.load %arg8[%c0_17, %c0_18] : memref<400x16xbf16, #tpu.memory_space<vmem>>, vector<400x16xbf16>
    tpu.vector_store %arg8[%c0_17, %c0_18], %32 {strides = array<i32>} : memref<400x16xbf16, #tpu.memory_space<vmem>>, vector<400x16xbf16>,
    return
  }
  func.func @transform_0(%arg0: i32) -> (i32, i32) {
    %c0_i32 = arith.constant 0 : i32
    %c0_i32_0 = arith.constant 0 : i32
    return %arg0, %c0_i32 : i32, i32
  }
  func.func @transform_1(%arg0: i32) -> (i32, i32) {
    %c0_i32 = arith.constant 0 : i32
    %c0_i32_0 = arith.constant 0 : i32
    return %arg0, %c0_i32 : i32, i32
  }
  func.func @transform_2(%arg0: i32) -> (i32, i32) {
    %c0_i32 = arith.constant 0 : i32
    %c0_i32_0 = arith.constant 0 : i32
    return %arg0, %c0_i32 : i32, i32
  }
  func.func @transform_3(%arg0: i32) -> (i32, i32) {
    %c0_i32 = arith.constant 0 : i32
    %c0_i32_0 = arith.constant 0 : i32
    return %arg0, %c0_i32 : i32, i32
  }
  func.func @transform_4(%arg0: i32) -> (i32, i32) {
    %c0_i32 = arith.constant 0 : i32
    %c0_i32_0 = arith.constant 0 : i32
    %c0_i32_1 = arith.constant 0 : i32
    return %c0_i32, %c0_i32_0 : i32, i32
  }
  func.func @transform_5(%arg0: i32) -> (i32, i32) {
    %c0_i32 = arith.constant 0 : i32
    %c0_i32_0 = arith.constant 0 : i32
    %c0_i32_1 = arith.constant 0 : i32
    return %c0_i32, %c0_i32_0 : i32, i32
  }
  func.func @transform_6(%arg0: i32) -> (i32, i32) {
    %c0_i32 = arith.constant 0 : i32
    %c0_i32_0 = arith.constant 0 : i32
    %c0_i32_1 = arith.constant 0 : i32
    return %c0_i32, %c0_i32_0 : i32, i32
  }
  func.func @transform_7(%arg0: i32) -> (i32, i32) {
    %c0_i32 = arith.constant 0 : i32
    %c0_i32_0 = arith.constant 0 : i32
    return %arg0, %c0_i32 : i32, i32
  }
}

module attributes {stable_mosaic.version = 11 : i64} {
  func.func @_conv_bn_relu_pool_kernel(%arg0: i32, %arg1: memref<112x400xbf16, #tpu.memory_space<vmem>>, %arg2: memref<112x400xbf16, #tpu.memory_space<vmem>>, %arg3: memref<112x400xbf16, #tpu.memory_space<vmem>>, %arg4: memref<112x400xbf16, #tpu.memory_space<vmem>>, %arg5: memref<400x128xbf16, #tpu.memory_space<vmem>>, %arg6: memref<1x128xf32, #tpu.memory_space<vmem>>, %arg7: memref<1x128xf32, #tpu.memory_space<vmem>>, %arg8: memref<112x128xbf16, #tpu.memory_space<vmem>>) attributes {dimension_semantics = [#tpu.dimension_semantics<parallel>], iteration_bounds = array<i64: 1>, scalar_prefetch = 0 : i64, scratch_operands = 0 : i64, tpu.core_type = #tpu.core_type<tc>, window_params = [{transform_indices = @transform_0, window_bounds = array<i64: 112, 400>}, {transform_indices = @transform_1, window_bounds = array<i64: 112, 400>}, {transform_indices = @transform_2, window_bounds = array<i64: 112, 400>}, {transform_indices = @transform_3, window_bounds = array<i64: 112, 400>}, {pipeline_mode = #tpu.pipeline_mode<synchronous>, transform_indices = @transform_4, window_bounds = array<i64: 400, 128>}, {pipeline_mode = #tpu.pipeline_mode<synchronous>, transform_indices = @transform_5, window_bounds = array<i64: 1, 128>}, {pipeline_mode = #tpu.pipeline_mode<synchronous>, transform_indices = @transform_6, window_bounds = array<i64: 1, 128>}, {transform_indices = @transform_7, window_bounds = array<i64: 112, 128>}]} {
    %c0 = arith.constant 0 : index
    %c0_0 = arith.constant 0 : index
    %0 = vector.load %arg5[%c0, %c0_0] : memref<400x128xbf16, #tpu.memory_space<vmem>>, vector<400x128xbf16>
    %c0_1 = arith.constant 0 : index
    %c0_2 = arith.constant 0 : index
    %1 = vector.load %arg6[%c0_1, %c0_2] : memref<1x128xf32, #tpu.memory_space<vmem>>, vector<1x128xf32>
    %c0_3 = arith.constant 0 : index
    %c0_4 = arith.constant 0 : index
    %2 = vector.load %arg7[%c0_3, %c0_4] : memref<1x128xf32, #tpu.memory_space<vmem>>, vector<1x128xf32>
    %c0_5 = arith.constant 0 : index
    %c0_6 = arith.constant 0 : index
    %3 = vector.load %arg1[%c0_5, %c0_6] : memref<112x400xbf16, #tpu.memory_space<vmem>>, vector<112x400xbf16>
    %cst = arith.constant dense<0.000000e+00> : vector<112x128xf32>
    %4 = tpu.matmul %3, %0, %cst {dimension_numbers = #tpu.dot_dimension_numbers<[1], [0], [0], [1], [0, 0, 1, 1], [], []>} : vector<112x400xbf16>, vector<400x128xbf16>, vector<112x128xf32> -> vector<112x128xf32>
    %5 = vector.broadcast %1 : vector<1x128xf32> to vector<112x128xf32>
    %6 = arith.mulf %4, %5 : vector<112x128xf32>
    %7 = vector.broadcast %2 : vector<1x128xf32> to vector<112x128xf32>
    %8 = arith.addf %6, %7 : vector<112x128xf32>
    %c0_7 = arith.constant 0 : index
    %c0_8 = arith.constant 0 : index
    %9 = vector.load %arg2[%c0_7, %c0_8] : memref<112x400xbf16, #tpu.memory_space<vmem>>, vector<112x400xbf16>
    %cst_9 = arith.constant dense<0.000000e+00> : vector<112x128xf32>
    %10 = tpu.matmul %9, %0, %cst_9 {dimension_numbers = #tpu.dot_dimension_numbers<[1], [0], [0], [1], [0, 0, 1, 1], [], []>} : vector<112x400xbf16>, vector<400x128xbf16>, vector<112x128xf32> -> vector<112x128xf32>
    %11 = vector.broadcast %1 : vector<1x128xf32> to vector<112x128xf32>
    %12 = arith.mulf %10, %11 : vector<112x128xf32>
    %13 = vector.broadcast %2 : vector<1x128xf32> to vector<112x128xf32>
    %14 = arith.addf %12, %13 : vector<112x128xf32>
    %15 = arith.maximumf %8, %14 : vector<112x128xf32>
    %c0_10 = arith.constant 0 : index
    %c0_11 = arith.constant 0 : index
    %16 = vector.load %arg3[%c0_10, %c0_11] : memref<112x400xbf16, #tpu.memory_space<vmem>>, vector<112x400xbf16>
    %cst_12 = arith.constant dense<0.000000e+00> : vector<112x128xf32>
    %17 = tpu.matmul %16, %0, %cst_12 {dimension_numbers = #tpu.dot_dimension_numbers<[1], [0], [0], [1], [0, 0, 1, 1], [], []>} : vector<112x400xbf16>, vector<400x128xbf16>, vector<112x128xf32> -> vector<112x128xf32>
    %18 = vector.broadcast %1 : vector<1x128xf32> to vector<112x128xf32>
    %19 = arith.mulf %17, %18 : vector<112x128xf32>
    %20 = vector.broadcast %2 : vector<1x128xf32> to vector<112x128xf32>
    %21 = arith.addf %19, %20 : vector<112x128xf32>
    %c0_13 = arith.constant 0 : index
    %c0_14 = arith.constant 0 : index
    %22 = vector.load %arg4[%c0_13, %c0_14] : memref<112x400xbf16, #tpu.memory_space<vmem>>, vector<112x400xbf16>
    %cst_15 = arith.constant dense<0.000000e+00> : vector<112x128xf32>
    %23 = tpu.matmul %22, %0, %cst_15 {dimension_numbers = #tpu.dot_dimension_numbers<[1], [0], [0], [1], [0, 0, 1, 1], [], []>} : vector<112x400xbf16>, vector<400x128xbf16>, vector<112x128xf32> -> vector<112x128xf32>
    %24 = vector.broadcast %1 : vector<1x128xf32> to vector<112x128xf32>
    %25 = arith.mulf %23, %24 : vector<112x128xf32>
    %26 = vector.broadcast %2 : vector<1x128xf32> to vector<112x128xf32>
    %27 = arith.addf %25, %26 : vector<112x128xf32>
    %28 = arith.maximumf %21, %27 : vector<112x128xf32>
    %29 = arith.maximumf %15, %28 : vector<112x128xf32>
    %cst_16 = arith.constant 0.000000e+00 : f32
    %30 = vector.broadcast %cst_16 : f32 to vector<112x128xf32>
    %31 = arith.maximumf %29, %30 : vector<112x128xf32>
    %32 = arith.truncf %31 : vector<112x128xf32> to vector<112x128xbf16>
    %c0_17 = arith.constant 0 : index
    %c0_18 = arith.constant 0 : index
    %33 = vector.load %arg8[%c0_17, %c0_18] : memref<112x128xbf16, #tpu.memory_space<vmem>>, vector<112x128xbf16>
    tpu.vector_store %arg8[%c0_17, %c0_18], %32 {strides = array<i32>} : memref<112x128xbf16, #tpu.memory_space<vmem>>, vector<112x128xbf16>,
    return
  }
  func.func @transform_0(%arg0: i32) -> (i32, i32) {
    %c0_i32 = arith.constant 0 : i32
    %c0_i32_0 = arith.constant 0 : i32
    return %arg0, %c0_i32 : i32, i32
  }
  func.func @transform_1(%arg0: i32) -> (i32, i32) {
    %c0_i32 = arith.constant 0 : i32
    %c0_i32_0 = arith.constant 0 : i32
    return %arg0, %c0_i32 : i32, i32
  }
  func.func @transform_2(%arg0: i32) -> (i32, i32) {
    %c0_i32 = arith.constant 0 : i32
    %c0_i32_0 = arith.constant 0 : i32
    return %arg0, %c0_i32 : i32, i32
  }
  func.func @transform_3(%arg0: i32) -> (i32, i32) {
    %c0_i32 = arith.constant 0 : i32
    %c0_i32_0 = arith.constant 0 : i32
    return %arg0, %c0_i32 : i32, i32
  }
  func.func @transform_4(%arg0: i32) -> (i32, i32) {
    %c0_i32 = arith.constant 0 : i32
    %c0_i32_0 = arith.constant 0 : i32
    %c0_i32_1 = arith.constant 0 : i32
    return %c0_i32, %c0_i32_0 : i32, i32
  }
  func.func @transform_5(%arg0: i32) -> (i32, i32) {
    %c0_i32 = arith.constant 0 : i32
    %c0_i32_0 = arith.constant 0 : i32
    %c0_i32_1 = arith.constant 0 : i32
    return %c0_i32, %c0_i32_0 : i32, i32
  }
  func.func @transform_6(%arg0: i32) -> (i32, i32) {
    %c0_i32 = arith.constant 0 : i32
    %c0_i32_0 = arith.constant 0 : i32
    %c0_i32_1 = arith.constant 0 : i32
    return %c0_i32, %c0_i32_0 : i32, i32
  }
  func.func @transform_7(%arg0: i32) -> (i32, i32) {
    %c0_i32 = arith.constant 0 : i32
    %c0_i32_0 = arith.constant 0 : i32
    return %arg0, %c0_i32 : i32, i32
  }
}

module attributes {stable_mosaic.version = 11 : i64} {
  func.func @_linear_kernel(%arg0: i32, %arg1: memref<16x6272xbf16, #tpu.memory_space<vmem>>, %arg2: memref<6272x128xbf16, #tpu.memory_space<vmem>>, %arg3: memref<1x128xf32, #tpu.memory_space<vmem>>, %arg4: memref<16x128xf32, #tpu.memory_space<vmem>>) attributes {dimension_semantics = [#tpu.dimension_semantics<parallel>], iteration_bounds = array<i64: 1>, scalar_prefetch = 0 : i64, scratch_operands = 0 : i64, tpu.core_type = #tpu.core_type<tc>, window_params = [{transform_indices = @transform_0, window_bounds = array<i64: 16, 6272>}, {pipeline_mode = #tpu.pipeline_mode<synchronous>, transform_indices = @transform_1, window_bounds = array<i64: 6272, 128>}, {pipeline_mode = #tpu.pipeline_mode<synchronous>, transform_indices = @transform_2, window_bounds = array<i64: 1, 128>}, {transform_indices = @transform_3, window_bounds = array<i64: 16, 128>}]} {
    %c0 = arith.constant 0 : index
    %c0_0 = arith.constant 0 : index
    %0 = vector.load %arg1[%c0, %c0_0] : memref<16x6272xbf16, #tpu.memory_space<vmem>>, vector<16x6272xbf16>
    %c0_1 = arith.constant 0 : index
    %c0_2 = arith.constant 0 : index
    %1 = vector.load %arg2[%c0_1, %c0_2] : memref<6272x128xbf16, #tpu.memory_space<vmem>>, vector<6272x128xbf16>
    %cst = arith.constant dense<0.000000e+00> : vector<16x128xf32>
    %2 = tpu.matmul %0, %1, %cst {dimension_numbers = #tpu.dot_dimension_numbers<[1], [0], [0], [1], [0, 0, 1, 1], [], []>} : vector<16x6272xbf16>, vector<6272x128xbf16>, vector<16x128xf32> -> vector<16x128xf32>
    %c0_3 = arith.constant 0 : index
    %c0_4 = arith.constant 0 : index
    %3 = vector.load %arg3[%c0_3, %c0_4] : memref<1x128xf32, #tpu.memory_space<vmem>>, vector<1x128xf32>
    %4 = vector.broadcast %3 : vector<1x128xf32> to vector<16x128xf32>
    %5 = arith.addf %2, %4 : vector<16x128xf32>
    %c0_5 = arith.constant 0 : index
    %c0_6 = arith.constant 0 : index
    %6 = vector.load %arg4[%c0_5, %c0_6] : memref<16x128xf32, #tpu.memory_space<vmem>>, vector<16x128xf32>
    tpu.vector_store %arg4[%c0_5, %c0_6], %5 {strides = array<i32>} : memref<16x128xf32, #tpu.memory_space<vmem>>, vector<16x128xf32>,
    return
  }
  func.func @transform_0(%arg0: i32) -> (i32, i32) {
    %c0_i32 = arith.constant 0 : i32
    %c0_i32_0 = arith.constant 0 : i32
    return %arg0, %c0_i32 : i32, i32
  }
  func.func @transform_1(%arg0: i32) -> (i32, i32) {
    %c0_i32 = arith.constant 0 : i32
    %c0_i32_0 = arith.constant 0 : i32
    %c0_i32_1 = arith.constant 0 : i32
    return %c0_i32, %c0_i32_0 : i32, i32
  }
  func.func @transform_2(%arg0: i32) -> (i32, i32) {
    %c0_i32 = arith.constant 0 : i32
    %c0_i32_0 = arith.constant 0 : i32
    %c0_i32_1 = arith.constant 0 : i32
    return %c0_i32, %c0_i32_0 : i32, i32
  }
  func.func @transform_3(%arg0: i32) -> (i32, i32) {
    %c0_i32 = arith.constant 0 : i32
    %c0_i32_0 = arith.constant 0 : i32
    return %arg0, %c0_i32 : i32, i32
  }
}

</mosaic_0001>

<llo_original>
// kernel: convnet_forward.3
$region0: #{convnet_forward.3}
  #allocation0 [shape = 'u32[]', space=smem, size = 0x4, offset = 0x4, fixed_abs, tag = 'smem constant byte address 0x4 - core index']
  #allocation1 [shape = 'u32[144,128]{1,0:T(1,128)}', space=vmem, size = 0x12000, scoped, tag = 'internal scratch']
  %s0 = inlined_call_operand.vmem [shape: bf16[400,32], index: 0, kind: input, shape index: {}]
  %s1 = inlined_call_operand.vmem [shape: bf16[400,32], index: 1, kind: input, shape index: {}]
  %s2 = inlined_call_operand.vmem [shape: bf16[400,32], index: 2, kind: input, shape index: {}]
  %s3 = inlined_call_operand.vmem [shape: bf16[400,32], index: 3, kind: input, shape index: {}]
  %s4 = inlined_call_operand.vmem [shape: bf16[32,16], index: 4, kind: input, shape index: {}]
  %s5 = inlined_call_operand.vmem [shape: f32[1,16], index: 5, kind: input, shape index: {}]
  %s6 = inlined_call_operand.vmem [shape: f32[1,16], index: 6, kind: input, shape index: {}]
  %s7 = inlined_call_operand.vmem [shape: bf16[400,16], index: 7, kind: output, shape index: {}]
  %s8 = sld [smem:[#allocation0]]
  $region38: #{convnet_forward.3} parent=0
    _
  %s10 = ssub.s32 1, %s8
  %s11 = scalar_select 0, %s10, %s8
  // Predicated region
  $region2: #{convnet_forward.3} parent=0 // pred_check
    _
  $region3: #{convnet_forward.3} parent=0 // pred_check_branch
    %13 = sbr.rel (0) target = $region5
  $region4: #{convnet_forward.3} parent=0 // pred_region
    _
  $region5: #{convnet_forward.3} parent=0 // pred_fallthru
    _
  // Predicated region
  $region6: #{convnet_forward.3} parent=0 // pred_check
    _
  $region7: #{convnet_forward.3} parent=0 // pred_check_branch
    %15 = sbr.rel (0) target = $region9
  $region8: #{convnet_forward.3} parent=0 // pred_region
    _
  $region9: #{convnet_forward.3} parent=0 // pred_fallthru
    _
  // Predicated region
  $region10: #{convnet_forward.3} parent=0 // pred_check
    _
  $region11: #{convnet_forward.3} parent=0 // pred_check_branch
    %17 = sbr.rel (0) target = $region13
  $region12: #{convnet_forward.3} parent=0 // pred_region
    _
  $region13: #{convnet_forward.3} parent=0 // pred_fallthru
    _
  // Predicated region
  $region14: #{convnet_forward.3} parent=0 // pred_check
    _
  $region15: #{convnet_forward.3} parent=0 // pred_check_branch
    %19 = sbr.rel (0) target = $region17
  $region16: #{convnet_forward.3} parent=0 // pred_region
    _
  $region17: #{convnet_forward.3} parent=0 // pred_fallthru
    _
  // Predicated region
  $region18: #{convnet_forward.3} parent=0 // pred_check
    _
  $region19: #{convnet_forward.3} parent=0 // pred_check_branch
    %21 = sbr.rel (0) target = $region21
  $region20: #{convnet_forward.3} parent=0 // pred_region
    _
  $region21: #{convnet_forward.3} parent=0 // pred_fallthru
    _
  // Predicated region
  $region22: #{convnet_forward.3} parent=0 // pred_check
    _
  $region23: #{convnet_forward.3} parent=0 // pred_check_branch
    %23 = sbr.rel (0) target = $region25
  $region24: #{convnet_forward.3} parent=0 // pred_region
    _
  $region25: #{convnet_forward.3} parent=0 // pred_fallthru
    _
  // Predicated region
  $region26: #{convnet_forward.3} parent=0 // pred_check
    _
  $region27: #{convnet_forward.3} parent=0 // pred_check_branch
    %25 = sbr.rel (0) target = $region29
  $region28: #{convnet_forward.3} parent=0 // pred_region
    _
  $region29: #{convnet_forward.3} parent=0 // pred_fallthru
    _
  %v27 = vld [vmem:[%s4] sm:$0xf]
  %v28 = vld [vmem:[%s4 + $0x4] sm:$0xf]
  %v29 = vld [vmem:[%s4 + $0x8] sm:$0xf]
  %v30 = vld [vmem:[%s4 + $0xc] sm:$0xf]
  %v31 = vld [vmem:[%s5] sm:$0x1]
  %v32 = vld [vmem:[%s6] sm:$0x1]
  %v33 = vld [vmem:[%s0] sm:$0xf]
  %v34 = vld [vmem:[%s0 + $0x4] sm:$0xf]
  %v35 = vld [vmem:[%s0 + $0x8] sm:$0xf]
  %v36 = vld [vmem:[%s0 + $0xc] sm:$0xf]
  %v37 = vld [vmem:[%s0 + $0x10] sm:$0xf]
  %v38 = vld [vmem:[%s0 + $0x14] sm:$0xf]
  %v39 = vld [vmem:[%s0 + $0x18] sm:$0xf]
  %v40 = vld [vmem:[%s0 + $0x1c] sm:$0xf]
  %v41 = vld [vmem:[%s0 + $0x20] sm:$0xf]
  %v42 = vld [vmem:[%s0 + $0x24] sm:$0xf]
  %v43 = vld [vmem:[%s0 + $0x28] sm:$0xf]
  %v44 = vld [vmem:[%s0 + $0x2c] sm:$0xf]
  %v45 = vld [vmem:[%s0 + $0x30] sm:$0xf]
  %v46 = vld [vmem:[%s0 + $0x34] sm:$0xf]
  %v47 = vld [vmem:[%s0 + $0x38] sm:$0xf]
  %v48 = vld [vmem:[%s0 + $0x3c] sm:$0xf]
  %v49 = vld [vmem:[%s0 + $0x40] sm:$0xf]
  %v50 = vld [vmem:[%s0 + $0x44] sm:$0xf]
  %v51 = vld [vmem:[%s0 + $0x48] sm:$0xf]
  %v52 = vld [vmem:[%s0 + $0x4c] sm:$0xf]
  %v53 = vld [vmem:[%s0 + $0x50] sm:$0xf]
  %v54 = vld [vmem:[%s0 + $0x54] sm:$0xf]
  %v55 = vld [vmem:[%s0 + $0x58] sm:$0xf]
  %v56 = vld [vmem:[%s0 + $0x5c] sm:$0xf]
  %v57 = vld [vmem:[%s0 + $0x60] sm:$0xf]
  %v58 = vld [vmem:[%s0 + $0x64] sm:$0xf]
  %v59 = vld [vmem:[%s0 + $0x68] sm:$0xf]
  %v60 = vld [vmem:[%s0 + $0x6c] sm:$0xf]
  %v61 = vld [vmem:[%s0 + $0x70] sm:$0xf]
  %v62 = vld [vmem:[%s0 + $0x74] sm:$0xf]
  %v63 = vld [vmem:[%s0 + $0x78] sm:$0xf]
  %v64 = vld [vmem:[%s0 + $0x7c] sm:$0xf]
  %v65 = vld [vmem:[%s0 + $0x80] sm:$0xf]
  %v66 = vld [vmem:[%s0 + $0x84] sm:$0xf]
  %v67 = vld [vmem:[%s0 + $0x88] sm:$0xf]
  %v68 = vld [vmem:[%s0 + $0x8c] sm:$0xf]
  %v69 = vld [vmem:[%s0 + $0x90] sm:$0xf]
  %v70 = vld [vmem:[%s0 + $0x94] sm:$0xf]
  %v71 = vld [vmem:[%s0 + $0x98] sm:$0xf]
  %v72 = vld [vmem:[%s0 + $0x9c] sm:$0xf]
  %v73 = vld [vmem:[%s0 + $0xa0] sm:$0xf]
  %v74 = vld [vmem:[%s0 + $0xa4] sm:$0xf]
  %v75 = vld [vmem:[%s0 + $0xa8] sm:$0xf]
  %v76 = vld [vmem:[%s0 + $0xac] sm:$0xf]
  %v77 = vld [vmem:[%s0 + $0xb0] sm:$0xf]
  %v78 = vld [vmem:[%s0 + $0xb4] sm:$0xf]
  %v79 = vld [vmem:[%s0 + $0xb8] sm:$0xf]
  %v80 = vld [vmem:[%s0 + $0xbc] sm:$0xf]
  %v81 = vld [vmem:[%s0 + $0xc0] sm:$0xf]
  %v82 = vld [vmem:[%s0 + $0xc4] sm:$0xf]
  %v133 = vunpack.c.l.b16 %v33
  %v134 = vunpack.c.l.b16 %v34
  %v135 = vunpack.c.l.b16 %v35
  %v136 = vunpack.c.l.b16 %v36
  %v137 = vunpack.c.l.b16 %v37
  %v138 = vunpack.c.l.b16 %v38
  %v139 = vunpack.c.l.b16 %v39
  %v140 = vunpack.c.l.b16 %v40
  %v141 = vunpack.c.l.b16 %v41
  %v142 = vunpack.c.l.b16 %v42
  %v143 = vunpack.c.l.b16 %v43
  %v144 = vunpack.c.l.b16 %v44
  %v145 = vunpack.c.l.b16 %v45
  %v146 = vunpack.c.l.b16 %v46
  %v147 = vunpack.c.l.b16 %v47
  %v148 = vunpack.c.l.b16 %v48
  %v149 = vunpack.c.l.b16 %v49
  %v150 = vunpack.c.l.b16 %v50
  %v151 = vunpack.c.l.b16 %v51
  %v152 = vunpack.c.l.b16 %v52
  %v153 = vunpack.c.l.b16 %v53
  %v154 = vunpack.c.l.b16 %v54
  %v155 = vunpack.c.l.b16 %v55
  %v156 = vunpack.c.l.b16 %v56
  %v157 = vunpack.c.l.b16 %v57
  %v158 = vunpack.c.l.b16 %v58
  %v159 = vunpack.c.l.b16 %v59
  %v160 = vunpack.c.l.b16 %v60
  %v161 = vunpack.c.l.b16 %v61
  %v162 = vunpack.c.l.b16 %v62
  %v163 = vunpack.c.l.b16 %v63
  %v164 = vunpack.c.l.b16 %v64
  %v165 = vunpack.c.l.b16 %v65
  %v166 = vunpack.c.l.b16 %v66
  %v167 = vunpack.c.l.b16 %v67
  %v168 = vunpack.c.l.b16 %v68
  %v169 = vunpack.c.l.b16 %v69
  %v170 = vunpack.c.l.b16 %v70
  %v171 = vunpack.c.l.b16 %v71
  %v172 = vunpack.c.l.b16 %v72
  %v173 = vunpack.c.l.b16 %v73
  %v174 = vunpack.c.l.b16 %v74
  %v175 = vunpack.c.l.b16 %v75
  %v176 = vunpack.c.l.b16 %v76
  %v177 = vunpack.c.l.b16 %v77
  %v178 = vunpack.c.l.b16 %v78
  %v179 = vunpack.c.l.b16 %v79
  %v180 = vunpack.c.l.b16 %v80
  %v181 = vunpack.c.l.b16 %v81
  %v182 = vunpack.c.l.b16 %v82
  %v183 = vpack.c.b16 %v134, %v133
  %v184 = vpack.c.b16 %v136, %v135
  %v185 = vpack.c.b16 %v138, %v137
  %v186 = vpack.c.b16 %v140, %v139
  %v187 = vpack.c.b16 %v142, %v141
  %v188 = vpack.c.b16 %v144, %v143
  %v189 = vpack.c.b16 %v146, %v145
  %v190 = vpack.c.b16 %v148, %v147
  %v191 = vpack.c.b16 %v150, %v149
  %v192 = vpack.c.b16 %v152, %v151
  %v193 = vpack.c.b16 %v154, %v153
  %v194 = vpack.c.b16 %v156, %v155
  %v195 = vpack.c.b16 %v158, %v157
  %v196 = vpack.c.b16 %v160, %v159
  %v197 = vpack.c.b16 %v162, %v161
  %v198 = vpack.c.b16 %v164, %v163
  %v199 = vpack.c.b16 %v166, %v165
  %v200 = vpack.c.b16 %v168, %v167
  %v201 = vpack.c.b16 %v170, %v169
  %v202 = vpack.c.b16 %v172, %v171
  %v203 = vpack.c.b16 %v174, %v173
  %v204 = vpack.c.b16 %v176, %v175
  %v205 = vpack.c.b16 %v178, %v177
  %v206 = vpack.c.b16 %v180, %v179
  %v207 = vpack.c.b16 %v182, %v181
  %v212 = vunpack.c.l.b16 %v27
  %v213 = vunpack.c.l.b16 %v28
  %v214 = vunpack.c.l.b16 %v29
  %v215 = vunpack.c.l.b16 %v30
  %v216 = vpack.c.b16 %v213, %v212
  %v217 = vpack.c.b16 %v215, %v214
  %vm220 = vcmask 261120
  %v222 = vsel %vm220, %v183, 0
  %v225 = vsel %vm220, %v184, 0
  %v228 = vsel %vm220, %v185, 0
  %v231 = vsel %vm220, %v186, 0
  %v234 = vsel %vm220, %v187, 0
  %v237 = vsel %vm220, %v188, 0
  %v240 = vsel %vm220, %v189, 0
  %v243 = vsel %vm220, %v190, 0
  %v246 = vsel %vm220, %v191, 0
  %v249 = vsel %vm220, %v192, 0
  %v252 = vsel %vm220, %v193, 0
  %v255 = vsel %vm220, %v194, 0
  %v258 = vsel %vm220, %v195, 0
  %v261 = vsel %vm220, %v196, 0
  %v264 = vsel %vm220, %v197, 0
  %v267 = vsel %vm220, %v198, 0
  %v270 = vsel %vm220, %v199, 0
  %v273 = vsel %vm220, %v200, 0
  %v276 = vsel %vm220, %v201, 0
  %v279 = vsel %vm220, %v202, 0
  %v282 = vsel %vm220, %v203, 0
  %v285 = vsel %vm220, %v204, 0
  %v288 = vsel %vm220, %v205, 0
  %v291 = vsel %vm220, %v206, 0
  %v294 = vsel %vm220, %v207, 0
  %296 = vmatprep.subr.bf16.mxu0 0
  %297 = vmatpush1.bf16.msra.mxu0 %v216
  %298 = vmatprep.subr.bf16.mxu0 0
  %299 = vmatpush1.bf16.msra.mxu0 %v217
  %300 = vmatprep.subr.bf16.mxu0 0
  %301 = vmatpush1.bf16.msra.mxu0 0
  %302 = vmatprep.subr.bf16.mxu0 0
  %303 = vmatpush1.bf16.msra.mxu0 0
  %304 = vmatprep.subr.bf16.mxu0 0
  %305 = vmatpush1.bf16.msra.mxu0 0
  %306 = vmatprep.subr.bf16.mxu0 0
  %307 = vmatpush1.bf16.msra.mxu0 0
  %308 = vmatprep.subr.bf16.mxu0 0
  %309 = vmatpush1.bf16.msra.mxu0 0
  %310 = vmatprep.subr.bf16.mxu0 0
  %311 = vmatpush1.bf16.msra.mxu0 0
  %312 = vmatprep.subr.bf16.mxu0 0
  %313 = vmatpush1.bf16.msra.mxu0 0
  %314 = vmatprep.subr.bf16.mxu0 0
  %315 = vmatpush1.bf16.msra.mxu0 0
  %316 = vmatprep.subr.bf16.mxu0 0
  %317 = vmatpush1.bf16.msra.mxu0 0
  %318 = vmatprep.subr.bf16.mxu0 0
  %319 = vmatpush1.bf16.msra.mxu0 0
  %320 = vmatprep.subr.bf16.mxu0 0
  %321 = vmatpush1.bf16.msra.mxu0 0
  %322 = vmatprep.subr.bf16.mxu0 0
  %323 = vmatpush1.bf16.msra.mxu0 0
  %324 = vmatprep.subr.bf16.mxu0 0
  %325 = vmatpush1.bf16.msra.mxu0 0
  %326 = vmatprep.subr.bf16.mxu0 0
  %327 = vmatpush1.bf16.msra.mxu0 0
  %328 = vmatprep.mubr.bf16.mxu0 0
  %329 = vmatmul.mubr.bf16.gmra.mrb[0].mxu0 %v222
  %v330 = vpop.f32.mrb[0].mxu0
  %v331 = vadd.f32 0.0, %v330
  %v332 = vpop.f32.mrb[0].mxu0
  %v333 = vpop.f32.mrb[0].mxu0
  %v334 = vadd.f32 0.0, %v333
  %v335 = vpop.f32.mrb[0].mxu0
  %336 = vmatprep.mubr.bf16.mxu0 0
  %337 = vmatmul.mubr.bf16.gmra.mrb[0].mxu0 %v225
  %v338 = vpop.f32.mrb[0].mxu0
  %v339 = vadd.f32 0.0, %v338
  %v340 = vpop.f32.mrb[0].mxu0
  %v341 = vpop.f32.mrb[0].mxu0
  %v342 = vadd.f32 0.0, %v341
  %v343 = vpop.f32.mrb[0].mxu0
  %344 = vmatprep.mubr.bf16.mxu0 0
  %345 = vmatmul.mubr.bf16.gmra.mrb[0].mxu0 %v228
  %v346 = vpop.f32.mrb[0].mxu0
  %v347 = vadd.f32 0.0, %v346
  %v348 = vpop.f32.mrb[0].mxu0
  %v349 = vpop.f32.mrb[0].mxu0
  %v350 = vadd.f32 0.0, %v349
  %v351 = vpop.f32.mrb[0].mxu0
  %352 = vmatprep.mubr.bf16.mxu0 0
  %353 = vmatmul.mubr.bf16.gmra.mrb[0].mxu0 %v231
  %v354 = vpop.f32.mrb[0].mxu0
  %v355 = vadd.f32 0.0, %v354
  %v356 = vpop.f32.mrb[0].mxu0
  %v357 = vpop.f32.mrb[0].mxu0
  %v358 = vadd.f32 0.0, %v357
  %v359 = vpop.f32.mrb[0].mxu0
  %360 = vmatprep.mubr.bf16.mxu0 0
  %361 = vmatmul.mubr.bf16.gmra.mrb[0].mxu0 %v234
  %v362 = vpop.f32.mrb[0].mxu0
  %v363 = vadd.f32 0.0, %v362
  %v364 = vpop.f32.mrb[0].mxu0
  %v365 = vpop.f32.mrb[0].mxu0
  %v366 = vadd.f32 0.0, %v365
  %v367 = vpop.f32.mrb[0].mxu0
  %368 = vmatprep.mubr.bf16.mxu0 0
  %369 = vmatmul.mubr.bf16.gmra.mrb[0].mxu0 %v237
  %v370 = vpop.f32.mrb[0].mxu0
  %v371 = vadd.f32 0.0, %v370
  %v372 = vpop.f32.mrb[0].mxu0
  %v373 = vpop.f32.mrb[0].mxu0
  %v374 = vadd.f32 0.0, %v373
  %v375 = vpop.f32.mrb[0].mxu0
  %376 = vmatprep.mubr.bf16.mxu0 0
  %377 = vmatmul.mubr.bf16.gmra.mrb[0].mxu0 %v240
  %v378 = vpop.f32.mrb[0].mxu0
  %v379 = vadd.f32 0.0, %v378
  %v380 = vpop.f32.mrb[0].mxu0
  %v381 = vpop.f32.mrb[0].mxu0
  %v382 = vadd.f32 0.0, %v381
  %v383 = vpop.f32.mrb[0].mxu0
  %384 = vmatprep.mubr.bf16.mxu0 0
  %385 = vmatmul.mubr.bf16.gmra.mrb[0].mxu0 %v243
  %v386 = vpop.f32.mrb[0].mxu0
  %v387 = vadd.f32 0.0, %v386
  %v388 = vpop.f32.mrb[0].mxu0
  %v389 = vpop.f32.mrb[0].mxu0
  %v390 = vadd.f32 0.0, %v389
  %v391 = vpop.f32.mrb[0].mxu0
  %392 = vmatprep.mubr.bf16.mxu0 0
  %393 = vmatmul.mubr.bf16.gmra.mrb[0].mxu0 %v246
  %v394 = vpop.f32.mrb[0].mxu0
  %v395 = vadd.f32 0.0, %v394
  %v396 = vpop.f32.mrb[0].mxu0
  %v397 = vpop.f32.mrb[0].mxu0
  %v398 = vadd.f32 0.0, %v397
  %v399 = vpop.f32.mrb[0].mxu0
  %400 = vmatprep.mubr.bf16.mxu0 0
  %401 = vmatmul.mubr.bf16.gmra.mrb[0].mxu0 %v249
  %v402 = vpop.f32.mrb[0].mxu0
  %v403 = vadd.f32 0.0, %v402
  %v404 = vpop.f32.mrb[0].mxu0
  %v405 = vpop.f32.mrb[0].mxu0
  %v406 = vadd.f32 0.0, %v405
  %v407 = vpop.f32.mrb[0].mxu0
  %408 = vmatprep.mubr.bf16.mxu0 0
  %409 = vmatmul.mubr.bf16.gmra.mrb[0].mxu0 %v252
  %v410 = vpop.f32.mrb[0].mxu0
  %v411 = vadd.f32 0.0, %v410
  %v412 = vpop.f32.mrb[0].mxu0
  %v413 = vpop.f32.mrb[0].mxu0
  %v414 = vadd.f32 0.0, %v413
  %v415 = vpop.f32.mrb[0].mxu0
  %416 = vmatprep.mubr.bf16.mxu0 0
  %417 = vmatmul.mubr.bf16.gmra.mrb[0].mxu0 %v255
  %v418 = vpop.f32.mrb[0].mxu0
  %v419 = vadd.f32 0.0, %v418
  %v420 = vpop.f32.mrb[0].mxu0
  %v421 = vpop.f32.mrb[0].mxu0
  %v422 = vadd.f32 0.0, %v421
  %v423 = vpop.f32.mrb[0].mxu0
  %424 = vmatprep.mubr.bf16.mxu0 0
  %425 = vmatmul.mubr.bf16.gmra.mrb[0].mxu0 %v258
  %v426 = vpop.f32.mrb[0].mxu0
  %v427 = vadd.f32 0.0, %v426
  %v428 = vpop.f32.mrb[0].mxu0
  %v429 = vpop.f32.mrb[0].mxu0
  %v430 = vadd.f32 0.0, %v429
  %v431 = vpop.f32.mrb[0].mxu0
  %432 = vmatprep.mubr.bf16.mxu0 0
  %433 = vmatmul.mubr.bf16.gmra.mrb[0].mxu0 %v261
  %v434 = vpop.f32.mrb[0].mxu0
  %v435 = vadd.f32 0.0, %v434
  %v436 = vpop.f32.mrb[0].mxu0
  %v437 = vpop.f32.mrb[0].mxu0
  %v438 = vadd.f32 0.0, %v437
  %v439 = vpop.f32.mrb[0].mxu0
  %440 = vmatprep.mubr.bf16.mxu0 0
  %441 = vmatmul.mubr.bf16.gmra.mrb[0].mxu0 %v264
  %v442 = vpop.f32.mrb[0].mxu0
  %v443 = vadd.f32 0.0, %v442
  %v444 = vpop.f32.mrb[0].mxu0
  %v445 = vpop.f32.mrb[0].mxu0
  %v446 = vadd.f32 0.0, %v445
  %v447 = vpop.f32.mrb[0].mxu0
  %448 = vmatprep.mubr.bf16.mxu0 0
  %449 = vmatmul.mubr.bf16.gmra.mrb[0].mxu0 %v267
  %v450 = vpop.f32.mrb[0].mxu0
  %v451 = vadd.f32 0.0, %v450
  %v452 = vpop.f32.mrb[0].mxu0
  %v453 = vpop.f32.mrb[0].mxu0
  %v454 = vadd.f32 0.0, %v453
  %v455 = vpop.f32.mrb[0].mxu0
  %456 = vmatprep.mubr.bf16.mxu0 0
  %457 = vmatmul.mubr.bf16.gmra.mrb[0].mxu0 %v270
  %v458 = vpop.f32.mrb[0].mxu0
  %v459 = vadd.f32 0.0, %v458
  %v460 = vpop.f32.mrb[0].mxu0
  %v461 = vpop.f32.mrb[0].mxu0
  %v462 = vadd.f32 0.0, %v461
  %v463 = vpop.f32.mrb[0].mxu0
  %464 = vmatprep.mubr.bf16.mxu0 0
  %465 = vmatmul.mubr.bf16.gmra.mrb[0].mxu0 %v273
  %v466 = vpop.f32.mrb[0].mxu0
  %v467 = vadd.f32 0.0, %v466
  %v468 = vpop.f32.mrb[0].mxu0
  %v469 = vpop.f32.mrb[0].mxu0
  %v470 = vadd.f32 0.0, %v469
  %v471 = vpop.f32.mrb[0].mxu0
  %472 = vmatprep.mubr.bf16.mxu0 0
  %473 = vmatmul.mubr.bf16.gmra.mrb[0].mxu0 %v276
  %v474 = vpop.f32.mrb[0].mxu0
  %v475 = vadd.f32 0.0, %v474
  %v476 = vpop.f32.mrb[0].mxu0
  %v477 = vpop.f32.mrb[0].mxu0
  %v478 = vadd.f32 0.0, %v477
  %v479 = vpop.f32.mrb[0].mxu0
  %480 = vmatprep.mubr.bf16.mxu0 0
  %481 = vmatmul.mubr.bf16.gmra.mrb[0].mxu0 %v279
  %v482 = vpop.f32.mrb[0].mxu0
  %v483 = vadd.f32 0.0, %v482
  %v484 = vpop.f32.mrb[0].mxu0
  %v485 = vpop.f32.mrb[0].mxu0
  %v486 = vadd.f32 0.0, %v485
  %v487 = vpop.f32.mrb[0].mxu0
  %488 = vmatprep.mubr.bf16.mxu0 0
  %489 = vmatmul.mubr.bf16.gmra.mrb[0].mxu0 %v282
  %v490 = vpop.f32.mrb[0].mxu0
  %v491 = vadd.f32 0.0, %v490
  %v492 = vpop.f32.mrb[0].mxu0
  %v493 = vpop.f32.mrb[0].mxu0
  %v494 = vadd.f32 0.0, %v493
  %v495 = vpop.f32.mrb[0].mxu0
  %496 = vmatprep.mubr.bf16.mxu0 0
  %497 = vmatmul.mubr.bf16.gmra.mrb[0].mxu0 %v285
  %v498 = vpop.f32.mrb[0].mxu0
  %v499 = vadd.f32 0.0, %v498
  %v500 = vpop.f32.mrb[0].mxu0
  %v501 = vpop.f32.mrb[0].mxu0
  %v502 = vadd.f32 0.0, %v501
  %v503 = vpop.f32.mrb[0].mxu0
  %504 = vmatprep.mubr.bf16.mxu0 0
  %505 = vmatmul.mubr.bf16.gmra.mrb[0].mxu0 %v288
  %v506 = vpop.f32.mrb[0].mxu0
  %v507 = vadd.f32 0.0, %v506
  %v508 = vpop.f32.mrb[0].mxu0
  %v509 = vpop.f32.mrb[0].mxu0
  %v510 = vadd.f32 0.0, %v509
  %v511 = vpop.f32.mrb[0].mxu0
  %512 = vmatprep.mubr.bf16.mxu0 0
  %513 = vmatmul.mubr.bf16.gmra.mrb[0].mxu0 %v291
  %v514 = vpop.f32.mrb[0].mxu0
  %v515 = vadd.f32 0.0, %v514
  %v516 = vpop.f32.mrb[0].mxu0
  %v517 = vpop.f32.mrb[0].mxu0
  %v518 = vadd.f32 0.0, %v517
  %v519 = vpop.f32.mrb[0].mxu0
  %520 = vmatprep.mubr.bf16.mxu0 0
  %521 = vmatmul.mubr.bf16.gmra.mrb[0].mxu0 %v294
  %v522 = vpop.f32.mrb[0].mxu0
  %v523 = vadd.f32 0.0, %v522
  %v524 = vpop.f32.mrb[0].mxu0
  %v525 = vpop.f32.mrb[0].mxu0
  %v526 = vadd.f32 0.0, %v525
  %v527 = vpop.f32.mrb[0].mxu0
  %528 = vdwg.mxu0
  %v530 = vlaneseq
  %v531 = vshrl.u32 %v530, 7
  %v532 = vsub.s32 0, %v531
  %v533 = vrot.slane %v31, %v532
  %v535 = vmul.f32 %v331, %v533
  %v536 = vmul.f32 %v334, %v533
  %v537 = vmul.f32 %v339, %v533
  %v538 = vmul.f32 %v342, %v533
  %v539 = vmul.f32 %v347, %v533
  %v540 = vmul.f32 %v350, %v533
  %v541 = vmul.f32 %v355, %v533
  %v542 = vmul.f32 %v358, %v533
  %v543 = vmul.f32 %v363, %v533
  %v544 = vmul.f32 %v366, %v533
  %v545 = vmul.f32 %v371, %v533
  %v546 = vmul.f32 %v374, %v533
  %v547 = vmul.f32 %v379, %v533
  %v548 = vmul.f32 %v382, %v533
  %v549 = vmul.f32 %v387, %v533
  %v550 = vmul.f32 %v390, %v533
  %v551 = vmul.f32 %v395, %v533
  %v552 = vmul.f32 %v398, %v533
  %v553 = vmul.f32 %v403, %v533
  %v554 = vmul.f32 %v406, %v533
  %v555 = vmul.f32 %v411, %v533
  %v556 = vmul.f32 %v414, %v533
  %v557 = vmul.f32 %v419, %v533
  %v558 = vmul.f32 %v422, %v533
  %v559 = vmul.f32 %v427, %v533
  %v560 = vmul.f32 %v430, %v533
  %v561 = vmul.f32 %v435, %v533
  %v562 = vmul.f32 %v438, %v533
  %v563 = vmul.f32 %v443, %v533
  %v564 = vmul.f32 %v446, %v533
  %v565 = vmul.f32 %v451, %v533
  %v566 = vmul.f32 %v454, %v533
  %v567 = vmul.f32 %v459, %v533
  %v568 = vmul.f32 %v462, %v533
  %v569 = vmul.f32 %v467, %v533
  %v570 = vmul.f32 %v470, %v533
  %v571 = vmul.f32 %v475, %v533
  %v572 = vmul.f32 %v478, %v533
  %v573 = vmul.f32 %v483, %v533
  %v574 = vmul.f32 %v486, %v533
  %v575 = vmul.f32 %v491, %v533
  %v576 = vmul.f32 %v494, %v533
  %v577 = vmul.f32 %v499, %v533
  %v578 = vmul.f32 %v502, %v533
  %v579 = vmul.f32 %v507, %v533
  %v580 = vmul.f32 %v510, %v533
  %v581 = vmul.f32 %v515, %v533
  %v582 = vmul.f32 %v518, %v533
  %v583 = vmul.f32 %v523, %v533
  %v584 = vmul.f32 %v526, %v533
  %v586 = vlaneseq
  %v587 = vshrl.u32 %v586, 7
  %v588 = vsub.s32 0, %v587
  %v589 = vrot.slane %v32, %v588
  %v591 = vadd.f32 %v535, %v589
  %v592 = vadd.f32 %v536, %v589
  %v593 = vadd.f32 %v537, %v589
  %v594 = vadd.f32 %v538, %v589
  %v595 = vadd.f32 %v539, %v589
  %v596 = vadd.f32 %v540, %v589
  %v597 = vadd.f32 %v541, %v589
  %v598 = vadd.f32 %v542, %v589
  %v599 = vadd.f32 %v543, %v589
  %v600 = vadd.f32 %v544, %v589
  %v601 = vadd.f32 %v545, %v589
  %v602 = vadd.f32 %v546, %v589
  %v603 = vadd.f32 %v547, %v589
  %v604 = vadd.f32 %v548, %v589
  %v605 = vadd.f32 %v549, %v589
  %v606 = vadd.f32 %v550, %v589
  %v607 = vadd.f32 %v551, %v589
  %v608 = vadd.f32 %v552, %v589
  %v609 = vadd.f32 %v553, %v589
  %v610 = vadd.f32 %v554, %v589
  %v611 = vadd.f32 %v555, %v589
  %v612 = vadd.f32 %v556, %v589
  %v613 = vadd.f32 %v557, %v589
  %v614 = vadd.f32 %v558, %v589
  %v615 = vadd.f32 %v559, %v589
  %v616 = vadd.f32 %v560, %v589
  %v617 = vadd.f32 %v561, %v589
  %v618 = vadd.f32 %v562, %v589
  %v619 = vadd.f32 %v563, %v589
  %v620 = vadd.f32 %v564, %v589
  %v621 = vadd.f32 %v565, %v589
  %v622 = vadd.f32 %v566, %v589
  %v623 = vadd.f32 %v567, %v589
  %v624 = vadd.f32 %v568, %v589
  %v625 = vadd.f32 %v569, %v589
  %v626 = vadd.f32 %v570, %v589
  %v627 = vadd.f32 %v571, %v589
  %v628 = vadd.f32 %v572, %v589
  %v629 = vadd.f32 %v573, %v589
  %v630 = vadd.f32 %v574, %v589
  %v631 = vadd.f32 %v575, %v589
  %v632 = vadd.f32 %v576, %v589
  %v633 = vadd.f32 %v577, %v589
  %v634 = vadd.f32 %v578, %v589
  %v635 = vadd.f32 %v579, %v589
  %v636 = vadd.f32 %v580, %v589
  %v637 = vadd.f32 %v581, %v589
  %v638 = vadd.f32 %v582, %v589
  %v639 = vadd.f32 %v583, %v589
  %v640 = vadd.f32 %v584, %v589
  %v641 = vld [vmem:[%s1] sm:$0xf]
  %v642 = vld [vmem:[%s1 + $0x4] sm:$0xf]
  %v643 = vld [vmem:[%s1 + $0x8] sm:$0xf]
  %v644 = vld [vmem:[%s1 + $0xc] sm:$0xf]
  %v645 = vld [vmem:[%s1 + $0x10] sm:$0xf]
  %v646 = vld [vmem:[%s1 + $0x14] sm:$0xf]
  %v647 = vld [vmem:[%s1 + $0x18] sm:$0xf]
  %v648 = vld [vmem:[%s1 + $0x1c] sm:$0xf]
  %v649 = vld [vmem:[%s1 + $0x20] sm:$0xf]
  %v650 = vld [vmem:[%s1 + $0x24] sm:$0xf]
  %v651 = vld [vmem:[%s1 + $0x28] sm:$0xf]
  %v652 = vld [vmem:[%s1 + $0x2c] sm:$0xf]
  %v653 = vld [vmem:[%s1 + $0x30] sm:$0xf]
  %v654 = vld [vmem:[%s1 + $0x34] sm:$0xf]
  %v655 = vld [vmem:[%s1 + $0x38] sm:$0xf]
  %v656 = vld [vmem:[%s1 + $0x3c] sm:$0xf]
  %v657 = vld [vmem:[%s1 + $0x40] sm:$0xf]
  %v658 = vld [vmem:[%s1 + $0x44] sm:$0xf]
  %v659 = vld [vmem:[%s1 + $0x48] sm:$0xf]
  %v660 = vld [vmem:[%s1 + $0x4c] sm:$0xf]
  %v661 = vld [vmem:[%s1 + $0x50] sm:$0xf]
  %v662 = vld [vmem:[%s1 + $0x54] sm:$0xf]
  %v663 = vld [vmem:[%s1 + $0x58] sm:$0xf]
  %v664 = vld [vmem:[%s1 + $0x5c] sm:$0xf]
  %v665 = vld [vmem:[%s1 + $0x60] sm:$0xf]
  %v666 = vld [vmem:[%s1 + $0x64] sm:$0xf]
  %v667 = vld [vmem:[%s1 + $0x68] sm:$0xf]
  %v668 = vld [vmem:[%s1 + $0x6c] sm:$0xf]
  %v669 = vld [vmem:[%s1 + $0x70] sm:$0xf]
  %v670 = vld [vmem:[%s1 + $0x74] sm:$0xf]
  %v671 = vld [vmem:[%s1 + $0x78] sm:$0xf]
  %v672 = vld [vmem:[%s1 + $0x7c] sm:$0xf]
  %v673 = vld [vmem:[%s1 + $0x80] sm:$0xf]
  %v674 = vld [vmem:[%s1 + $0x84] sm:$0xf]
  %v675 = vld [vmem:[%s1 + $0x88] sm:$0xf]
  %v676 = vld [vmem:[%s1 + $0x8c] sm:$0xf]
  %v677 = vld [vmem:[%s1 + $0x90] sm:$0xf]
  %v678 = vld [vmem:[%s1 + $0x94] sm:$0xf]
  %v679 = vld [vmem:[%s1 + $0x98] sm:$0xf]
  %v680 = vld [vmem:[%s1 + $0x9c] sm:$0xf]
  %v681 = vld [vmem:[%s1 + $0xa0] sm:$0xf]
  %v682 = vld [vmem:[%s1 + $0xa4] sm:$0xf]
  %v683 = vld [vmem:[%s1 + $0xa8] sm:$0xf]
  %v684 = vld [vmem:[%s1 + $0xac] sm:$0xf]
  %v685 = vld [vmem:[%s1 + $0xb0] sm:$0xf]
  %v686 = vld [vmem:[%s1 + $0xb4] sm:$0xf]
  %v687 = vld [vmem:[%s1 + $0xb8] sm:$0xf]
  %v688 = vld [vmem:[%s1 + $0xbc] sm:$0xf]
  %v689 = vld [vmem:[%s1 + $0xc0] sm:$0xf]
  %v690 = vld [vmem:[%s1 + $0xc4] sm:$0xf]
  %v741 = vunpack.c.l.b16 %v641
  %v742 = vunpack.c.l.b16 %v642
  %v743 = vunpack.c.l.b16 %v643
  %v744 = vunpack.c.l.b16 %v644
  %v745 = vunpack.c.l.b16 %v645
  %v746 = vunpack.c.l.b16 %v646
  %v747 = vunpack.c.l.b16 %v647
  %v748 = vunpack.c.l.b16 %v648
  %v749 = vunpack.c.l.b16 %v649
  %v750 = vunpack.c.l.b16 %v650
  %v751 = vunpack.c.l.b16 %v651
  %v752 = vunpack.c.l.b16 %v652
  %v753 = vunpack.c.l.b16 %v653
  %v754 = vunpack.c.l.b16 %v654
  %v755 = vunpack.c.l.b16 %v655
  %v756 = vunpack.c.l.b16 %v656
  %v757 = vunpack.c.l.b16 %v657
  %v758 = vunpack.c.l.b16 %v658
  %v759 = vunpack.c.l.b16 %v659
  %v760 = vunpack.c.l.b16 %v660
  %v761 = vunpack.c.l.b16 %v661
  %v762 = vunpack.c.l.b16 %v662
  %v763 = vunpack.c.l.b16 %v663
  %v764 = vunpack.c.l.b16 %v664
  %v765 = vunpack.c.l.b16 %v665
  %v766 = vunpack.c.l.b16 %v666
  %v767 = vunpack.c.l.b16 %v667
  %v768 = vunpack.c.l.b16 %v668
  %v769 = vunpack.c.l.b16 %v669
  %v770 = vunpack.c.l.b16 %v670
  %v771 = vunpack.c.l.b16 %v671
  %v772 = vunpack.c.l.b16 %v672
  %v773 = vunpack.c.l.b16 %v673
  %v774 = vunpack.c.l.b16 %v674
  %v775 = vunpack.c.l.b16 %v675
  %v776 = vunpack.c.l.b16 %v676
  %v777 = vunpack.c.l.b16 %v677
  %v778 = vunpack.c.l.b16 %v678
  %v779 = vunpack.c.l.b16 %v679
  %v780 = vunpack.c.l.b16 %v680
  %v781 = vunpack.c.l.b16 %v681
  %v782 = vunpack.c.l.b16 %v682
  %v783 = vunpack.c.l.b16 %v683
  %v784 = vunpack.c.l.b16 %v684
  %v785 = vunpack.c.l.b16 %v685
  %v786 = vunpack.c.l.b16 %v686
  %v787 = vunpack.c.l.b16 %v687
  %v788 = vunpack.c.l.b16 %v688
  %v789 = vunpack.c.l.b16 %v689
  %v790 = vunpack.c.l.b16 %v690
  %v791 = vpack.c.b16 %v742, %v741
  %v792 = vpack.c.b16 %v744, %v743
  %v793 = vpack.c.b16 %v746, %v745
  %v794 = vpack.c.b16 %v748, %v747
  %v795 = vpack.c.b16 %v750, %v749
  %v796 = vpack.c.b16 %v752, %v751
  %v797 = vpack.c.b16 %v754, %v753
  %v798 = vpack.c.b16 %v756, %v755
  %v799 = vpack.c.b16 %v758, %v757
  %v800 = vpack.c.b16 %v760, %v759
  %v801 = vpack.c.b16 %v762, %v761
  %v802 = vpack.c.b16 %v764, %v763
  %v803 = vpack.c.b16 %v766, %v765
  %v804 = vpack.c.b16 %v768, %v767
  %v805 = vpack.c.b16 %v770, %v769
  %v806 = vpack.c.b16 %v772, %v771
  %v807 = vpack.c.b16 %v774, %v773
  %v808 = vpack.c.b16 %v776, %v775
  %v809 = vpack.c.b16 %v778, %v777
  %v810 = vpack.c.b16 %v780, %v779
  %v811 = vpack.c.b16 %v782, %v781
  %v812 = vpack.c.b16 %v784, %v783
  %v813 = vpack.c.b16 %v786, %v785
  %v814 = vpack.c.b16 %v788, %v787
  %v815 = vpack.c.b16 %v790, %v789
  %v817 = vsel %vm220, %v791, 0
  %v820 = vsel %vm220, %v792, 0
  %v823 = vsel %vm220, %v793, 0
  %v826 = vsel %vm220, %v794, 0
  %v829 = vsel %vm220, %v795, 0
  %v832 = vsel %vm220, %v796, 0
  %v835 = vsel %vm220, %v797, 0
  %v838 = vsel %vm220, %v798, 0
  %v841 = vsel %vm220, %v799, 0
  %v844 = vsel %vm220, %v800, 0
  %v847 = vsel %vm220, %v801, 0
  %v850 = vsel %vm220, %v802, 0
  %v853 = vsel %vm220, %v803, 0
  %v856 = vsel %vm220, %v804, 0
  %v859 = vsel %vm220, %v805, 0
  %v862 = vsel %vm220, %v806, 0
  %v865 = vsel %vm220, %v807, 0
  %v868 = vsel %vm220, %v808, 0
  %v871 = vsel %vm220, %v809, 0
  %v874 = vsel %vm220, %v810, 0
  %v877 = vsel %vm220, %v811, 0
  %v880 = vsel %vm220, %v812, 0
  %v883 = vsel %vm220, %v813, 0
  %v886 = vsel %vm220, %v814, 0
  %v889 = vsel %vm220, %v815, 0
  %891 = vmatprep.subr.bf16.mxu0 0
  %892 = vmatpush1.bf16.msra.mxu0 %v216
  %893 = vmatprep.subr.bf16.mxu0 0
  %894 = vmatpush1.bf16.msra.mxu0 %v217
  %895 = vmatprep.subr.bf16.mxu0 0
  %896 = vmatpush1.bf16.msra.mxu0 0
  %897 = vmatprep.subr.bf16.mxu0 0
  %898 = vmatpush1.bf16.msra.mxu0 0
  %899 = vmatprep.subr.bf16.mxu0 0
  %900 = vmatpush1.bf16.msra.mxu0 0
  %901 = vmatprep.subr.bf16.mxu0 0
  %902 = vmatpush1.bf16.msra.mxu0 0
  %903 = vmatprep.subr.bf16.mxu0 0
  %904 = vmatpush1.bf16.msra.mxu0 0
  %905 = vmatprep.subr.bf16.mxu0 0
  %906 = vmatpush1.bf16.msra.mxu0 0
  %907 = vmatprep.subr.bf16.mxu0 0
  %908 = vmatpush1.bf16.msra.mxu0 0
  %909 = vmatprep.subr.bf16.mxu0 0
  %910 = vmatpush1.bf16.msra.mxu0 0
  %911 = vmatprep.subr.bf16.mxu0 0
  %912 = vmatpush1.bf16.msra.mxu0 0
  %913 = vmatprep.subr.bf16.mxu0 0
  %914 = vmatpush1.bf16.msra.mxu0 0
  %915 = vmatprep.subr.bf16.mxu0 0
  %916 = vmatpush1.bf16.msra.mxu0 0
  %917 = vmatprep.subr.bf16.mxu0 0
  %918 = vmatpush1.bf16.msra.mxu0 0
  %919 = vmatprep.subr.bf16.mxu0 0
  %920 = vmatpush1.bf16.msra.mxu0 0
  %921 = vmatprep.subr.bf16.mxu0 0
  %922 = vmatpush1.bf16.msra.mxu0 0
  %923 = vmatprep.mubr.bf16.mxu0 0
  %924 = vmatmul.mubr.bf16.gmra.mrb[0].mxu0 %v817
  %v925 = vpop.f32.mrb[0].mxu0
  %v926 = vadd.f32 0.0, %v925
  %v927 = vpop.f32.mrb[0].mxu0
  %v928 = vpop.f32.mrb[0].mxu0
  %v929 = vadd.f32 0.0, %v928
  %v930 = vpop.f32.mrb[0].mxu0
  %931 = vmatprep.mubr.bf16.mxu0 0
  %932 = vmatmul.mubr.bf16.gmra.mrb[0].mxu0 %v820
  %v933 = vpop.f32.mrb[0].mxu0
  %v934 = vadd.f32 0.0, %v933
  %v935 = vpop.f32.mrb[0].mxu0
  %v936 = vpop.f32.mrb[0].mxu0
  %v937 = vadd.f32 0.0, %v936
  %v938 = vpop.f32.mrb[0].mxu0
  %939 = vmatprep.mubr.bf16.mxu0 0
  %940 = vmatmul.mubr.bf16.gmra.mrb[0].mxu0 %v823
  %v941 = vpop.f32.mrb[0].mxu0
  %v942 = vadd.f32 0.0, %v941
  %v943 = vpop.f32.mrb[0].mxu0
  %v944 = vpop.f32.mrb[0].mxu0
  %v945 = vadd.f32 0.0, %v944
  %v946 = vpop.f32.mrb[0].mxu0
  %947 = vmatprep.mubr.bf16.mxu0 0
  %948 = vmatmul.mubr.bf16.gmra.mrb[0].mxu0 %v826
  %v949 = vpop.f32.mrb[0].mxu0
  %v950 = vadd.f32 0.0, %v949
  %v951 = vpop.f32.mrb[0].mxu0
  %v952 = vpop.f32.mrb[0].mxu0
  %v953 = vadd.f32 0.0, %v952
  %v954 = vpop.f32.mrb[0].mxu0
  %955 = vmatprep.mubr.bf16.mxu0 0
  %956 = vmatmul.mubr.bf16.gmra.mrb[0].mxu0 %v829
  %v957 = vpop.f32.mrb[0].mxu0
  %v958 = vadd.f32 0.0, %v957
  %v959 = vpop.f32.mrb[0].mxu0
  %v960 = vpop.f32.mrb[0].mxu0
  %v961 = vadd.f32 0.0, %v960
  %v962 = vpop.f32.mrb[0].mxu0
  %963 = vmatprep.mubr.bf16.mxu0 0
  %964 = vmatmul.mubr.bf16.gmra.mrb[0].mxu0 %v832
  %v965 = vpop.f32.mrb[0].mxu0
  %v966 = vadd.f32 0.0, %v965
  %v967 = vpop.f32.mrb[0].mxu0
  %v968 = vpop.f32.mrb[0].mxu0
  %v969 = vadd.f32 0.0, %v968
  %v970 = vpop.f32.mrb[0].mxu0
  %971 = vmatprep.mubr.bf16.mxu0 0
  %972 = vmatmul.mubr.bf16.gmra.mrb[0].mxu0 %v835
  %v973 = vpop.f32.mrb[0].mxu0
  %v974 = vadd.f32 0.0, %v973
  %v975 = vpop.f32.mrb[0].mxu0
  %v976 = vpop.f32.mrb[0].mxu0
  %v977 = vadd.f32 0.0, %v976
  %v978 = vpop.f32.mrb[0].mxu0
  %979 = vmatprep.mubr.bf16.mxu0 0
  %980 = vmatmul.mubr.bf16.gmra.mrb[0].mxu0 %v838
  %v981 = vpop.f32.mrb[0].mxu0
  %v982 = vadd.f32 0.0, %v981
  %v983 = vpop.f32.mrb[0].mxu0
  %v984 = vpop.f32.mrb[0].mxu0
  %v985 = vadd.f32 0.0, %v984
  %v986 = vpop.f32.mrb[0].mxu0
  %987 = vmatprep.mubr.bf16.mxu0 0
  %988 = vmatmul.mubr.bf16.gmra.mrb[0].mxu0 %v841
  %v989 = vpop.f32.mrb[0].mxu0
  %v990 = vadd.f32 0.0, %v989
  %v991 = vpop.f32.mrb[0].mxu0
  %v992 = vpop.f32.mrb[0].mxu0
  %v993 = vadd.f32 0.0, %v992
  %v994 = vpop.f32.mrb[0].mxu0
  %995 = vmatprep.mubr.bf16.mxu0 0
  %996 = vmatmul.mubr.bf16.gmra.mrb[0].mxu0 %v844
  %v997 = vpop.f32.mrb[0].mxu0
  %v998 = vadd.f32 0.0, %v997
  %v999 = vpop.f32.mrb[0].mxu0
  %v1000 = vpop.f32.mrb[0].mxu0
  %v1001 = vadd.f32 0.0, %v1000
  %v1002 = vpop.f32.mrb[0].mxu0
  %1003 = vmatprep.mubr.bf16.mxu0 0
  %1004 = vmatmul.mubr.bf16.gmra.mrb[0].mxu0 %v847
  %v1005 = vpop.f32.mrb[0].mxu0
  %v1006 = vadd.f32 0.0, %v1005
  %v1007 = vpop.f32.mrb[0].mxu0
  %v1008 = vpop.f32.mrb[0].mxu0
  %v1009 = vadd.f32 0.0, %v1008
  %v1010 = vpop.f32.mrb[0].mxu0
  %1011 = vmatprep.mubr.bf16.mxu0 0
  %1012 = vmatmul.mubr.bf16.gmra.mrb[0].mxu0 %v850
  %v1013 = vpop.f32.mrb[0].mxu0
  %v1014 = vadd.f32 0.0, %v1013
  %v1015 = vpop.f32.mrb[0].mxu0
  %v1016 = vpop.f32.mrb[0].mxu0
  %v1017 = vadd.f32 0.0, %v1016
  %v1018 = vpop.f32.mrb[0].mxu0
  %1019 = vmatprep.mubr.bf16.mxu0 0
  %1020 = vmatmul.mubr.bf16.gmra.mrb[0].mxu0 %v853
  %v1021 = vpop.f32.mrb[0].mxu0
  %v1022 = vadd.f32 0.0, %v1021
  %v1023 = vpop.f32.mrb[0].mxu0
  %v1024 = vpop.f32.mrb[0].mxu0
  %v1025 = vadd.f32 0.0, %v1024
  %v1026 = vpop.f32.mrb[0].mxu0
  %1027 = vmatprep.mubr.bf16.mxu0 0
  %1028 = vmatmul.mubr.bf16.gmra.mrb[0].mxu0 %v856
  %v1029 = vpop.f32.mrb[0].mxu0
  %v1030 = vadd.f32 0.0, %v1029
  %v1031 = vpop.f32.mrb[0].mxu0
  %v1032 = vpop.f32.mrb[0].mxu0
  %v1033 = vadd.f32 0.0, %v1032
  %v1034 = vpop.f32.mrb[0].mxu0
  %1035 = vmatprep.mubr.bf16.mxu0 0
  %1036 = vmatmul.mubr.bf16.gmra.mrb[0].mxu0 %v859
  %v1037 = vpop.f32.mrb[0].mxu0
  %v1038 = vadd.f32 0.0, %v1037
  %v1039 = vpop.f32.mrb[0].mxu0
  %v1040 = vpop.f32.mrb[0].mxu0
  %v1041 = vadd.f32 0.0, %v1040
  %v1042 = vpop.f32.mrb[0].mxu0
  %1043 = vmatprep.mubr.bf16.mxu0 0
  %1044 = vmatmul.mubr.bf16.gmra.mrb[0].mxu0 %v862
  %v1045 = vpop.f32.mrb[0].mxu0
  %v1046 = vadd.f32 0.0, %v1045
  %v1047 = vpop.f32.mrb[0].mxu0
  %v1048 = vpop.f32.mrb[0].mxu0
  %v1049 = vadd.f32 0.0, %v1048
  %v1050 = vpop.f32.mrb[0].mxu0
  %1051 = vmatprep.mubr.bf16.mxu0 0
  %1052 = vmatmul.mubr.bf16.gmra.mrb[0].mxu0 %v865
  %v1053 = vpop.f32.mrb[0].mxu0
  %v1054 = vadd.f32 0.0, %v1053
  %v1055 = vpop.f32.mrb[0].mxu0
  %v1056 = vpop.f32.mrb[0].mxu0
  %v1057 = vadd.f32 0.0, %v1056
  %v1058 = vpop.f32.mrb[0].mxu0
  %1059 = vmatprep.mubr.bf16.mxu0 0
  %1060 = vmatmul.mubr.bf16.gmra.mrb[0].mxu0 %v868
  %v1061 = vpop.f32.mrb[0].mxu0
  %v1062 = vadd.f32 0.0, %v1061
  %v1063 = vpop.f32.mrb[0].mxu0
  %v1064 = vpop.f32.mrb[0].mxu0
  %v1065 = vadd.f32 0.0, %v1064
  %v1066 = vpop.f32.mrb[0].mxu0
  %1067 = vmatprep.mubr.bf16.mxu0 0
  %1068 = vmatmul.mubr.bf16.gmra.mrb[0].mxu0 %v871
  %v1069 = vpop.f32.mrb[0].mxu0
  %v1070 = vadd.f32 0.0, %v1069
  %v1071 = vpop.f32.mrb[0].mxu0
  %v1072 = vpop.f32.mrb[0].mxu0
  %v1073 = vadd.f32 0.0, %v1072
  %v1074 = vpop.f32.mrb[0].mxu0
  %1075 = vmatprep.mubr.bf16.mxu0 0
  %1076 = vmatmul.mubr.bf16.gmra.mrb[0].mxu0 %v874
  %v1077 = vpop.f32.mrb[0].mxu0
  %v1078 = vadd.f32 0.0, %v1077
  %v1079 = vpop.f32.mrb[0].mxu0
  %v1080 = vpop.f32.mrb[0].mxu0
  %v1081 = vadd.f32 0.0, %v1080
  %v1082 = vpop.f32.mrb[0].mxu0
  %1083 = vmatprep.mubr.bf16.mxu0 0
  %1084 = vmatmul.mubr.bf16.gmra.mrb[0].mxu0 %v877
  %v1085 = vpop.f32.mrb[0].mxu0
  %v1086 = vadd.f32 0.0, %v1085
  %v1087 = vpop.f32.mrb[0].mxu0
  %v1088 = vpop.f32.mrb[0].mxu0
  %v1089 = vadd.f32 0.0, %v1088
  %v1090 = vpop.f32.mrb[0].mxu0
  %1091 = vmatprep.mubr.bf16.mxu0 0
  %1092 = vmatmul.mubr.bf16.gmra.mrb[0].mxu0 %v880
  %v1093 = vpop.f32.mrb[0].mxu0
  %v1094 = vadd.f32 0.0, %v1093
  %v1095 = vpop.f32.mrb[0].mxu0
  %v1096 = vpop.f32.mrb[0].mxu0
  %v1097 = vadd.f32 0.0, %v1096
  %v1098 = vpop.f32.mrb[0].mxu0
  %1099 = vmatprep.mubr.bf16.mxu0 0
  %1100 = vmatmul.mubr.bf16.gmra.mrb[0].mxu0 %v883
  %v1101 = vpop.f32.mrb[0].mxu0
  %v1102 = vadd.f32 0.0, %v1101
  %v1103 = vpop.f32.mrb[0].mxu0
  %v1104 = vpop.f32.mrb[0].mxu0
  %v1105 = vadd.f32 0.0, %v1104
  %v1106 = vpop.f32.mrb[0].mxu0
  %1107 = vmatprep.mubr.bf16.mxu0 0
  %1108 = vmatmul.mubr.bf16.gmra.mrb[0].mxu0 %v886
  %v1109 = vpop.f32.mrb[0].mxu0
  %v1110 = vadd.f32 0.0, %v1109
  %v1111 = vpop.f32.mrb[0].mxu0
  %v1112 = vpop.f32.mrb[0].mxu0
  %v1113 = vadd.f32 0.0, %v1112
  %v1114 = vpop.f32.mrb[0].mxu0
  %1115 = vmatprep.mubr.bf16.mxu0 0
  %1116 = vmatmul.mubr.bf16.gmra.mrb[0].mxu0 %v889
  %v1117 = vpop.f32.mrb[0].mxu0
  %v1118 = vadd.f32 0.0, %v1117
  %v1119 = vpop.f32.mrb[0].mxu0
  %v1120 = vpop.f32.mrb[0].mxu0
  %v1121 = vadd.f32 0.0, %v1120
  %v1122 = vpop.f32.mrb[0].mxu0
  %1123 = vdwg.mxu0
  %v1124 = vmul.f32 %v926, %v533
  %v1125 = vmul.f32 %v929, %v533
  %v1126 = vmul.f32 %v934, %v533
  %v1127 = vmul.f32 %v937, %v533
  %v1128 = vmul.f32 %v942, %v533
  %v1129 = vmul.f32 %v945, %v533
  %v1130 = vmul.f32 %v950, %v533
  %v1131 = vmul.f32 %v953, %v533
  %v1132 = vmul.f32 %v958, %v533
  %v1133 = vmul.f32 %v961, %v533
  %v1134 = vmul.f32 %v966, %v533
  %v1135 = vmul.f32 %v969, %v533
  %v1136 = vmul.f32 %v974, %v533
  %v1137 = vmul.f32 %v977, %v533
  %v1138 = vmul.f32 %v982, %v533
  %v1139 = vmul.f32 %v985, %v533
  %v1140 = vmul.f32 %v990, %v533
  %v1141 = vmul.f32 %v993, %v533
  %v1142 = vmul.f32 %v998, %v533
  %v1143 = vmul.f32 %v1001, %v533
  %v1144 = vmul.f32 %v1006, %v533
  %v1145 = vmul.f32 %v1009, %v533
  %v1146 = vmul.f32 %v1014, %v533
  %v1147 = vmul.f32 %v1017, %v533
  %v1148 = vmul.f32 %v1022, %v533
  %v1149 = vmul.f32 %v1025, %v533
  %v1150 = vmul.f32 %v1030, %v533
  %v1151 = vmul.f32 %v1033, %v533
  %v1152 = vmul.f32 %v1038, %v533
  %v1153 = vmul.f32 %v1041, %v533
  %v1154 = vmul.f32 %v1046, %v533
  %v1155 = vmul.f32 %v1049, %v533
  %v1156 = vmul.f32 %v1054, %v533
  %v1157 = vmul.f32 %v1057, %v533
  %v1158 = vmul.f32 %v1062, %v533
  %v1159 = vmul.f32 %v1065, %v533
  %v1160 = vmul.f32 %v1070, %v533
  %v1161 = vmul.f32 %v1073, %v533
  %v1162 = vmul.f32 %v1078, %v533
  %v1163 = vmul.f32 %v1081, %v533
  %v1164 = vmul.f32 %v1086, %v533
  %v1165 = vmul.f32 %v1089, %v533
  %v1166 = vmul.f32 %v1094, %v533
  %v1167 = vmul.f32 %v1097, %v533
  %v1168 = vmul.f32 %v1102, %v533
  %v1169 = vmul.f32 %v1105, %v533
  %v1170 = vmul.f32 %v1110, %v533
  %v1171 = vmul.f32 %v1113, %v533
  %v1172 = vmul.f32 %v1118, %v533
  %v1173 = vmul.f32 %v1121, %v533
  %v1174 = vadd.f32 %v1124, %v589
  %v1175 = vadd.f32 %v1125, %v589
  %v1176 = vadd.f32 %v1126, %v589
  %v1177 = vadd.f32 %v1127, %v589
  %v1178 = vadd.f32 %v1128, %v589
  %v1179 = vadd.f32 %v1129, %v589
  %v1180 = vadd.f32 %v1130, %v589
  %v1181 = vadd.f32 %v1131, %v589
  %v1182 = vadd.f32 %v1132, %v589
  %v1183 = vadd.f32 %v1133, %v589
  %v1184 = vadd.f32 %v1134, %v589
  %v1185 = vadd.f32 %v1135, %v589
  %v1186 = vadd.f32 %v1136, %v589
  %v1187 = vadd.f32 %v1137, %v589
  %v1188 = vadd.f32 %v1138, %v589
  %v1189 = vadd.f32 %v1139, %v589
  %v1190 = vadd.f32 %v1140, %v589
  %v1191 = vadd.f32 %v1141, %v589
  %v1192 = vadd.f32 %v1142, %v589
  %v1193 = vadd.f32 %v1143, %v589
  %v1194 = vadd.f32 %v1144, %v589
  %v1195 = vadd.f32 %v1145, %v589
  %v1196 = vadd.f32 %v1146, %v589
  %v1197 = vadd.f32 %v1147, %v589
  %v1198 = vadd.f32 %v1148, %v589
  %v1199 = vadd.f32 %v1149, %v589
  %v1200 = vadd.f32 %v1150, %v589
  %v1201 = vadd.f32 %v1151, %v589
  %v1202 = vadd.f32 %v1152, %v589
  %v1203 = vadd.f32 %v1153, %v589
  %v1204 = vadd.f32 %v1154, %v589
  %v1205 = vadd.f32 %v1155, %v589
  %v1206 = vadd.f32 %v1156, %v589
  %v1207 = vadd.f32 %v1157, %v589
  %v1208 = vadd.f32 %v1158, %v589
  %v1209 = vadd.f32 %v1159, %v589
  %v1210 = vadd.f32 %v1160, %v589
  %v1211 = vadd.f32 %v1161, %v589
  %v1212 = vadd.f32 %v1162, %v589
  %v1213 = vadd.f32 %v1163, %v589
  %v1214 = vadd.f32 %v1164, %v589
  %v1215 = vadd.f32 %v1165, %v589
  %v1216 = vadd.f32 %v1166, %v589
  %v1217 = vadd.f32 %v1167, %v589
  %v1218 = vadd.f32 %v1168, %v589
  %v1219 = vadd.f32 %v1169, %v589
  %v1220 = vadd.f32 %v1170, %v589
  %v1221 = vadd.f32 %v1171, %v589
  %v1222 = vadd.f32 %v1172, %v589
  %v1223 = vadd.f32 %v1173, %v589
  %v1224 = vmax.f32 %v591, %v1174
  %v1225 = vmax.f32 %v592, %v1175
  %v1226 = vmax.f32 %v593, %v1176
  %v1227 = vmax.f32 %v594, %v1177
  %v1228 = vmax.f32 %v595, %v1178
  %v1229 = vmax.f32 %v596, %v1179
  %v1230 = vmax.f32 %v597, %v1180
  %v1231 = vmax.f32 %v598, %v1181
  %v1232 = vmax.f32 %v599, %v1182
  %v1233 = vmax.f32 %v600, %v1183
  %v1234 = vmax.f32 %v601, %v1184
  %v1235 = vmax.f32 %v602, %v1185
  %v1236 = vmax.f32 %v603, %v1186
  %v1237 = vmax.f32 %v604, %v1187
  %v1238 = vmax.f32 %v605, %v1188
  %v1239 = vmax.f32 %v606, %v1189
  %v1240 = vmax.f32 %v607, %v1190
  %v1241 = vmax.f32 %v608, %v1191
  %v1242 = vmax.f32 %v609, %v1192
  %v1243 = vmax.f32 %v610, %v1193
  %v1244 = vmax.f32 %v611, %v1194
  %v1245 = vmax.f32 %v612, %v1195
  %v1246 = vmax.f32 %v613, %v1196
  %v1247 = vmax.f32 %v614, %v1197
  %v1248 = vmax.f32 %v615, %v1198
  %v1249 = vmax.f32 %v616, %v1199
  %v1250 = vmax.f32 %v617, %v1200
  %v1251 = vmax.f32 %v618, %v1201
  %v1252 = vmax.f32 %v619, %v1202
  %v1253 = vmax.f32 %v620, %v1203
  %v1254 = vmax.f32 %v621, %v1204
  %v1255 = vmax.f32 %v622, %v1205
  %v1256 = vmax.f32 %v623, %v1206
  %v1257 = vmax.f32 %v624, %v1207
  %v1258 = vmax.f32 %v625, %v1208
  %v1259 = vmax.f32 %v626, %v1209
  %v1260 = vmax.f32 %v627, %v1210
  %v1261 = vmax.f32 %v628, %v1211
  %v1262 = vmax.f32 %v629, %v1212
  %v1263 = vmax.f32 %v630, %v1213
  %v1264 = vmax.f32 %v631, %v1214
  %v1265 = vmax.f32 %v632, %v1215
  %v1266 = vmax.f32 %v633, %v1216
  %v1267 = vmax.f32 %v634, %v1217
  %v1268 = vmax.f32 %v635, %v1218
  %v1269 = vmax.f32 %v636, %v1219
  %v1270 = vmax.f32 %v637, %v1220
  %v1271 = vmax.f32 %v638, %v1221
  %v1272 = vmax.f32 %v639, %v1222
  %v1273 = vmax.f32 %v640, %v1223
  %v1274 = vld [vmem:[%s2] sm:$0xf]
  %v1275 = vld [vmem:[%s2 + $0x4] sm:$0xf]
  %v1276 = vld [vmem:[%s2 + $0x8] sm:$0xf]
  %v1277 = vld [vmem:[%s2 + $0xc] sm:$0xf]
  %v1278 = vld [vmem:[%s2 + $0x10] sm:$0xf]
  %v1279 = vld [vmem:[%s2 + $0x14] sm:$0xf]
  %v1280 = vld [vmem:[%s2 + $0x18] sm:$0xf]
  %v1281 = vld [vmem:[%s2 + $0x1c] sm:$0xf]
  %v1282 = vld [vmem:[%s2 + $0x20] sm:$0xf]
  %v1283 = vld [vmem:[%s2 + $0x24] sm:$0xf]
  %v1284 = vld [vmem:[%s2 + $0x28] sm:$0xf]
  %v1285 = vld [vmem:[%s2 + $0x2c] sm:$0xf]
  %v1286 = vld [vmem:[%s2 + $0x30] sm:$0xf]
  %v1287 = vld [vmem:[%s2 + $0x34] sm:$0xf]
  %v1288 = vld [vmem:[%s2 + $0x38] sm:$0xf]
  %v1289 = vld [vmem:[%s2 + $0x3c] sm:$0xf]
  %v1290 = vld [vmem:[%s2 + $0x40] sm:$0xf]
  %v1291 = vld [vmem:[%s2 + $0x44] sm:$0xf]
  %v1292 = vld [vmem:[%s2 + $0x48] sm:$0xf]
  %v1293 = vld [vmem:[%s2 + $0x4c] sm:$0xf]
  %v1294 = vld [vmem:[%s2 + $0x50] sm:$0xf]
  %v1295 = vld [vmem:[%s2 + $0x54] sm:$0xf]
  %v1296 = vld [vmem:[%s2 + $0x58] sm:$0xf]
  %v1297 = vld [vmem:[%s2 + $0x5c] sm:$0xf]
  %v1298 = vld [vmem:[%s2 + $0x60] sm:$0xf]
  %v1299 = vld [vmem:[%s2 + $0x64] sm:$0xf]
  %v1300 = vld [vmem:[%s2 + $0x68] sm:$0xf]
  %v1301 = vld [vmem:[%s2 + $0x6c] sm:$0xf]
  %v1302 = vld [vmem:[%s2 + $0x70] sm:$0xf]
  %v1303 = vld [vmem:[%s2 + $0x74] sm:$0xf]
  %v1304 = vld [vmem:[%s2 + $0x78] sm:$0xf]
  %v1305 = vld [vmem:[%s2 + $0x7c] sm:$0xf]
  %v1306 = vld [vmem:[%s2 + $0x80] sm:$0xf]
  %v1307 = vld [vmem:[%s2 + $0x84] sm:$0xf]
  %v1308 = vld [vmem:[%s2 + $0x88] sm:$0xf]
  %v1309 = vld [vmem:[%s2 + $0x8c] sm:$0xf]
  %v1310 = vld [vmem:[%s2 + $0x90] sm:$0xf]
  %v1311 = vld [vmem:[%s2 + $0x94] sm:$0xf]
  %v1312 = vld [vmem:[%s2 + $0x98] sm:$0xf]
  %v1313 = vld [vmem:[%s2 + $0x9c] sm:$0xf]
  %v1314 = vld [vmem:[%s2 + $0xa0] sm:$0xf]
  %v1315 = vld [vmem:[%s2 + $0xa4] sm:$0xf]
  %v1316 = vld [vmem:[%s2 + $0xa8] sm:$0xf]
  %v1317 = vld [vmem:[%s2 + $0xac] sm:$0xf]
  %v1318 = vld [vmem:[%s2 + $0xb0] sm:$0xf]
  %v1319 = vld [vmem:[%s2 + $0xb4] sm:$0xf]
  %v1320 = vld [vmem:[%s2 + $0xb8] sm:$0xf]
  %v1321 = vld [vmem:[%s2 + $0xbc] sm:$0xf]
  %v1322 = vld [vmem:[%s2 + $0xc0] sm:$0xf]
  %v1323 = vld [vmem:[%s2 + $0xc4] sm:$0xf]
  %v1374 = vunpack.c.l.b16 %v1274
  %v1375 = vunpack.c.l.b16 %v1275
  %v1376 = vunpack.c.l.b16 %v1276
  %v1377 = vunpack.c.l.b16 %v1277
  %v1378 = vunpack.c.l.b16 %v1278
  %v1379 = vunpack.c.l.b16 %v1279
  %v1380 = vunpack.c.l.b16 %v1280
  %v1381 = vunpack.c.l.b16 %v1281
  %v1382 = vunpack.c.l.b16 %v1282
  %v1383 = vunpack.c.l.b16 %v1283
  %v1384 = vunpack.c.l.b16 %v1284
  %v1385 = vunpack.c.l.b16 %v1285
  %v1386 = vunpack.c.l.b16 %v1286
  %v1387 = vunpack.c.l.b16 %v1287
  %v1388 = vunpack.c.l.b16 %v1288
  %v1389 = vunpack.c.l.b16 %v1289
  %v1390 = vunpack.c.l.b16 %v1290
  %v1391 = vunpack.c.l.b16 %v1291
  %v1392 = vunpack.c.l.b16 %v1292
  %v1393 = vunpack.c.l.b16 %v1293
  %v1394 = vunpack.c.l.b16 %v1294
  %v1395 = vunpack.c.l.b16 %v1295
  %v1396 = vunpack.c.l.b16 %v1296
  %v1397 = vunpack.c.l.b16 %v1297
  %v1398 = vunpack.c.l.b16 %v1298
  %v1399 = vunpack.c.l.b16 %v1299
  %v1400 = vunpack.c.l.b16 %v1300
  %v1401 = vunpack.c.l.b16 %v1301
  %v1402 = vunpack.c.l.b16 %v1302
  %v1403 = vunpack.c.l.b16 %v1303
  %v1404 = vunpack.c.l.b16 %v1304
  %v1405 = vunpack.c.l.b16 %v1305
  %v1406 = vunpack.c.l.b16 %v1306
  %v1407 = vunpack.c.l.b16 %v1307
  %v1408 = vunpack.c.l.b16 %v1308
  %v1409 = vunpack.c.l.b16 %v1309
  %v1410 = vunpack.c.l.b16 %v1310
  %v1411 = vunpack.c.l.b16 %v1311
  %v1412 = vunpack.c.l.b16 %v1312
  %v1413 = vunpack.c.l.b16 %v1313
  %v1414 = vunpack.c.l.b16 %v1314
  %v1415 = vunpack.c.l.b16 %v1315
  %v1416 = vunpack.c.l.b16 %v1316
  %v1417 = vunpack.c.l.b16 %v1317
  %v1418 = vunpack.c.l.b16 %v1318
  %v1419 = vunpack.c.l.b16 %v1319
  %v1420 = vunpack.c.l.b16 %v1320
  %v1421 = vunpack.c.l.b16 %v1321
  %v1422 = vunpack.c.l.b16 %v1322
  %v1423 = vunpack.c.l.b16 %v1323
  %v1424 = vpack.c.b16 %v1375, %v1374
  %v1425 = vpack.c.b16 %v1377, %v1376
  %v1426 = vpack.c.b16 %v1379, %v1378
  %v1427 = vpack.c.b16 %v1381, %v1380
  %v1428 = vpack.c.b16 %v1383, %v1382
  %v1429 = vpack.c.b16 %v1385, %v1384
  %v1430 = vpack.c.b16 %v1387, %v1386
  %v1431 = vpack.c.b16 %v1389, %v1388
  %v1432 = vpack.c.b16 %v1391, %v1390
  %v1433 = vpack.c.b16 %v1393, %v1392
  %v1434 = vpack.c.b16 %v1395, %v1394
  %v1435 = vpack.c.b16 %v1397, %v1396
  %v1436 = vpack.c.b16 %v1399, %v1398
  %v1437 = vpack.c.b16 %v1401, %v1400
  %v1438 = vpack.c.b16 %v1403, %v1402
  %v1439 = vpack.c.b16 %v1405, %v1404
  %v1440 = vpack.c.b16 %v1407, %v1406
  %v1441 = vpack.c.b16 %v1409, %v1408
  %v1442 = vpack.c.b16 %v1411, %v1410
  %v1443 = vpack.c.b16 %v1413, %v1412
  %v1444 = vpack.c.b16 %v1415, %v1414
  %v1445 = vpack.c.b16 %v1417, %v1416
  %v1446 = vpack.c.b16 %v1419, %v1418
  %v1447 = vpack.c.b16 %v1421, %v1420
  %v1448 = vpack.c.b16 %v1423, %v1422
  %v1450 = vsel %vm220, %v1424, 0
  %v1453 = vsel %vm220, %v1425, 0
  %v1456 = vsel %vm220, %v1426, 0
  %v1459 = vsel %vm220, %v1427, 0
  %v1462 = vsel %vm220, %v1428, 0
  %v1465 = vsel %vm220, %v1429, 0
  %v1468 = vsel %vm220, %v1430, 0
  %v1471 = vsel %vm220, %v1431, 0
  %v1474 = vsel %vm220, %v1432, 0
  %v1477 = vsel %vm220, %v1433, 0
  %v1480 = vsel %vm220, %v1434, 0
  %v1483 = vsel %vm220, %v1435, 0
  %v1486 = vsel %vm220, %v1436, 0
  %v1489 = vsel %vm220, %v1437, 0
  %v1492 = vsel %vm220, %v1438, 0
  %v1495 = vsel %vm220, %v1439, 0
  %v1498 = vsel %vm220, %v1440, 0
  %v1501 = vsel %vm220, %v1441, 0
  %v1504 = vsel %vm220, %v1442, 0
  %v1507 = vsel %vm220, %v1443, 0
  %v1510 = vsel %vm220, %v1444, 0
  %v1513 = vsel %vm220, %v1445, 0
  %v1516 = vsel %vm220, %v1446, 0
  %v1519 = vsel %vm220, %v1447, 0
  %v1522 = vsel %vm220, %v1448, 0
  %1524 = vmatprep.subr.bf16.mxu0 0
  %1525 = vmatpush1.bf16.msra.mxu0 %v216
  %1526 = vmatprep.subr.bf16.mxu0 0
  %1527 = vmatpush1.bf16.msra.mxu0 %v217
  %1528 = vmatprep.subr.bf16.mxu0 0
  %1529 = vmatpush1.bf16.msra.mxu0 0
  %1530 = vmatprep.subr.bf16.mxu0 0
  %1531 = vmatpush1.bf16.msra.mxu0 0
  %1532 = vmatprep.subr.bf16.mxu0 0
  %1533 = vmatpush1.bf16.msra.mxu0 0
  %1534 = vmatprep.subr.bf16.mxu0 0
  %1535 = vmatpush1.bf16.msra.mxu0 0
  %1536 = vmatprep.subr.bf16.mxu0 0
  %1537 = vmatpush1.bf16.msra.mxu0 0
  %1538 = vmatprep.subr.bf16.mxu0 0
  %1539 = vmatpush1.bf16.msra.mxu0 0
  %1540 = vmatprep.subr.bf16.mxu0 0
  %1541 = vmatpush1.bf16.msra.mxu0 0
  %1542 = vmatprep.subr.bf16.mxu0 0
  %1543 = vmatpush1.bf16.msra.mxu0 0
  %1544 = vmatprep.subr.bf16.mxu0 0
  %1545 = vmatpush1.bf16.msra.mxu0 0
  %1546 = vmatprep.subr.bf16.mxu0 0
  %1547 = vmatpush1.bf16.msra.mxu0 0
  %1548 = vmatprep.subr.bf16.mxu0 0
  %1549 = vmatpush1.bf16.msra.mxu0 0
  %1550 = vmatprep.subr.bf16.mxu0 0
  %1551 = vmatpush1.bf16.msra.mxu0 0
  %1552 = vmatprep.subr.bf16.mxu0 0
  %1553 = vmatpush1.bf16.msra.mxu0 0
  %1554 = vmatprep.subr.bf16.mxu0 0
  %1555 = vmatpush1.bf16.msra.mxu0 0
  %1556 = vmatprep.mubr.bf16.mxu0 0
  %1557 = vmatmul.mubr.bf16.gmra.mrb[0].mxu0 %v1450
  %v1558 = vpop.f32.mrb[0].mxu0
  %v1559 = vadd.f32 0.0, %v1558
  %v1560 = vpop.f32.mrb[0].mxu0
  %v1561 = vpop.f32.mrb[0].mxu0
  %v1562 = vadd.f32 0.0, %v1561
  %v1563 = vpop.f32.mrb[0].mxu0
  %1564 = vmatprep.mubr.bf16.mxu0 0
  %1565 = vmatmul.mubr.bf16.gmra.mrb[0].mxu0 %v1453
  %v1566 = vpop.f32.mrb[0].mxu0
  %v1567 = vadd.f32 0.0, %v1566
  %v1568 = vpop.f32.mrb[0].mxu0
  %v1569 = vpop.f32.mrb[0].mxu0
  %v1570 = vadd.f32 0.0, %v1569
  %v1571 = vpop.f32.mrb[0].mxu0
  %1572 = vmatprep.mubr.bf16.mxu0 0
  %1573 = vmatmul.mubr.bf16.gmra.mrb[0].mxu0 %v1456
  %v1574 = vpop.f32.mrb[0].mxu0
  %v1575 = vadd.f32 0.0, %v1574
  %v1576 = vpop.f32.mrb[0].mxu0
  %v1577 = vpop.f32.mrb[0].mxu0
  %v1578 = vadd.f32 0.0, %v1577
  %v1579 = vpop.f32.mrb[0].mxu0
  %1580 = vmatprep.mubr.bf16.mxu0 0
  %1581 = vmatmul.mubr.bf16.gmra.mrb[0].mxu0 %v1459
  %v1582 = vpop.f32.mrb[0].mxu0
  %v1583 = vadd.f32 0.0, %v1582
  %v1584 = vpop.f32.mrb[0].mxu0
  %v1585 = vpop.f32.mrb[0].mxu0
  %v1586 = vadd.f32 0.0, %v1585
  %v1587 = vpop.f32.mrb[0].mxu0
  %1588 = vmatprep.mubr.bf16.mxu0 0
  %1589 = vmatmul.mubr.bf16.gmra.mrb[0].mxu0 %v1462
  %v1590 = vpop.f32.mrb[0].mxu0
  %v1591 = vadd.f32 0.0, %v1590
  %v1592 = vpop.f32.mrb[0].mxu0
  %v1593 = vpop.f32.mrb[0].mxu0
  %v1594 = vadd.f32 0.0, %v1593
  %v1595 = vpop.f32.mrb[0].mxu0
  %1596 = vmatprep.mubr.bf16.mxu0 0
  %1597 = vmatmul.mubr.bf16.gmra.mrb[0].mxu0 %v1465
  %v1598 = vpop.f32.mrb[0].mxu0
  %v1599 = vadd.f32 0.0, %v1598
  %v1600 = vpop.f32.mrb[0].mxu0
  %v1601 = vpop.f32.mrb[0].mxu0
  %v1602 = vadd.f32 0.0, %v1601
  %v1603 = vpop.f32.mrb[0].mxu0
  %1604 = vmatprep.mubr.bf16.mxu0 0
  %1605 = vmatmul.mubr.bf16.gmra.mrb[0].mxu0 %v1468
  %v1606 = vpop.f32.mrb[0].mxu0
  %v1607 = vadd.f32 0.0, %v1606
  %v1608 = vpop.f32.mrb[0].mxu0
  %v1609 = vpop.f32.mrb[0].mxu0
  %v1610 = vadd.f32 0.0, %v1609
  %v1611 = vpop.f32.mrb[0].mxu0
  %1612 = vmatprep.mubr.bf16.mxu0 0
  %1613 = vmatmul.mubr.bf16.gmra.mrb[0].mxu0 %v1471
  %v1614 = vpop.f32.mrb[0].mxu0
  %v1615 = vadd.f32 0.0, %v1614
  %v1616 = vpop.f32.mrb[0].mxu0
  %v1617 = vpop.f32.mrb[0].mxu0
  %v1618 = vadd.f32 0.0, %v1617
  %v1619 = vpop.f32.mrb[0].mxu0
  %1620 = vmatprep.mubr.bf16.mxu0 0
  %1621 = vmatmul.mubr.bf16.gmra.mrb[0].mxu0 %v1474
  %v1622 = vpop.f32.mrb[0].mxu0
  %v1623 = vadd.f32 0.0, %v1622
  %v1624 = vpop.f32.mrb[0].mxu0
  %v1625 = vpop.f32.mrb[0].mxu0
  %v1626 = vadd.f32 0.0, %v1625
  %v1627 = vpop.f32.mrb[0].mxu0
  %1628 = vmatprep.mubr.bf16.mxu0 0
  %1629 = vmatmul.mubr.bf16.gmra.mrb[0].mxu0 %v1477
  %v1630 = vpop.f32.mrb[0].mxu0
  %v1631 = vadd.f32 0.0, %v1630
  %v1632 = vpop.f32.mrb[0].mxu0
  %v1633 = vpop.f32.mrb[0].mxu0
  %v1634 = vadd.f32 0.0, %v1633
  %v1635 = vpop.f32.mrb[0].mxu0
  %1636 = vmatprep.mubr.bf16.mxu0 0
  %1637 = vmatmul.mubr.bf16.gmra.mrb[0].mxu0 %v1480
  %v1638 = vpop.f32.mrb[0].mxu0
  %v1639 = vadd.f32 0.0, %v1638
  %v1640 = vpop.f32.mrb[0].mxu0
  %v1641 = vpop.f32.mrb[0].mxu0
  %v1642 = vadd.f32 0.0, %v1641
  %v1643 = vpop.f32.mrb[0].mxu0
  %1644 = vmatprep.mubr.bf16.mxu0 0
  %1645 = vmatmul.mubr.bf16.gmra.mrb[0].mxu0 %v1483
  %v1646 = vpop.f32.mrb[0].mxu0
  %v1647 = vadd.f32 0.0, %v1646
  %v1648 = vpop.f32.mrb[0].mxu0
  %v1649 = vpop.f32.mrb[0].mxu0
  %v1650 = vadd.f32 0.0, %v1649
  %v1651 = vpop.f32.mrb[0].mxu0
  %1652 = vmatprep.mubr.bf16.mxu0 0
  %1653 = vmatmul.mubr.bf16.gmra.mrb[0].mxu0 %v1486
  %v1654 = vpop.f32.mrb[0].mxu0
  %v1655 = vadd.f32 0.0, %v1654
  %v1656 = vpop.f32.mrb[0].mxu0
  %v1657 = vpop.f32.mrb[0].mxu0
  %v1658 = vadd.f32 0.0, %v1657
  %v1659 = vpop.f32.mrb[0].mxu0
  %1660 = vmatprep.mubr.bf16.mxu0 0
  %1661 = vmatmul.mubr.bf16.gmra.mrb[0].mxu0 %v1489
  %v1662 = vpop.f32.mrb[0].mxu0
  %v1663 = vadd.f32 0.0, %v1662
  %v1664 = vpop.f32.mrb[0].mxu0
  %v1665 = vpop.f32.mrb[0].mxu0
  %v1666 = vadd.f32 0.0, %v1665
  %v1667 = vpop.f32.mrb[0].mxu0
  %1668 = vmatprep.mubr.bf16.mxu0 0
  %1669 = vmatmul.mubr.bf16.gmra.mrb[0].mxu0 %v1492
  %v1670 = vpop.f32.mrb[0].mxu0
  %v1671 = vadd.f32 0.0, %v1670
  %v1672 = vpop.f32.mrb[0].mxu0
  %v1673 = vpop.f32.mrb[0].mxu0
  %v1674 = vadd.f32 0.0, %v1673
  %v1675 = vpop.f32.mrb[0].mxu0
  %1676 = vmatprep.mubr.bf16.mxu0 0
  %1677 = vmatmul.mubr.bf16.gmra.mrb[0].mxu0 %v1495
  %v1678 = vpop.f32.mrb[0].mxu0
  %v1679 = vadd.f32 0.0, %v1678
  %v1680 = vpop.f32.mrb[0].mxu0
  %v1681 = vpop.f32.mrb[0].mxu0
  %v1682 = vadd.f32 0.0, %v1681
  %v1683 = vpop.f32.mrb[0].mxu0
  %1684 = vmatprep.mubr.bf16.mxu0 0
  %1685 = vmatmul.mubr.bf16.gmra.mrb[0].mxu0 %v1498
  %v1686 = vpop.f32.mrb[0].mxu0
  %v1687 = vadd.f32 0.0, %v1686
  %v1688 = vpop.f32.mrb[0].mxu0
  %v1689 = vpop.f32.mrb[0].mxu0
  %v1690 = vadd.f32 0.0, %v1689
  %v1691 = vpop.f32.mrb[0].mxu0
  %1692 = vmatprep.mubr.bf16.mxu0 0
  %1693 = vmatmul.mubr.bf16.gmra.mrb[0].mxu0 %v1501
  %v1694 = vpop.f32.mrb[0].mxu0
  %v1695 = vadd.f32 0.0, %v1694
  %v1696 = vpop.f32.mrb[0].mxu0
  %v1697 = vpop.f32.mrb[0].mxu0
  %v1698 = vadd.f32 0.0, %v1697
  %v1699 = vpop.f32.mrb[0].mxu0
  %1700 = vmatprep.mubr.bf16.mxu0 0
  %1701 = vmatmul.mubr.bf16.gmra.mrb[0].mxu0 %v1504
  %v1702 = vpop.f32.mrb[0].mxu0
  %v1703 = vadd.f32 0.0, %v1702
  %v1704 = vpop.f32.mrb[0].mxu0
  %v1705 = vpop.f32.mrb[0].mxu0
  %v1706 = vadd.f32 0.0, %v1705
  %v1707 = vpop.f32.mrb[0].mxu0
  %1708 = vmatprep.mubr.bf16.mxu0 0
  %1709 = vmatmul.mubr.bf16.gmra.mrb[0].mxu0 %v1507
  %v1710 = vpop.f32.mrb[0].mxu0
  %v1711 = vadd.f32 0.0, %v1710
  %v1712 = vpop.f32.mrb[0].mxu0
  %v1713 = vpop.f32.mrb[0].mxu0
  %v1714 = vadd.f32 0.0, %v1713
  %v1715 = vpop.f32.mrb[0].mxu0
  %1716 = vmatprep.mubr.bf16.mxu0 0
  %1717 = vmatmul.mubr.bf16.gmra.mrb[0].mxu0 %v1510
  %v1718 = vpop.f32.mrb[0].mxu0
  %v1719 = vadd.f32 0.0, %v1718
  %v1720 = vpop.f32.mrb[0].mxu0
  %v1721 = vpop.f32.mrb[0].mxu0
  %v1722 = vadd.f32 0.0, %v1721
  %v1723 = vpop.f32.mrb[0].mxu0
  %1724 = vmatprep.mubr.bf16.mxu0 0
  %1725 = vmatmul.mubr.bf16.gmra.mrb[0].mxu0 %v1513
  %v1726 = vpop.f32.mrb[0].mxu0
  %v1727 = vadd.f32 0.0, %v1726
  %v1728 = vpop.f32.mrb[0].mxu0
  %v1729 = vpop.f32.mrb[0].mxu0
  %v1730 = vadd.f32 0.0, %v1729
  %v1731 = vpop.f32.mrb[0].mxu0
  %1732 = vmatprep.mubr.bf16.mxu0 0
  %1733 = vmatmul.mubr.bf16.gmra.mrb[0].mxu0 %v1516
  %v1734 = vpop.f32.mrb[0].mxu0
  %v1735 = vadd.f32 0.0, %v1734
  %v1736 = vpop.f32.mrb[0].mxu0
  %v1737 = vpop.f32.mrb[0].mxu0
  %v1738 = vadd.f32 0.0, %v1737
  %v1739 = vpop.f32.mrb[0].mxu0
  %1740 = vmatprep.mubr.bf16.mxu0 0
  %1741 = vmatmul.mubr.bf16.gmra.mrb[0].mxu0 %v1519
  %v1742 = vpop.f32.mrb[0].mxu0
  %v1743 = vadd.f32 0.0, %v1742
  %v1744 = vpop.f32.mrb[0].mxu0
  %v1745 = vpop.f32.mrb[0].mxu0
  %v1746 = vadd.f32 0.0, %v1745
  %v1747 = vpop.f32.mrb[0].mxu0
  %1748 = vmatprep.mubr.bf16.mxu0 0
  %1749 = vmatmul.mubr.bf16.gmra.mrb[0].mxu0 %v1522
  %v1750 = vpop.f32.mrb[0].mxu0
  %v1751 = vadd.f32 0.0, %v1750
  %v1752 = vpop.f32.mrb[0].mxu0
  %v1753 = vpop.f32.mrb[0].mxu0
  %v1754 = vadd.f32 0.0, %v1753
  %v1755 = vpop.f32.mrb[0].mxu0
  %1756 = vdwg.mxu0
  %v1757 = vmul.f32 %v1559, %v533
  %v1758 = vmul.f32 %v1562, %v533
  %v1759 = vmul.f32 %v1567, %v533
  %v1760 = vmul.f32 %v1570, %v533
  %v1761 = vmul.f32 %v1575, %v533
  %v1762 = vmul.f32 %v1578, %v533
  %v1763 = vmul.f32 %v1583, %v533
  %v1764 = vmul.f32 %v1586, %v533
  %v1765 = vmul.f32 %v1591, %v533
  %v1766 = vmul.f32 %v1594, %v533
  %v1767 = vmul.f32 %v1599, %v533
  %v1768 = vmul.f32 %v1602, %v533
  %v1769 = vmul.f32 %v1607, %v533
  %v1770 = vmul.f32 %v1610, %v533
  %v1771 = vmul.f32 %v1615, %v533
  %v1772 = vmul.f32 %v1618, %v533
  %v1773 = vmul.f32 %v1623, %v533
  %v1774 = vmul.f32 %v1626, %v533
  %v1775 = vmul.f32 %v1631, %v533
  %v1776 = vmul.f32 %v1634, %v533
  %v1777 = vmul.f32 %v1639, %v533
  %v1778 = vmul.f32 %v1642, %v533
  %v1779 = vmul.f32 %v1647, %v533
  %v1780 = vmul.f32 %v1650, %v533
  %v1781 = vmul.f32 %v1655, %v533
  %v1782 = vmul.f32 %v1658, %v533
  %v1783 = vmul.f32 %v1663, %v533
  %v1784 = vmul.f32 %v1666, %v533
  %v1785 = vmul.f32 %v1671, %v533
  %v1786 = vmul.f32 %v1674, %v533
  %v1787 = vmul.f32 %v1679, %v533
  %v1788 = vmul.f32 %v1682, %v533
  %v1789 = vmul.f32 %v1687, %v533
  %v1790 = vmul.f32 %v1690, %v533
  %v1791 = vmul.f32 %v1695, %v533
  %v1792 = vmul.f32 %v1698, %v533
  %v1793 = vmul.f32 %v1703, %v533
  %v1794 = vmul.f32 %v1706, %v533
  %v1795 = vmul.f32 %v1711, %v533
  %v1796 = vmul.f32 %v1714, %v533
  %v1797 = vmul.f32 %v1719, %v533
  %v1798 = vmul.f32 %v1722, %v533
  %v1799 = vmul.f32 %v1727, %v533
  %v1800 = vmul.f32 %v1730, %v533
  %v1801 = vmul.f32 %v1735, %v533
  %v1802 = vmul.f32 %v1738, %v533
  %v1803 = vmul.f32 %v1743, %v533
  %v1804 = vmul.f32 %v1746, %v533
  %v1805 = vmul.f32 %v1751, %v533
  %v1806 = vmul.f32 %v1754, %v533
  %v1807 = vadd.f32 %v1757, %v589
  %v1808 = vadd.f32 %v1758, %v589
  %v1809 = vadd.f32 %v1759, %v589
  %v1810 = vadd.f32 %v1760, %v589
  %v1811 = vadd.f32 %v1761, %v589
  %v1812 = vadd.f32 %v1762, %v589
  %v1813 = vadd.f32 %v1763, %v589
  %v1814 = vadd.f32 %v1764, %v589
  %v1815 = vadd.f32 %v1765, %v589
  %v1816 = vadd.f32 %v1766, %v589
  %v1817 = vadd.f32 %v1767, %v589
  %v1818 = vadd.f32 %v1768, %v589
  %v1819 = vadd.f32 %v1769, %v589
  %v1820 = vadd.f32 %v1770, %v589
  %v1821 = vadd.f32 %v1771, %v589
  %v1822 = vadd.f32 %v1772, %v589
  %v1823 = vadd.f32 %v1773, %v589
  %v1824 = vadd.f32 %v1774, %v589
  %v1825 = vadd.f32 %v1775, %v589
  %v1826 = vadd.f32 %v1776, %v589
  %v1827 = vadd.f32 %v1777, %v589
  %v1828 = vadd.f32 %v1778, %v589
  %v1829 = vadd.f32 %v1779, %v589
  %v1830 = vadd.f32 %v1780, %v589
  %v1831 = vadd.f32 %v1781, %v589
  %v1832 = vadd.f32 %v1782, %v589
  %v1833 = vadd.f32 %v1783, %v589
  %v1834 = vadd.f32 %v1784, %v589
  %v1835 = vadd.f32 %v1785, %v589
  %v1836 = vadd.f32 %v1786, %v589
  %v1837 = vadd.f32 %v1787, %v589
  %v1838 = vadd.f32 %v1788, %v589
  %v1839 = vadd.f32 %v1789, %v589
  %v1840 = vadd.f32 %v1790, %v589
  %v1841 = vadd.f32 %v1791, %v589
  %v1842 = vadd.f32 %v1792, %v589
  %v1843 = vadd.f32 %v1793, %v589
  %v1844 = vadd.f32 %v1794, %v589
  %v1845 = vadd.f32 %v1795, %v589
  %v1846 = vadd.f32 %v1796, %v589
  %v1847 = vadd.f32 %v1797, %v589
  %v1848 = vadd.f32 %v1798, %v589
  %v1849 = vadd.f32 %v1799, %v589
  %v1850 = vadd.f32 %v1800, %v589
  %v1851 = vadd.f32 %v1801, %v589
  %v1852 = vadd.f32 %v1802, %v589
  %v1853 = vadd.f32 %v1803, %v589
  %v1854 = vadd.f32 %v1804, %v589
  %v1855 = vadd.f32 %v1805, %v589
  %v1856 = vadd.f32 %v1806, %v589
  %v1857 = vld [vmem:[%s3] sm:$0xf]
  %v1858 = vld [vmem:[%s3 + $0x4] sm:$0xf]
  %v1859 = vld [vmem:[%s3 + $0x8] sm:$0xf]
  %v1860 = vld [vmem:[%s3 + $0xc] sm:$0xf]
  %v1861 = vld [vmem:[%s3 + $0x10] sm:$0xf]
  %v1862 = vld [vmem:[%s3 + $0x14] sm:$0xf]
  %v1863 = vld [vmem:[%s3 + $0x18] sm:$0xf]
  %v1864 = vld [vmem:[%s3 + $0x1c] sm:$0xf]
  %v1865 = vld [vmem:[%s3 + $0x20] sm:$0xf]
  %v1866 = vld [vmem:[%s3 + $0x24] sm:$0xf]
  %v1867 = vld [vmem:[%s3 + $0x28] sm:$0xf]
  %v1868 = vld [vmem:[%s3 + $0x2c] sm:$0xf]
  %v1869 = vld [vmem:[%s3 + $0x30] sm:$0xf]
  %v1870 = vld [vmem:[%s3 + $0x34] sm:$0xf]
  %v1871 = vld [vmem:[%s3 + $0x38] sm:$0xf]
  %v1872 = vld [vmem:[%s3 + $0x3c] sm:$0xf]
  %v1873 = vld [vmem:[%s3 + $0x40] sm:$0xf]
  %v1874 = vld [vmem:[%s3 + $0x44] sm:$0xf]
  %v1875 = vld [vmem:[%s3 + $0x48] sm:$0xf]
  %v1876 = vld [vmem:[%s3 + $0x4c] sm:$0xf]
  %v1877 = vld [vmem:[%s3 + $0x50] sm:$0xf]
  %v1878 = vld [vmem:[%s3 + $0x54] sm:$0xf]
  %v1879 = vld [vmem:[%s3 + $0x58] sm:$0xf]
  %v1880 = vld [vmem:[%s3 + $0x5c] sm:$0xf]
  %v1881 = vld [vmem:[%s3 + $0x60] sm:$0xf]
  %v1882 = vld [vmem:[%s3 + $0x64] sm:$0xf]
  %v1883 = vld [vmem:[%s3 + $0x68] sm:$0xf]
  %v1884 = vld [vmem:[%s3 + $0x6c] sm:$0xf]
  %v1885 = vld [vmem:[%s3 + $0x70] sm:$0xf]
  %v1886 = vld [vmem:[%s3 + $0x74] sm:$0xf]
  %v1887 = vld [vmem:[%s3 + $0x78] sm:$0xf]
  %v1888 = vld [vmem:[%s3 + $0x7c] sm:$0xf]
  %v1889 = vld [vmem:[%s3 + $0x80] sm:$0xf]
  %v1890 = vld [vmem:[%s3 + $0x84] sm:$0xf]
  %v1891 = vld [vmem:[%s3 + $0x88] sm:$0xf]
  %v1892 = vld [vmem:[%s3 + $0x8c] sm:$0xf]
  %v1893 = vld [vmem:[%s3 + $0x90] sm:$0xf]
  %v1894 = vld [vmem:[%s3 + $0x94] sm:$0xf]
  %v1895 = vld [vmem:[%s3 + $0x98] sm:$0xf]
  %v1896 = vld [vmem:[%s3 + $0x9c] sm:$0xf]
  %v1897 = vld [vmem:[%s3 + $0xa0] sm:$0xf]
  %v1898 = vld [vmem:[%s3 + $0xa4] sm:$0xf]
  %v1899 = vld [vmem:[%s3 + $0xa8] sm:$0xf]
  %v1900 = vld [vmem:[%s3 + $0xac] sm:$0xf]
  %v1901 = vld [vmem:[%s3 + $0xb0] sm:$0xf]
  %v1902 = vld [vmem:[%s3 + $0xb4] sm:$0xf]
  %v1903 = vld [vmem:[%s3 + $0xb8] sm:$0xf]
  %v1904 = vld [vmem:[%s3 + $0xbc] sm:$0xf]
  %v1905 = vld [vmem:[%s3 + $0xc0] sm:$0xf]
  %v1906 = vld [vmem:[%s3 + $0xc4] sm:$0xf]
  %v1957 = vunpack.c.l.b16 %v1857
  %v1958 = vunpack.c.l.b16 %v1858
  %v1959 = vunpack.c.l.b16 %v1859
  %v1960 = vunpack.c.l.b16 %v1860
  %v1961 = vunpack.c.l.b16 %v1861
  %v1962 = vunpack.c.l.b16 %v1862
  %v1963 = vunpack.c.l.b16 %v1863
  %v1964 = vunpack.c.l.b16 %v1864
  %v1965 = vunpack.c.l.b16 %v1865
  %v1966 = vunpack.c.l.b16 %v1866
  %v1967 = vunpack.c.l.b16 %v1867
  %v1968 = vunpack.c.l.b16 %v1868
  %v1969 = vunpack.c.l.b16 %v1869
  %v1970 = vunpack.c.l.b16 %v1870
  %v1971 = vunpack.c.l.b16 %v1871
  %v1972 = vunpack.c.l.b16 %v1872
  %v1973 = vunpack.c.l.b16 %v1873
  %v1974 = vunpack.c.l.b16 %v1874
  %v1975 = vunpack.c.l.b16 %v1875
  %v1976 = vunpack.c.l.b16 %v1876
  %v1977 = vunpack.c.l.b16 %v1877
  %v1978 = vunpack.c.l.b16 %v1878
  %v1979 = vunpack.c.l.b16 %v1879
  %v1980 = vunpack.c.l.b16 %v1880
  %v1981 = vunpack.c.l.b16 %v1881
  %v1982 = vunpack.c.l.b16 %v1882
  %v1983 = vunpack.c.l.b16 %v1883
  %v1984 = vunpack.c.l.b16 %v1884
  %v1985 = vunpack.c.l.b16 %v1885
  %v1986 = vunpack.c.l.b16 %v1886
  %v1987 = vunpack.c.l.b16 %v1887
  %v1988 = vunpack.c.l.b16 %v1888
  %v1989 = vunpack.c.l.b16 %v1889
  %v1990 = vunpack.c.l.b16 %v1890
  %v1991 = vunpack.c.l.b16 %v1891
  %v1992 = vunpack.c.l.b16 %v1892
  %v1993 = vunpack.c.l.b16 %v1893
  %v1994 = vunpack.c.l.b16 %v1894
  %v1995 = vunpack.c.l.b16 %v1895
  %v1996 = vunpack.c.l.b16 %v1896
  %v1997 = vunpack.c.l.b16 %v1897
  %v1998 = vunpack.c.l.b16 %v1898
  %v1999 = vunpack.c.l.b16 %v1899
  %v2000 = vunpack.c.l.b16 %v1900
  %v2001 = vunpack.c.l.b16 %v1901
  %v2002 = vunpack.c.l.b16 %v1902
  %v2003 = vunpack.c.l.b16 %v1903
  %v2004 = vunpack.c.l.b16 %v1904
  %v2005 = vunpack.c.l.b16 %v1905
  %v2006 = vunpack.c.l.b16 %v1906
  %v2007 = vpack.c.b16 %v1958, %v1957
  %v2008 = vpack.c.b16 %v1960, %v1959
  %v2009 = vpack.c.b16 %v1962, %v1961
  %v2010 = vpack.c.b16 %v1964, %v1963
  %v2011 = vpack.c.b16 %v1966, %v1965
  %v2012 = vpack.c.b16 %v1968, %v1967
  %v2013 = vpack.c.b16 %v1970, %v1969
  %v2014 = vpack.c.b16 %v1972, %v1971
  %v2015 = vpack.c.b16 %v1974, %v1973
  %v2016 = vpack.c.b16 %v1976, %v1975
  %v2017 = vpack.c.b16 %v1978, %v1977
  %v2018 = vpack.c.b16 %v1980, %v1979
  %v2019 = vpack.c.b16 %v1982, %v1981
  %v2020 = vpack.c.b16 %v1984, %v1983
  %v2021 = vpack.c.b16 %v1986, %v1985
  %v2022 = vpack.c.b16 %v1988, %v1987
  %v2023 = vpack.c.b16 %v1990, %v1989
  %v2024 = vpack.c.b16 %v1992, %v1991
  %v2025 = vpack.c.b16 %v1994, %v1993
  %v2026 = vpack.c.b16 %v1996, %v1995
  %v2027 = vpack.c.b16 %v1998, %v1997
  %v2028 = vpack.c.b16 %v2000, %v1999
  %v2029 = vpack.c.b16 %v2002, %v2001
  %v2030 = vpack.c.b16 %v2004, %v2003
  %v2031 = vpack.c.b16 %v2006, %v2005
  %v2033 = vsel %vm220, %v2007, 0
  %v2036 = vsel %vm220, %v2008, 0
  %v2039 = vsel %vm220, %v2009, 0
  %v2042 = vsel %vm220, %v2010, 0
  %v2045 = vsel %vm220, %v2011, 0
  %v2048 = vsel %vm220, %v2012, 0
  %v2051 = vsel %vm220, %v2013, 0
  %v2054 = vsel %vm220, %v2014, 0
  %v2057 = vsel %vm220, %v2015, 0
  %v2060 = vsel %vm220, %v2016, 0
  %v2063 = vsel %vm220, %v2017, 0
  %v2066 = vsel %vm220, %v2018, 0
  %v2069 = vsel %vm220, %v2019, 0
  %v2072 = vsel %vm220, %v2020, 0
  %v2075 = vsel %vm220, %v2021, 0
  %v2078 = vsel %vm220, %v2022, 0
  %v2081 = vsel %vm220, %v2023, 0
  %v2084 = vsel %vm220, %v2024, 0
  %v2087 = vsel %vm220, %v2025, 0
  %v2090 = vsel %vm220, %v2026, 0
  %v2093 = vsel %vm220, %v2027, 0
  %v2096 = vsel %vm220, %v2028, 0
  %v2099 = vsel %vm220, %v2029, 0
  %v2102 = vsel %vm220, %v2030, 0
  %v2105 = vsel %vm220, %v2031, 0
  %2107 = vmatprep.subr.bf16.mxu0 0
  %2108 = vmatpush1.bf16.msra.mxu0 %v216
  %2109 = vmatprep.subr.bf16.mxu0 0
  %2110 = vmatpush1.bf16.msra.mxu0 %v217
  %2111 = vmatprep.subr.bf16.mxu0 0
  %2112 = vmatpush1.bf16.msra.mxu0 0
  %2113 = vmatprep.subr.bf16.mxu0 0
  %2114 = vmatpush1.bf16.msra.mxu0 0
  %2115 = vmatprep.subr.bf16.mxu0 0
  %2116 = vmatpush1.bf16.msra.mxu0 0
  %2117 = vmatprep.subr.bf16.mxu0 0
  %2118 = vmatpush1.bf16.msra.mxu0 0
  %2119 = vmatprep.subr.bf16.mxu0 0
  %2120 = vmatpush1.bf16.msra.mxu0 0
  %2121 = vmatprep.subr.bf16.mxu0 0
  %2122 = vmatpush1.bf16.msra.mxu0 0
  %2123 = vmatprep.subr.bf16.mxu0 0
  %2124 = vmatpush1.bf16.msra.mxu0 0
  %2125 = vmatprep.subr.bf16.mxu0 0
  %2126 = vmatpush1.bf16.msra.mxu0 0
  %2127 = vmatprep.subr.bf16.mxu0 0
  %2128 = vmatpush1.bf16.msra.mxu0 0
  %2129 = vmatprep.subr.bf16.mxu0 0
  %2130 = vmatpush1.bf16.msra.mxu0 0
  %2131 = vmatprep.subr.bf16.mxu0 0
  %2132 = vmatpush1.bf16.msra.mxu0 0
  %2133 = vmatprep.subr.bf16.mxu0 0
  %2134 = vmatpush1.bf16.msra.mxu0 0
  %2135 = vmatprep.subr.bf16.mxu0 0
  %2136 = vmatpush1.bf16.msra.mxu0 0
  %2137 = vmatprep.subr.bf16.mxu0 0
  %2138 = vmatpush1.bf16.msra.mxu0 0
  %2139 = vmatprep.mubr.bf16.mxu0 0
  %2140 = vmatmul.mubr.bf16.gmra.mrb[0].mxu0 %v2033
  %v2141 = vpop.f32.mrb[0].mxu0
  %v2142 = vadd.f32 0.0, %v2141
  %v2143 = vpop.f32.mrb[0].mxu0
  %v2144 = vpop.f32.mrb[0].mxu0
  %v2145 = vadd.f32 0.0, %v2144
  %v2146 = vpop.f32.mrb[0].mxu0
  %2147 = vmatprep.mubr.bf16.mxu0 0
  %2148 = vmatmul.mubr.bf16.gmra.mrb[0].mxu0 %v2036
  %v2149 = vpop.f32.mrb[0].mxu0
  %v2150 = vadd.f32 0.0, %v2149
  %v2151 = vpop.f32.mrb[0].mxu0
  %v2152 = vpop.f32.mrb[0].mxu0
  %v2153 = vadd.f32 0.0, %v2152
  %v2154 = vpop.f32.mrb[0].mxu0
  %2155 = vmatprep.mubr.bf16.mxu0 0
  %2156 = vmatmul.mubr.bf16.gmra.mrb[0].mxu0 %v2039
  %v2157 = vpop.f32.mrb[0].mxu0
  %v2158 = vadd.f32 0.0, %v2157
  %v2159 = vpop.f32.mrb[0].mxu0
  %v2160 = vpop.f32.mrb[0].mxu0
  %v2161 = vadd.f32 0.0, %v2160
  %v2162 = vpop.f32.mrb[0].mxu0
  %2163 = vmatprep.mubr.bf16.mxu0 0
  %2164 = vmatmul.mubr.bf16.gmra.mrb[0].mxu0 %v2042
  %v2165 = vpop.f32.mrb[0].mxu0
  %v2166 = vadd.f32 0.0, %v2165
  %v2167 = vpop.f32.mrb[0].mxu0
  %v2168 = vpop.f32.mrb[0].mxu0
  %v2169 = vadd.f32 0.0, %v2168
  %v2170 = vpop.f32.mrb[0].mxu0
  %2171 = vmatprep.mubr.bf16.mxu0 0
  %2172 = vmatmul.mubr.bf16.gmra.mrb[0].mxu0 %v2045
  %v2173 = vpop.f32.mrb[0].mxu0
  %v2174 = vadd.f32 0.0, %v2173
  %v2175 = vpop.f32.mrb[0].mxu0
  %v2176 = vpop.f32.mrb[0].mxu0
  %v2177 = vadd.f32 0.0, %v2176
  %v2178 = vpop.f32.mrb[0].mxu0
  %2179 = vmatprep.mubr.bf16.mxu0 0
  %2180 = vmatmul.mubr.bf16.gmra.mrb[0].mxu0 %v2048
  %v2181 = vpop.f32.mrb[0].mxu0
  %v2182 = vadd.f32 0.0, %v2181
  %v2183 = vpop.f32.mrb[0].mxu0
  %v2184 = vpop.f32.mrb[0].mxu0
  %v2185 = vadd.f32 0.0, %v2184
  %v2186 = vpop.f32.mrb[0].mxu0
  %2187 = vmatprep.mubr.bf16.mxu0 0
  %2188 = vmatmul.mubr.bf16.gmra.mrb[0].mxu0 %v2051
  %v2189 = vpop.f32.mrb[0].mxu0
  %v2190 = vadd.f32 0.0, %v2189
  %v2191 = vpop.f32.mrb[0].mxu0
  %v2192 = vpop.f32.mrb[0].mxu0
  %v2193 = vadd.f32 0.0, %v2192
  %v2194 = vpop.f32.mrb[0].mxu0
  %2195 = vmatprep.mubr.bf16.mxu0 0
  %2196 = vmatmul.mubr.bf16.gmra.mrb[0].mxu0 %v2054
  %v2197 = vpop.f32.mrb[0].mxu0
  %v2198 = vadd.f32 0.0, %v2197
  %v2199 = vpop.f32.mrb[0].mxu0
  %v2200 = vpop.f32.mrb[0].mxu0
  %v2201 = vadd.f32 0.0, %v2200
  %v2202 = vpop.f32.mrb[0].mxu0
  %2203 = vmatprep.mubr.bf16.mxu0 0
  %2204 = vmatmul.mubr.bf16.gmra.mrb[0].mxu0 %v2057
  %v2205 = vpop.f32.mrb[0].mxu0
  %v2206 = vadd.f32 0.0, %v2205
  %v2207 = vpop.f32.mrb[0].mxu0
  %v2208 = vpop.f32.mrb[0].mxu0
  %v2209 = vadd.f32 0.0, %v2208
  %v2210 = vpop.f32.mrb[0].mxu0
  %2211 = vmatprep.mubr.bf16.mxu0 0
  %2212 = vmatmul.mubr.bf16.gmra.mrb[0].mxu0 %v2060
  %v2213 = vpop.f32.mrb[0].mxu0
  %v2214 = vadd.f32 0.0, %v2213
  %v2215 = vpop.f32.mrb[0].mxu0
  %v2216 = vpop.f32.mrb[0].mxu0
  %v2217 = vadd.f32 0.0, %v2216
  %v2218 = vpop.f32.mrb[0].mxu0
  %2219 = vmatprep.mubr.bf16.mxu0 0
  %2220 = vmatmul.mubr.bf16.gmra.mrb[0].mxu0 %v2063
  %v2221 = vpop.f32.mrb[0].mxu0
  %v2222 = vadd.f32 0.0, %v2221
  %v2223 = vpop.f32.mrb[0].mxu0
  %v2224 = vpop.f32.mrb[0].mxu0
  %v2225 = vadd.f32 0.0, %v2224
  %v2226 = vpop.f32.mrb[0].mxu0
  %2227 = vmatprep.mubr.bf16.mxu0 0
  %2228 = vmatmul.mubr.bf16.gmra.mrb[0].mxu0 %v2066
  %v2229 = vpop.f32.mrb[0].mxu0
  %v2230 = vadd.f32 0.0, %v2229
  %v2231 = vpop.f32.mrb[0].mxu0
  %v2232 = vpop.f32.mrb[0].mxu0
  %v2233 = vadd.f32 0.0, %v2232
  %v2234 = vpop.f32.mrb[0].mxu0
  %2235 = vmatprep.mubr.bf16.mxu0 0
  %2236 = vmatmul.mubr.bf16.gmra.mrb[0].mxu0 %v2069
  %v2237 = vpop.f32.mrb[0].mxu0
  %v2238 = vadd.f32 0.0, %v2237
  %v2239 = vpop.f32.mrb[0].mxu0
  %v2240 = vpop.f32.mrb[0].mxu0
  %v2241 = vadd.f32 0.0, %v2240
  %v2242 = vpop.f32.mrb[0].mxu0
  %2243 = vmatprep.mubr.bf16.mxu0 0
  %2244 = vmatmul.mubr.bf16.gmra.mrb[0].mxu0 %v2072
  %v2245 = vpop.f32.mrb[0].mxu0
  %v2246 = vadd.f32 0.0, %v2245
  %v2247 = vpop.f32.mrb[0].mxu0
  %v2248 = vpop.f32.mrb[0].mxu0
  %v2249 = vadd.f32 0.0, %v2248
  %v2250 = vpop.f32.mrb[0].mxu0
  %2251 = vmatprep.mubr.bf16.mxu0 0
  %2252 = vmatmul.mubr.bf16.gmra.mrb[0].mxu0 %v2075
  %v2253 = vpop.f32.mrb[0].mxu0
  %v2254 = vadd.f32 0.0, %v2253
  %v2255 = vpop.f32.mrb[0].mxu0
  %v2256 = vpop.f32.mrb[0].mxu0
  %v2257 = vadd.f32 0.0, %v2256
  %v2258 = vpop.f32.mrb[0].mxu0
  %2259 = vmatprep.mubr.bf16.mxu0 0
  %2260 = vmatmul.mubr.bf16.gmra.mrb[0].mxu0 %v2078
  %v2261 = vpop.f32.mrb[0].mxu0
  %v2262 = vadd.f32 0.0, %v2261
  %v2263 = vpop.f32.mrb[0].mxu0
  %v2264 = vpop.f32.mrb[0].mxu0
  %v2265 = vadd.f32 0.0, %v2264
  %v2266 = vpop.f32.mrb[0].mxu0
  %2267 = vmatprep.mubr.bf16.mxu0 0
  %2268 = vmatmul.mubr.bf16.gmra.mrb[0].mxu0 %v2081
  %v2269 = vpop.f32.mrb[0].mxu0
  %v2270 = vadd.f32 0.0, %v2269
  %v2271 = vpop.f32.mrb[0].mxu0
  %v2272 = vpop.f32.mrb[0].mxu0
  %v2273 = vadd.f32 0.0, %v2272
  %v2274 = vpop.f32.mrb[0].mxu0
  %2275 = vmatprep.mubr.bf16.mxu0 0
  %2276 = vmatmul.mubr.bf16.gmra.mrb[0].mxu0 %v2084
  %v2277 = vpop.f32.mrb[0].mxu0
  %v2278 = vadd.f32 0.0, %v2277
  %v2279 = vpop.f32.mrb[0].mxu0
  %v2280 = vpop.f32.mrb[0].mxu0
  %v2281 = vadd.f32 0.0, %v2280
  %v2282 = vpop.f32.mrb[0].mxu0
  %2283 = vmatprep.mubr.bf16.mxu0 0
  %2284 = vmatmul.mubr.bf16.gmra.mrb[0].mxu0 %v2087
  %v2285 = vpop.f32.mrb[0].mxu0
  %v2286 = vadd.f32 0.0, %v2285
  %v2287 = vpop.f32.mrb[0].mxu0
  %v2288 = vpop.f32.mrb[0].mxu0
  %v2289 = vadd.f32 0.0, %v2288
  %v2290 = vpop.f32.mrb[0].mxu0
  %2291 = vmatprep.mubr.bf16.mxu0 0
  %2292 = vmatmul.mubr.bf16.gmra.mrb[0].mxu0 %v2090
  %v2293 = vpop.f32.mrb[0].mxu0
  %v2294 = vadd.f32 0.0, %v2293
  %v2295 = vpop.f32.mrb[0].mxu0
  %v2296 = vpop.f32.mrb[0].mxu0
  %v2297 = vadd.f32 0.0, %v2296
  %v2298 = vpop.f32.mrb[0].mxu0
  %2299 = vmatprep.mubr.bf16.mxu0 0
  %2300 = vmatmul.mubr.bf16.gmra.mrb[0].mxu0 %v2093
  %v2301 = vpop.f32.mrb[0].mxu0
  %v2302 = vadd.f32 0.0, %v2301
  %v2303 = vpop.f32.mrb[0].mxu0
  %v2304 = vpop.f32.mrb[0].mxu0
  %v2305 = vadd.f32 0.0, %v2304
  %v2306 = vpop.f32.mrb[0].mxu0
  %2307 = vmatprep.mubr.bf16.mxu0 0
  %2308 = vmatmul.mubr.bf16.gmra.mrb[0].mxu0 %v2096
  %v2309 = vpop.f32.mrb[0].mxu0
  %v2310 = vadd.f32 0.0, %v2309
  %v2311 = vpop.f32.mrb[0].mxu0
  %v2312 = vpop.f32.mrb[0].mxu0
  %v2313 = vadd.f32 0.0, %v2312
  %v2314 = vpop.f32.mrb[0].mxu0
  %2315 = vmatprep.mubr.bf16.mxu0 0
  %2316 = vmatmul.mubr.bf16.gmra.mrb[0].mxu0 %v2099
  %v2317 = vpop.f32.mrb[0].mxu0
  %v2318 = vadd.f32 0.0, %v2317
  %v2319 = vpop.f32.mrb[0].mxu0
  %v2320 = vpop.f32.mrb[0].mxu0
  %v2321 = vadd.f32 0.0, %v2320
  %v2322 = vpop.f32.mrb[0].mxu0
  %2323 = vmatprep.mubr.bf16.mxu0 0
  %2324 = vmatmul.mubr.bf16.gmra.mrb[0].mxu0 %v2102
  %v2325 = vpop.f32.mrb[0].mxu0
  %v2326 = vadd.f32 0.0, %v2325
  %v2327 = vpop.f32.mrb[0].mxu0
  %v2328 = vpop.f32.mrb[0].mxu0
  %v2329 = vadd.f32 0.0, %v2328
  %v2330 = vpop.f32.mrb[0].mxu0
  %2331 = vmatprep.mubr.bf16.mxu0 0
  %2332 = vmatmul.mubr.bf16.gmra.mrb[0].mxu0 %v2105
  %v2333 = vpop.f32.mrb[0].mxu0
  %v2334 = vadd.f32 0.0, %v2333
  %v2335 = vpop.f32.mrb[0].mxu0
  %v2336 = vpop.f32.mrb[0].mxu0
  %v2337 = vadd.f32 0.0, %v2336
  %v2338 = vpop.f32.mrb[0].mxu0
  %2339 = vdwg.mxu0
  %v2340 = vmul.f32 %v2142, %v533
  %v2341 = vmul.f32 %v2145, %v533
  %v2342 = vmul.f32 %v2150, %v533
  %v2343 = vmul.f32 %v2153, %v533
  %v2344 = vmul.f32 %v2158, %v533
  %v2345 = vmul.f32 %v2161, %v533
  %v2346 = vmul.f32 %v2166, %v533
  %v2347 = vmul.f32 %v2169, %v533
  %v2348 = vmul.f32 %v2174, %v533
  %v2349 = vmul.f32 %v2177, %v533
  %v2350 = vmul.f32 %v2182, %v533
  %v2351 = vmul.f32 %v2185, %v533
  %v2352 = vmul.f32 %v2190, %v533
  %v2353 = vmul.f32 %v2193, %v533
  %v2354 = vmul.f32 %v2198, %v533
  %v2355 = vmul.f32 %v2201, %v533
  %v2356 = vmul.f32 %v2206, %v533
  %v2357 = vmul.f32 %v2209, %v533
  %v2358 = vmul.f32 %v2214, %v533
  %v2359 = vmul.f32 %v2217, %v533
  %v2360 = vmul.f32 %v2222, %v533
  %v2361 = vmul.f32 %v2225, %v533
  %v2362 = vmul.f32 %v2230, %v533
  %v2363 = vmul.f32 %v2233, %v533
  %v2364 = vmul.f32 %v2238, %v533
  %v2365 = vmul.f32 %v2241, %v533
  %v2366 = vmul.f32 %v2246, %v533
  %v2367 = vmul.f32 %v2249, %v533
  %v2368 = vmul.f32 %v2254, %v533
  %v2369 = vmul.f32 %v2257, %v533
  %v2370 = vmul.f32 %v2262, %v533
  %v2371 = vmul.f32 %v2265, %v533
  %v2372 = vmul.f32 %v2270, %v533
  %v2373 = vmul.f32 %v2273, %v533
  %v2374 = vmul.f32 %v2278, %v533
  %v2375 = vmul.f32 %v2281, %v533
  %v2376 = vmul.f32 %v2286, %v533
  %v2377 = vmul.f32 %v2289, %v533
  %v2378 = vmul.f32 %v2294, %v533
  %v2379 = vmul.f32 %v2297, %v533
  %v2380 = vmul.f32 %v2302, %v533
  %v2381 = vmul.f32 %v2305, %v533
  %v2382 = vmul.f32 %v2310, %v533
  %v2383 = vmul.f32 %v2313, %v533
  %v2384 = vmul.f32 %v2318, %v533
  %v2385 = vmul.f32 %v2321, %v533
  %v2386 = vmul.f32 %v2326, %v533
  %v2387 = vmul.f32 %v2329, %v533
  %v2388 = vmul.f32 %v2334, %v533
  %v2389 = vmul.f32 %v2337, %v533
  %v2390 = vadd.f32 %v2340, %v589
  %v2391 = vadd.f32 %v2341, %v589
  %v2392 = vadd.f32 %v2342, %v589
  %v2393 = vadd.f32 %v2343, %v589
  %v2394 = vadd.f32 %v2344, %v589
  %v2395 = vadd.f32 %v2345, %v589
  %v2396 = vadd.f32 %v2346, %v589
  %v2397 = vadd.f32 %v2347, %v589
  %v2398 = vadd.f32 %v2348, %v589
  %v2399 = vadd.f32 %v2349, %v589
  %v2400 = vadd.f32 %v2350, %v589
  %v2401 = vadd.f32 %v2351, %v589
  %v2402 = vadd.f32 %v2352, %v589
  %v2403 = vadd.f32 %v2353, %v589
  %v2404 = vadd.f32 %v2354, %v589
  %v2405 = vadd.f32 %v2355, %v589
  %v2406 = vadd.f32 %v2356, %v589
  %v2407 = vadd.f32 %v2357, %v589
  %v2408 = vadd.f32 %v2358, %v589
  %v2409 = vadd.f32 %v2359, %v589
  %v2410 = vadd.f32 %v2360, %v589
  %v2411 = vadd.f32 %v2361, %v589
  %v2412 = vadd.f32 %v2362, %v589
  %v2413 = vadd.f32 %v2363, %v589
  %v2414 = vadd.f32 %v2364, %v589
  %v2415 = vadd.f32 %v2365, %v589
  %v2416 = vadd.f32 %v2366, %v589
  %v2417 = vadd.f32 %v2367, %v589
  %v2418 = vadd.f32 %v2368, %v589
  %v2419 = vadd.f32 %v2369, %v589
  %v2420 = vadd.f32 %v2370, %v589
  %v2421 = vadd.f32 %v2371, %v589
  %v2422 = vadd.f32 %v2372, %v589
  %v2423 = vadd.f32 %v2373, %v589
  %v2424 = vadd.f32 %v2374, %v589
  %v2425 = vadd.f32 %v2375, %v589
  %v2426 = vadd.f32 %v2376, %v589
  %v2427 = vadd.f32 %v2377, %v589
  %v2428 = vadd.f32 %v2378, %v589
  %v2429 = vadd.f32 %v2379, %v589
  %v2430 = vadd.f32 %v2380, %v589
  %v2431 = vadd.f32 %v2381, %v589
  %v2432 = vadd.f32 %v2382, %v589
  %v2433 = vadd.f32 %v2383, %v589
  %v2434 = vadd.f32 %v2384, %v589
  %v2435 = vadd.f32 %v2385, %v589
  %v2436 = vadd.f32 %v2386, %v589
  %v2437 = vadd.f32 %v2387, %v589
  %v2438 = vadd.f32 %v2388, %v589
  %v2439 = vadd.f32 %v2389, %v589
  %v2440 = vmax.f32 %v1807, %v2390
  %v2441 = vmax.f32 %v1808, %v2391
  %v2442 = vmax.f32 %v1809, %v2392
  %v2443 = vmax.f32 %v1810, %v2393
  %v2444 = vmax.f32 %v1811, %v2394
  %v2445 = vmax.f32 %v1812, %v2395
  %v2446 = vmax.f32 %v1813, %v2396
  %v2447 = vmax.f32 %v1814, %v2397
  %v2448 = vmax.f32 %v1815, %v2398
  %v2449 = vmax.f32 %v1816, %v2399
  %v2450 = vmax.f32 %v1817, %v2400
  %v2451 = vmax.f32 %v1818, %v2401
  %v2452 = vmax.f32 %v1819, %v2402
  %v2453 = vmax.f32 %v1820, %v2403
  %v2454 = vmax.f32 %v1821, %v2404
  %v2455 = vmax.f32 %v1822, %v2405
  %v2456 = vmax.f32 %v1823, %v2406
  %v2457 = vmax.f32 %v1824, %v2407
  %v2458 = vmax.f32 %v1825, %v2408
  %v2459 = vmax.f32 %v1826, %v2409
  %v2460 = vmax.f32 %v1827, %v2410
  %v2461 = vmax.f32 %v1828, %v2411
  %v2462 = vmax.f32 %v1829, %v2412
  %v2463 = vmax.f32 %v1830, %v2413
  %v2464 = vmax.f32 %v1831, %v2414
  %v2465 = vmax.f32 %v1832, %v2415
  %v2466 = vmax.f32 %v1833, %v2416
  %v2467 = vmax.f32 %v1834, %v2417
  %v2468 = vmax.f32 %v1835, %v2418
  %v2469 = vmax.f32 %v1836, %v2419
  %v2470 = vmax.f32 %v1837, %v2420
  %v2471 = vmax.f32 %v1838, %v2421
  %v2472 = vmax.f32 %v1839, %v2422
  %v2473 = vmax.f32 %v1840, %v2423
  %v2474 = vmax.f32 %v1841, %v2424
  %v2475 = vmax.f32 %v1842, %v2425
  %v2476 = vmax.f32 %v1843, %v2426
  %v2477 = vmax.f32 %v1844, %v2427
  %v2478 = vmax.f32 %v1845, %v2428
  %v2479 = vmax.f32 %v1846, %v2429
  %v2480 = vmax.f32 %v1847, %v2430
  %v2481 = vmax.f32 %v1848, %v2431
  %v2482 = vmax.f32 %v1849, %v2432
  %v2483 = vmax.f32 %v1850, %v2433
  %v2484 = vmax.f32 %v1851, %v2434
  %v2485 = vmax.f32 %v1852, %v2435
  %v2486 = vmax.f32 %v1853, %v2436
  %v2487 = vmax.f32 %v1854, %v2437
  %v2488 = vmax.f32 %v1855, %v2438
  %v2489 = vmax.f32 %v1856, %v2439
  %v2490 = vmax.f32 %v1224, %v2440
  %v2491 = vmax.f32 %v1225, %v2441
  %v2492 = vmax.f32 %v1226, %v2442
  %v2493 = vmax.f32 %v1227, %v2443
  %v2494 = vmax.f32 %v1228, %v2444
  %v2495 = vmax.f32 %v1229, %v2445
  %v2496 = vmax.f32 %v1230, %v2446
  %v2497 = vmax.f32 %v1231, %v2447
  %v2498 = vmax.f32 %v1232, %v2448
  %v2499 = vmax.f32 %v1233, %v2449
  %v2500 = vmax.f32 %v1234, %v2450
  %v2501 = vmax.f32 %v1235, %v2451
  %v2502 = vmax.f32 %v1236, %v2452
  %v2503 = vmax.f32 %v1237, %v2453
  %v2504 = vmax.f32 %v1238, %v2454
  %v2505 = vmax.f32 %v1239, %v2455
  %v2506 = vmax.f32 %v1240, %v2456
  %v2507 = vmax.f32 %v1241, %v2457
  %v2508 = vmax.f32 %v1242, %v2458
  %v2509 = vmax.f32 %v1243, %v2459
  %v2510 = vmax.f32 %v1244, %v2460
  %v2511 = vmax.f32 %v1245, %v2461
  %v2512 = vmax.f32 %v1246, %v2462
  %v2513 = vmax.f32 %v1247, %v2463
  %v2514 = vmax.f32 %v1248, %v2464
  %v2515 = vmax.f32 %v1249, %v2465
  %v2516 = vmax.f32 %v1250, %v2466
  %v2517 = vmax.f32 %v1251, %v2467
  %v2518 = vmax.f32 %v1252, %v2468
  %v2519 = vmax.f32 %v1253, %v2469
  %v2520 = vmax.f32 %v1254, %v2470
  %v2521 = vmax.f32 %v1255, %v2471
  %v2522 = vmax.f32 %v1256, %v2472
  %v2523 = vmax.f32 %v1257, %v2473
  %v2524 = vmax.f32 %v1258, %v2474
  %v2525 = vmax.f32 %v1259, %v2475
  %v2526 = vmax.f32 %v1260, %v2476
  %v2527 = vmax.f32 %v1261, %v2477
  %v2528 = vmax.f32 %v1262, %v2478
  %v2529 = vmax.f32 %v1263, %v2479
  %v2530 = vmax.f32 %v1264, %v2480
  %v2531 = vmax.f32 %v1265, %v2481
  %v2532 = vmax.f32 %v1266, %v2482
  %v2533 = vmax.f32 %v1267, %v2483
  %v2534 = vmax.f32 %v1268, %v2484
  %v2535 = vmax.f32 %v1269, %v2485
  %v2536 = vmax.f32 %v1270, %v2486
  %v2537 = vmax.f32 %v1271, %v2487
  %v2538 = vmax.f32 %v1272, %v2488
  %v2539 = vmax.f32 %v1273, %v2489
  %v2540 = vmax.f32 %v2490, 0.0
  %v2541 = vmax.f32 %v2491, 0.0
  %v2542 = vmax.f32 %v2492, 0.0
  %v2543 = vmax.f32 %v2493, 0.0
  %v2544 = vmax.f32 %v2494, 0.0
  %v2545 = vmax.f32 %v2495, 0.0
  %v2546 = vmax.f32 %v2496, 0.0
  %v2547 = vmax.f32 %v2497, 0.0
  %v2548 = vmax.f32 %v2498, 0.0
  %v2549 = vmax.f32 %v2499, 0.0
  %v2550 = vmax.f32 %v2500, 0.0
  %v2551 = vmax.f32 %v2501, 0.0
  %v2552 = vmax.f32 %v2502, 0.0
  %v2553 = vmax.f32 %v2503, 0.0
  %v2554 = vmax.f32 %v2504, 0.0
  %v2555 = vmax.f32 %v2505, 0.0
  %v2556 = vmax.f32 %v2506, 0.0
  %v2557 = vmax.f32 %v2507, 0.0
  %v2558 = vmax.f32 %v2508, 0.0
  %v2559 = vmax.f32 %v2509, 0.0
  %v2560 = vmax.f32 %v2510, 0.0
  %v2561 = vmax.f32 %v2511, 0.0
  %v2562 = vmax.f32 %v2512, 0.0
  %v2563 = vmax.f32 %v2513, 0.0
  %v2564 = vmax.f32 %v2514, 0.0
  %v2565 = vmax.f32 %v2515, 0.0
  %v2566 = vmax.f32 %v2516, 0.0
  %v2567 = vmax.f32 %v2517, 0.0
  %v2568 = vmax.f32 %v2518, 0.0
  %v2569 = vmax.f32 %v2519, 0.0
  %v2570 = vmax.f32 %v2520, 0.0
  %v2571 = vmax.f32 %v2521, 0.0
  %v2572 = vmax.f32 %v2522, 0.0
  %v2573 = vmax.f32 %v2523, 0.0
  %v2574 = vmax.f32 %v2524, 0.0
  %v2575 = vmax.f32 %v2525, 0.0
  %v2576 = vmax.f32 %v2526, 0.0
  %v2577 = vmax.f32 %v2527, 0.0
  %v2578 = vmax.f32 %v2528, 0.0
  %v2579 = vmax.f32 %v2529, 0.0
  %v2580 = vmax.f32 %v2530, 0.0
  %v2581 = vmax.f32 %v2531, 0.0
  %v2582 = vmax.f32 %v2532, 0.0
  %v2583 = vmax.f32 %v2533, 0.0
  %v2584 = vmax.f32 %v2534, 0.0
  %v2585 = vmax.f32 %v2535, 0.0
  %v2586 = vmax.f32 %v2536, 0.0
  %v2587 = vmax.f32 %v2537, 0.0
  %v2588 = vmax.f32 %v2538, 0.0
  %v2589 = vmax.f32 %v2539, 0.0
  %v2590 = vpack.c.bf16 %v2541, %v2540
  %v2591 = vpack.c.bf16 %v2543, %v2542
  %v2592 = vpack.c.bf16 %v2545, %v2544
  %v2593 = vpack.c.bf16 %v2547, %v2546
  %v2594 = vpack.c.bf16 %v2549, %v2548
  %v2595 = vpack.c.bf16 %v2551, %v2550
  %v2596 = vpack.c.bf16 %v2553, %v2552
  %v2597 = vpack.c.bf16 %v2555, %v2554
  %v2598 = vpack.c.bf16 %v2557, %v2556
  %v2599 = vpack.c.bf16 %v2559, %v2558
  %v2600 = vpack.c.bf16 %v2561, %v2560
  %v2601 = vpack.c.bf16 %v2563, %v2562
  %v2602 = vpack.c.bf16 %v2565, %v2564
  %v2603 = vpack.c.bf16 %v2567, %v2566
  %v2604 = vpack.c.bf16 %v2569, %v2568
  %v2605 = vpack.c.bf16 %v2571, %v2570
  %v2606 = vpack.c.bf16 %v2573, %v2572
  %v2607 = vpack.c.bf16 %v2575, %v2574
  %v2608 = vpack.c.bf16 %v2577, %v2576
  %v2609 = vpack.c.bf16 %v2579, %v2578
  %v2610 = vpack.c.bf16 %v2581, %v2580
  %v2611 = vpack.c.bf16 %v2583, %v2582
  %v2612 = vpack.c.bf16 %v2585, %v2584
  %v2613 = vpack.c.bf16 %v2587, %v2586
  %v2614 = vpack.c.bf16 %v2589, %v2588
  %v2640 = vunpack.c.l.b16 %v2590
  %v2641 = vunpack.c.h.b16 %v2590
  %v2642 = vunpack.c.l.b16 %v2591
  %v2643 = vunpack.c.h.b16 %v2591
  %v2644 = vunpack.c.l.b16 %v2592
  %v2645 = vunpack.c.h.b16 %v2592
  %v2646 = vunpack.c.l.b16 %v2593
  %v2647 = vunpack.c.h.b16 %v2593
  %v2648 = vunpack.c.l.b16 %v2594
  %v2649 = vunpack.c.h.b16 %v2594
  %v2650 = vunpack.c.l.b16 %v2595
  %v2651 = vunpack.c.h.b16 %v2595
  %v2652 = vunpack.c.l.b16 %v2596
  %v2653 = vunpack.c.h.b16 %v2596
  %v2654 = vunpack.c.l.b16 %v2597
  %v2655 = vunpack.c.h.b16 %v2597
  %v2656 = vunpack.c.l.b16 %v2598
  %v2657 = vunpack.c.h.b16 %v2598
  %v2658 = vunpack.c.l.b16 %v2599
  %v2659 = vunpack.c.h.b16 %v2599
  %v2660 = vunpack.c.l.b16 %v2600
  %v2661 = vunpack.c.h.b16 %v2600
  %v2662 = vunpack.c.l.b16 %v2601
  %v2663 = vunpack.c.h.b16 %v2601
  %v2664 = vunpack.c.l.b16 %v2602
  %v2665 = vunpack.c.h.b16 %v2602
  %v2666 = vunpack.c.l.b16 %v2603
  %v2667 = vunpack.c.h.b16 %v2603
  %v2668 = vunpack.c.l.b16 %v2604
  %v2669 = vunpack.c.h.b16 %v2604
  %v2670 = vunpack.c.l.b16 %v2605
  %v2671 = vunpack.c.h.b16 %v2605
  %v2672 = vunpack.c.l.b16 %v2606
  %v2673 = vunpack.c.h.b16 %v2606
  %v2674 = vunpack.c.l.b16 %v2607
  %v2675 = vunpack.c.h.b16 %v2607
  %v2676 = vunpack.c.l.b16 %v2608
  %v2677 = vunpack.c.h.b16 %v2608
  %v2678 = vunpack.c.l.b16 %v2609
  %v2679 = vunpack.c.h.b16 %v2609
  %v2680 = vunpack.c.l.b16 %v2610
  %v2681 = vunpack.c.h.b16 %v2610
  %v2682 = vunpack.c.l.b16 %v2611
  %v2683 = vunpack.c.h.b16 %v2611
  %v2684 = vunpack.c.l.b16 %v2612
  %v2685 = vunpack.c.h.b16 %v2612
  %v2686 = vunpack.c.l.b16 %v2613
  %v2687 = vunpack.c.h.b16 %v2613
  %v2688 = vunpack.c.l.b16 %v2614
  %v2689 = vunpack.c.h.b16 %v2614
  %v2690 = vpack.c.b16 %v2640, %v2640
  %v2691 = vpack.c.b16 %v2641, %v2641
  %v2692 = vpack.c.b16 %v2642, %v2642
  %v2693 = vpack.c.b16 %v2643, %v2643
  %v2694 = vpack.c.b16 %v2644, %v2644
  %v2695 = vpack.c.b16 %v2645, %v2645
  %v2696 = vpack.c.b16 %v2646, %v2646
  %v2697 = vpack.c.b16 %v2647, %v2647
  %v2698 = vpack.c.b16 %v2648, %v2648
  %v2699 = vpack.c.b16 %v2649, %v2649
  %v2700 = vpack.c.b16 %v2650, %v2650
  %v2701 = vpack.c.b16 %v2651, %v2651
  %v2702 = vpack.c.b16 %v2652, %v2652
  %v2703 = vpack.c.b16 %v2653, %v2653
  %v2704 = vpack.c.b16 %v2654, %v2654
  %v2705 = vpack.c.b16 %v2655, %v2655
  %v2706 = vpack.c.b16 %v2656, %v2656
  %v2707 = vpack.c.b16 %v2657, %v2657
  %v2708 = vpack.c.b16 %v2658, %v2658
  %v2709 = vpack.c.b16 %v2659, %v2659
  %v2710 = vpack.c.b16 %v2660, %v2660
  %v2711 = vpack.c.b16 %v2661, %v2661
  %v2712 = vpack.c.b16 %v2662, %v2662
  %v2713 = vpack.c.b16 %v2663, %v2663
  %v2714 = vpack.c.b16 %v2664, %v2664
  %v2715 = vpack.c.b16 %v2665, %v2665
  %v2716 = vpack.c.b16 %v2666, %v2666
  %v2717 = vpack.c.b16 %v2667, %v2667
  %v2718 = vpack.c.b16 %v2668, %v2668
  %v2719 = vpack.c.b16 %v2669, %v2669
  %v2720 = vpack.c.b16 %v2670, %v2670
  %v2721 = vpack.c.b16 %v2671, %v2671
  %v2722 = vpack.c.b16 %v2672, %v2672
  %v2723 = vpack.c.b16 %v2673, %v2673
  %v2724 = vpack.c.b16 %v2674, %v2674
  %v2725 = vpack.c.b16 %v2675, %v2675
  %v2726 = vpack.c.b16 %v2676, %v2676
  %v2727 = vpack.c.b16 %v2677, %v2677
  %v2728 = vpack.c.b16 %v2678, %v2678
  %v2729 = vpack.c.b16 %v2679, %v2679
  %v2730 = vpack.c.b16 %v2680, %v2680
  %v2731 = vpack.c.b16 %v2681, %v2681
  %v2732 = vpack.c.b16 %v2682, %v2682
  %v2733 = vpack.c.b16 %v2683, %v2683
  %v2734 = vpack.c.b16 %v2684, %v2684
  %v2735 = vpack.c.b16 %v2685, %v2685
  %v2736 = vpack.c.b16 %v2686, %v2686
  %v2737 = vpack.c.b16 %v2687, %v2687
  %v2738 = vpack.c.b16 %v2688, %v2688
  %v2739 = vpack.c.b16 %v2689, %v2689
  %vm2790 = vcmask 125952
  %2791 = vst.msk [vmem:[%s7] sm:$0xf] %vm2790, %v2690
  %2792 = vst.msk [vmem:[%s7 + $0x4] sm:$0xf] %vm2790, %v2691
  %2793 = vst.msk [vmem:[%s7 + $0x8] sm:$0xf] %vm2790, %v2692
  %2794 = vst.msk [vmem:[%s7 + $0xc] sm:$0xf] %vm2790, %v2693
  %2795 = vst.msk [vmem:[%s7 + $0x10] sm:$0xf] %vm2790, %v2694
  %2796 = vst.msk [vmem:[%s7 + $0x14] sm:$0xf] %vm2790, %v2695
  %2797 = vst.msk [vmem:[%s7 + $0x18] sm:$0xf] %vm2790, %v2696
  %2798 = vst.msk [vmem:[%s7 + $0x1c] sm:$0xf] %vm2790, %v2697
  %2799 = vst.msk [vmem:[%s7 + $0x20] sm:$0xf] %vm2790, %v2698
  %2800 = vst.msk [vmem:[%s7 + $0x24] sm:$0xf] %vm2790, %v2699
  %2801 = vst.msk [vmem:[%s7 + $0x28] sm:$0xf] %vm2790, %v2700
  %2802 = vst.msk [vmem:[%s7 + $0x2c] sm:$0xf] %vm2790, %v2701
  %2803 = vst.msk [vmem:[%s7 + $0x30] sm:$0xf] %vm2790, %v2702
  %2804 = vst.msk [vmem:[%s7 + $0x34] sm:$0xf] %vm2790, %v2703
  %2805 = vst.msk [vmem:[%s7 + $0x38] sm:$0xf] %vm2790, %v2704
  %2806 = vst.msk [vmem:[%s7 + $0x3c] sm:$0xf] %vm2790, %v2705
  %2807 = vst.msk [vmem:[%s7 + $0x40] sm:$0xf] %vm2790, %v2706
  %2808 = vst.msk [vmem:[%s7 + $0x44] sm:$0xf] %vm2790, %v2707
  %2809 = vst.msk [vmem:[%s7 + $0x48] sm:$0xf] %vm2790, %v2708
  %2810 = vst.msk [vmem:[%s7 + $0x4c] sm:$0xf] %vm2790, %v2709
  %2811 = vst.msk [vmem:[%s7 + $0x50] sm:$0xf] %vm2790, %v2710
  %2812 = vst.msk [vmem:[%s7 + $0x54] sm:$0xf] %vm2790, %v2711
  %2813 = vst.msk [vmem:[%s7 + $0x58] sm:$0xf] %vm2790, %v2712
  %2814 = vst.msk [vmem:[%s7 + $0x5c] sm:$0xf] %vm2790, %v2713
  %2815 = vst.msk [vmem:[%s7 + $0x60] sm:$0xf] %vm2790, %v2714
  %2816 = vst.msk [vmem:[%s7 + $0x64] sm:$0xf] %vm2790, %v2715
  %2817 = vst.msk [vmem:[%s7 + $0x68] sm:$0xf] %vm2790, %v2716
  %2818 = vst.msk [vmem:[%s7 + $0x6c] sm:$0xf] %vm2790, %v2717
  %2819 = vst.msk [vmem:[%s7 + $0x70] sm:$0xf] %vm2790, %v2718
  %2820 = vst.msk [vmem:[%s7 + $0x74] sm:$0xf] %vm2790, %v2719
  %2821 = vst.msk [vmem:[%s7 + $0x78] sm:$0xf] %vm2790, %v2720
  %2822 = vst.msk [vmem:[%s7 + $0x7c] sm:$0xf] %vm2790, %v2721
  %2823 = vst.msk [vmem:[%s7 + $0x80] sm:$0xf] %vm2790, %v2722
  %2824 = vst.msk [vmem:[%s7 + $0x84] sm:$0xf] %vm2790, %v2723
  %2825 = vst.msk [vmem:[%s7 + $0x88] sm:$0xf] %vm2790, %v2724
  %2826 = vst.msk [vmem:[%s7 + $0x8c] sm:$0xf] %vm2790, %v2725
  %2827 = vst.msk [vmem:[%s7 + $0x90] sm:$0xf] %vm2790, %v2726
  %2828 = vst.msk [vmem:[%s7 + $0x94] sm:$0xf] %vm2790, %v2727
  %2829 = vst.msk [vmem:[%s7 + $0x98] sm:$0xf] %vm2790, %v2728
  %2830 = vst.msk [vmem:[%s7 + $0x9c] sm:$0xf] %vm2790, %v2729
  %2831 = vst.msk [vmem:[%s7 + $0xa0] sm:$0xf] %vm2790, %v2730
  %2832 = vst.msk [vmem:[%s7 + $0xa4] sm:$0xf] %vm2790, %v2731
  %2833 = vst.msk [vmem:[%s7 + $0xa8] sm:$0xf] %vm2790, %v2732
  %2834 = vst.msk [vmem:[%s7 + $0xac] sm:$0xf] %vm2790, %v2733
  %2835 = vst.msk [vmem:[%s7 + $0xb0] sm:$0xf] %vm2790, %v2734
  %2836 = vst.msk [vmem:[%s7 + $0xb4] sm:$0xf] %vm2790, %v2735
  %2837 = vst.msk [vmem:[%s7 + $0xb8] sm:$0xf] %vm2790, %v2736
  %2838 = vst.msk [vmem:[%s7 + $0xbc] sm:$0xf] %vm2790, %v2737
  %2839 = vst.msk [vmem:[%s7 + $0xc0] sm:$0xf] %vm2790, %v2738
  %2840 = vst.msk [vmem:[%s7 + $0xc4] sm:$0xf] %vm2790, %v2739
  // Predicated region
  $region30: #{convnet_forward.3} parent=0 // pred_check
    _
  $region31: #{convnet_forward.3} parent=0 // pred_check_branch
    %2842 = sbr.rel (0) target = $region33
  $region32: #{convnet_forward.3} parent=0 // pred_region
    _
  $region33: #{convnet_forward.3} parent=0 // pred_fallthru
    _
  // Predicated region
  $region34: #{convnet_forward.3} parent=0 // pred_check
    _
  $region35: #{convnet_forward.3} parent=0 // pred_check_branch
    %2844 = sbr.rel (0) target = $region37
  $region36: #{convnet_forward.3} parent=0 // pred_region
    _
  $region37: #{convnet_forward.3} parent=0 // pred_fallthru
    _

// kernel: convnet_forward.4
$region0: #{convnet_forward.4}
  #allocation0 [shape = 'u32[]', space=smem, size = 0x4, offset = 0x4, fixed_abs, tag = 'smem constant byte address 0x4 - core index']
  #allocation1 [shape = 'u32[144,128]{1,0:T(1,128)}', space=vmem, size = 0x12000, scoped, tag = 'internal scratch']
  %s0 = inlined_call_operand.vmem [shape: bf16[112,400], index: 0, kind: input, shape index: {}]
  %s1 = inlined_call_operand.vmem [shape: bf16[112,400], index: 1, kind: input, shape index: {}]
  %s2 = inlined_call_operand.vmem [shape: bf16[112,400], index: 2, kind: input, shape index: {}]
  %s3 = inlined_call_operand.vmem [shape: bf16[112,400], index: 3, kind: input, shape index: {}]
  %s4 = inlined_call_operand.vmem [shape: bf16[400,128], index: 4, kind: input, shape index: {}]
  %s5 = inlined_call_operand.vmem [shape: f32[1,128], index: 5, kind: input, shape index: {}]
  %s6 = inlined_call_operand.vmem [shape: f32[1,128], index: 6, kind: input, shape index: {}]
  %s7 = inlined_call_operand.vmem [shape: bf16[112,128], index: 7, kind: output, shape index: {}]
  %s8 = sld [smem:[#allocation0]]
  $region38: #{convnet_forward.4} parent=0
    _
  %s10 = ssub.s32 1, %s8
  %s11 = scalar_select 0, %s10, %s8
  // Predicated region
  $region2: #{convnet_forward.4} parent=0 // pred_check
    _
  $region3: #{convnet_forward.4} parent=0 // pred_check_branch
    %13 = sbr.rel (0) target = $region5
  $region4: #{convnet_forward.4} parent=0 // pred_region
    _
  $region5: #{convnet_forward.4} parent=0 // pred_fallthru
    _
  // Predicated region
  $region6: #{convnet_forward.4} parent=0 // pred_check
    _
  $region7: #{convnet_forward.4} parent=0 // pred_check_branch
    %15 = sbr.rel (0) target = $region9
  $region8: #{convnet_forward.4} parent=0 // pred_region
    _
  $region9: #{convnet_forward.4} parent=0 // pred_fallthru
    _
  // Predicated region
  $region10: #{convnet_forward.4} parent=0 // pred_check
    _
  $region11: #{convnet_forward.4} parent=0 // pred_check_branch
    %17 = sbr.rel (0) target = $region13
  $region12: #{convnet_forward.4} parent=0 // pred_region
    _
  $region13: #{convnet_forward.4} parent=0 // pred_fallthru
    _
  // Predicated region
  $region14: #{convnet_forward.4} parent=0 // pred_check
    _
  $region15: #{convnet_forward.4} parent=0 // pred_check_branch
    %19 = sbr.rel (0) target = $region17
  $region16: #{convnet_forward.4} parent=0 // pred_region
    _
  $region17: #{convnet_forward.4} parent=0 // pred_fallthru
    _
  // Predicated region
  $region18: #{convnet_forward.4} parent=0 // pred_check
    _
  $region19: #{convnet_forward.4} parent=0 // pred_check_branch
    %21 = sbr.rel (0) target = $region21
  $region20: #{convnet_forward.4} parent=0 // pred_region
    _
  $region21: #{convnet_forward.4} parent=0 // pred_fallthru
    _
  // Predicated region
  $region22: #{convnet_forward.4} parent=0 // pred_check
    _
  $region23: #{convnet_forward.4} parent=0 // pred_check_branch
    %23 = sbr.rel (0) target = $region25
  $region24: #{convnet_forward.4} parent=0 // pred_region
    _
  $region25: #{convnet_forward.4} parent=0 // pred_fallthru
    _
  // Predicated region
  $region26: #{convnet_forward.4} parent=0 // pred_check
    _
  $region27: #{convnet_forward.4} parent=0 // pred_check_branch
    %25 = sbr.rel (0) target = $region29
  $region28: #{convnet_forward.4} parent=0 // pred_region
    _
  $region29: #{convnet_forward.4} parent=0 // pred_fallthru
    _
  %v27 = vld [vmem:[%s4] sm:$0xf]
  %v28 = vld [vmem:[%s4 + $0x4] sm:$0xf]
  %v29 = vld [vmem:[%s4 + $0x8] sm:$0xf]
  %v30 = vld [vmem:[%s4 + $0xc] sm:$0xf]
  %v31 = vld [vmem:[%s4 + $0x10] sm:$0xf]
  %v32 = vld [vmem:[%s4 + $0x14] sm:$0xf]
  %v33 = vld [vmem:[%s4 + $0x18] sm:$0xf]
  %v34 = vld [vmem:[%s4 + $0x1c] sm:$0xf]
  %v35 = vld [vmem:[%s4 + $0x20] sm:$0xf]
  %v36 = vld [vmem:[%s4 + $0x24] sm:$0xf]
  %v37 = vld [vmem:[%s4 + $0x28] sm:$0xf]
  %v38 = vld [vmem:[%s4 + $0x2c] sm:$0xf]
  %v39 = vld [vmem:[%s4 + $0x30] sm:$0xf]
  %v40 = vld [vmem:[%s4 + $0x34] sm:$0xf]
  %v41 = vld [vmem:[%s4 + $0x38] sm:$0xf]
  %v42 = vld [vmem:[%s4 + $0x3c] sm:$0xf]
  %v43 = vld [vmem:[%s4 + $0x40] sm:$0xf]
  %v44 = vld [vmem:[%s4 + $0x44] sm:$0xf]
  %v45 = vld [vmem:[%s4 + $0x48] sm:$0xf]
  %v46 = vld [vmem:[%s4 + $0x4c] sm:$0xf]
  %v47 = vld [vmem:[%s4 + $0x50] sm:$0xf]
  %v48 = vld [vmem:[%s4 + $0x54] sm:$0xf]
  %v49 = vld [vmem:[%s4 + $0x58] sm:$0xf]
  %v50 = vld [vmem:[%s4 + $0x5c] sm:$0xf]
  %v51 = vld [vmem:[%s4 + $0x60] sm:$0xf]
  %v52 = vld [vmem:[%s4 + $0x64] sm:$0xf]
  %v53 = vld [vmem:[%s4 + $0x68] sm:$0xf]
  %v54 = vld [vmem:[%s4 + $0x6c] sm:$0xf]
  %v55 = vld [vmem:[%s4 + $0x70] sm:$0xf]
  %v56 = vld [vmem:[%s4 + $0x74] sm:$0xf]
  %v57 = vld [vmem:[%s4 + $0x78] sm:$0xf]
  %v58 = vld [vmem:[%s4 + $0x7c] sm:$0xf]
  %v59 = vld [vmem:[%s4 + $0x80] sm:$0xf]
  %v60 = vld [vmem:[%s4 + $0x84] sm:$0xf]
  %v61 = vld [vmem:[%s4 + $0x88] sm:$0xf]
  %v62 = vld [vmem:[%s4 + $0x8c] sm:$0xf]
  %v63 = vld [vmem:[%s4 + $0x90] sm:$0xf]
  %v64 = vld [vmem:[%s4 + $0x94] sm:$0xf]
  %v65 = vld [vmem:[%s4 + $0x98] sm:$0xf]
  %v66 = vld [vmem:[%s4 + $0x9c] sm:$0xf]
  %v67 = vld [vmem:[%s4 + $0xa0] sm:$0xf]
  %v68 = vld [vmem:[%s4 + $0xa4] sm:$0xf]
  %v69 = vld [vmem:[%s4 + $0xa8] sm:$0xf]
  %v70 = vld [vmem:[%s4 + $0xac] sm:$0xf]
  %v71 = vld [vmem:[%s4 + $0xb0] sm:$0xf]
  %v72 = vld [vmem:[%s4 + $0xb4] sm:$0xf]
  %v73 = vld [vmem:[%s4 + $0xb8] sm:$0xf]
  %v74 = vld [vmem:[%s4 + $0xbc] sm:$0xf]
  %v75 = vld [vmem:[%s4 + $0xc0] sm:$0xf]
  %v76 = vld [vmem:[%s4 + $0xc4] sm:$0xf]
  %v77 = vld [vmem:[%s5] sm:$0x1]
  %v78 = vld [vmem:[%s6] sm:$0x1]
  %v79 = vld [vmem:[%s0] sm:$0xff]
  %v80 = vld [vmem:[%s0 + $0x8] sm:$0xff]
  %v81 = vld [vmem:[%s0 + $0x10] sm:$0xff]
  %v82 = vld [vmem:[%s0 + $0x18] sm:$0xff]
  %v83 = vld [vmem:[%s0 + $0x20] sm:$0xff]
  %v84 = vld [vmem:[%s0 + $0x28] sm:$0xff]
  %v85 = vld [vmem:[%s0 + $0x30] sm:$0xff]
  %v86 = vld [vmem:[%s0 + $0x38] sm:$0xff]
  %v87 = vld [vmem:[%s0 + $0x40] sm:$0xff]
  %v88 = vld [vmem:[%s0 + $0x48] sm:$0xff]
  %v89 = vld [vmem:[%s0 + $0x50] sm:$0xff]
  %v90 = vld [vmem:[%s0 + $0x58] sm:$0xff]
  %v91 = vld [vmem:[%s0 + $0x60] sm:$0xff]
  %v92 = vld [vmem:[%s0 + $0x68] sm:$0xff]
  %v93 = vld [vmem:[%s0 + $0x70] sm:$0xff]
  %v94 = vld [vmem:[%s0 + $0x78] sm:$0xff]
  %v95 = vld [vmem:[%s0 + $0x80] sm:$0xff]
  %v96 = vld [vmem:[%s0 + $0x88] sm:$0xff]
  %v97 = vld [vmem:[%s0 + $0x90] sm:$0xff]
  %v98 = vld [vmem:[%s0 + $0x98] sm:$0xff]
  %v99 = vld [vmem:[%s0 + $0xa0] sm:$0xff]
  %v100 = vld [vmem:[%s0 + $0xa8] sm:$0xff]
  %v101 = vld [vmem:[%s0 + $0xb0] sm:$0xff]
  %v102 = vld [vmem:[%s0 + $0xb8] sm:$0xff]
  %v103 = vld [vmem:[%s0 + $0xc0] sm:$0xff]
  %v104 = vld [vmem:[%s0 + $0xc8] sm:$0xff]
  %v105 = vld [vmem:[%s0 + $0xd0] sm:$0xff]
  %v106 = vld [vmem:[%s0 + $0xd8] sm:$0xff]
  %v135 = vunpack.c.l.b16 %v79
  %v136 = vunpack.c.h.b16 %v79
  %v137 = vunpack.c.l.b16 %v80
  %v138 = vunpack.c.h.b16 %v80
  %v139 = vunpack.c.l.b16 %v81
  %v140 = vunpack.c.h.b16 %v81
  %v141 = vunpack.c.l.b16 %v82
  %v142 = vunpack.c.h.b16 %v82
  %v143 = vunpack.c.l.b16 %v83
  %v144 = vunpack.c.h.b16 %v83
  %v145 = vunpack.c.l.b16 %v84
  %v146 = vunpack.c.h.b16 %v84
  %v147 = vunpack.c.l.b16 %v85
  %v148 = vunpack.c.h.b16 %v85
  %v149 = vunpack.c.l.b16 %v86
  %v150 = vunpack.c.h.b16 %v86
  %v151 = vunpack.c.l.b16 %v87
  %v152 = vunpack.c.h.b16 %v87
  %v153 = vunpack.c.l.b16 %v88
  %v154 = vunpack.c.h.b16 %v88
  %v155 = vunpack.c.l.b16 %v89
  %v156 = vunpack.c.h.b16 %v89
  %v157 = vunpack.c.l.b16 %v90
  %v158 = vunpack.c.h.b16 %v90
  %v159 = vunpack.c.l.b16 %v91
  %v160 = vunpack.c.h.b16 %v91
  %v161 = vunpack.c.l.b16 %v92
  %v162 = vunpack.c.h.b16 %v92
  %v163 = vunpack.c.l.b16 %v93
  %v164 = vunpack.c.h.b16 %v93
  %v165 = vunpack.c.l.b16 %v94
  %v166 = vunpack.c.h.b16 %v94
  %v167 = vunpack.c.l.b16 %v95
  %v168 = vunpack.c.h.b16 %v95
  %v169 = vunpack.c.l.b16 %v96
  %v170 = vunpack.c.h.b16 %v96
  %v171 = vunpack.c.l.b16 %v97
  %v172 = vunpack.c.h.b16 %v97
  %v173 = vunpack.c.l.b16 %v98
  %v174 = vunpack.c.h.b16 %v98
  %v175 = vunpack.c.l.b16 %v99
  %v176 = vunpack.c.h.b16 %v99
  %v177 = vunpack.c.l.b16 %v100
  %v178 = vunpack.c.h.b16 %v100
  %v179 = vunpack.c.l.b16 %v101
  %v180 = vunpack.c.h.b16 %v101
  %v181 = vunpack.c.l.b16 %v102
  %v182 = vunpack.c.h.b16 %v102
  %v183 = vunpack.c.l.b16 %v103
  %v184 = vunpack.c.h.b16 %v103
  %v185 = vunpack.c.l.b16 %v104
  %v186 = vunpack.c.h.b16 %v104
  %v187 = vunpack.c.l.b16 %v105
  %v188 = vunpack.c.h.b16 %v105
  %v189 = vunpack.c.l.b16 %v106
  %v190 = vunpack.c.h.b16 %v106
  %v191 = vpack.c.b16 %v139, %v135
  %v192 = vpack.c.b16 %v140, %v136
  %v193 = vpack.c.b16 %v141, %v137
  %v194 = vpack.c.b16 %v142, %v138
  %v195 = vpack.c.b16 %v147, %v143
  %v196 = vpack.c.b16 %v148, %v144
  %v197 = vpack.c.b16 %v149, %v145
  %v198 = vpack.c.b16 %v150, %v146
  %v199 = vpack.c.b16 %v155, %v151
  %v200 = vpack.c.b16 %v156, %v152
  %v201 = vpack.c.b16 %v157, %v153
  %v202 = vpack.c.b16 %v158, %v154
  %v203 = vpack.c.b16 %v163, %v159
  %v204 = vpack.c.b16 %v164, %v160
  %v205 = vpack.c.b16 %v165, %v161
  %v206 = vpack.c.b16 %v166, %v162
  %v207 = vpack.c.b16 %v171, %v167
  %v208 = vpack.c.b16 %v172, %v168
  %v209 = vpack.c.b16 %v173, %v169
  %v210 = vpack.c.b16 %v174, %v170
  %v211 = vpack.c.b16 %v179, %v175
  %v212 = vpack.c.b16 %v180, %v176
  %v213 = vpack.c.b16 %v181, %v177
  %v214 = vpack.c.b16 %v182, %v178
  %v215 = vpack.c.b16 %v187, %v183
  %v216 = vpack.c.b16 %v188, %v184
  %v217 = vpack.c.b16 %v189, %v185
  %v218 = vpack.c.b16 %v190, %v186
  %v290 = vunpack.c.l.b16 %v27
  %v291 = vunpack.c.l.b16 %v28
  %v292 = vunpack.c.l.b16 %v29
  %v293 = vunpack.c.l.b16 %v30
  %v294 = vunpack.c.l.b16 %v31
  %v295 = vunpack.c.l.b16 %v32
  %v296 = vunpack.c.l.b16 %v33
  %v297 = vunpack.c.l.b16 %v34
  %v298 = vunpack.c.l.b16 %v35
  %v299 = vunpack.c.l.b16 %v36
  %v300 = vunpack.c.l.b16 %v37
  %v301 = vunpack.c.l.b16 %v38
  %v302 = vunpack.c.l.b16 %v39
  %v303 = vunpack.c.l.b16 %v40
  %v304 = vunpack.c.l.b16 %v41
  %v305 = vunpack.c.l.b16 %v42
  %v306 = vunpack.c.l.b16 %v43
  %v307 = vunpack.c.l.b16 %v44
  %v308 = vunpack.c.l.b16 %v45
  %v309 = vunpack.c.l.b16 %v46
  %v310 = vunpack.c.l.b16 %v47
  %v311 = vunpack.c.l.b16 %v48
  %v312 = vunpack.c.l.b16 %v49
  %v313 = vunpack.c.l.b16 %v50
  %v314 = vunpack.c.l.b16 %v51
  %v315 = vunpack.c.l.b16 %v52
  %v316 = vunpack.c.l.b16 %v53
  %v317 = vunpack.c.l.b16 %v54
  %v318 = vunpack.c.l.b16 %v55
  %v319 = vunpack.c.l.b16 %v56
  %v320 = vunpack.c.l.b16 %v57
  %v321 = vunpack.c.l.b16 %v58
  %v322 = vunpack.c.l.b16 %v59
  %v323 = vunpack.c.l.b16 %v60
  %v324 = vunpack.c.l.b16 %v61
  %v325 = vunpack.c.l.b16 %v62
  %v326 = vunpack.c.l.b16 %v63
  %v327 = vunpack.c.l.b16 %v64
  %v328 = vunpack.c.l.b16 %v65
  %v329 = vunpack.c.l.b16 %v66
  %v330 = vunpack.c.l.b16 %v67
  %v331 = vunpack.c.l.b16 %v68
  %v332 = vunpack.c.l.b16 %v69
  %v333 = vunpack.c.l.b16 %v70
  %v334 = vunpack.c.l.b16 %v71
  %v335 = vunpack.c.l.b16 %v72
  %v336 = vunpack.c.l.b16 %v73
  %v337 = vunpack.c.l.b16 %v74
  %v338 = vunpack.c.l.b16 %v75
  %v339 = vunpack.c.l.b16 %v76
  %v340 = vpack.c.b16 %v291, %v290
  %v341 = vpack.c.b16 %v293, %v292
  %v342 = vpack.c.b16 %v295, %v294
  %v343 = vpack.c.b16 %v297, %v296
  %v344 = vpack.c.b16 %v299, %v298
  %v345 = vpack.c.b16 %v301, %v300
  %v346 = vpack.c.b16 %v303, %v302
  %v347 = vpack.c.b16 %v305, %v304
  %v348 = vpack.c.b16 %v307, %v306
  %v349 = vpack.c.b16 %v309, %v308
  %v350 = vpack.c.b16 %v311, %v310
  %v351 = vpack.c.b16 %v313, %v312
  %v352 = vpack.c.b16 %v315, %v314
  %v353 = vpack.c.b16 %v317, %v316
  %v354 = vpack.c.b16 %v319, %v318
  %v355 = vpack.c.b16 %v321, %v320
  %v356 = vpack.c.b16 %v323, %v322
  %v357 = vpack.c.b16 %v325, %v324
  %v358 = vpack.c.b16 %v327, %v326
  %v359 = vpack.c.b16 %v329, %v328
  %v360 = vpack.c.b16 %v331, %v330
  %v361 = vpack.c.b16 %v333, %v332
  %v362 = vpack.c.b16 %v335, %v334
  %v363 = vpack.c.b16 %v337, %v336
  %v364 = vpack.c.b16 %v339, %v338
  %vm390 = vcmask 130048
  %v392 = vsel %vm390, %v194, 0
  %v395 = vsel %vm390, %v198, 0
  %v398 = vsel %vm390, %v202, 0
  %v401 = vsel %vm390, %v206, 0
  %v404 = vsel %vm390, %v210, 0
  %v407 = vsel %vm390, %v214, 0
  %v410 = vsel %vm390, %v218, 0
  %412 = vmatprep.subr.bf16.mxu0 0
  %413 = vmatpush1.bf16.msra.mxu0 %v340
  %414 = vmatprep.subr.bf16.mxu0 0
  %415 = vmatpush1.bf16.msra.mxu0 %v341
  %416 = vmatprep.subr.bf16.mxu0 0
  %417 = vmatpush1.bf16.msra.mxu0 %v342
  %418 = vmatprep.subr.bf16.mxu0 0
  %419 = vmatpush1.bf16.msra.mxu0 %v343
  %420 = vmatprep.subr.bf16.mxu0 0
  %421 = vmatpush1.bf16.msra.mxu0 %v344
  %422 = vmatprep.subr.bf16.mxu0 0
  %423 = vmatpush1.bf16.msra.mxu0 %v345
  %424 = vmatprep.subr.bf16.mxu0 0
  %425 = vmatpush1.bf16.msra.mxu0 %v346
  %426 = vmatprep.subr.bf16.mxu0 0
  %427 = vmatpush1.bf16.msra.mxu0 %v347
  %428 = vmatprep.subr.bf16.mxu0 0
  %429 = vmatpush1.bf16.msra.mxu0 %v348
  %430 = vmatprep.subr.bf16.mxu0 0
  %431 = vmatpush1.bf16.msra.mxu0 %v349
  %432 = vmatprep.subr.bf16.mxu0 0
  %433 = vmatpush1.bf16.msra.mxu0 %v350
  %434 = vmatprep.subr.bf16.mxu0 0
  %435 = vmatpush1.bf16.msra.mxu0 %v351
  %436 = vmatprep.subr.bf16.mxu0 0
  %437 = vmatpush1.bf16.msra.mxu0 %v352
  %438 = vmatprep.subr.bf16.mxu0 0
  %439 = vmatpush1.bf16.msra.mxu0 %v353
  %440 = vmatprep.subr.bf16.mxu0 0
  %441 = vmatpush1.bf16.msra.mxu0 %v354
  %442 = vmatprep.subr.bf16.mxu0 0
  %443 = vmatpush1.bf16.msra.mxu0 %v355
  %444 = vmatprep.mubr.bf16.mxu0 %v192
  %445 = vmatmul.mubr.bf16.gmra.mrb[0].mxu0 %v191
  %v446 = vpop.f32.mrb[0].mxu0
  %v447 = vadd.f32 0.0, %v446
  %v448 = vpop.f32.mrb[0].mxu0
  %v449 = vpop.f32.mrb[0].mxu0
  %v450 = vadd.f32 0.0, %v449
  %v451 = vpop.f32.mrb[0].mxu0
  %452 = vmatprep.mubr.bf16.mxu0 %v196
  %453 = vmatmul.mubr.bf16.gmra.mrb[0].mxu0 %v195
  %v454 = vpop.f32.mrb[0].mxu0
  %v455 = vadd.f32 0.0, %v454
  %v456 = vpop.f32.mrb[0].mxu0
  %v457 = vpop.f32.mrb[0].mxu0
  %v458 = vadd.f32 0.0, %v457
  %v459 = vpop.f32.mrb[0].mxu0
  %460 = vmatprep.mubr.bf16.mxu0 %v200
  %461 = vmatmul.mubr.bf16.gmra.mrb[0].mxu0 %v199
  %v462 = vpop.f32.mrb[0].mxu0
  %v463 = vadd.f32 0.0, %v462
  %v464 = vpop.f32.mrb[0].mxu0
  %v465 = vpop.f32.mrb[0].mxu0
  %v466 = vadd.f32 0.0, %v465
  %v467 = vpop.f32.mrb[0].mxu0
  %468 = vmatprep.mubr.bf16.mxu0 %v204
  %469 = vmatmul.mubr.bf16.gmra.mrb[0].mxu0 %v203
  %v470 = vpop.f32.mrb[0].mxu0
  %v471 = vadd.f32 0.0, %v470
  %v472 = vpop.f32.mrb[0].mxu0
  %v473 = vpop.f32.mrb[0].mxu0
  %v474 = vadd.f32 0.0, %v473
  %v475 = vpop.f32.mrb[0].mxu0
  %476 = vmatprep.mubr.bf16.mxu0 %v208
  %477 = vmatmul.mubr.bf16.gmra.mrb[0].mxu0 %v207
  %v478 = vpop.f32.mrb[0].mxu0
  %v479 = vadd.f32 0.0, %v478
  %v480 = vpop.f32.mrb[0].mxu0
  %v481 = vpop.f32.mrb[0].mxu0
  %v482 = vadd.f32 0.0, %v481
  %v483 = vpop.f32.mrb[0].mxu0
  %484 = vmatprep.mubr.bf16.mxu0 %v212
  %485 = vmatmul.mubr.bf16.gmra.mrb[0].mxu0 %v211
  %v486 = vpop.f32.mrb[0].mxu0
  %v487 = vadd.f32 0.0, %v486
  %v488 = vpop.f32.mrb[0].mxu0
  %v489 = vpop.f32.mrb[0].mxu0
  %v490 = vadd.f32 0.0, %v489
  %v491 = vpop.f32.mrb[0].mxu0
  %492 = vmatprep.mubr.bf16.mxu0 %v216
  %493 = vmatmul.mubr.bf16.gmra.mrb[0].mxu0 %v215
  %v494 = vpop.f32.mrb[0].mxu0
  %v495 = vadd.f32 0.0, %v494
  %v496 = vpop.f32.mrb[0].mxu0
  %v497 = vpop.f32.mrb[0].mxu0
  %v498 = vadd.f32 0.0, %v497
  %v499 = vpop.f32.mrb[0].mxu0
  %500 = vdwg.mxu0
  %501 = vmatprep.subr.bf16.mxu0 0
  %502 = vmatpush1.bf16.msra.mxu0 %v356
  %503 = vmatprep.subr.bf16.mxu0 0
  %504 = vmatpush1.bf16.msra.mxu0 %v357
  %505 = vmatprep.subr.bf16.mxu0 0
  %506 = vmatpush1.bf16.msra.mxu0 %v358
  %507 = vmatprep.subr.bf16.mxu0 0
  %508 = vmatpush1.bf16.msra.mxu0 %v359
  %509 = vmatprep.subr.bf16.mxu0 0
  %510 = vmatpush1.bf16.msra.mxu0 %v360
  %511 = vmatprep.subr.bf16.mxu0 0
  %512 = vmatpush1.bf16.msra.mxu0 %v361
  %513 = vmatprep.subr.bf16.mxu0 0
  %514 = vmatpush1.bf16.msra.mxu0 %v362
  %515 = vmatprep.subr.bf16.mxu0 0
  %516 = vmatpush1.bf16.msra.mxu0 %v363
  %517 = vmatprep.subr.bf16.mxu0 0
  %518 = vmatpush1.bf16.msra.mxu0 %v364
  %519 = vmatprep.subr.bf16.mxu0 0
  %520 = vmatpush1.bf16.msra.mxu0 0
  %521 = vmatprep.subr.bf16.mxu0 0
  %522 = vmatpush1.bf16.msra.mxu0 0
  %523 = vmatprep.subr.bf16.mxu0 0
  %524 = vmatpush1.bf16.msra.mxu0 0
  %525 = vmatprep.subr.bf16.mxu0 0
  %526 = vmatpush1.bf16.msra.mxu0 0
  %527 = vmatprep.subr.bf16.mxu0 0
  %528 = vmatpush1.bf16.msra.mxu0 0
  %529 = vmatprep.subr.bf16.mxu0 0
  %530 = vmatpush1.bf16.msra.mxu0 0
  %531 = vmatprep.subr.bf16.mxu0 0
  %532 = vmatpush1.bf16.msra.mxu0 0
  %533 = vmatprep.mubr.bf16.mxu0 %v392
  %534 = vmatmul.mubr.bf16.gmra.mrb[0].mxu0 %v193
  %v535 = vpop.f32.mrb[0].mxu0
  %v536 = vadd.f32 %v447, %v535
  %v537 = vpop.f32.mrb[0].mxu0
  %v538 = vpop.f32.mrb[0].mxu0
  %v539 = vadd.f32 %v450, %v538
  %v540 = vpop.f32.mrb[0].mxu0
  %541 = vmatprep.mubr.bf16.mxu0 %v395
  %542 = vmatmul.mubr.bf16.gmra.mrb[0].mxu0 %v197
  %v543 = vpop.f32.mrb[0].mxu0
  %v544 = vadd.f32 %v455, %v543
  %v545 = vpop.f32.mrb[0].mxu0
  %v546 = vpop.f32.mrb[0].mxu0
  %v547 = vadd.f32 %v458, %v546
  %v548 = vpop.f32.mrb[0].mxu0
  %549 = vmatprep.mubr.bf16.mxu0 %v398
  %550 = vmatmul.mubr.bf16.gmra.mrb[0].mxu0 %v201
  %v551 = vpop.f32.mrb[0].mxu0
  %v552 = vadd.f32 %v463, %v551
  %v553 = vpop.f32.mrb[0].mxu0
  %v554 = vpop.f32.mrb[0].mxu0
  %v555 = vadd.f32 %v466, %v554
  %v556 = vpop.f32.mrb[0].mxu0
  %557 = vmatprep.mubr.bf16.mxu0 %v401
  %558 = vmatmul.mubr.bf16.gmra.mrb[0].mxu0 %v205
  %v559 = vpop.f32.mrb[0].mxu0
  %v560 = vadd.f32 %v471, %v559
  %v561 = vpop.f32.mrb[0].mxu0
  %v562 = vpop.f32.mrb[0].mxu0
  %v563 = vadd.f32 %v474, %v562
  %v564 = vpop.f32.mrb[0].mxu0
  %565 = vmatprep.mubr.bf16.mxu0 %v404
  %566 = vmatmul.mubr.bf16.gmra.mrb[0].mxu0 %v209
  %v567 = vpop.f32.mrb[0].mxu0
  %v568 = vadd.f32 %v479, %v567
  %v569 = vpop.f32.mrb[0].mxu0
  %v570 = vpop.f32.mrb[0].mxu0
  %v571 = vadd.f32 %v482, %v570
  %v572 = vpop.f32.mrb[0].mxu0
  %573 = vmatprep.mubr.bf16.mxu0 %v407
  %574 = vmatmul.mubr.bf16.gmra.mrb[0].mxu0 %v213
  %v575 = vpop.f32.mrb[0].mxu0
  %v576 = vadd.f32 %v487, %v575
  %v577 = vpop.f32.mrb[0].mxu0
  %v578 = vpop.f32.mrb[0].mxu0
  %v579 = vadd.f32 %v490, %v578
  %v580 = vpop.f32.mrb[0].mxu0
  %581 = vmatprep.mubr.bf16.mxu0 %v410
  %582 = vmatmul.mubr.bf16.gmra.mrb[0].mxu0 %v217
  %v583 = vpop.f32.mrb[0].mxu0
  %v584 = vadd.f32 %v495, %v583
  %v585 = vpop.f32.mrb[0].mxu0
  %v586 = vpop.f32.mrb[0].mxu0
  %v587 = vadd.f32 %v498, %v586
  %v588 = vpop.f32.mrb[0].mxu0
  %589 = vdwg.mxu0
  %v591 = vlaneseq
  %v592 = vshrl.u32 %v591, 7
  %v593 = vsub.s32 0, %v592
  %v594 = vrot.slane %v77, %v593
  %v596 = vmul.f32 %v536, %v594
  %v597 = vmul.f32 %v539, %v594
  %v598 = vmul.f32 %v544, %v594
  %v599 = vmul.f32 %v547, %v594
  %v600 = vmul.f32 %v552, %v594
  %v601 = vmul.f32 %v555, %v594
  %v602 = vmul.f32 %v560, %v594
  %v603 = vmul.f32 %v563, %v594
  %v604 = vmul.f32 %v568, %v594
  %v605 = vmul.f32 %v571, %v594
  %v606 = vmul.f32 %v576, %v594
  %v607 = vmul.f32 %v579, %v594
  %v608 = vmul.f32 %v584, %v594
  %v609 = vmul.f32 %v587, %v594
  %v611 = vlaneseq
  %v612 = vshrl.u32 %v611, 7
  %v613 = vsub.s32 0, %v612
  %v614 = vrot.slane %v78, %v613
  %v616 = vadd.f32 %v596, %v614
  %v617 = vadd.f32 %v597, %v614
  %v618 = vadd.f32 %v598, %v614
  %v619 = vadd.f32 %v599, %v614
  %v620 = vadd.f32 %v600, %v614
  %v621 = vadd.f32 %v601, %v614
  %v622 = vadd.f32 %v602, %v614
  %v623 = vadd.f32 %v603, %v614
  %v624 = vadd.f32 %v604, %v614
  %v625 = vadd.f32 %v605, %v614
  %v626 = vadd.f32 %v606, %v614
  %v627 = vadd.f32 %v607, %v614
  %v628 = vadd.f32 %v608, %v614
  %v629 = vadd.f32 %v609, %v614
  %v630 = vld [vmem:[%s1] sm:$0xff]
  %v631 = vld [vmem:[%s1 + $0x8] sm:$0xff]
  %v632 = vld [vmem:[%s1 + $0x10] sm:$0xff]
  %v633 = vld [vmem:[%s1 + $0x18] sm:$0xff]
  %v634 = vld [vmem:[%s1 + $0x20] sm:$0xff]
  %v635 = vld [vmem:[%s1 + $0x28] sm:$0xff]
  %v636 = vld [vmem:[%s1 + $0x30] sm:$0xff]
  %v637 = vld [vmem:[%s1 + $0x38] sm:$0xff]
  %v638 = vld [vmem:[%s1 + $0x40] sm:$0xff]
  %v639 = vld [vmem:[%s1 + $0x48] sm:$0xff]
  %v640 = vld [vmem:[%s1 + $0x50] sm:$0xff]
  %v641 = vld [vmem:[%s1 + $0x58] sm:$0xff]
  %v642 = vld [vmem:[%s1 + $0x60] sm:$0xff]
  %v643 = vld [vmem:[%s1 + $0x68] sm:$0xff]
  %v644 = vld [vmem:[%s1 + $0x70] sm:$0xff]
  %v645 = vld [vmem:[%s1 + $0x78] sm:$0xff]
  %v646 = vld [vmem:[%s1 + $0x80] sm:$0xff]
  %v647 = vld [vmem:[%s1 + $0x88] sm:$0xff]
  %v648 = vld [vmem:[%s1 + $0x90] sm:$0xff]
  %v649 = vld [vmem:[%s1 + $0x98] sm:$0xff]
  %v650 = vld [vmem:[%s1 + $0xa0] sm:$0xff]
  %v651 = vld [vmem:[%s1 + $0xa8] sm:$0xff]
  %v652 = vld [vmem:[%s1 + $0xb0] sm:$0xff]
  %v653 = vld [vmem:[%s1 + $0xb8] sm:$0xff]
  %v654 = vld [vmem:[%s1 + $0xc0] sm:$0xff]
  %v655 = vld [vmem:[%s1 + $0xc8] sm:$0xff]
  %v656 = vld [vmem:[%s1 + $0xd0] sm:$0xff]
  %v657 = vld [vmem:[%s1 + $0xd8] sm:$0xff]
  %v686 = vunpack.c.l.b16 %v630
  %v687 = vunpack.c.h.b16 %v630
  %v688 = vunpack.c.l.b16 %v631
  %v689 = vunpack.c.h.b16 %v631
  %v690 = vunpack.c.l.b16 %v632
  %v691 = vunpack.c.h.b16 %v632
  %v692 = vunpack.c.l.b16 %v633
  %v693 = vunpack.c.h.b16 %v633
  %v694 = vunpack.c.l.b16 %v634
  %v695 = vunpack.c.h.b16 %v634
  %v696 = vunpack.c.l.b16 %v635
  %v697 = vunpack.c.h.b16 %v635
  %v698 = vunpack.c.l.b16 %v636
  %v699 = vunpack.c.h.b16 %v636
  %v700 = vunpack.c.l.b16 %v637
  %v701 = vunpack.c.h.b16 %v637
  %v702 = vunpack.c.l.b16 %v638
  %v703 = vunpack.c.h.b16 %v638
  %v704 = vunpack.c.l.b16 %v639
  %v705 = vunpack.c.h.b16 %v639
  %v706 = vunpack.c.l.b16 %v640
  %v707 = vunpack.c.h.b16 %v640
  %v708 = vunpack.c.l.b16 %v641
  %v709 = vunpack.c.h.b16 %v641
  %v710 = vunpack.c.l.b16 %v642
  %v711 = vunpack.c.h.b16 %v642
  %v712 = vunpack.c.l.b16 %v643
  %v713 = vunpack.c.h.b16 %v643
  %v714 = vunpack.c.l.b16 %v644
  %v715 = vunpack.c.h.b16 %v644
  %v716 = vunpack.c.l.b16 %v645
  %v717 = vunpack.c.h.b16 %v645
  %v718 = vunpack.c.l.b16 %v646
  %v719 = vunpack.c.h.b16 %v646
  %v720 = vunpack.c.l.b16 %v647
  %v721 = vunpack.c.h.b16 %v647
  %v722 = vunpack.c.l.b16 %v648
  %v723 = vunpack.c.h.b16 %v648
  %v724 = vunpack.c.l.b16 %v649
  %v725 = vunpack.c.h.b16 %v649
  %v726 = vunpack.c.l.b16 %v650
  %v727 = vunpack.c.h.b16 %v650
  %v728 = vunpack.c.l.b16 %v651
  %v729 = vunpack.c.h.b16 %v651
  %v730 = vunpack.c.l.b16 %v652
  %v731 = vunpack.c.h.b16 %v652
  %v732 = vunpack.c.l.b16 %v653
  %v733 = vunpack.c.h.b16 %v653
  %v734 = vunpack.c.l.b16 %v654
  %v735 = vunpack.c.h.b16 %v654
  %v736 = vunpack.c.l.b16 %v655
  %v737 = vunpack.c.h.b16 %v655
  %v738 = vunpack.c.l.b16 %v656
  %v739 = vunpack.c.h.b16 %v656
  %v740 = vunpack.c.l.b16 %v657
  %v741 = vunpack.c.h.b16 %v657
  %v742 = vpack.c.b16 %v690, %v686
  %v743 = vpack.c.b16 %v691, %v687
  %v744 = vpack.c.b16 %v692, %v688
  %v745 = vpack.c.b16 %v693, %v689
  %v746 = vpack.c.b16 %v698, %v694
  %v747 = vpack.c.b16 %v699, %v695
  %v748 = vpack.c.b16 %v700, %v696
  %v749 = vpack.c.b16 %v701, %v697
  %v750 = vpack.c.b16 %v706, %v702
  %v751 = vpack.c.b16 %v707, %v703
  %v752 = vpack.c.b16 %v708, %v704
  %v753 = vpack.c.b16 %v709, %v705
  %v754 = vpack.c.b16 %v714, %v710
  %v755 = vpack.c.b16 %v715, %v711
  %v756 = vpack.c.b16 %v716, %v712
  %v757 = vpack.c.b16 %v717, %v713
  %v758 = vpack.c.b16 %v722, %v718
  %v759 = vpack.c.b16 %v723, %v719
  %v760 = vpack.c.b16 %v724, %v720
  %v761 = vpack.c.b16 %v725, %v721
  %v762 = vpack.c.b16 %v730, %v726
  %v763 = vpack.c.b16 %v731, %v727
  %v764 = vpack.c.b16 %v732, %v728
  %v765 = vpack.c.b16 %v733, %v729
  %v766 = vpack.c.b16 %v738, %v734
  %v767 = vpack.c.b16 %v739, %v735
  %v768 = vpack.c.b16 %v740, %v736
  %v769 = vpack.c.b16 %v741, %v737
  %v792 = vsel %vm390, %v745, 0
  %v795 = vsel %vm390, %v749, 0
  %v798 = vsel %vm390, %v753, 0
  %v801 = vsel %vm390, %v757, 0
  %v804 = vsel %vm390, %v761, 0
  %v807 = vsel %vm390, %v765, 0
  %v810 = vsel %vm390, %v769, 0
  %812 = vmatprep.subr.bf16.mxu0 0
  %813 = vmatpush1.bf16.msra.mxu0 %v340
  %814 = vmatprep.subr.bf16.mxu0 0
  %815 = vmatpush1.bf16.msra.mxu0 %v341
  %816 = vmatprep.subr.bf16.mxu0 0
  %817 = vmatpush1.bf16.msra.mxu0 %v342
  %818 = vmatprep.subr.bf16.mxu0 0
  %819 = vmatpush1.bf16.msra.mxu0 %v343
  %820 = vmatprep.subr.bf16.mxu0 0
  %821 = vmatpush1.bf16.msra.mxu0 %v344
  %822 = vmatprep.subr.bf16.mxu0 0
  %823 = vmatpush1.bf16.msra.mxu0 %v345
  %824 = vmatprep.subr.bf16.mxu0 0
  %825 = vmatpush1.bf16.msra.mxu0 %v346
  %826 = vmatprep.subr.bf16.mxu0 0
  %827 = vmatpush1.bf16.msra.mxu0 %v347
  %828 = vmatprep.subr.bf16.mxu0 0
  %829 = vmatpush1.bf16.msra.mxu0 %v348
  %830 = vmatprep.subr.bf16.mxu0 0
  %831 = vmatpush1.bf16.msra.mxu0 %v349
  %832 = vmatprep.subr.bf16.mxu0 0
  %833 = vmatpush1.bf16.msra.mxu0 %v350
  %834 = vmatprep.subr.bf16.mxu0 0
  %835 = vmatpush1.bf16.msra.mxu0 %v351
  %836 = vmatprep.subr.bf16.mxu0 0
  %837 = vmatpush1.bf16.msra.mxu0 %v352
  %838 = vmatprep.subr.bf16.mxu0 0
  %839 = vmatpush1.bf16.msra.mxu0 %v353
  %840 = vmatprep.subr.bf16.mxu0 0
  %841 = vmatpush1.bf16.msra.mxu0 %v354
  %842 = vmatprep.subr.bf16.mxu0 0
  %843 = vmatpush1.bf16.msra.mxu0 %v355
  %844 = vmatprep.mubr.bf16.mxu0 %v743
  %845 = vmatmul.mubr.bf16.gmra.mrb[0].mxu0 %v742
  %v846 = vpop.f32.mrb[0].mxu0
  %v847 = vadd.f32 0.0, %v846
  %v848 = vpop.f32.mrb[0].mxu0
  %v849 = vpop.f32.mrb[0].mxu0
  %v850 = vadd.f32 0.0, %v849
  %v851 = vpop.f32.mrb[0].mxu0
  %852 = vmatprep.mubr.bf16.mxu0 %v747
  %853 = vmatmul.mubr.bf16.gmra.mrb[0].mxu0 %v746
  %v854 = vpop.f32.mrb[0].mxu0
  %v855 = vadd.f32 0.0, %v854
  %v856 = vpop.f32.mrb[0].mxu0
  %v857 = vpop.f32.mrb[0].mxu0
  %v858 = vadd.f32 0.0, %v857
  %v859 = vpop.f32.mrb[0].mxu0
  %860 = vmatprep.mubr.bf16.mxu0 %v751
  %861 = vmatmul.mubr.bf16.gmra.mrb[0].mxu0 %v750
  %v862 = vpop.f32.mrb[0].mxu0
  %v863 = vadd.f32 0.0, %v862
  %v864 = vpop.f32.mrb[0].mxu0
  %v865 = vpop.f32.mrb[0].mxu0
  %v866 = vadd.f32 0.0, %v865
  %v867 = vpop.f32.mrb[0].mxu0
  %868 = vmatprep.mubr.bf16.mxu0 %v755
  %869 = vmatmul.mubr.bf16.gmra.mrb[0].mxu0 %v754
  %v870 = vpop.f32.mrb[0].mxu0
  %v871 = vadd.f32 0.0, %v870
  %v872 = vpop.f32.mrb[0].mxu0
  %v873 = vpop.f32.mrb[0].mxu0
  %v874 = vadd.f32 0.0, %v873
  %v875 = vpop.f32.mrb[0].mxu0
  %876 = vmatprep.mubr.bf16.mxu0 %v759
  %877 = vmatmul.mubr.bf16.gmra.mrb[0].mxu0 %v758
  %v878 = vpop.f32.mrb[0].mxu0
  %v879 = vadd.f32 0.0, %v878
  %v880 = vpop.f32.mrb[0].mxu0
  %v881 = vpop.f32.mrb[0].mxu0
  %v882 = vadd.f32 0.0, %v881
  %v883 = vpop.f32.mrb[0].mxu0
  %884 = vmatprep.mubr.bf16.mxu0 %v763
  %885 = vmatmul.mubr.bf16.gmra.mrb[0].mxu0 %v762
  %v886 = vpop.f32.mrb[0].mxu0
  %v887 = vadd.f32 0.0, %v886
  %v888 = vpop.f32.mrb[0].mxu0
  %v889 = vpop.f32.mrb[0].mxu0
  %v890 = vadd.f32 0.0, %v889
  %v891 = vpop.f32.mrb[0].mxu0
  %892 = vmatprep.mubr.bf16.mxu0 %v767
  %893 = vmatmul.mubr.bf16.gmra.mrb[0].mxu0 %v766
  %v894 = vpop.f32.mrb[0].mxu0
  %v895 = vadd.f32 0.0, %v894
  %v896 = vpop.f32.mrb[0].mxu0
  %v897 = vpop.f32.mrb[0].mxu0
  %v898 = vadd.f32 0.0, %v897
  %v899 = vpop.f32.mrb[0].mxu0
  %900 = vdwg.mxu0
  %901 = vmatprep.subr.bf16.mxu0 0
  %902 = vmatpush1.bf16.msra.mxu0 %v356
  %903 = vmatprep.subr.bf16.mxu0 0
  %904 = vmatpush1.bf16.msra.mxu0 %v357
  %905 = vmatprep.subr.bf16.mxu0 0
  %906 = vmatpush1.bf16.msra.mxu0 %v358
  %907 = vmatprep.subr.bf16.mxu0 0
  %908 = vmatpush1.bf16.msra.mxu0 %v359
  %909 = vmatprep.subr.bf16.mxu0 0
  %910 = vmatpush1.bf16.msra.mxu0 %v360
  %911 = vmatprep.subr.bf16.mxu0 0
  %912 = vmatpush1.bf16.msra.mxu0 %v361
  %913 = vmatprep.subr.bf16.mxu0 0
  %914 = vmatpush1.bf16.msra.mxu0 %v362
  %915 = vmatprep.subr.bf16.mxu0 0
  %916 = vmatpush1.bf16.msra.mxu0 %v363
  %917 = vmatprep.subr.bf16.mxu0 0
  %918 = vmatpush1.bf16.msra.mxu0 %v364
  %919 = vmatprep.subr.bf16.mxu0 0
  %920 = vmatpush1.bf16.msra.mxu0 0
  %921 = vmatprep.subr.bf16.mxu0 0
  %922 = vmatpush1.bf16.msra.mxu0 0
  %923 = vmatprep.subr.bf16.mxu0 0
  %924 = vmatpush1.bf16.msra.mxu0 0
  %925 = vmatprep.subr.bf16.mxu0 0
  %926 = vmatpush1.bf16.msra.mxu0 0
  %927 = vmatprep.subr.bf16.mxu0 0
  %928 = vmatpush1.bf16.msra.mxu0 0
  %929 = vmatprep.subr.bf16.mxu0 0
  %930 = vmatpush1.bf16.msra.mxu0 0
  %931 = vmatprep.subr.bf16.mxu0 0
  %932 = vmatpush1.bf16.msra.mxu0 0
  %933 = vmatprep.mubr.bf16.mxu0 %v792
  %934 = vmatmul.mubr.bf16.gmra.mrb[0].mxu0 %v744
  %v935 = vpop.f32.mrb[0].mxu0
  %v936 = vadd.f32 %v847, %v935
  %v937 = vpop.f32.mrb[0].mxu0
  %v938 = vpop.f32.mrb[0].mxu0
  %v939 = vadd.f32 %v850, %v938
  %v940 = vpop.f32.mrb[0].mxu0
  %941 = vmatprep.mubr.bf16.mxu0 %v795
  %942 = vmatmul.mubr.bf16.gmra.mrb[0].mxu0 %v748
  %v943 = vpop.f32.mrb[0].mxu0
  %v944 = vadd.f32 %v855, %v943
  %v945 = vpop.f32.mrb[0].mxu0
  %v946 = vpop.f32.mrb[0].mxu0
  %v947 = vadd.f32 %v858, %v946
  %v948 = vpop.f32.mrb[0].mxu0
  %949 = vmatprep.mubr.bf16.mxu0 %v798
  %950 = vmatmul.mubr.bf16.gmra.mrb[0].mxu0 %v752
  %v951 = vpop.f32.mrb[0].mxu0
  %v952 = vadd.f32 %v863, %v951
  %v953 = vpop.f32.mrb[0].mxu0
  %v954 = vpop.f32.mrb[0].mxu0
  %v955 = vadd.f32 %v866, %v954
  %v956 = vpop.f32.mrb[0].mxu0
  %957 = vmatprep.mubr.bf16.mxu0 %v801
  %958 = vmatmul.mubr.bf16.gmra.mrb[0].mxu0 %v756
  %v959 = vpop.f32.mrb[0].mxu0
  %v960 = vadd.f32 %v871, %v959
  %v961 = vpop.f32.mrb[0].mxu0
  %v962 = vpop.f32.mrb[0].mxu0
  %v963 = vadd.f32 %v874, %v962
  %v964 = vpop.f32.mrb[0].mxu0
  %965 = vmatprep.mubr.bf16.mxu0 %v804
  %966 = vmatmul.mubr.bf16.gmra.mrb[0].mxu0 %v760
  %v967 = vpop.f32.mrb[0].mxu0
  %v968 = vadd.f32 %v879, %v967
  %v969 = vpop.f32.mrb[0].mxu0
  %v970 = vpop.f32.mrb[0].mxu0
  %v971 = vadd.f32 %v882, %v970
  %v972 = vpop.f32.mrb[0].mxu0
  %973 = vmatprep.mubr.bf16.mxu0 %v807
  %974 = vmatmul.mubr.bf16.gmra.mrb[0].mxu0 %v764
  %v975 = vpop.f32.mrb[0].mxu0
  %v976 = vadd.f32 %v887, %v975
  %v977 = vpop.f32.mrb[0].mxu0
  %v978 = vpop.f32.mrb[0].mxu0
  %v979 = vadd.f32 %v890, %v978
  %v980 = vpop.f32.mrb[0].mxu0
  %981 = vmatprep.mubr.bf16.mxu0 %v810
  %982 = vmatmul.mubr.bf16.gmra.mrb[0].mxu0 %v768
  %v983 = vpop.f32.mrb[0].mxu0
  %v984 = vadd.f32 %v895, %v983
  %v985 = vpop.f32.mrb[0].mxu0
  %v986 = vpop.f32.mrb[0].mxu0
  %v987 = vadd.f32 %v898, %v986
  %v988 = vpop.f32.mrb[0].mxu0
  %989 = vdwg.mxu0
  %v990 = vmul.f32 %v936, %v594
  %v991 = vmul.f32 %v939, %v594
  %v992 = vmul.f32 %v944, %v594
  %v993 = vmul.f32 %v947, %v594
  %v994 = vmul.f32 %v952, %v594
  %v995 = vmul.f32 %v955, %v594
  %v996 = vmul.f32 %v960, %v594
  %v997 = vmul.f32 %v963, %v594
  %v998 = vmul.f32 %v968, %v594
  %v999 = vmul.f32 %v971, %v594
  %v1000 = vmul.f32 %v976, %v594
  %v1001 = vmul.f32 %v979, %v594
  %v1002 = vmul.f32 %v984, %v594
  %v1003 = vmul.f32 %v987, %v594
  %v1004 = vadd.f32 %v990, %v614
  %v1005 = vadd.f32 %v991, %v614
  %v1006 = vadd.f32 %v992, %v614
  %v1007 = vadd.f32 %v993, %v614
  %v1008 = vadd.f32 %v994, %v614
  %v1009 = vadd.f32 %v995, %v614
  %v1010 = vadd.f32 %v996, %v614
  %v1011 = vadd.f32 %v997, %v614
  %v1012 = vadd.f32 %v998, %v614
  %v1013 = vadd.f32 %v999, %v614
  %v1014 = vadd.f32 %v1000, %v614
  %v1015 = vadd.f32 %v1001, %v614
  %v1016 = vadd.f32 %v1002, %v614
  %v1017 = vadd.f32 %v1003, %v614
  %v1018 = vmax.f32 %v616, %v1004
  %v1019 = vmax.f32 %v617, %v1005
  %v1020 = vmax.f32 %v618, %v1006
  %v1021 = vmax.f32 %v619, %v1007
  %v1022 = vmax.f32 %v620, %v1008
  %v1023 = vmax.f32 %v621, %v1009
  %v1024 = vmax.f32 %v622, %v1010
  %v1025 = vmax.f32 %v623, %v1011
  %v1026 = vmax.f32 %v624, %v1012
  %v1027 = vmax.f32 %v625, %v1013
  %v1028 = vmax.f32 %v626, %v1014
  %v1029 = vmax.f32 %v627, %v1015
  %v1030 = vmax.f32 %v628, %v1016
  %v1031 = vmax.f32 %v629, %v1017
  %v1032 = vld [vmem:[%s2] sm:$0xff]
  %v1033 = vld [vmem:[%s2 + $0x8] sm:$0xff]
  %v1034 = vld [vmem:[%s2 + $0x10] sm:$0xff]
  %v1035 = vld [vmem:[%s2 + $0x18] sm:$0xff]
  %v1036 = vld [vmem:[%s2 + $0x20] sm:$0xff]
  %v1037 = vld [vmem:[%s2 + $0x28] sm:$0xff]
  %v1038 = vld [vmem:[%s2 + $0x30] sm:$0xff]
  %v1039 = vld [vmem:[%s2 + $0x38] sm:$0xff]
  %v1040 = vld [vmem:[%s2 + $0x40] sm:$0xff]
  %v1041 = vld [vmem:[%s2 + $0x48] sm:$0xff]
  %v1042 = vld [vmem:[%s2 + $0x50] sm:$0xff]
  %v1043 = vld [vmem:[%s2 + $0x58] sm:$0xff]
  %v1044 = vld [vmem:[%s2 + $0x60] sm:$0xff]
  %v1045 = vld [vmem:[%s2 + $0x68] sm:$0xff]
  %v1046 = vld [vmem:[%s2 + $0x70] sm:$0xff]
  %v1047 = vld [vmem:[%s2 + $0x78] sm:$0xff]
  %v1048 = vld [vmem:[%s2 + $0x80] sm:$0xff]
  %v1049 = vld [vmem:[%s2 + $0x88] sm:$0xff]
  %v1050 = vld [vmem:[%s2 + $0x90] sm:$0xff]
  %v1051 = vld [vmem:[%s2 + $0x98] sm:$0xff]
  %v1052 = vld [vmem:[%s2 + $0xa0] sm:$0xff]
  %v1053 = vld [vmem:[%s2 + $0xa8] sm:$0xff]
  %v1054 = vld [vmem:[%s2 + $0xb0] sm:$0xff]
  %v1055 = vld [vmem:[%s2 + $0xb8] sm:$0xff]
  %v1056 = vld [vmem:[%s2 + $0xc0] sm:$0xff]
  %v1057 = vld [vmem:[%s2 + $0xc8] sm:$0xff]
  %v1058 = vld [vmem:[%s2 + $0xd0] sm:$0xff]
  %v1059 = vld [vmem:[%s2 + $0xd8] sm:$0xff]
  %v1088 = vunpack.c.l.b16 %v1032
  %v1089 = vunpack.c.h.b16 %v1032
  %v1090 = vunpack.c.l.b16 %v1033
  %v1091 = vunpack.c.h.b16 %v1033
  %v1092 = vunpack.c.l.b16 %v1034
  %v1093 = vunpack.c.h.b16 %v1034
  %v1094 = vunpack.c.l.b16 %v1035
  %v1095 = vunpack.c.h.b16 %v1035
  %v1096 = vunpack.c.l.b16 %v1036
  %v1097 = vunpack.c.h.b16 %v1036
  %v1098 = vunpack.c.l.b16 %v1037
  %v1099 = vunpack.c.h.b16 %v1037
  %v1100 = vunpack.c.l.b16 %v1038
  %v1101 = vunpack.c.h.b16 %v1038
  %v1102 = vunpack.c.l.b16 %v1039
  %v1103 = vunpack.c.h.b16 %v1039
  %v1104 = vunpack.c.l.b16 %v1040
  %v1105 = vunpack.c.h.b16 %v1040
  %v1106 = vunpack.c.l.b16 %v1041
  %v1107 = vunpack.c.h.b16 %v1041
  %v1108 = vunpack.c.l.b16 %v1042
  %v1109 = vunpack.c.h.b16 %v1042
  %v1110 = vunpack.c.l.b16 %v1043
  %v1111 = vunpack.c.h.b16 %v1043
  %v1112 = vunpack.c.l.b16 %v1044
  %v1113 = vunpack.c.h.b16 %v1044
  %v1114 = vunpack.c.l.b16 %v1045
  %v1115 = vunpack.c.h.b16 %v1045
  %v1116 = vunpack.c.l.b16 %v1046
  %v1117 = vunpack.c.h.b16 %v1046
  %v1118 = vunpack.c.l.b16 %v1047
  %v1119 = vunpack.c.h.b16 %v1047
  %v1120 = vunpack.c.l.b16 %v1048
  %v1121 = vunpack.c.h.b16 %v1048
  %v1122 = vunpack.c.l.b16 %v1049
  %v1123 = vunpack.c.h.b16 %v1049
  %v1124 = vunpack.c.l.b16 %v1050
  %v1125 = vunpack.c.h.b16 %v1050
  %v1126 = vunpack.c.l.b16 %v1051
  %v1127 = vunpack.c.h.b16 %v1051
  %v1128 = vunpack.c.l.b16 %v1052
  %v1129 = vunpack.c.h.b16 %v1052
  %v1130 = vunpack.c.l.b16 %v1053
  %v1131 = vunpack.c.h.b16 %v1053
  %v1132 = vunpack.c.l.b16 %v1054
  %v1133 = vunpack.c.h.b16 %v1054
  %v1134 = vunpack.c.l.b16 %v1055
  %v1135 = vunpack.c.h.b16 %v1055
  %v1136 = vunpack.c.l.b16 %v1056
  %v1137 = vunpack.c.h.b16 %v1056
  %v1138 = vunpack.c.l.b16 %v1057
  %v1139 = vunpack.c.h.b16 %v1057
  %v1140 = vunpack.c.l.b16 %v1058
  %v1141 = vunpack.c.h.b16 %v1058
  %v1142 = vunpack.c.l.b16 %v1059
  %v1143 = vunpack.c.h.b16 %v1059
  %v1144 = vpack.c.b16 %v1092, %v1088
  %v1145 = vpack.c.b16 %v1093, %v1089
  %v1146 = vpack.c.b16 %v1094, %v1090
  %v1147 = vpack.c.b16 %v1095, %v1091
  %v1148 = vpack.c.b16 %v1100, %v1096
  %v1149 = vpack.c.b16 %v1101, %v1097
  %v1150 = vpack.c.b16 %v1102, %v1098
  %v1151 = vpack.c.b16 %v1103, %v1099
  %v1152 = vpack.c.b16 %v1108, %v1104
  %v1153 = vpack.c.b16 %v1109, %v1105
  %v1154 = vpack.c.b16 %v1110, %v1106
  %v1155 = vpack.c.b16 %v1111, %v1107
  %v1156 = vpack.c.b16 %v1116, %v1112
  %v1157 = vpack.c.b16 %v1117, %v1113
  %v1158 = vpack.c.b16 %v1118, %v1114
  %v1159 = vpack.c.b16 %v1119, %v1115
  %v1160 = vpack.c.b16 %v1124, %v1120
  %v1161 = vpack.c.b16 %v1125, %v1121
  %v1162 = vpack.c.b16 %v1126, %v1122
  %v1163 = vpack.c.b16 %v1127, %v1123
  %v1164 = vpack.c.b16 %v1132, %v1128
  %v1165 = vpack.c.b16 %v1133, %v1129
  %v1166 = vpack.c.b16 %v1134, %v1130
  %v1167 = vpack.c.b16 %v1135, %v1131
  %v1168 = vpack.c.b16 %v1140, %v1136
  %v1169 = vpack.c.b16 %v1141, %v1137
  %v1170 = vpack.c.b16 %v1142, %v1138
  %v1171 = vpack.c.b16 %v1143, %v1139
  %v1194 = vsel %vm390, %v1147, 0
  %v1197 = vsel %vm390, %v1151, 0
  %v1200 = vsel %vm390, %v1155, 0
  %v1203 = vsel %vm390, %v1159, 0
  %v1206 = vsel %vm390, %v1163, 0
  %v1209 = vsel %vm390, %v1167, 0
  %v1212 = vsel %vm390, %v1171, 0
  %1214 = vmatprep.subr.bf16.mxu0 0
  %1215 = vmatpush1.bf16.msra.mxu0 %v340
  %1216 = vmatprep.subr.bf16.mxu0 0
  %1217 = vmatpush1.bf16.msra.mxu0 %v341
  %1218 = vmatprep.subr.bf16.mxu0 0
  %1219 = vmatpush1.bf16.msra.mxu0 %v342
  %1220 = vmatprep.subr.bf16.mxu0 0
  %1221 = vmatpush1.bf16.msra.mxu0 %v343
  %1222 = vmatprep.subr.bf16.mxu0 0
  %1223 = vmatpush1.bf16.msra.mxu0 %v344
  %1224 = vmatprep.subr.bf16.mxu0 0
  %1225 = vmatpush1.bf16.msra.mxu0 %v345
  %1226 = vmatprep.subr.bf16.mxu0 0
  %1227 = vmatpush1.bf16.msra.mxu0 %v346
  %1228 = vmatprep.subr.bf16.mxu0 0
  %1229 = vmatpush1.bf16.msra.mxu0 %v347
  %1230 = vmatprep.subr.bf16.mxu0 0
  %1231 = vmatpush1.bf16.msra.mxu0 %v348
  %1232 = vmatprep.subr.bf16.mxu0 0
  %1233 = vmatpush1.bf16.msra.mxu0 %v349
  %1234 = vmatprep.subr.bf16.mxu0 0
  %1235 = vmatpush1.bf16.msra.mxu0 %v350
  %1236 = vmatprep.subr.bf16.mxu0 0
  %1237 = vmatpush1.bf16.msra.mxu0 %v351
  %1238 = vmatprep.subr.bf16.mxu0 0
  %1239 = vmatpush1.bf16.msra.mxu0 %v352
  %1240 = vmatprep.subr.bf16.mxu0 0
  %1241 = vmatpush1.bf16.msra.mxu0 %v353
  %1242 = vmatprep.subr.bf16.mxu0 0
  %1243 = vmatpush1.bf16.msra.mxu0 %v354
  %1244 = vmatprep.subr.bf16.mxu0 0
  %1245 = vmatpush1.bf16.msra.mxu0 %v355
  %1246 = vmatprep.mubr.bf16.mxu0 %v1145
  %1247 = vmatmul.mubr.bf16.gmra.mrb[0].mxu0 %v1144
  %v1248 = vpop.f32.mrb[0].mxu0
  %v1249 = vadd.f32 0.0, %v1248
  %v1250 = vpop.f32.mrb[0].mxu0
  %v1251 = vpop.f32.mrb[0].mxu0
  %v1252 = vadd.f32 0.0, %v1251
  %v1253 = vpop.f32.mrb[0].mxu0
  %1254 = vmatprep.mubr.bf16.mxu0 %v1149
  %1255 = vmatmul.mubr.bf16.gmra.mrb[0].mxu0 %v1148
  %v1256 = vpop.f32.mrb[0].mxu0
  %v1257 = vadd.f32 0.0, %v1256
  %v1258 = vpop.f32.mrb[0].mxu0
  %v1259 = vpop.f32.mrb[0].mxu0
  %v1260 = vadd.f32 0.0, %v1259
  %v1261 = vpop.f32.mrb[0].mxu0
  %1262 = vmatprep.mubr.bf16.mxu0 %v1153
  %1263 = vmatmul.mubr.bf16.gmra.mrb[0].mxu0 %v1152
  %v1264 = vpop.f32.mrb[0].mxu0
  %v1265 = vadd.f32 0.0, %v1264
  %v1266 = vpop.f32.mrb[0].mxu0
  %v1267 = vpop.f32.mrb[0].mxu0
  %v1268 = vadd.f32 0.0, %v1267
  %v1269 = vpop.f32.mrb[0].mxu0
  %1270 = vmatprep.mubr.bf16.mxu0 %v1157
  %1271 = vmatmul.mubr.bf16.gmra.mrb[0].mxu0 %v1156
  %v1272 = vpop.f32.mrb[0].mxu0
  %v1273 = vadd.f32 0.0, %v1272
  %v1274 = vpop.f32.mrb[0].mxu0
  %v1275 = vpop.f32.mrb[0].mxu0
  %v1276 = vadd.f32 0.0, %v1275
  %v1277 = vpop.f32.mrb[0].mxu0
  %1278 = vmatprep.mubr.bf16.mxu0 %v1161
  %1279 = vmatmul.mubr.bf16.gmra.mrb[0].mxu0 %v1160
  %v1280 = vpop.f32.mrb[0].mxu0
  %v1281 = vadd.f32 0.0, %v1280
  %v1282 = vpop.f32.mrb[0].mxu0
  %v1283 = vpop.f32.mrb[0].mxu0
  %v1284 = vadd.f32 0.0, %v1283
  %v1285 = vpop.f32.mrb[0].mxu0
  %1286 = vmatprep.mubr.bf16.mxu0 %v1165
  %1287 = vmatmul.mubr.bf16.gmra.mrb[0].mxu0 %v1164
  %v1288 = vpop.f32.mrb[0].mxu0
  %v1289 = vadd.f32 0.0, %v1288
  %v1290 = vpop.f32.mrb[0].mxu0
  %v1291 = vpop.f32.mrb[0].mxu0
  %v1292 = vadd.f32 0.0, %v1291
  %v1293 = vpop.f32.mrb[0].mxu0
  %1294 = vmatprep.mubr.bf16.mxu0 %v1169
  %1295 = vmatmul.mubr.bf16.gmra.mrb[0].mxu0 %v1168
  %v1296 = vpop.f32.mrb[0].mxu0
  %v1297 = vadd.f32 0.0, %v1296
  %v1298 = vpop.f32.mrb[0].mxu0
  %v1299 = vpop.f32.mrb[0].mxu0
  %v1300 = vadd.f32 0.0, %v1299
  %v1301 = vpop.f32.mrb[0].mxu0
  %1302 = vdwg.mxu0
  %1303 = vmatprep.subr.bf16.mxu0 0
  %1304 = vmatpush1.bf16.msra.mxu0 %v356
  %1305 = vmatprep.subr.bf16.mxu0 0
  %1306 = vmatpush1.bf16.msra.mxu0 %v357
  %1307 = vmatprep.subr.bf16.mxu0 0
  %1308 = vmatpush1.bf16.msra.mxu0 %v358
  %1309 = vmatprep.subr.bf16.mxu0 0
  %1310 = vmatpush1.bf16.msra.mxu0 %v359
  %1311 = vmatprep.subr.bf16.mxu0 0
  %1312 = vmatpush1.bf16.msra.mxu0 %v360
  %1313 = vmatprep.subr.bf16.mxu0 0
  %1314 = vmatpush1.bf16.msra.mxu0 %v361
  %1315 = vmatprep.subr.bf16.mxu0 0
  %1316 = vmatpush1.bf16.msra.mxu0 %v362
  %1317 = vmatprep.subr.bf16.mxu0 0
  %1318 = vmatpush1.bf16.msra.mxu0 %v363
  %1319 = vmatprep.subr.bf16.mxu0 0
  %1320 = vmatpush1.bf16.msra.mxu0 %v364
  %1321 = vmatprep.subr.bf16.mxu0 0
  %1322 = vmatpush1.bf16.msra.mxu0 0
  %1323 = vmatprep.subr.bf16.mxu0 0
  %1324 = vmatpush1.bf16.msra.mxu0 0
  %1325 = vmatprep.subr.bf16.mxu0 0
  %1326 = vmatpush1.bf16.msra.mxu0 0
  %1327 = vmatprep.subr.bf16.mxu0 0
  %1328 = vmatpush1.bf16.msra.mxu0 0
  %1329 = vmatprep.subr.bf16.mxu0 0
  %1330 = vmatpush1.bf16.msra.mxu0 0
  %1331 = vmatprep.subr.bf16.mxu0 0
  %1332 = vmatpush1.bf16.msra.mxu0 0
  %1333 = vmatprep.subr.bf16.mxu0 0
  %1334 = vmatpush1.bf16.msra.mxu0 0
  %1335 = vmatprep.mubr.bf16.mxu0 %v1194
  %1336 = vmatmul.mubr.bf16.gmra.mrb[0].mxu0 %v1146
  %v1337 = vpop.f32.mrb[0].mxu0
  %v1338 = vadd.f32 %v1249, %v1337
  %v1339 = vpop.f32.mrb[0].mxu0
  %v1340 = vpop.f32.mrb[0].mxu0
  %v1341 = vadd.f32 %v1252, %v1340
  %v1342 = vpop.f32.mrb[0].mxu0
  %1343 = vmatprep.mubr.bf16.mxu0 %v1197
  %1344 = vmatmul.mubr.bf16.gmra.mrb[0].mxu0 %v1150
  %v1345 = vpop.f32.mrb[0].mxu0
  %v1346 = vadd.f32 %v1257, %v1345
  %v1347 = vpop.f32.mrb[0].mxu0
  %v1348 = vpop.f32.mrb[0].mxu0
  %v1349 = vadd.f32 %v1260, %v1348
  %v1350 = vpop.f32.mrb[0].mxu0
  %1351 = vmatprep.mubr.bf16.mxu0 %v1200
  %1352 = vmatmul.mubr.bf16.gmra.mrb[0].mxu0 %v1154
  %v1353 = vpop.f32.mrb[0].mxu0
  %v1354 = vadd.f32 %v1265, %v1353
  %v1355 = vpop.f32.mrb[0].mxu0
  %v1356 = vpop.f32.mrb[0].mxu0
  %v1357 = vadd.f32 %v1268, %v1356
  %v1358 = vpop.f32.mrb[0].mxu0
  %1359 = vmatprep.mubr.bf16.mxu0 %v1203
  %1360 = vmatmul.mubr.bf16.gmra.mrb[0].mxu0 %v1158
  %v1361 = vpop.f32.mrb[0].mxu0
  %v1362 = vadd.f32 %v1273, %v1361
  %v1363 = vpop.f32.mrb[0].mxu0
  %v1364 = vpop.f32.mrb[0].mxu0
  %v1365 = vadd.f32 %v1276, %v1364
  %v1366 = vpop.f32.mrb[0].mxu0
  %1367 = vmatprep.mubr.bf16.mxu0 %v1206
  %1368 = vmatmul.mubr.bf16.gmra.mrb[0].mxu0 %v1162
  %v1369 = vpop.f32.mrb[0].mxu0
  %v1370 = vadd.f32 %v1281, %v1369
  %v1371 = vpop.f32.mrb[0].mxu0
  %v1372 = vpop.f32.mrb[0].mxu0
  %v1373 = vadd.f32 %v1284, %v1372
  %v1374 = vpop.f32.mrb[0].mxu0
  %1375 = vmatprep.mubr.bf16.mxu0 %v1209
  %1376 = vmatmul.mubr.bf16.gmra.mrb[0].mxu0 %v1166
  %v1377 = vpop.f32.mrb[0].mxu0
  %v1378 = vadd.f32 %v1289, %v1377
  %v1379 = vpop.f32.mrb[0].mxu0
  %v1380 = vpop.f32.mrb[0].mxu0
  %v1381 = vadd.f32 %v1292, %v1380
  %v1382 = vpop.f32.mrb[0].mxu0
  %1383 = vmatprep.mubr.bf16.mxu0 %v1212
  %1384 = vmatmul.mubr.bf16.gmra.mrb[0].mxu0 %v1170
  %v1385 = vpop.f32.mrb[0].mxu0
  %v1386 = vadd.f32 %v1297, %v1385
  %v1387 = vpop.f32.mrb[0].mxu0
  %v1388 = vpop.f32.mrb[0].mxu0
  %v1389 = vadd.f32 %v1300, %v1388
  %v1390 = vpop.f32.mrb[0].mxu0
  %1391 = vdwg.mxu0
  %v1392 = vmul.f32 %v1338, %v594
  %v1393 = vmul.f32 %v1341, %v594
  %v1394 = vmul.f32 %v1346, %v594
  %v1395 = vmul.f32 %v1349, %v594
  %v1396 = vmul.f32 %v1354, %v594
  %v1397 = vmul.f32 %v1357, %v594
  %v1398 = vmul.f32 %v1362, %v594
  %v1399 = vmul.f32 %v1365, %v594
  %v1400 = vmul.f32 %v1370, %v594
  %v1401 = vmul.f32 %v1373, %v594
  %v1402 = vmul.f32 %v1378, %v594
  %v1403 = vmul.f32 %v1381, %v594
  %v1404 = vmul.f32 %v1386, %v594
  %v1405 = vmul.f32 %v1389, %v594
  %v1406 = vadd.f32 %v1392, %v614
  %v1407 = vadd.f32 %v1393, %v614
  %v1408 = vadd.f32 %v1394, %v614
  %v1409 = vadd.f32 %v1395, %v614
  %v1410 = vadd.f32 %v1396, %v614
  %v1411 = vadd.f32 %v1397, %v614
  %v1412 = vadd.f32 %v1398, %v614
  %v1413 = vadd.f32 %v1399, %v614
  %v1414 = vadd.f32 %v1400, %v614
  %v1415 = vadd.f32 %v1401, %v614
  %v1416 = vadd.f32 %v1402, %v614
  %v1417 = vadd.f32 %v1403, %v614
  %v1418 = vadd.f32 %v1404, %v614
  %v1419 = vadd.f32 %v1405, %v614
  %v1420 = vld [vmem:[%s3] sm:$0xff]
  %v1421 = vld [vmem:[%s3 + $0x8] sm:$0xff]
  %v1422 = vld [vmem:[%s3 + $0x10] sm:$0xff]
  %v1423 = vld [vmem:[%s3 + $0x18] sm:$0xff]
  %v1424 = vld [vmem:[%s3 + $0x20] sm:$0xff]
  %v1425 = vld [vmem:[%s3 + $0x28] sm:$0xff]
  %v1426 = vld [vmem:[%s3 + $0x30] sm:$0xff]
  %v1427 = vld [vmem:[%s3 + $0x38] sm:$0xff]
  %v1428 = vld [vmem:[%s3 + $0x40] sm:$0xff]
  %v1429 = vld [vmem:[%s3 + $0x48] sm:$0xff]
  %v1430 = vld [vmem:[%s3 + $0x50] sm:$0xff]
  %v1431 = vld [vmem:[%s3 + $0x58] sm:$0xff]
  %v1432 = vld [vmem:[%s3 + $0x60] sm:$0xff]
  %v1433 = vld [vmem:[%s3 + $0x68] sm:$0xff]
  %v1434 = vld [vmem:[%s3 + $0x70] sm:$0xff]
  %v1435 = vld [vmem:[%s3 + $0x78] sm:$0xff]
  %v1436 = vld [vmem:[%s3 + $0x80] sm:$0xff]
  %v1437 = vld [vmem:[%s3 + $0x88] sm:$0xff]
  %v1438 = vld [vmem:[%s3 + $0x90] sm:$0xff]
  %v1439 = vld [vmem:[%s3 + $0x98] sm:$0xff]
  %v1440 = vld [vmem:[%s3 + $0xa0] sm:$0xff]
  %v1441 = vld [vmem:[%s3 + $0xa8] sm:$0xff]
  %v1442 = vld [vmem:[%s3 + $0xb0] sm:$0xff]
  %v1443 = vld [vmem:[%s3 + $0xb8] sm:$0xff]
  %v1444 = vld [vmem:[%s3 + $0xc0] sm:$0xff]
  %v1445 = vld [vmem:[%s3 + $0xc8] sm:$0xff]
  %v1446 = vld [vmem:[%s3 + $0xd0] sm:$0xff]
  %v1447 = vld [vmem:[%s3 + $0xd8] sm:$0xff]
  %v1476 = vunpack.c.l.b16 %v1420
  %v1477 = vunpack.c.h.b16 %v1420
  %v1478 = vunpack.c.l.b16 %v1421
  %v1479 = vunpack.c.h.b16 %v1421
  %v1480 = vunpack.c.l.b16 %v1422
  %v1481 = vunpack.c.h.b16 %v1422
  %v1482 = vunpack.c.l.b16 %v1423
  %v1483 = vunpack.c.h.b16 %v1423
  %v1484 = vunpack.c.l.b16 %v1424
  %v1485 = vunpack.c.h.b16 %v1424
  %v1486 = vunpack.c.l.b16 %v1425
  %v1487 = vunpack.c.h.b16 %v1425
  %v1488 = vunpack.c.l.b16 %v1426
  %v1489 = vunpack.c.h.b16 %v1426
  %v1490 = vunpack.c.l.b16 %v1427
  %v1491 = vunpack.c.h.b16 %v1427
  %v1492 = vunpack.c.l.b16 %v1428
  %v1493 = vunpack.c.h.b16 %v1428
  %v1494 = vunpack.c.l.b16 %v1429
  %v1495 = vunpack.c.h.b16 %v1429
  %v1496 = vunpack.c.l.b16 %v1430
  %v1497 = vunpack.c.h.b16 %v1430
  %v1498 = vunpack.c.l.b16 %v1431
  %v1499 = vunpack.c.h.b16 %v1431
  %v1500 = vunpack.c.l.b16 %v1432
  %v1501 = vunpack.c.h.b16 %v1432
  %v1502 = vunpack.c.l.b16 %v1433
  %v1503 = vunpack.c.h.b16 %v1433
  %v1504 = vunpack.c.l.b16 %v1434
  %v1505 = vunpack.c.h.b16 %v1434
  %v1506 = vunpack.c.l.b16 %v1435
  %v1507 = vunpack.c.h.b16 %v1435
  %v1508 = vunpack.c.l.b16 %v1436
  %v1509 = vunpack.c.h.b16 %v1436
  %v1510 = vunpack.c.l.b16 %v1437
  %v1511 = vunpack.c.h.b16 %v1437
  %v1512 = vunpack.c.l.b16 %v1438
  %v1513 = vunpack.c.h.b16 %v1438
  %v1514 = vunpack.c.l.b16 %v1439
  %v1515 = vunpack.c.h.b16 %v1439
  %v1516 = vunpack.c.l.b16 %v1440
  %v1517 = vunpack.c.h.b16 %v1440
  %v1518 = vunpack.c.l.b16 %v1441
  %v1519 = vunpack.c.h.b16 %v1441
  %v1520 = vunpack.c.l.b16 %v1442
  %v1521 = vunpack.c.h.b16 %v1442
  %v1522 = vunpack.c.l.b16 %v1443
  %v1523 = vunpack.c.h.b16 %v1443
  %v1524 = vunpack.c.l.b16 %v1444
  %v1525 = vunpack.c.h.b16 %v1444
  %v1526 = vunpack.c.l.b16 %v1445
  %v1527 = vunpack.c.h.b16 %v1445
  %v1528 = vunpack.c.l.b16 %v1446
  %v1529 = vunpack.c.h.b16 %v1446
  %v1530 = vunpack.c.l.b16 %v1447
  %v1531 = vunpack.c.h.b16 %v1447
  %v1532 = vpack.c.b16 %v1480, %v1476
  %v1533 = vpack.c.b16 %v1481, %v1477
  %v1534 = vpack.c.b16 %v1482, %v1478
  %v1535 = vpack.c.b16 %v1483, %v1479
  %v1536 = vpack.c.b16 %v1488, %v1484
  %v1537 = vpack.c.b16 %v1489, %v1485
  %v1538 = vpack.c.b16 %v1490, %v1486
  %v1539 = vpack.c.b16 %v1491, %v1487
  %v1540 = vpack.c.b16 %v1496, %v1492
  %v1541 = vpack.c.b16 %v1497, %v1493
  %v1542 = vpack.c.b16 %v1498, %v1494
  %v1543 = vpack.c.b16 %v1499, %v1495
  %v1544 = vpack.c.b16 %v1504, %v1500
  %v1545 = vpack.c.b16 %v1505, %v1501
  %v1546 = vpack.c.b16 %v1506, %v1502
  %v1547 = vpack.c.b16 %v1507, %v1503
  %v1548 = vpack.c.b16 %v1512, %v1508
  %v1549 = vpack.c.b16 %v1513, %v1509
  %v1550 = vpack.c.b16 %v1514, %v1510
  %v1551 = vpack.c.b16 %v1515, %v1511
  %v1552 = vpack.c.b16 %v1520, %v1516
  %v1553 = vpack.c.b16 %v1521, %v1517
  %v1554 = vpack.c.b16 %v1522, %v1518
  %v1555 = vpack.c.b16 %v1523, %v1519
  %v1556 = vpack.c.b16 %v1528, %v1524
  %v1557 = vpack.c.b16 %v1529, %v1525
  %v1558 = vpack.c.b16 %v1530, %v1526
  %v1559 = vpack.c.b16 %v1531, %v1527
  %v1582 = vsel %vm390, %v1535, 0
  %v1585 = vsel %vm390, %v1539, 0
  %v1588 = vsel %vm390, %v1543, 0
  %v1591 = vsel %vm390, %v1547, 0
  %v1594 = vsel %vm390, %v1551, 0
  %v1597 = vsel %vm390, %v1555, 0
  %v1600 = vsel %vm390, %v1559, 0
  %1602 = vmatprep.subr.bf16.mxu0 0
  %1603 = vmatpush1.bf16.msra.mxu0 %v340
  %1604 = vmatprep.subr.bf16.mxu0 0
  %1605 = vmatpush1.bf16.msra.mxu0 %v341
  %1606 = vmatprep.subr.bf16.mxu0 0
  %1607 = vmatpush1.bf16.msra.mxu0 %v342
  %1608 = vmatprep.subr.bf16.mxu0 0
  %1609 = vmatpush1.bf16.msra.mxu0 %v343
  %1610 = vmatprep.subr.bf16.mxu0 0
  %1611 = vmatpush1.bf16.msra.mxu0 %v344
  %1612 = vmatprep.subr.bf16.mxu0 0
  %1613 = vmatpush1.bf16.msra.mxu0 %v345
  %1614 = vmatprep.subr.bf16.mxu0 0
  %1615 = vmatpush1.bf16.msra.mxu0 %v346
  %1616 = vmatprep.subr.bf16.mxu0 0
  %1617 = vmatpush1.bf16.msra.mxu0 %v347
  %1618 = vmatprep.subr.bf16.mxu0 0
  %1619 = vmatpush1.bf16.msra.mxu0 %v348
  %1620 = vmatprep.subr.bf16.mxu0 0
  %1621 = vmatpush1.bf16.msra.mxu0 %v349
  %1622 = vmatprep.subr.bf16.mxu0 0
  %1623 = vmatpush1.bf16.msra.mxu0 %v350
  %1624 = vmatprep.subr.bf16.mxu0 0
  %1625 = vmatpush1.bf16.msra.mxu0 %v351
  %1626 = vmatprep.subr.bf16.mxu0 0
  %1627 = vmatpush1.bf16.msra.mxu0 %v352
  %1628 = vmatprep.subr.bf16.mxu0 0
  %1629 = vmatpush1.bf16.msra.mxu0 %v353
  %1630 = vmatprep.subr.bf16.mxu0 0
  %1631 = vmatpush1.bf16.msra.mxu0 %v354
  %1632 = vmatprep.subr.bf16.mxu0 0
  %1633 = vmatpush1.bf16.msra.mxu0 %v355
  %1634 = vmatprep.mubr.bf16.mxu0 %v1533
  %1635 = vmatmul.mubr.bf16.gmra.mrb[0].mxu0 %v1532
  %v1636 = vpop.f32.mrb[0].mxu0
  %v1637 = vadd.f32 0.0, %v1636
  %v1638 = vpop.f32.mrb[0].mxu0
  %v1639 = vpop.f32.mrb[0].mxu0
  %v1640 = vadd.f32 0.0, %v1639
  %v1641 = vpop.f32.mrb[0].mxu0
  %1642 = vmatprep.mubr.bf16.mxu0 %v1537
  %1643 = vmatmul.mubr.bf16.gmra.mrb[0].mxu0 %v1536
  %v1644 = vpop.f32.mrb[0].mxu0
  %v1645 = vadd.f32 0.0, %v1644
  %v1646 = vpop.f32.mrb[0].mxu0
  %v1647 = vpop.f32.mrb[0].mxu0
  %v1648 = vadd.f32 0.0, %v1647
  %v1649 = vpop.f32.mrb[0].mxu0
  %1650 = vmatprep.mubr.bf16.mxu0 %v1541
  %1651 = vmatmul.mubr.bf16.gmra.mrb[0].mxu0 %v1540
  %v1652 = vpop.f32.mrb[0].mxu0
  %v1653 = vadd.f32 0.0, %v1652
  %v1654 = vpop.f32.mrb[0].mxu0
  %v1655 = vpop.f32.mrb[0].mxu0
  %v1656 = vadd.f32 0.0, %v1655
  %v1657 = vpop.f32.mrb[0].mxu0
  %1658 = vmatprep.mubr.bf16.mxu0 %v1545
  %1659 = vmatmul.mubr.bf16.gmra.mrb[0].mxu0 %v1544
  %v1660 = vpop.f32.mrb[0].mxu0
  %v1661 = vadd.f32 0.0, %v1660
  %v1662 = vpop.f32.mrb[0].mxu0
  %v1663 = vpop.f32.mrb[0].mxu0
  %v1664 = vadd.f32 0.0, %v1663
  %v1665 = vpop.f32.mrb[0].mxu0
  %1666 = vmatprep.mubr.bf16.mxu0 %v1549
  %1667 = vmatmul.mubr.bf16.gmra.mrb[0].mxu0 %v1548
  %v1668 = vpop.f32.mrb[0].mxu0
  %v1669 = vadd.f32 0.0, %v1668
  %v1670 = vpop.f32.mrb[0].mxu0
  %v1671 = vpop.f32.mrb[0].mxu0
  %v1672 = vadd.f32 0.0, %v1671
  %v1673 = vpop.f32.mrb[0].mxu0
  %1674 = vmatprep.mubr.bf16.mxu0 %v1553
  %1675 = vmatmul.mubr.bf16.gmra.mrb[0].mxu0 %v1552
  %v1676 = vpop.f32.mrb[0].mxu0
  %v1677 = vadd.f32 0.0, %v1676
  %v1678 = vpop.f32.mrb[0].mxu0
  %v1679 = vpop.f32.mrb[0].mxu0
  %v1680 = vadd.f32 0.0, %v1679
  %v1681 = vpop.f32.mrb[0].mxu0
  %1682 = vmatprep.mubr.bf16.mxu0 %v1557
  %1683 = vmatmul.mubr.bf16.gmra.mrb[0].mxu0 %v1556
  %v1684 = vpop.f32.mrb[0].mxu0
  %v1685 = vadd.f32 0.0, %v1684
  %v1686 = vpop.f32.mrb[0].mxu0
  %v1687 = vpop.f32.mrb[0].mxu0
  %v1688 = vadd.f32 0.0, %v1687
  %v1689 = vpop.f32.mrb[0].mxu0
  %1690 = vdwg.mxu0
  %1691 = vmatprep.subr.bf16.mxu0 0
  %1692 = vmatpush1.bf16.msra.mxu0 %v356
  %1693 = vmatprep.subr.bf16.mxu0 0
  %1694 = vmatpush1.bf16.msra.mxu0 %v357
  %1695 = vmatprep.subr.bf16.mxu0 0
  %1696 = vmatpush1.bf16.msra.mxu0 %v358
  %1697 = vmatprep.subr.bf16.mxu0 0
  %1698 = vmatpush1.bf16.msra.mxu0 %v359
  %1699 = vmatprep.subr.bf16.mxu0 0
  %1700 = vmatpush1.bf16.msra.mxu0 %v360
  %1701 = vmatprep.subr.bf16.mxu0 0
  %1702 = vmatpush1.bf16.msra.mxu0 %v361
  %1703 = vmatprep.subr.bf16.mxu0 0
  %1704 = vmatpush1.bf16.msra.mxu0 %v362
  %1705 = vmatprep.subr.bf16.mxu0 0
  %1706 = vmatpush1.bf16.msra.mxu0 %v363
  %1707 = vmatprep.subr.bf16.mxu0 0
  %1708 = vmatpush1.bf16.msra.mxu0 %v364
  %1709 = vmatprep.subr.bf16.mxu0 0
  %1710 = vmatpush1.bf16.msra.mxu0 0
  %1711 = vmatprep.subr.bf16.mxu0 0
  %1712 = vmatpush1.bf16.msra.mxu0 0
  %1713 = vmatprep.subr.bf16.mxu0 0
  %1714 = vmatpush1.bf16.msra.mxu0 0
  %1715 = vmatprep.subr.bf16.mxu0 0
  %1716 = vmatpush1.bf16.msra.mxu0 0
  %1717 = vmatprep.subr.bf16.mxu0 0
  %1718 = vmatpush1.bf16.msra.mxu0 0
  %1719 = vmatprep.subr.bf16.mxu0 0
  %1720 = vmatpush1.bf16.msra.mxu0 0
  %1721 = vmatprep.subr.bf16.mxu0 0
  %1722 = vmatpush1.bf16.msra.mxu0 0
  %1723 = vmatprep.mubr.bf16.mxu0 %v1582
  %1724 = vmatmul.mubr.bf16.gmra.mrb[0].mxu0 %v1534
  %v1725 = vpop.f32.mrb[0].mxu0
  %v1726 = vadd.f32 %v1637, %v1725
  %v1727 = vpop.f32.mrb[0].mxu0
  %v1728 = vpop.f32.mrb[0].mxu0
  %v1729 = vadd.f32 %v1640, %v1728
  %v1730 = vpop.f32.mrb[0].mxu0
  %1731 = vmatprep.mubr.bf16.mxu0 %v1585
  %1732 = vmatmul.mubr.bf16.gmra.mrb[0].mxu0 %v1538
  %v1733 = vpop.f32.mrb[0].mxu0
  %v1734 = vadd.f32 %v1645, %v1733
  %v1735 = vpop.f32.mrb[0].mxu0
  %v1736 = vpop.f32.mrb[0].mxu0
  %v1737 = vadd.f32 %v1648, %v1736
  %v1738 = vpop.f32.mrb[0].mxu0
  %1739 = vmatprep.mubr.bf16.mxu0 %v1588
  %1740 = vmatmul.mubr.bf16.gmra.mrb[0].mxu0 %v1542
  %v1741 = vpop.f32.mrb[0].mxu0
  %v1742 = vadd.f32 %v1653, %v1741
  %v1743 = vpop.f32.mrb[0].mxu0
  %v1744 = vpop.f32.mrb[0].mxu0
  %v1745 = vadd.f32 %v1656, %v1744
  %v1746 = vpop.f32.mrb[0].mxu0
  %1747 = vmatprep.mubr.bf16.mxu0 %v1591
  %1748 = vmatmul.mubr.bf16.gmra.mrb[0].mxu0 %v1546
  %v1749 = vpop.f32.mrb[0].mxu0
  %v1750 = vadd.f32 %v1661, %v1749
  %v1751 = vpop.f32.mrb[0].mxu0
  %v1752 = vpop.f32.mrb[0].mxu0
  %v1753 = vadd.f32 %v1664, %v1752
  %v1754 = vpop.f32.mrb[0].mxu0
  %1755 = vmatprep.mubr.bf16.mxu0 %v1594
  %1756 = vmatmul.mubr.bf16.gmra.mrb[0].mxu0 %v1550
  %v1757 = vpop.f32.mrb[0].mxu0
  %v1758 = vadd.f32 %v1669, %v1757
  %v1759 = vpop.f32.mrb[0].mxu0
  %v1760 = vpop.f32.mrb[0].mxu0
  %v1761 = vadd.f32 %v1672, %v1760
  %v1762 = vpop.f32.mrb[0].mxu0
  %1763 = vmatprep.mubr.bf16.mxu0 %v1597
  %1764 = vmatmul.mubr.bf16.gmra.mrb[0].mxu0 %v1554
  %v1765 = vpop.f32.mrb[0].mxu0
  %v1766 = vadd.f32 %v1677, %v1765
  %v1767 = vpop.f32.mrb[0].mxu0
  %v1768 = vpop.f32.mrb[0].mxu0
  %v1769 = vadd.f32 %v1680, %v1768
  %v1770 = vpop.f32.mrb[0].mxu0
  %1771 = vmatprep.mubr.bf16.mxu0 %v1600
  %1772 = vmatmul.mubr.bf16.gmra.mrb[0].mxu0 %v1558
  %v1773 = vpop.f32.mrb[0].mxu0
  %v1774 = vadd.f32 %v1685, %v1773
  %v1775 = vpop.f32.mrb[0].mxu0
  %v1776 = vpop.f32.mrb[0].mxu0
  %v1777 = vadd.f32 %v1688, %v1776
  %v1778 = vpop.f32.mrb[0].mxu0
  %1779 = vdwg.mxu0
  %v1780 = vmul.f32 %v1726, %v594
  %v1781 = vmul.f32 %v1729, %v594
  %v1782 = vmul.f32 %v1734, %v594
  %v1783 = vmul.f32 %v1737, %v594
  %v1784 = vmul.f32 %v1742, %v594
  %v1785 = vmul.f32 %v1745, %v594
  %v1786 = vmul.f32 %v1750, %v594
  %v1787 = vmul.f32 %v1753, %v594
  %v1788 = vmul.f32 %v1758, %v594
  %v1789 = vmul.f32 %v1761, %v594
  %v1790 = vmul.f32 %v1766, %v594
  %v1791 = vmul.f32 %v1769, %v594
  %v1792 = vmul.f32 %v1774, %v594
  %v1793 = vmul.f32 %v1777, %v594
  %v1794 = vadd.f32 %v1780, %v614
  %v1795 = vadd.f32 %v1781, %v614
  %v1796 = vadd.f32 %v1782, %v614
  %v1797 = vadd.f32 %v1783, %v614
  %v1798 = vadd.f32 %v1784, %v614
  %v1799 = vadd.f32 %v1785, %v614
  %v1800 = vadd.f32 %v1786, %v614
  %v1801 = vadd.f32 %v1787, %v614
  %v1802 = vadd.f32 %v1788, %v614
  %v1803 = vadd.f32 %v1789, %v614
  %v1804 = vadd.f32 %v1790, %v614
  %v1805 = vadd.f32 %v1791, %v614
  %v1806 = vadd.f32 %v1792, %v614
  %v1807 = vadd.f32 %v1793, %v614
  %v1808 = vmax.f32 %v1406, %v1794
  %v1809 = vmax.f32 %v1407, %v1795
  %v1810 = vmax.f32 %v1408, %v1796
  %v1811 = vmax.f32 %v1409, %v1797
  %v1812 = vmax.f32 %v1410, %v1798
  %v1813 = vmax.f32 %v1411, %v1799
  %v1814 = vmax.f32 %v1412, %v1800
  %v1815 = vmax.f32 %v1413, %v1801
  %v1816 = vmax.f32 %v1414, %v1802
  %v1817 = vmax.f32 %v1415, %v1803
  %v1818 = vmax.f32 %v1416, %v1804
  %v1819 = vmax.f32 %v1417, %v1805
  %v1820 = vmax.f32 %v1418, %v1806
  %v1821 = vmax.f32 %v1419, %v1807
  %v1822 = vmax.f32 %v1018, %v1808
  %v1823 = vmax.f32 %v1019, %v1809
  %v1824 = vmax.f32 %v1020, %v1810
  %v1825 = vmax.f32 %v1021, %v1811
  %v1826 = vmax.f32 %v1022, %v1812
  %v1827 = vmax.f32 %v1023, %v1813
  %v1828 = vmax.f32 %v1024, %v1814
  %v1829 = vmax.f32 %v1025, %v1815
  %v1830 = vmax.f32 %v1026, %v1816
  %v1831 = vmax.f32 %v1027, %v1817
  %v1832 = vmax.f32 %v1028, %v1818
  %v1833 = vmax.f32 %v1029, %v1819
  %v1834 = vmax.f32 %v1030, %v1820
  %v1835 = vmax.f32 %v1031, %v1821
  %v1836 = vmax.f32 %v1822, 0.0
  %v1837 = vmax.f32 %v1823, 0.0
  %v1838 = vmax.f32 %v1824, 0.0
  %v1839 = vmax.f32 %v1825, 0.0
  %v1840 = vmax.f32 %v1826, 0.0
  %v1841 = vmax.f32 %v1827, 0.0
  %v1842 = vmax.f32 %v1828, 0.0
  %v1843 = vmax.f32 %v1829, 0.0
  %v1844 = vmax.f32 %v1830, 0.0
  %v1845 = vmax.f32 %v1831, 0.0
  %v1846 = vmax.f32 %v1832, 0.0
  %v1847 = vmax.f32 %v1833, 0.0
  %v1848 = vmax.f32 %v1834, 0.0
  %v1849 = vmax.f32 %v1835, 0.0
  %v1850 = vpack.c.bf16 %v1837, %v1836
  %v1851 = vpack.c.bf16 %v1839, %v1838
  %v1852 = vpack.c.bf16 %v1841, %v1840
  %v1853 = vpack.c.bf16 %v1843, %v1842
  %v1854 = vpack.c.bf16 %v1845, %v1844
  %v1855 = vpack.c.bf16 %v1847, %v1846
  %v1856 = vpack.c.bf16 %v1849, %v1848
  %v1864 = vunpack.c.l.b16 %v1850
  %v1865 = vunpack.c.h.b16 %v1850
  %v1866 = vunpack.c.l.b16 %v1851
  %v1867 = vunpack.c.h.b16 %v1851
  %v1868 = vunpack.c.l.b16 %v1852
  %v1869 = vunpack.c.h.b16 %v1852
  %v1870 = vunpack.c.l.b16 %v1853
  %v1871 = vunpack.c.h.b16 %v1853
  %v1872 = vunpack.c.l.b16 %v1854
  %v1873 = vunpack.c.h.b16 %v1854
  %v1874 = vunpack.c.l.b16 %v1855
  %v1875 = vunpack.c.h.b16 %v1855
  %v1876 = vunpack.c.l.b16 %v1856
  %v1877 = vunpack.c.h.b16 %v1856
  %v1878 = vpack.c.b16 %v1864, %v1864
  %v1879 = vpack.c.b16 %v1865, %v1865
  %v1880 = vpack.c.b16 %v1866, %v1866
  %v1881 = vpack.c.b16 %v1867, %v1867
  %v1882 = vpack.c.b16 %v1868, %v1868
  %v1883 = vpack.c.b16 %v1869, %v1869
  %v1884 = vpack.c.b16 %v1870, %v1870
  %v1885 = vpack.c.b16 %v1871, %v1871
  %v1886 = vpack.c.b16 %v1872, %v1872
  %v1887 = vpack.c.b16 %v1873, %v1873
  %v1888 = vpack.c.b16 %v1874, %v1874
  %v1889 = vpack.c.b16 %v1875, %v1875
  %v1890 = vpack.c.b16 %v1876, %v1876
  %v1891 = vpack.c.b16 %v1877, %v1877
  %1906 = vst [vmem:[%s7] sm:$0xf] %v1878
  %1907 = vst [vmem:[%s7 + $0x4] sm:$0xf] %v1879
  %1908 = vst [vmem:[%s7 + $0x8] sm:$0xf] %v1880
  %1909 = vst [vmem:[%s7 + $0xc] sm:$0xf] %v1881
  %1910 = vst [vmem:[%s7 + $0x10] sm:$0xf] %v1882
  %1911 = vst [vmem:[%s7 + $0x14] sm:$0xf] %v1883
  %1912 = vst [vmem:[%s7 + $0x18] sm:$0xf] %v1884
  %1913 = vst [vmem:[%s7 + $0x1c] sm:$0xf] %v1885
  %1914 = vst [vmem:[%s7 + $0x20] sm:$0xf] %v1886
  %1915 = vst [vmem:[%s7 + $0x24] sm:$0xf] %v1887
  %1916 = vst [vmem:[%s7 + $0x28] sm:$0xf] %v1888
  %1917 = vst [vmem:[%s7 + $0x2c] sm:$0xf] %v1889
  %1918 = vst [vmem:[%s7 + $0x30] sm:$0xf] %v1890
  %1919 = vst [vmem:[%s7 + $0x34] sm:$0xf] %v1891
  // Predicated region
  $region30: #{convnet_forward.4} parent=0 // pred_check
    _
  $region31: #{convnet_forward.4} parent=0 // pred_check_branch
    %1921 = sbr.rel (0) target = $region33
  $region32: #{convnet_forward.4} parent=0 // pred_region
    _
  $region33: #{convnet_forward.4} parent=0 // pred_fallthru
    _
  // Predicated region
  $region34: #{convnet_forward.4} parent=0 // pred_check
    _
  $region35: #{convnet_forward.4} parent=0 // pred_check_branch
    %1923 = sbr.rel (0) target = $region37
  $region36: #{convnet_forward.4} parent=0 // pred_region
    _
  $region37: #{convnet_forward.4} parent=0 // pred_fallthru
    _

// kernel: convnet_forward.5
$region0: #{convnet_forward.5}
  #allocation0 [shape = 'u32[]', space=smem, size = 0x4, offset = 0x4, fixed_abs, tag = 'smem constant byte address 0x4 - core index']
  #allocation1 [shape = 'u32[144,128]{1,0:T(1,128)}', space=vmem, size = 0x12000, scoped, tag = 'internal scratch']
  %s0 = inlined_call_operand.vmem [shape: bf16[16,6272], index: 0, kind: input, shape index: {}]
  %s1 = inlined_call_operand.vmem [shape: bf16[6272,128], index: 1, kind: input, shape index: {}]
  %s2 = inlined_call_operand.vmem [shape: f32[1,128], index: 2, kind: input, shape index: {}]
  %s3 = inlined_call_operand.vmem [shape: f32[16,128], index: 3, kind: output, shape index: {}]
  %s4 = sld [smem:[#allocation0]]
  $region22: #{convnet_forward.5} parent=0
    _
  %s6 = ssub.s32 1, %s4
  %s7 = scalar_select 0, %s6, %s4
  // Predicated region
  $region2: #{convnet_forward.5} parent=0 // pred_check
    _
  $region3: #{convnet_forward.5} parent=0 // pred_check_branch
    %9 = sbr.rel (0) target = $region5
  $region4: #{convnet_forward.5} parent=0 // pred_region
    _
  $region5: #{convnet_forward.5} parent=0 // pred_fallthru
    _
  // Predicated region
  $region6: #{convnet_forward.5} parent=0 // pred_check
    _
  $region7: #{convnet_forward.5} parent=0 // pred_check_branch
    %11 = sbr.rel (0) target = $region9
  $region8: #{convnet_forward.5} parent=0 // pred_region
    _
  $region9: #{convnet_forward.5} parent=0 // pred_fallthru
    _
  // Predicated region
  $region10: #{convnet_forward.5} parent=0 // pred_check
    _
  $region11: #{convnet_forward.5} parent=0 // pred_check_branch
    %13 = sbr.rel (0) target = $region13
  $region12: #{convnet_forward.5} parent=0 // pred_region
    _
  $region13: #{convnet_forward.5} parent=0 // pred_fallthru
    _
  %v15 = vld [vmem:[%s0] sm:$0xff]
  %v16 = vld [vmem:[%s0 + $0x8] sm:$0xff]
  %v17 = vld [vmem:[%s0 + $0x10] sm:$0xff]
  %v18 = vld [vmem:[%s0 + $0x18] sm:$0xff]
  %v19 = vld [vmem:[%s0 + $0x20] sm:$0xff]
  %v20 = vld [vmem:[%s0 + $0x28] sm:$0xff]
  %v21 = vld [vmem:[%s0 + $0x30] sm:$0xff]
  %v22 = vld [vmem:[%s0 + $0x38] sm:$0xff]
  %v23 = vld [vmem:[%s0 + $0x40] sm:$0xff]
  %v24 = vld [vmem:[%s0 + $0x48] sm:$0xff]
  %v25 = vld [vmem:[%s0 + $0x50] sm:$0xff]
  %v26 = vld [vmem:[%s0 + $0x58] sm:$0xff]
  %v27 = vld [vmem:[%s0 + $0x60] sm:$0xff]
  %v28 = vld [vmem:[%s0 + $0x68] sm:$0xff]
  %v29 = vld [vmem:[%s0 + $0x70] sm:$0xff]
  %v30 = vld [vmem:[%s0 + $0x78] sm:$0xff]
  %v31 = vld [vmem:[%s0 + $0x80] sm:$0xff]
  %v32 = vld [vmem:[%s0 + $0x88] sm:$0xff]
  %v33 = vld [vmem:[%s0 + $0x90] sm:$0xff]
  %v34 = vld [vmem:[%s0 + $0x98] sm:$0xff]
  %v35 = vld [vmem:[%s0 + $0xa0] sm:$0xff]
  %v36 = vld [vmem:[%s0 + $0xa8] sm:$0xff]
  %v37 = vld [vmem:[%s0 + $0xb0] sm:$0xff]
  %v38 = vld [vmem:[%s0 + $0xb8] sm:$0xff]
  %v39 = vld [vmem:[%s0 + $0xc0] sm:$0xf]
  %v40 = vld [vmem:[%s0 + $0xc4] sm:$0xff]
  %v41 = vld [vmem:[%s0 + $0xcc] sm:$0xff]
  %v42 = vld [vmem:[%s0 + $0xd4] sm:$0xff]
  %v43 = vld [vmem:[%s0 + $0xdc] sm:$0xff]
  %v44 = vld [vmem:[%s0 + $0xe4] sm:$0xff]
  %v45 = vld [vmem:[%s0 + $0xec] sm:$0xff]
  %v46 = vld [vmem:[%s0 + $0xf4] sm:$0xff]
  %v47 = vld [vmem:[%s0 + $0xfc] sm:$0xff]
  %v48 = vld [vmem:[%s0 + $0x104] sm:$0xff]
  %v49 = vld [vmem:[%s0 + $0x10c] sm:$0xff]
  %v50 = vld [vmem:[%s0 + $0x114] sm:$0xff]
  %v51 = vld [vmem:[%s0 + $0x11c] sm:$0xff]
  %v52 = vld [vmem:[%s0 + $0x124] sm:$0xff]
  %v53 = vld [vmem:[%s0 + $0x12c] sm:$0xff]
  %v54 = vld [vmem:[%s0 + $0x134] sm:$0xff]
  %v55 = vld [vmem:[%s0 + $0x13c] sm:$0xff]
  %v56 = vld [vmem:[%s0 + $0x144] sm:$0xff]
  %v57 = vld [vmem:[%s0 + $0x14c] sm:$0xff]
  %v58 = vld [vmem:[%s0 + $0x154] sm:$0xff]
  %v59 = vld [vmem:[%s0 + $0x15c] sm:$0xff]
  %v60 = vld [vmem:[%s0 + $0x164] sm:$0xff]
  %v61 = vld [vmem:[%s0 + $0x16c] sm:$0xff]
  %v62 = vld [vmem:[%s0 + $0x174] sm:$0xff]
  %v63 = vld [vmem:[%s0 + $0x17c] sm:$0xff]
  %v64 = vld [vmem:[%s0 + $0x184] sm:$0xf]
  %v65 = vld [vmem:[%s1] sm:$0xf]
  %v66 = vld [vmem:[%s1 + $0x4] sm:$0xf]
  %v67 = vld [vmem:[%s1 + $0x8] sm:$0xf]
  %v68 = vld [vmem:[%s1 + $0xc] sm:$0xf]
  %v69 = vld [vmem:[%s1 + $0x10] sm:$0xf]
  %v70 = vld [vmem:[%s1 + $0x14] sm:$0xf]
  %v71 = vld [vmem:[%s1 + $0x18] sm:$0xf]
  %v72 = vld [vmem:[%s1 + $0x1c] sm:$0xf]
  %v73 = vld [vmem:[%s1 + $0x20] sm:$0xf]
  %v74 = vld [vmem:[%s1 + $0x24] sm:$0xf]
  %v75 = vld [vmem:[%s1 + $0x28] sm:$0xf]
  %v76 = vld [vmem:[%s1 + $0x2c] sm:$0xf]
  %v77 = vld [vmem:[%s1 + $0x30] sm:$0xf]
  %v78 = vld [vmem:[%s1 + $0x34] sm:$0xf]
  %v79 = vld [vmem:[%s1 + $0x38] sm:$0xf]
  %v80 = vld [vmem:[%s1 + $0x3c] sm:$0xf]
  %v81 = vld [vmem:[%s1 + $0x40] sm:$0xf]
  %v82 = vld [vmem:[%s1 + $0x44] sm:$0xf]
  %v83 = vld [vmem:[%s1 + $0x48] sm:$0xf]
  %v84 = vld [vmem:[%s1 + $0x4c] sm:$0xf]
  %v85 = vld [vmem:[%s1 + $0x50] sm:$0xf]
  %v86 = vld [vmem:[%s1 + $0x54] sm:$0xf]
  %v87 = vld [vmem:[%s1 + $0x58] sm:$0xf]
  %v88 = vld [vmem:[%s1 + $0x5c] sm:$0xf]
  %v89 = vld [vmem:[%s1 + $0x60] sm:$0xf]
  %v90 = vld [vmem:[%s1 + $0x64] sm:$0xf]
  %v91 = vld [vmem:[%s1 + $0x68] sm:$0xf]
  %v92 = vld [vmem:[%s1 + $0x6c] sm:$0xf]
  %v93 = vld [vmem:[%s1 + $0x70] sm:$0xf]
  %v94 = vld [vmem:[%s1 + $0x74] sm:$0xf]
  %v95 = vld [vmem:[%s1 + $0x78] sm:$0xf]
  %v96 = vld [vmem:[%s1 + $0x7c] sm:$0xf]
  %v97 = vld [vmem:[%s1 + $0x80] sm:$0xf]
  %v98 = vld [vmem:[%s1 + $0x84] sm:$0xf]
  %v99 = vld [vmem:[%s1 + $0x88] sm:$0xf]
  %v100 = vld [vmem:[%s1 + $0x8c] sm:$0xf]
  %v101 = vld [vmem:[%s1 + $0x90] sm:$0xf]
  %v102 = vld [vmem:[%s1 + $0x94] sm:$0xf]
  %v103 = vld [vmem:[%s1 + $0x98] sm:$0xf]
  %v104 = vld [vmem:[%s1 + $0x9c] sm:$0xf]
  %v105 = vld [vmem:[%s1 + $0xa0] sm:$0xf]
  %v106 = vld [vmem:[%s1 + $0xa4] sm:$0xf]
  %v107 = vld [vmem:[%s1 + $0xa8] sm:$0xf]
  %v108 = vld [vmem:[%s1 + $0xac] sm:$0xf]
  %v109 = vld [vmem:[%s1 + $0xb0] sm:$0xf]
  %v110 = vld [vmem:[%s1 + $0xb4] sm:$0xf]
  %v111 = vld [vmem:[%s1 + $0xb8] sm:$0xf]
  %v112 = vld [vmem:[%s1 + $0xbc] sm:$0xf]
  %v113 = vld [vmem:[%s1 + $0xc0] sm:$0xf]
  %v114 = vld [vmem:[%s1 + $0xc4] sm:$0xf]
  %v115 = vld [vmem:[%s1 + $0xc8] sm:$0xf]
  %v116 = vld [vmem:[%s1 + $0xcc] sm:$0xf]
  %v117 = vld [vmem:[%s1 + $0xd0] sm:$0xf]
  %v118 = vld [vmem:[%s1 + $0xd4] sm:$0xf]
  %v119 = vld [vmem:[%s1 + $0xd8] sm:$0xf]
  %v120 = vld [vmem:[%s1 + $0xdc] sm:$0xf]
  %v121 = vld [vmem:[%s1 + $0xe0] sm:$0xf]
  %v122 = vld [vmem:[%s1 + $0xe4] sm:$0xf]
  %v123 = vld [vmem:[%s1 + $0xe8] sm:$0xf]
  %v124 = vld [vmem:[%s1 + $0xec] sm:$0xf]
  %v125 = vld [vmem:[%s1 + $0xf0] sm:$0xf]
  %v126 = vld [vmem:[%s1 + $0xf4] sm:$0xf]
  %v127 = vld [vmem:[%s1 + $0xf8] sm:$0xf]
  %v128 = vld [vmem:[%s1 + $0xfc] sm:$0xf]
  %v129 = vld [vmem:[%s1 + $0x100] sm:$0xf]
  %v130 = vld [vmem:[%s1 + $0x104] sm:$0xf]
  %v131 = vld [vmem:[%s1 + $0x108] sm:$0xf]
  %v132 = vld [vmem:[%s1 + $0x10c] sm:$0xf]
  %v133 = vld [vmem:[%s1 + $0x110] sm:$0xf]
  %v134 = vld [vmem:[%s1 + $0x114] sm:$0xf]
  %v135 = vld [vmem:[%s1 + $0x118] sm:$0xf]
  %v136 = vld [vmem:[%s1 + $0x11c] sm:$0xf]
  %v137 = vld [vmem:[%s1 + $0x120] sm:$0xf]
  %v138 = vld [vmem:[%s1 + $0x124] sm:$0xf]
  %v139 = vld [vmem:[%s1 + $0x128] sm:$0xf]
  %v140 = vld [vmem:[%s1 + $0x12c] sm:$0xf]
  %v141 = vld [vmem:[%s1 + $0x130] sm:$0xf]
  %v142 = vld [vmem:[%s1 + $0x134] sm:$0xf]
  %v143 = vld [vmem:[%s1 + $0x138] sm:$0xf]
  %v144 = vld [vmem:[%s1 + $0x13c] sm:$0xf]
  %v145 = vld [vmem:[%s1 + $0x140] sm:$0xf]
  %v146 = vld [vmem:[%s1 + $0x144] sm:$0xf]
  %v147 = vld [vmem:[%s1 + $0x148] sm:$0xf]
  %v148 = vld [vmem:[%s1 + $0x14c] sm:$0xf]
  %v149 = vld [vmem:[%s1 + $0x150] sm:$0xf]
  %v150 = vld [vmem:[%s1 + $0x154] sm:$0xf]
  %v151 = vld [vmem:[%s1 + $0x158] sm:$0xf]
  %v152 = vld [vmem:[%s1 + $0x15c] sm:$0xf]
  %v153 = vld [vmem:[%s1 + $0x160] sm:$0xf]
  %v154 = vld [vmem:[%s1 + $0x164] sm:$0xf]
  %v155 = vld [vmem:[%s1 + $0x168] sm:$0xf]
  %v156 = vld [vmem:[%s1 + $0x16c] sm:$0xf]
  %v157 = vld [vmem:[%s1 + $0x170] sm:$0xf]
  %v158 = vld [vmem:[%s1 + $0x174] sm:$0xf]
  %v159 = vld [vmem:[%s1 + $0x178] sm:$0xf]
  %v160 = vld [vmem:[%s1 + $0x17c] sm:$0xf]
  %v161 = vld [vmem:[%s1 + $0x180] sm:$0xf]
  %v162 = vld [vmem:[%s1 + $0x184] sm:$0xf]
  %v163 = vld [vmem:[%s1 + $0x188] sm:$0xf]
  %v164 = vld [vmem:[%s1 + $0x18c] sm:$0xf]
  %v165 = vld [vmem:[%s1 + $0x190] sm:$0xf]
  %v166 = vld [vmem:[%s1 + $0x194] sm:$0xf]
  %v167 = vld [vmem:[%s1 + $0x198] sm:$0xf]
  %v168 = vld [vmem:[%s1 + $0x19c] sm:$0xf]
  %v169 = vld [vmem:[%s1 + $0x1a0] sm:$0xf]
  %v170 = vld [vmem:[%s1 + $0x1a4] sm:$0xf]
  %v171 = vld [vmem:[%s1 + $0x1a8] sm:$0xf]
  %v172 = vld [vmem:[%s1 + $0x1ac] sm:$0xf]
  %v173 = vld [vmem:[%s1 + $0x1b0] sm:$0xf]
  %v174 = vld [vmem:[%s1 + $0x1b4] sm:$0xf]
  %v175 = vld [vmem:[%s1 + $0x1b8] sm:$0xf]
  %v176 = vld [vmem:[%s1 + $0x1bc] sm:$0xf]
  %v177 = vld [vmem:[%s1 + $0x1c0] sm:$0xf]
  %v178 = vld [vmem:[%s1 + $0x1c4] sm:$0xf]
  %v179 = vld [vmem:[%s1 + $0x1c8] sm:$0xf]
  %v180 = vld [vmem:[%s1 + $0x1cc] sm:$0xf]
  %v181 = vld [vmem:[%s1 + $0x1d0] sm:$0xf]
  %v182 = vld [vmem:[%s1 + $0x1d4] sm:$0xf]
  %v183 = vld [vmem:[%s1 + $0x1d8] sm:$0xf]
  %v184 = vld [vmem:[%s1 + $0x1dc] sm:$0xf]
  %v185 = vld [vmem:[%s1 + $0x1e0] sm:$0xf]
  %v186 = vld [vmem:[%s1 + $0x1e4] sm:$0xf]
  %v187 = vld [vmem:[%s1 + $0x1e8] sm:$0xf]
  %v188 = vld [vmem:[%s1 + $0x1ec] sm:$0xf]
  %v189 = vld [vmem:[%s1 + $0x1f0] sm:$0xf]
  %v190 = vld [vmem:[%s1 + $0x1f4] sm:$0xf]
  %v191 = vld [vmem:[%s1 + $0x1f8] sm:$0xf]
  %v192 = vld [vmem:[%s1 + $0x1fc] sm:$0xf]
  %v193 = vld [vmem:[%s1 + $0x200] sm:$0xf]
  %v194 = vld [vmem:[%s1 + $0x204] sm:$0xf]
  %v195 = vld [vmem:[%s1 + $0x208] sm:$0xf]
  %v196 = vld [vmem:[%s1 + $0x20c] sm:$0xf]
  %v197 = vld [vmem:[%s1 + $0x210] sm:$0xf]
  %v198 = vld [vmem:[%s1 + $0x214] sm:$0xf]
  %v199 = vld [vmem:[%s1 + $0x218] sm:$0xf]
  %v200 = vld [vmem:[%s1 + $0x21c] sm:$0xf]
  %v201 = vld [vmem:[%s1 + $0x220] sm:$0xf]
  %v202 = vld [vmem:[%s1 + $0x224] sm:$0xf]
  %v203 = vld [vmem:[%s1 + $0x228] sm:$0xf]
  %v204 = vld [vmem:[%s1 + $0x22c] sm:$0xf]
  %v205 = vld [vmem:[%s1 + $0x230] sm:$0xf]
  %v206 = vld [vmem:[%s1 + $0x234] sm:$0xf]
  %v207 = vld [vmem:[%s1 + $0x238] sm:$0xf]
  %v208 = vld [vmem:[%s1 + $0x23c] sm:$0xf]
  %v209 = vld [vmem:[%s1 + $0x240] sm:$0xf]
  %v210 = vld [vmem:[%s1 + $0x244] sm:$0xf]
  %v211 = vld [vmem:[%s1 + $0x248] sm:$0xf]
  %v212 = vld [vmem:[%s1 + $0x24c] sm:$0xf]
  %v213 = vld [vmem:[%s1 + $0x250] sm:$0xf]
  %v214 = vld [vmem:[%s1 + $0x254] sm:$0xf]
  %v215 = vld [vmem:[%s1 + $0x258] sm:$0xf]
  %v216 = vld [vmem:[%s1 + $0x25c] sm:$0xf]
  %v217 = vld [vmem:[%s1 + $0x260] sm:$0xf]
  %v218 = vld [vmem:[%s1 + $0x264] sm:$0xf]
  %v219 = vld [vmem:[%s1 + $0x268] sm:$0xf]
  %v220 = vld [vmem:[%s1 + $0x26c] sm:$0xf]
  %v221 = vld [vmem:[%s1 + $0x270] sm:$0xf]
  %v222 = vld [vmem:[%s1 + $0x274] sm:$0xf]
  %v223 = vld [vmem:[%s1 + $0x278] sm:$0xf]
  %v224 = vld [vmem:[%s1 + $0x27c] sm:$0xf]
  %v225 = vld [vmem:[%s1 + $0x280] sm:$0xf]
  %v226 = vld [vmem:[%s1 + $0x284] sm:$0xf]
  %v227 = vld [vmem:[%s1 + $0x288] sm:$0xf]
  %v228 = vld [vmem:[%s1 + $0x28c] sm:$0xf]
  %v229 = vld [vmem:[%s1 + $0x290] sm:$0xf]
  %v230 = vld [vmem:[%s1 + $0x294] sm:$0xf]
  %v231 = vld [vmem:[%s1 + $0x298] sm:$0xf]
  %v232 = vld [vmem:[%s1 + $0x29c] sm:$0xf]
  %v233 = vld [vmem:[%s1 + $0x2a0] sm:$0xf]
  %v234 = vld [vmem:[%s1 + $0x2a4] sm:$0xf]
  %v235 = vld [vmem:[%s1 + $0x2a8] sm:$0xf]
  %v236 = vld [vmem:[%s1 + $0x2ac] sm:$0xf]
  %v237 = vld [vmem:[%s1 + $0x2b0] sm:$0xf]
  %v238 = vld [vmem:[%s1 + $0x2b4] sm:$0xf]
  %v239 = vld [vmem:[%s1 + $0x2b8] sm:$0xf]
  %v240 = vld [vmem:[%s1 + $0x2bc] sm:$0xf]
  %v241 = vld [vmem:[%s1 + $0x2c0] sm:$0xf]
  %v242 = vld [vmem:[%s1 + $0x2c4] sm:$0xf]
  %v243 = vld [vmem:[%s1 + $0x2c8] sm:$0xf]
  %v244 = vld [vmem:[%s1 + $0x2cc] sm:$0xf]
  %v245 = vld [vmem:[%s1 + $0x2d0] sm:$0xf]
  %v246 = vld [vmem:[%s1 + $0x2d4] sm:$0xf]
  %v247 = vld [vmem:[%s1 + $0x2d8] sm:$0xf]
  %v248 = vld [vmem:[%s1 + $0x2dc] sm:$0xf]
  %v249 = vld [vmem:[%s1 + $0x2e0] sm:$0xf]
  %v250 = vld [vmem:[%s1 + $0x2e4] sm:$0xf]
  %v251 = vld [vmem:[%s1 + $0x2e8] sm:$0xf]
  %v252 = vld [vmem:[%s1 + $0x2ec] sm:$0xf]
  %v253 = vld [vmem:[%s1 + $0x2f0] sm:$0xf]
  %v254 = vld [vmem:[%s1 + $0x2f4] sm:$0xf]
  %v255 = vld [vmem:[%s1 + $0x2f8] sm:$0xf]
  %v256 = vld [vmem:[%s1 + $0x2fc] sm:$0xf]
  %v257 = vld [vmem:[%s1 + $0x300] sm:$0xf]
  %v258 = vld [vmem:[%s1 + $0x304] sm:$0xf]
  %v259 = vld [vmem:[%s1 + $0x308] sm:$0xf]
  %v260 = vld [vmem:[%s1 + $0x30c] sm:$0xf]
  %v261 = vld [vmem:[%s1 + $0x310] sm:$0xf]
  %v262 = vld [vmem:[%s1 + $0x314] sm:$0xf]
  %v263 = vld [vmem:[%s1 + $0x318] sm:$0xf]
  %v264 = vld [vmem:[%s1 + $0x31c] sm:$0xf]
  %v265 = vld [vmem:[%s1 + $0x320] sm:$0xf]
  %v266 = vld [vmem:[%s1 + $0x324] sm:$0xf]
  %v267 = vld [vmem:[%s1 + $0x328] sm:$0xf]
  %v268 = vld [vmem:[%s1 + $0x32c] sm:$0xf]
  %v269 = vld [vmem:[%s1 + $0x330] sm:$0xf]
  %v270 = vld [vmem:[%s1 + $0x334] sm:$0xf]
  %v271 = vld [vmem:[%s1 + $0x338] sm:$0xf]
  %v272 = vld [vmem:[%s1 + $0x33c] sm:$0xf]
  %v273 = vld [vmem:[%s1 + $0x340] sm:$0xf]
  %v274 = vld [vmem:[%s1 + $0x344] sm:$0xf]
  %v275 = vld [vmem:[%s1 + $0x348] sm:$0xf]
  %v276 = vld [vmem:[%s1 + $0x34c] sm:$0xf]
  %v277 = vld [vmem:[%s1 + $0x350] sm:$0xf]
  %v278 = vld [vmem:[%s1 + $0x354] sm:$0xf]
  %v279 = vld [vmem:[%s1 + $0x358] sm:$0xf]
  %v280 = vld [vmem:[%s1 + $0x35c] sm:$0xf]
  %v281 = vld [vmem:[%s1 + $0x360] sm:$0xf]
  %v282 = vld [vmem:[%s1 + $0x364] sm:$0xf]
  %v283 = vld [vmem:[%s1 + $0x368] sm:$0xf]
  %v284 = vld [vmem:[%s1 + $0x36c] sm:$0xf]
  %v285 = vld [vmem:[%s1 + $0x370] sm:$0xf]
  %v286 = vld [vmem:[%s1 + $0x374] sm:$0xf]
  %v287 = vld [vmem:[%s1 + $0x378] sm:$0xf]
  %v288 = vld [vmem:[%s1 + $0x37c] sm:$0xf]
  %v289 = vld [vmem:[%s1 + $0x380] sm:$0xf]
  %v290 = vld [vmem:[%s1 + $0x384] sm:$0xf]
  %v291 = vld [vmem:[%s1 + $0x388] sm:$0xf]
  %v292 = vld [vmem:[%s1 + $0x38c] sm:$0xf]
  %v293 = vld [vmem:[%s1 + $0x390] sm:$0xf]
  %v294 = vld [vmem:[%s1 + $0x394] sm:$0xf]
  %v295 = vld [vmem:[%s1 + $0x398] sm:$0xf]
  %v296 = vld [vmem:[%s1 + $0x39c] sm:$0xf]
  %v297 = vld [vmem:[%s1 + $0x3a0] sm:$0xf]
  %v298 = vld [vmem:[%s1 + $0x3a4] sm:$0xf]
  %v299 = vld [vmem:[%s1 + $0x3a8] sm:$0xf]
  %v300 = vld [vmem:[%s1 + $0x3ac] sm:$0xf]
  %v301 = vld [vmem:[%s1 + $0x3b0] sm:$0xf]
  %v302 = vld [vmem:[%s1 + $0x3b4] sm:$0xf]
  %v303 = vld [vmem:[%s1 + $0x3b8] sm:$0xf]
  %v304 = vld [vmem:[%s1 + $0x3bc] sm:$0xf]
  %v305 = vld [vmem:[%s1 + $0x3c0] sm:$0xf]
  %v306 = vld [vmem:[%s1 + $0x3c4] sm:$0xf]
  %v307 = vld [vmem:[%s1 + $0x3c8] sm:$0xf]
  %v308 = vld [vmem:[%s1 + $0x3cc] sm:$0xf]
  %v309 = vld [vmem:[%s1 + $0x3d0] sm:$0xf]
  %v310 = vld [vmem:[%s1 + $0x3d4] sm:$0xf]
  %v311 = vld [vmem:[%s1 + $0x3d8] sm:$0xf]
  %v312 = vld [vmem:[%s1 + $0x3dc] sm:$0xf]
  %v313 = vld [vmem:[%s1 + $0x3e0] sm:$0xf]
  %v314 = vld [vmem:[%s1 + $0x3e4] sm:$0xf]
  %v315 = vld [vmem:[%s1 + $0x3e8] sm:$0xf]
  %v316 = vld [vmem:[%s1 + $0x3ec] sm:$0xf]
  %v317 = vld [vmem:[%s1 + $0x3f0] sm:$0xf]
  %v318 = vld [vmem:[%s1 + $0x3f4] sm:$0xf]
  %v319 = vld [vmem:[%s1 + $0x3f8] sm:$0xf]
  %v320 = vld [vmem:[%s1 + $0x3fc] sm:$0xf]
  %v321 = vld [vmem:[%s1 + $0x400] sm:$0xf]
  %v322 = vld [vmem:[%s1 + $0x404] sm:$0xf]
  %v323 = vld [vmem:[%s1 + $0x408] sm:$0xf]
  %v324 = vld [vmem:[%s1 + $0x40c] sm:$0xf]
  %v325 = vld [vmem:[%s1 + $0x410] sm:$0xf]
  %v326 = vld [vmem:[%s1 + $0x414] sm:$0xf]
  %v327 = vld [vmem:[%s1 + $0x418] sm:$0xf]
  %v328 = vld [vmem:[%s1 + $0x41c] sm:$0xf]
  %v329 = vld [vmem:[%s1 + $0x420] sm:$0xf]
  %v330 = vld [vmem:[%s1 + $0x424] sm:$0xf]
  %v331 = vld [vmem:[%s1 + $0x428] sm:$0xf]
  %v332 = vld [vmem:[%s1 + $0x42c] sm:$0xf]
  %v333 = vld [vmem:[%s1 + $0x430] sm:$0xf]
  %v334 = vld [vmem:[%s1 + $0x434] sm:$0xf]
  %v335 = vld [vmem:[%s1 + $0x438] sm:$0xf]
  %v336 = vld [vmem:[%s1 + $0x43c] sm:$0xf]
  %v337 = vld [vmem:[%s1 + $0x440] sm:$0xf]
  %v338 = vld [vmem:[%s1 + $0x444] sm:$0xf]
  %v339 = vld [vmem:[%s1 + $0x448] sm:$0xf]
  %v340 = vld [vmem:[%s1 + $0x44c] sm:$0xf]
  %v341 = vld [vmem:[%s1 + $0x450] sm:$0xf]
  %v342 = vld [vmem:[%s1 + $0x454] sm:$0xf]
  %v343 = vld [vmem:[%s1 + $0x458] sm:$0xf]
  %v344 = vld [vmem:[%s1 + $0x45c] sm:$0xf]
  %v345 = vld [vmem:[%s1 + $0x460] sm:$0xf]
  %v346 = vld [vmem:[%s1 + $0x464] sm:$0xf]
  %v347 = vld [vmem:[%s1 + $0x468] sm:$0xf]
  %v348 = vld [vmem:[%s1 + $0x46c] sm:$0xf]
  %v349 = vld [vmem:[%s1 + $0x470] sm:$0xf]
  %v350 = vld [vmem:[%s1 + $0x474] sm:$0xf]
  %v351 = vld [vmem:[%s1 + $0x478] sm:$0xf]
  %v352 = vld [vmem:[%s1 + $0x47c] sm:$0xf]
  %v353 = vld [vmem:[%s1 + $0x480] sm:$0xf]
  %v354 = vld [vmem:[%s1 + $0x484] sm:$0xf]
  %v355 = vld [vmem:[%s1 + $0x488] sm:$0xf]
  %v356 = vld [vmem:[%s1 + $0x48c] sm:$0xf]
  %v357 = vld [vmem:[%s1 + $0x490] sm:$0xf]
  %v358 = vld [vmem:[%s1 + $0x494] sm:$0xf]
  %v359 = vld [vmem:[%s1 + $0x498] sm:$0xf]
  %v360 = vld [vmem:[%s1 + $0x49c] sm:$0xf]
  %v361 = vld [vmem:[%s1 + $0x4a0] sm:$0xf]
  %v362 = vld [vmem:[%s1 + $0x4a4] sm:$0xf]
  %v363 = vld [vmem:[%s1 + $0x4a8] sm:$0xf]
  %v364 = vld [vmem:[%s1 + $0x4ac] sm:$0xf]
  %v365 = vld [vmem:[%s1 + $0x4b0] sm:$0xf]
  %v366 = vld [vmem:[%s1 + $0x4b4] sm:$0xf]
  %v367 = vld [vmem:[%s1 + $0x4b8] sm:$0xf]
  %v368 = vld [vmem:[%s1 + $0x4bc] sm:$0xf]
  %v369 = vld [vmem:[%s1 + $0x4c0] sm:$0xf]
  %v370 = vld [vmem:[%s1 + $0x4c4] sm:$0xf]
  %v371 = vld [vmem:[%s1 + $0x4c8] sm:$0xf]
  %v372 = vld [vmem:[%s1 + $0x4cc] sm:$0xf]
  %v373 = vld [vmem:[%s1 + $0x4d0] sm:$0xf]
  %v374 = vld [vmem:[%s1 + $0x4d4] sm:$0xf]
  %v375 = vld [vmem:[%s1 + $0x4d8] sm:$0xf]
  %v376 = vld [vmem:[%s1 + $0x4dc] sm:$0xf]
  %v377 = vld [vmem:[%s1 + $0x4e0] sm:$0xf]
  %v378 = vld [vmem:[%s1 + $0x4e4] sm:$0xf]
  %v379 = vld [vmem:[%s1 + $0x4e8] sm:$0xf]
  %v380 = vld [vmem:[%s1 + $0x4ec] sm:$0xf]
  %v381 = vld [vmem:[%s1 + $0x4f0] sm:$0xf]
  %v382 = vld [vmem:[%s1 + $0x4f4] sm:$0xf]
  %v383 = vld [vmem:[%s1 + $0x4f8] sm:$0xf]
  %v384 = vld [vmem:[%s1 + $0x4fc] sm:$0xf]
  %v385 = vld [vmem:[%s1 + $0x500] sm:$0xf]
  %v386 = vld [vmem:[%s1 + $0x504] sm:$0xf]
  %v387 = vld [vmem:[%s1 + $0x508] sm:$0xf]
  %v388 = vld [vmem:[%s1 + $0x50c] sm:$0xf]
  %v389 = vld [vmem:[%s1 + $0x510] sm:$0xf]
  %v390 = vld [vmem:[%s1 + $0x514] sm:$0xf]
  %v391 = vld [vmem:[%s1 + $0x518] sm:$0xf]
  %v392 = vld [vmem:[%s1 + $0x51c] sm:$0xf]
  %v393 = vld [vmem:[%s1 + $0x520] sm:$0xf]
  %v394 = vld [vmem:[%s1 + $0x524] sm:$0xf]
  %v395 = vld [vmem:[%s1 + $0x528] sm:$0xf]
  %v396 = vld [vmem:[%s1 + $0x52c] sm:$0xf]
  %v397 = vld [vmem:[%s1 + $0x530] sm:$0xf]
  %v398 = vld [vmem:[%s1 + $0x534] sm:$0xf]
  %v399 = vld [vmem:[%s1 + $0x538] sm:$0xf]
  %v400 = vld [vmem:[%s1 + $0x53c] sm:$0xf]
  %v401 = vld [vmem:[%s1 + $0x540] sm:$0xf]
  %v402 = vld [vmem:[%s1 + $0x544] sm:$0xf]
  %v403 = vld [vmem:[%s1 + $0x548] sm:$0xf]
  %v404 = vld [vmem:[%s1 + $0x54c] sm:$0xf]
  %v405 = vld [vmem:[%s1 + $0x550] sm:$0xf]
  %v406 = vld [vmem:[%s1 + $0x554] sm:$0xf]
  %v407 = vld [vmem:[%s1 + $0x558] sm:$0xf]
  %v408 = vld [vmem:[%s1 + $0x55c] sm:$0xf]
  %v409 = vld [vmem:[%s1 + $0x560] sm:$0xf]
  %v410 = vld [vmem:[%s1 + $0x564] sm:$0xf]
  %v411 = vld [vmem:[%s1 + $0x568] sm:$0xf]
  %v412 = vld [vmem:[%s1 + $0x56c] sm:$0xf]
  %v413 = vld [vmem:[%s1 + $0x570] sm:$0xf]
  %v414 = vld [vmem:[%s1 + $0x574] sm:$0xf]
  %v415 = vld [vmem:[%s1 + $0x578] sm:$0xf]
  %v416 = vld [vmem:[%s1 + $0x57c] sm:$0xf]
  %v417 = vld [vmem:[%s1 + $0x580] sm:$0xf]
  %v418 = vld [vmem:[%s1 + $0x584] sm:$0xf]
  %v419 = vld [vmem:[%s1 + $0x588] sm:$0xf]
  %v420 = vld [vmem:[%s1 + $0x58c] sm:$0xf]
  %v421 = vld [vmem:[%s1 + $0x590] sm:$0xf]
  %v422 = vld [vmem:[%s1 + $0x594] sm:$0xf]
  %v423 = vld [vmem:[%s1 + $0x598] sm:$0xf]
  %v424 = vld [vmem:[%s1 + $0x59c] sm:$0xf]
  %v425 = vld [vmem:[%s1 + $0x5a0] sm:$0xf]
  %v426 = vld [vmem:[%s1 + $0x5a4] sm:$0xf]
  %v427 = vld [vmem:[%s1 + $0x5a8] sm:$0xf]
  %v428 = vld [vmem:[%s1 + $0x5ac] sm:$0xf]
  %v429 = vld [vmem:[%s1 + $0x5b0] sm:$0xf]
  %v430 = vld [vmem:[%s1 + $0x5b4] sm:$0xf]
  %v431 = vld [vmem:[%s1 + $0x5b8] sm:$0xf]
  %v432 = vld [vmem:[%s1 + $0x5bc] sm:$0xf]
  %v433 = vld [vmem:[%s1 + $0x5c0] sm:$0xf]
  %v434 = vld [vmem:[%s1 + $0x5c4] sm:$0xf]
  %v435 = vld [vmem:[%s1 + $0x5c8] sm:$0xf]
  %v436 = vld [vmem:[%s1 + $0x5cc] sm:$0xf]
  %v437 = vld [vmem:[%s1 + $0x5d0] sm:$0xf]
  %v438 = vld [vmem:[%s1 + $0x5d4] sm:$0xf]
  %v439 = vld [vmem:[%s1 + $0x5d8] sm:$0xf]
  %v440 = vld [vmem:[%s1 + $0x5dc] sm:$0xf]
  %v441 = vld [vmem:[%s1 + $0x5e0] sm:$0xf]
  %v442 = vld [vmem:[%s1 + $0x5e4] sm:$0xf]
  %v443 = vld [vmem:[%s1 + $0x5e8] sm:$0xf]
  %v444 = vld [vmem:[%s1 + $0x5ec] sm:$0xf]
  %v445 = vld [vmem:[%s1 + $0x5f0] sm:$0xf]
  %v446 = vld [vmem:[%s1 + $0x5f4] sm:$0xf]
  %v447 = vld [vmem:[%s1 + $0x5f8] sm:$0xf]
  %v448 = vld [vmem:[%s1 + $0x5fc] sm:$0xf]
  %v449 = vld [vmem:[%s1 + $0x600] sm:$0xf]
  %v450 = vld [vmem:[%s1 + $0x604] sm:$0xf]
  %v451 = vld [vmem:[%s1 + $0x608] sm:$0xf]
  %v452 = vld [vmem:[%s1 + $0x60c] sm:$0xf]
  %v453 = vld [vmem:[%s1 + $0x610] sm:$0xf]
  %v454 = vld [vmem:[%s1 + $0x614] sm:$0xf]
  %v455 = vld [vmem:[%s1 + $0x618] sm:$0xf]
  %v456 = vld [vmem:[%s1 + $0x61c] sm:$0xf]
  %v457 = vld [vmem:[%s1 + $0x620] sm:$0xf]
  %v458 = vld [vmem:[%s1 + $0x624] sm:$0xf]
  %v459 = vld [vmem:[%s1 + $0x628] sm:$0xf]
  %v460 = vld [vmem:[%s1 + $0x62c] sm:$0xf]
  %v461 = vld [vmem:[%s1 + $0x630] sm:$0xf]
  %v462 = vld [vmem:[%s1 + $0x634] sm:$0xf]
  %v463 = vld [vmem:[%s1 + $0x638] sm:$0xf]
  %v464 = vld [vmem:[%s1 + $0x63c] sm:$0xf]
  %v465 = vld [vmem:[%s1 + $0x640] sm:$0xf]
  %v466 = vld [vmem:[%s1 + $0x644] sm:$0xf]
  %v467 = vld [vmem:[%s1 + $0x648] sm:$0xf]
  %v468 = vld [vmem:[%s1 + $0x64c] sm:$0xf]
  %v469 = vld [vmem:[%s1 + $0x650] sm:$0xf]
  %v470 = vld [vmem:[%s1 + $0x654] sm:$0xf]
  %v471 = vld [vmem:[%s1 + $0x658] sm:$0xf]
  %v472 = vld [vmem:[%s1 + $0x65c] sm:$0xf]
  %v473 = vld [vmem:[%s1 + $0x660] sm:$0xf]
  %v474 = vld [vmem:[%s1 + $0x664] sm:$0xf]
  %v475 = vld [vmem:[%s1 + $0x668] sm:$0xf]
  %v476 = vld [vmem:[%s1 + $0x66c] sm:$0xf]
  %v477 = vld [vmem:[%s1 + $0x670] sm:$0xf]
  %v478 = vld [vmem:[%s1 + $0x674] sm:$0xf]
  %v479 = vld [vmem:[%s1 + $0x678] sm:$0xf]
  %v480 = vld [vmem:[%s1 + $0x67c] sm:$0xf]
  %v481 = vld [vmem:[%s1 + $0x680] sm:$0xf]
  %v482 = vld [vmem:[%s1 + $0x684] sm:$0xf]
  %v483 = vld [vmem:[%s1 + $0x688] sm:$0xf]
  %v484 = vld [vmem:[%s1 + $0x68c] sm:$0xf]
  %v485 = vld [vmem:[%s1 + $0x690] sm:$0xf]
  %v486 = vld [vmem:[%s1 + $0x694] sm:$0xf]
  %v487 = vld [vmem:[%s1 + $0x698] sm:$0xf]
  %v488 = vld [vmem:[%s1 + $0x69c] sm:$0xf]
  %v489 = vld [vmem:[%s1 + $0x6a0] sm:$0xf]
  %v490 = vld [vmem:[%s1 + $0x6a4] sm:$0xf]
  %v491 = vld [vmem:[%s1 + $0x6a8] sm:$0xf]
  %v492 = vld [vmem:[%s1 + $0x6ac] sm:$0xf]
  %v493 = vld [vmem:[%s1 + $0x6b0] sm:$0xf]
  %v494 = vld [vmem:[%s1 + $0x6b4] sm:$0xf]
  %v495 = vld [vmem:[%s1 + $0x6b8] sm:$0xf]
  %v496 = vld [vmem:[%s1 + $0x6bc] sm:$0xf]
  %v497 = vld [vmem:[%s1 + $0x6c0] sm:$0xf]
  %v498 = vld [vmem:[%s1 + $0x6c4] sm:$0xf]
  %v499 = vld [vmem:[%s1 + $0x6c8] sm:$0xf]
  %v500 = vld [vmem:[%s1 + $0x6cc] sm:$0xf]
  %v501 = vld [vmem:[%s1 + $0x6d0] sm:$0xf]
  %v502 = vld [vmem:[%s1 + $0x6d4] sm:$0xf]
  %v503 = vld [vmem:[%s1 + $0x6d8] sm:$0xf]
  %v504 = vld [vmem:[%s1 + $0x6dc] sm:$0xf]
  %v505 = vld [vmem:[%s1 + $0x6e0] sm:$0xf]
  %v506 = vld [vmem:[%s1 + $0x6e4] sm:$0xf]
  %v507 = vld [vmem:[%s1 + $0x6e8] sm:$0xf]
  %v508 = vld [vmem:[%s1 + $0x6ec] sm:$0xf]
  %v509 = vld [vmem:[%s1 + $0x6f0] sm:$0xf]
  %v510 = vld [vmem:[%s1 + $0x6f4] sm:$0xf]
  %v511 = vld [vmem:[%s1 + $0x6f8] sm:$0xf]
  %v512 = vld [vmem:[%s1 + $0x6fc] sm:$0xf]
  %v513 = vld [vmem:[%s1 + $0x700] sm:$0xf]
  %v514 = vld [vmem:[%s1 + $0x704] sm:$0xf]
  %v515 = vld [vmem:[%s1 + $0x708] sm:$0xf]
  %v516 = vld [vmem:[%s1 + $0x70c] sm:$0xf]
  %v517 = vld [vmem:[%s1 + $0x710] sm:$0xf]
  %v518 = vld [vmem:[%s1 + $0x714] sm:$0xf]
  %v519 = vld [vmem:[%s1 + $0x718] sm:$0xf]
  %v520 = vld [vmem:[%s1 + $0x71c] sm:$0xf]
  %v521 = vld [vmem:[%s1 + $0x720] sm:$0xf]
  %v522 = vld [vmem:[%s1 + $0x724] sm:$0xf]
  %v523 = vld [vmem:[%s1 + $0x728] sm:$0xf]
  %v524 = vld [vmem:[%s1 + $0x72c] sm:$0xf]
  %v525 = vld [vmem:[%s1 + $0x730] sm:$0xf]
  %v526 = vld [vmem:[%s1 + $0x734] sm:$0xf]
  %v527 = vld [vmem:[%s1 + $0x738] sm:$0xf]
  %v528 = vld [vmem:[%s1 + $0x73c] sm:$0xf]
  %v529 = vld [vmem:[%s1 + $0x740] sm:$0xf]
  %v530 = vld [vmem:[%s1 + $0x744] sm:$0xf]
  %v531 = vld [vmem:[%s1 + $0x748] sm:$0xf]
  %v532 = vld [vmem:[%s1 + $0x74c] sm:$0xf]
  %v533 = vld [vmem:[%s1 + $0x750] sm:$0xf]
  %v534 = vld [vmem:[%s1 + $0x754] sm:$0xf]
  %v535 = vld [vmem:[%s1 + $0x758] sm:$0xf]
  %v536 = vld [vmem:[%s1 + $0x75c] sm:$0xf]
  %v537 = vld [vmem:[%s1 + $0x760] sm:$0xf]
  %v538 = vld [vmem:[%s1 + $0x764] sm:$0xf]
  %v539 = vld [vmem:[%s1 + $0x768] sm:$0xf]
  %v540 = vld [vmem:[%s1 + $0x76c] sm:$0xf]
  %v541 = vld [vmem:[%s1 + $0x770] sm:$0xf]
  %v542 = vld [vmem:[%s1 + $0x774] sm:$0xf]
  %v543 = vld [vmem:[%s1 + $0x778] sm:$0xf]
  %v544 = vld [vmem:[%s1 + $0x77c] sm:$0xf]
  %v545 = vld [vmem:[%s1 + $0x780] sm:$0xf]
  %v546 = vld [vmem:[%s1 + $0x784] sm:$0xf]
  %v547 = vld [vmem:[%s1 + $0x788] sm:$0xf]
  %v548 = vld [vmem:[%s1 + $0x78c] sm:$0xf]
  %v549 = vld [vmem:[%s1 + $0x790] sm:$0xf]
  %v550 = vld [vmem:[%s1 + $0x794] sm:$0xf]
  %v551 = vld [vmem:[%s1 + $0x798] sm:$0xf]
  %v552 = vld [vmem:[%s1 + $0x79c] sm:$0xf]
  %v553 = vld [vmem:[%s1 + $0x7a0] sm:$0xf]
  %v554 = vld [vmem:[%s1 + $0x7a4] sm:$0xf]
  %v555 = vld [vmem:[%s1 + $0x7a8] sm:$0xf]
  %v556 = vld [vmem:[%s1 + $0x7ac] sm:$0xf]
  %v557 = vld [vmem:[%s1 + $0x7b0] sm:$0xf]
  %v558 = vld [vmem:[%s1 + $0x7b4] sm:$0xf]
  %v559 = vld [vmem:[%s1 + $0x7b8] sm:$0xf]
  %v560 = vld [vmem:[%s1 + $0x7bc] sm:$0xf]
  %v561 = vld [vmem:[%s1 + $0x7c0] sm:$0xf]
  %v562 = vld [vmem:[%s1 + $0x7c4] sm:$0xf]
  %v563 = vld [vmem:[%s1 + $0x7c8] sm:$0xf]
  %v564 = vld [vmem:[%s1 + $0x7cc] sm:$0xf]
  %v565 = vld [vmem:[%s1 + $0x7d0] sm:$0xf]
  %v566 = vld [vmem:[%s1 + $0x7d4] sm:$0xf]
  %v567 = vld [vmem:[%s1 + $0x7d8] sm:$0xf]
  %v568 = vld [vmem:[%s1 + $0x7dc] sm:$0xf]
  %v569 = vld [vmem:[%s1 + $0x7e0] sm:$0xf]
  %v570 = vld [vmem:[%s1 + $0x7e4] sm:$0xf]
  %v571 = vld [vmem:[%s1 + $0x7e8] sm:$0xf]
  %v572 = vld [vmem:[%s1 + $0x7ec] sm:$0xf]
  %v573 = vld [vmem:[%s1 + $0x7f0] sm:$0xf]
  %v574 = vld [vmem:[%s1 + $0x7f4] sm:$0xf]
  %v575 = vld [vmem:[%s1 + $0x7f8] sm:$0xf]
  %v576 = vld [vmem:[%s1 + $0x7fc] sm:$0xf]
  %v577 = vld [vmem:[%s1 + $0x800] sm:$0xf]
  %v578 = vld [vmem:[%s1 + $0x804] sm:$0xf]
  %v579 = vld [vmem:[%s1 + $0x808] sm:$0xf]
  %v580 = vld [vmem:[%s1 + $0x80c] sm:$0xf]
  %v581 = vld [vmem:[%s1 + $0x810] sm:$0xf]
  %v582 = vld [vmem:[%s1 + $0x814] sm:$0xf]
  %v583 = vld [vmem:[%s1 + $0x818] sm:$0xf]
  %v584 = vld [vmem:[%s1 + $0x81c] sm:$0xf]
  %v585 = vld [vmem:[%s1 + $0x820] sm:$0xf]
  %v586 = vld [vmem:[%s1 + $0x824] sm:$0xf]
  %v587 = vld [vmem:[%s1 + $0x828] sm:$0xf]
  %v588 = vld [vmem:[%s1 + $0x82c] sm:$0xf]
  %v589 = vld [vmem:[%s1 + $0x830] sm:$0xf]
  %v590 = vld [vmem:[%s1 + $0x834] sm:$0xf]
  %v591 = vld [vmem:[%s1 + $0x838] sm:$0xf]
  %v592 = vld [vmem:[%s1 + $0x83c] sm:$0xf]
  %v593 = vld [vmem:[%s1 + $0x840] sm:$0xf]
  %v594 = vld [vmem:[%s1 + $0x844] sm:$0xf]
  %v595 = vld [vmem:[%s1 + $0x848] sm:$0xf]
  %v596 = vld [vmem:[%s1 + $0x84c] sm:$0xf]
  %v597 = vld [vmem:[%s1 + $0x850] sm:$0xf]
  %v598 = vld [vmem:[%s1 + $0x854] sm:$0xf]
  %v599 = vld [vmem:[%s1 + $0x858] sm:$0xf]
  %v600 = vld [vmem:[%s1 + $0x85c] sm:$0xf]
  %v601 = vld [vmem:[%s1 + $0x860] sm:$0xf]
  %v602 = vld [vmem:[%s1 + $0x864] sm:$0xf]
  %v603 = vld [vmem:[%s1 + $0x868] sm:$0xf]
  %v604 = vld [vmem:[%s1 + $0x86c] sm:$0xf]
  %v605 = vld [vmem:[%s1 + $0x870] sm:$0xf]
  %v606 = vld [vmem:[%s1 + $0x874] sm:$0xf]
  %v607 = vld [vmem:[%s1 + $0x878] sm:$0xf]
  %v608 = vld [vmem:[%s1 + $0x87c] sm:$0xf]
  %v609 = vld [vmem:[%s1 + $0x880] sm:$0xf]
  %v610 = vld [vmem:[%s1 + $0x884] sm:$0xf]
  %v611 = vld [vmem:[%s1 + $0x888] sm:$0xf]
  %v612 = vld [vmem:[%s1 + $0x88c] sm:$0xf]
  %v613 = vld [vmem:[%s1 + $0x890] sm:$0xf]
  %v614 = vld [vmem:[%s1 + $0x894] sm:$0xf]
  %v615 = vld [vmem:[%s1 + $0x898] sm:$0xf]
  %v616 = vld [vmem:[%s1 + $0x89c] sm:$0xf]
  %v617 = vld [vmem:[%s1 + $0x8a0] sm:$0xf]
  %v618 = vld [vmem:[%s1 + $0x8a4] sm:$0xf]
  %v619 = vld [vmem:[%s1 + $0x8a8] sm:$0xf]
  %v620 = vld [vmem:[%s1 + $0x8ac] sm:$0xf]
  %v621 = vld [vmem:[%s1 + $0x8b0] sm:$0xf]
  %v622 = vld [vmem:[%s1 + $0x8b4] sm:$0xf]
  %v623 = vld [vmem:[%s1 + $0x8b8] sm:$0xf]
  %v624 = vld [vmem:[%s1 + $0x8bc] sm:$0xf]
  %v625 = vld [vmem:[%s1 + $0x8c0] sm:$0xf]
  %v626 = vld [vmem:[%s1 + $0x8c4] sm:$0xf]
  %v627 = vld [vmem:[%s1 + $0x8c8] sm:$0xf]
  %v628 = vld [vmem:[%s1 + $0x8cc] sm:$0xf]
  %v629 = vld [vmem:[%s1 + $0x8d0] sm:$0xf]
  %v630 = vld [vmem:[%s1 + $0x8d4] sm:$0xf]
  %v631 = vld [vmem:[%s1 + $0x8d8] sm:$0xf]
  %v632 = vld [vmem:[%s1 + $0x8dc] sm:$0xf]
  %v633 = vld [vmem:[%s1 + $0x8e0] sm:$0xf]
  %v634 = vld [vmem:[%s1 + $0x8e4] sm:$0xf]
  %v635 = vld [vmem:[%s1 + $0x8e8] sm:$0xf]
  %v636 = vld [vmem:[%s1 + $0x8ec] sm:$0xf]
  %v637 = vld [vmem:[%s1 + $0x8f0] sm:$0xf]
  %v638 = vld [vmem:[%s1 + $0x8f4] sm:$0xf]
  %v639 = vld [vmem:[%s1 + $0x8f8] sm:$0xf]
  %v640 = vld [vmem:[%s1 + $0x8fc] sm:$0xf]
  %v641 = vld [vmem:[%s1 + $0x900] sm:$0xf]
  %v642 = vld [vmem:[%s1 + $0x904] sm:$0xf]
  %v643 = vld [vmem:[%s1 + $0x908] sm:$0xf]
  %v644 = vld [vmem:[%s1 + $0x90c] sm:$0xf]
  %v645 = vld [vmem:[%s1 + $0x910] sm:$0xf]
  %v646 = vld [vmem:[%s1 + $0x914] sm:$0xf]
  %v647 = vld [vmem:[%s1 + $0x918] sm:$0xf]
  %v648 = vld [vmem:[%s1 + $0x91c] sm:$0xf]
  %v649 = vld [vmem:[%s1 + $0x920] sm:$0xf]
  %v650 = vld [vmem:[%s1 + $0x924] sm:$0xf]
  %v651 = vld [vmem:[%s1 + $0x928] sm:$0xf]
  %v652 = vld [vmem:[%s1 + $0x92c] sm:$0xf]
  %v653 = vld [vmem:[%s1 + $0x930] sm:$0xf]
  %v654 = vld [vmem:[%s1 + $0x934] sm:$0xf]
  %v655 = vld [vmem:[%s1 + $0x938] sm:$0xf]
  %v656 = vld [vmem:[%s1 + $0x93c] sm:$0xf]
  %v657 = vld [vmem:[%s1 + $0x940] sm:$0xf]
  %v658 = vld [vmem:[%s1 + $0x944] sm:$0xf]
  %v659 = vld [vmem:[%s1 + $0x948] sm:$0xf]
  %v660 = vld [vmem:[%s1 + $0x94c] sm:$0xf]
  %v661 = vld [vmem:[%s1 + $0x950] sm:$0xf]
  %v662 = vld [vmem:[%s1 + $0x954] sm:$0xf]
  %v663 = vld [vmem:[%s1 + $0x958] sm:$0xf]
  %v664 = vld [vmem:[%s1 + $0x95c] sm:$0xf]
  %v665 = vld [vmem:[%s1 + $0x960] sm:$0xf]
  %v666 = vld [vmem:[%s1 + $0x964] sm:$0xf]
  %v667 = vld [vmem:[%s1 + $0x968] sm:$0xf]
  %v668 = vld [vmem:[%s1 + $0x96c] sm:$0xf]
  %v669 = vld [vmem:[%s1 + $0x970] sm:$0xf]
  %v670 = vld [vmem:[%s1 + $0x974] sm:$0xf]
  %v671 = vld [vmem:[%s1 + $0x978] sm:$0xf]
  %v672 = vld [vmem:[%s1 + $0x97c] sm:$0xf]
  %v673 = vld [vmem:[%s1 + $0x980] sm:$0xf]
  %v674 = vld [vmem:[%s1 + $0x984] sm:$0xf]
  %v675 = vld [vmem:[%s1 + $0x988] sm:$0xf]
  %v676 = vld [vmem:[%s1 + $0x98c] sm:$0xf]
  %v677 = vld [vmem:[%s1 + $0x990] sm:$0xf]
  %v678 = vld [vmem:[%s1 + $0x994] sm:$0xf]
  %v679 = vld [vmem:[%s1 + $0x998] sm:$0xf]
  %v680 = vld [vmem:[%s1 + $0x99c] sm:$0xf]
  %v681 = vld [vmem:[%s1 + $0x9a0] sm:$0xf]
  %v682 = vld [vmem:[%s1 + $0x9a4] sm:$0xf]
  %v683 = vld [vmem:[%s1 + $0x9a8] sm:$0xf]
  %v684 = vld [vmem:[%s1 + $0x9ac] sm:$0xf]
  %v685 = vld [vmem:[%s1 + $0x9b0] sm:$0xf]
  %v686 = vld [vmem:[%s1 + $0x9b4] sm:$0xf]
  %v687 = vld [vmem:[%s1 + $0x9b8] sm:$0xf]
  %v688 = vld [vmem:[%s1 + $0x9bc] sm:$0xf]
  %v689 = vld [vmem:[%s1 + $0x9c0] sm:$0xf]
  %v690 = vld [vmem:[%s1 + $0x9c4] sm:$0xf]
  %v691 = vld [vmem:[%s1 + $0x9c8] sm:$0xf]
  %v692 = vld [vmem:[%s1 + $0x9cc] sm:$0xf]
  %v693 = vld [vmem:[%s1 + $0x9d0] sm:$0xf]
  %v694 = vld [vmem:[%s1 + $0x9d4] sm:$0xf]
  %v695 = vld [vmem:[%s1 + $0x9d8] sm:$0xf]
  %v696 = vld [vmem:[%s1 + $0x9dc] sm:$0xf]
  %v697 = vld [vmem:[%s1 + $0x9e0] sm:$0xf]
  %v698 = vld [vmem:[%s1 + $0x9e4] sm:$0xf]
  %v699 = vld [vmem:[%s1 + $0x9e8] sm:$0xf]
  %v700 = vld [vmem:[%s1 + $0x9ec] sm:$0xf]
  %v701 = vld [vmem:[%s1 + $0x9f0] sm:$0xf]
  %v702 = vld [vmem:[%s1 + $0x9f4] sm:$0xf]
  %v703 = vld [vmem:[%s1 + $0x9f8] sm:$0xf]
  %v704 = vld [vmem:[%s1 + $0x9fc] sm:$0xf]
  %v705 = vld [vmem:[%s1 + $0xa00] sm:$0xf]
  %v706 = vld [vmem:[%s1 + $0xa04] sm:$0xf]
  %v707 = vld [vmem:[%s1 + $0xa08] sm:$0xf]
  %v708 = vld [vmem:[%s1 + $0xa0c] sm:$0xf]
  %v709 = vld [vmem:[%s1 + $0xa10] sm:$0xf]
  %v710 = vld [vmem:[%s1 + $0xa14] sm:$0xf]
  %v711 = vld [vmem:[%s1 + $0xa18] sm:$0xf]
  %v712 = vld [vmem:[%s1 + $0xa1c] sm:$0xf]
  %v713 = vld [vmem:[%s1 + $0xa20] sm:$0xf]
  %v714 = vld [vmem:[%s1 + $0xa24] sm:$0xf]
  %v715 = vld [vmem:[%s1 + $0xa28] sm:$0xf]
  %v716 = vld [vmem:[%s1 + $0xa2c] sm:$0xf]
  %v717 = vld [vmem:[%s1 + $0xa30] sm:$0xf]
  %v718 = vld [vmem:[%s1 + $0xa34] sm:$0xf]
  %v719 = vld [vmem:[%s1 + $0xa38] sm:$0xf]
  %v720 = vld [vmem:[%s1 + $0xa3c] sm:$0xf]
  %v721 = vld [vmem:[%s1 + $0xa40] sm:$0xf]
  %v722 = vld [vmem:[%s1 + $0xa44] sm:$0xf]
  %v723 = vld [vmem:[%s1 + $0xa48] sm:$0xf]
  %v724 = vld [vmem:[%s1 + $0xa4c] sm:$0xf]
  %v725 = vld [vmem:[%s1 + $0xa50] sm:$0xf]
  %v726 = vld [vmem:[%s1 + $0xa54] sm:$0xf]
  %v727 = vld [vmem:[%s1 + $0xa58] sm:$0xf]
  %v728 = vld [vmem:[%s1 + $0xa5c] sm:$0xf]
  %v729 = vld [vmem:[%s1 + $0xa60] sm:$0xf]
  %v730 = vld [vmem:[%s1 + $0xa64] sm:$0xf]
  %v731 = vld [vmem:[%s1 + $0xa68] sm:$0xf]
  %v732 = vld [vmem:[%s1 + $0xa6c] sm:$0xf]
  %v733 = vld [vmem:[%s1 + $0xa70] sm:$0xf]
  %v734 = vld [vmem:[%s1 + $0xa74] sm:$0xf]
  %v735 = vld [vmem:[%s1 + $0xa78] sm:$0xf]
  %v736 = vld [vmem:[%s1 + $0xa7c] sm:$0xf]
  %v737 = vld [vmem:[%s1 + $0xa80] sm:$0xf]
  %v738 = vld [vmem:[%s1 + $0xa84] sm:$0xf]
  %v739 = vld [vmem:[%s1 + $0xa88] sm:$0xf]
  %v740 = vld [vmem:[%s1 + $0xa8c] sm:$0xf]
  %v741 = vld [vmem:[%s1 + $0xa90] sm:$0xf]
  %v742 = vld [vmem:[%s1 + $0xa94] sm:$0xf]
  %v743 = vld [vmem:[%s1 + $0xa98] sm:$0xf]
  %v744 = vld [vmem:[%s1 + $0xa9c] sm:$0xf]
  %v745 = vld [vmem:[%s1 + $0xaa0] sm:$0xf]
  %v746 = vld [vmem:[%s1 + $0xaa4] sm:$0xf]
  %v747 = vld [vmem:[%s1 + $0xaa8] sm:$0xf]
  %v748 = vld [vmem:[%s1 + $0xaac] sm:$0xf]
  %v749 = vld [vmem:[%s1 + $0xab0] sm:$0xf]
  %v750 = vld [vmem:[%s1 + $0xab4] sm:$0xf]
  %v751 = vld [vmem:[%s1 + $0xab8] sm:$0xf]
  %v752 = vld [vmem:[%s1 + $0xabc] sm:$0xf]
  %v753 = vld [vmem:[%s1 + $0xac0] sm:$0xf]
  %v754 = vld [vmem:[%s1 + $0xac4] sm:$0xf]
  %v755 = vld [vmem:[%s1 + $0xac8] sm:$0xf]
  %v756 = vld [vmem:[%s1 + $0xacc] sm:$0xf]
  %v757 = vld [vmem:[%s1 + $0xad0] sm:$0xf]
  %v758 = vld [vmem:[%s1 + $0xad4] sm:$0xf]
  %v759 = vld [vmem:[%s1 + $0xad8] sm:$0xf]
  %v760 = vld [vmem:[%s1 + $0xadc] sm:$0xf]
  %v761 = vld [vmem:[%s1 + $0xae0] sm:$0xf]
  %v762 = vld [vmem:[%s1 + $0xae4] sm:$0xf]
  %v763 = vld [vmem:[%s1 + $0xae8] sm:$0xf]
  %v764 = vld [vmem:[%s1 + $0xaec] sm:$0xf]
  %v765 = vld [vmem:[%s1 + $0xaf0] sm:$0xf]
  %v766 = vld [vmem:[%s1 + $0xaf4] sm:$0xf]
  %v767 = vld [vmem:[%s1 + $0xaf8] sm:$0xf]
  %v768 = vld [vmem:[%s1 + $0xafc] sm:$0xf]
  %v769 = vld [vmem:[%s1 + $0xb00] sm:$0xf]
  %v770 = vld [vmem:[%s1 + $0xb04] sm:$0xf]
  %v771 = vld [vmem:[%s1 + $0xb08] sm:$0xf]
  %v772 = vld [vmem:[%s1 + $0xb0c] sm:$0xf]
  %v773 = vld [vmem:[%s1 + $0xb10] sm:$0xf]
  %v774 = vld [vmem:[%s1 + $0xb14] sm:$0xf]
  %v775 = vld [vmem:[%s1 + $0xb18] sm:$0xf]
  %v776 = vld [vmem:[%s1 + $0xb1c] sm:$0xf]
  %v777 = vld [vmem:[%s1 + $0xb20] sm:$0xf]
  %v778 = vld [vmem:[%s1 + $0xb24] sm:$0xf]
  %v779 = vld [vmem:[%s1 + $0xb28] sm:$0xf]
  %v780 = vld [vmem:[%s1 + $0xb2c] sm:$0xf]
  %v781 = vld [vmem:[%s1 + $0xb30] sm:$0xf]
  %v782 = vld [vmem:[%s1 + $0xb34] sm:$0xf]
  %v783 = vld [vmem:[%s1 + $0xb38] sm:$0xf]
  %v784 = vld [vmem:[%s1 + $0xb3c] sm:$0xf]
  %v785 = vld [vmem:[%s1 + $0xb40] sm:$0xf]
  %v786 = vld [vmem:[%s1 + $0xb44] sm:$0xf]
  %v787 = vld [vmem:[%s1 + $0xb48] sm:$0xf]
  %v788 = vld [vmem:[%s1 + $0xb4c] sm:$0xf]
  %v789 = vld [vmem:[%s1 + $0xb50] sm:$0xf]
  %v790 = vld [vmem:[%s1 + $0xb54] sm:$0xf]
  %v791 = vld [vmem:[%s1 + $0xb58] sm:$0xf]
  %v792 = vld [vmem:[%s1 + $0xb5c] sm:$0xf]
  %v793 = vld [vmem:[%s1 + $0xb60] sm:$0xf]
  %v794 = vld [vmem:[%s1 + $0xb64] sm:$0xf]
  %v795 = vld [vmem:[%s1 + $0xb68] sm:$0xf]
  %v796 = vld [vmem:[%s1 + $0xb6c] sm:$0xf]
  %v797 = vld [vmem:[%s1 + $0xb70] sm:$0xf]
  %v798 = vld [vmem:[%s1 + $0xb74] sm:$0xf]
  %v799 = vld [vmem:[%s1 + $0xb78] sm:$0xf]
  %v800 = vld [vmem:[%s1 + $0xb7c] sm:$0xf]
  %v801 = vld [vmem:[%s1 + $0xb80] sm:$0xf]
  %v802 = vld [vmem:[%s1 + $0xb84] sm:$0xf]
  %v803 = vld [vmem:[%s1 + $0xb88] sm:$0xf]
  %v804 = vld [vmem:[%s1 + $0xb8c] sm:$0xf]
  %v805 = vld [vmem:[%s1 + $0xb90] sm:$0xf]
  %v806 = vld [vmem:[%s1 + $0xb94] sm:$0xf]
  %v807 = vld [vmem:[%s1 + $0xb98] sm:$0xf]
  %v808 = vld [vmem:[%s1 + $0xb9c] sm:$0xf]
  %v809 = vld [vmem:[%s1 + $0xba0] sm:$0xf]
  %v810 = vld [vmem:[%s1 + $0xba4] sm:$0xf]
  %v811 = vld [vmem:[%s1 + $0xba8] sm:$0xf]
  %v812 = vld [vmem:[%s1 + $0xbac] sm:$0xf]
  %v813 = vld [vmem:[%s1 + $0xbb0] sm:$0xf]
  %v814 = vld [vmem:[%s1 + $0xbb4] sm:$0xf]
  %v815 = vld [vmem:[%s1 + $0xbb8] sm:$0xf]
  %v816 = vld [vmem:[%s1 + $0xbbc] sm:$0xf]
  %v817 = vld [vmem:[%s1 + $0xbc0] sm:$0xf]
  %v818 = vld [vmem:[%s1 + $0xbc4] sm:$0xf]
  %v819 = vld [vmem:[%s1 + $0xbc8] sm:$0xf]
  %v820 = vld [vmem:[%s1 + $0xbcc] sm:$0xf]
  %v821 = vld [vmem:[%s1 + $0xbd0] sm:$0xf]
  %v822 = vld [vmem:[%s1 + $0xbd4] sm:$0xf]
  %v823 = vld [vmem:[%s1 + $0xbd8] sm:$0xf]
  %v824 = vld [vmem:[%s1 + $0xbdc] sm:$0xf]
  %v825 = vld [vmem:[%s1 + $0xbe0] sm:$0xf]
  %v826 = vld [vmem:[%s1 + $0xbe4] sm:$0xf]
  %v827 = vld [vmem:[%s1 + $0xbe8] sm:$0xf]
  %v828 = vld [vmem:[%s1 + $0xbec] sm:$0xf]
  %v829 = vld [vmem:[%s1 + $0xbf0] sm:$0xf]
  %v830 = vld [vmem:[%s1 + $0xbf4] sm:$0xf]
  %v831 = vld [vmem:[%s1 + $0xbf8] sm:$0xf]
  %v832 = vld [vmem:[%s1 + $0xbfc] sm:$0xf]
  %v833 = vld [vmem:[%s1 + $0xc00] sm:$0xf]
  %v834 = vld [vmem:[%s1 + $0xc04] sm:$0xf]
  %v835 = vld [vmem:[%s1 + $0xc08] sm:$0xf]
  %v836 = vld [vmem:[%s1 + $0xc0c] sm:$0xf]
  %v837 = vld [vmem:[%s1 + $0xc10] sm:$0xf]
  %v838 = vld [vmem:[%s1 + $0xc14] sm:$0xf]
  %v839 = vld [vmem:[%s1 + $0xc18] sm:$0xf]
  %v840 = vld [vmem:[%s1 + $0xc1c] sm:$0xf]
  %v841 = vld [vmem:[%s1 + $0xc20] sm:$0xf]
  %v842 = vld [vmem:[%s1 + $0xc24] sm:$0xf]
  %v843 = vld [vmem:[%s1 + $0xc28] sm:$0xf]
  %v844 = vld [vmem:[%s1 + $0xc2c] sm:$0xf]
  %v845 = vld [vmem:[%s1 + $0xc30] sm:$0xf]
  %v846 = vld [vmem:[%s1 + $0xc34] sm:$0xf]
  %v847 = vld [vmem:[%s1 + $0xc38] sm:$0xf]
  %v848 = vld [vmem:[%s1 + $0xc3c] sm:$0xf]
  %v849 = vld [vmem:[%s2] sm:$0x1]
  %v851 = vlaneseq
  %v852 = vshrl.u32 %v851, 7
  %v853 = vsub.s32 0, %v852
  %v854 = vrot.slane %v849, %v853
  %v906 = vunpack.c.l.b16 %v15
  %v907 = vunpack.c.h.b16 %v15
  %v908 = vunpack.c.l.b16 %v16
  %v909 = vunpack.c.h.b16 %v16
  %v910 = vunpack.c.l.b16 %v17
  %v911 = vunpack.c.h.b16 %v17
  %v912 = vunpack.c.l.b16 %v18
  %v913 = vunpack.c.h.b16 %v18
  %v914 = vunpack.c.l.b16 %v19
  %v915 = vunpack.c.h.b16 %v19
  %v916 = vunpack.c.l.b16 %v20
  %v917 = vunpack.c.h.b16 %v20
  %v918 = vunpack.c.l.b16 %v21
  %v919 = vunpack.c.h.b16 %v21
  %v920 = vunpack.c.l.b16 %v22
  %v921 = vunpack.c.h.b16 %v22
  %v922 = vunpack.c.l.b16 %v23
  %v923 = vunpack.c.h.b16 %v23
  %v924 = vunpack.c.l.b16 %v24
  %v925 = vunpack.c.h.b16 %v24
  %v926 = vunpack.c.l.b16 %v25
  %v927 = vunpack.c.h.b16 %v25
  %v928 = vunpack.c.l.b16 %v26
  %v929 = vunpack.c.h.b16 %v26
  %v930 = vunpack.c.l.b16 %v27
  %v931 = vunpack.c.h.b16 %v27
  %v932 = vunpack.c.l.b16 %v28
  %v933 = vunpack.c.h.b16 %v28
  %v934 = vunpack.c.l.b16 %v29
  %v935 = vunpack.c.h.b16 %v29
  %v936 = vunpack.c.l.b16 %v30
  %v937 = vunpack.c.h.b16 %v30
  %v938 = vunpack.c.l.b16 %v31
  %v939 = vunpack.c.h.b16 %v31
  %v940 = vunpack.c.l.b16 %v32
  %v941 = vunpack.c.h.b16 %v32
  %v942 = vunpack.c.l.b16 %v33
  %v943 = vunpack.c.h.b16 %v33
  %v944 = vunpack.c.l.b16 %v34
  %v945 = vunpack.c.h.b16 %v34
  %v946 = vunpack.c.l.b16 %v35
  %v947 = vunpack.c.h.b16 %v35
  %v948 = vunpack.c.l.b16 %v36
  %v949 = vunpack.c.h.b16 %v36
  %v950 = vunpack.c.l.b16 %v37
  %v951 = vunpack.c.h.b16 %v37
  %v952 = vunpack.c.l.b16 %v38
  %v953 = vunpack.c.h.b16 %v38
  %v954 = vunpack.c.l.b16 %v39
  %v955 = vunpack.c.l.b16 %v40
  %v956 = vunpack.c.h.b16 %v40
  %v957 = vunpack.c.l.b16 %v41
  %v958 = vunpack.c.h.b16 %v41
  %v959 = vunpack.c.l.b16 %v42
  %v960 = vunpack.c.h.b16 %v42
  %v961 = vunpack.c.l.b16 %v43
  %v962 = vunpack.c.h.b16 %v43
  %v963 = vunpack.c.l.b16 %v44
  %v964 = vunpack.c.h.b16 %v44
  %v965 = vunpack.c.l.b16 %v45
  %v966 = vunpack.c.h.b16 %v45
  %v967 = vunpack.c.l.b16 %v46
  %v968 = vunpack.c.h.b16 %v46
  %v969 = vunpack.c.l.b16 %v47
  %v970 = vunpack.c.h.b16 %v47
  %v971 = vunpack.c.l.b16 %v48
  %v972 = vunpack.c.h.b16 %v48
  %v973 = vunpack.c.l.b16 %v49
  %v974 = vunpack.c.h.b16 %v49
  %v975 = vunpack.c.l.b16 %v50
  %v976 = vunpack.c.h.b16 %v50
  %v977 = vunpack.c.l.b16 %v51
  %v978 = vunpack.c.h.b16 %v51
  %v979 = vunpack.c.l.b16 %v52
  %v980 = vunpack.c.h.b16 %v52
  %v981 = vunpack.c.l.b16 %v53
  %v982 = vunpack.c.h.b16 %v53
  %v983 = vunpack.c.l.b16 %v54
  %v984 = vunpack.c.h.b16 %v54
  %v985 = vunpack.c.l.b16 %v55
  %v986 = vunpack.c.h.b16 %v55
  %v987 = vunpack.c.l.b16 %v56
  %v988 = vunpack.c.h.b16 %v56
  %v989 = vunpack.c.l.b16 %v57
  %v990 = vunpack.c.h.b16 %v57
  %v991 = vunpack.c.l.b16 %v58
  %v992 = vunpack.c.h.b16 %v58
  %v993 = vunpack.c.l.b16 %v59
  %v994 = vunpack.c.h.b16 %v59
  %v995 = vunpack.c.l.b16 %v60
  %v996 = vunpack.c.h.b16 %v60
  %v997 = vunpack.c.l.b16 %v61
  %v998 = vunpack.c.h.b16 %v61
  %v999 = vunpack.c.l.b16 %v62
  %v1000 = vunpack.c.h.b16 %v62
  %v1001 = vunpack.c.l.b16 %v63
  %v1002 = vunpack.c.h.b16 %v63
  %v1003 = vunpack.c.l.b16 %v64
  %v1004 = vpack.c.b16 %v955, %v906
  %v1005 = vpack.c.b16 %v956, %v907
  %v1006 = vpack.c.b16 %v957, %v908
  %v1007 = vpack.c.b16 %v958, %v909
  %v1008 = vpack.c.b16 %v959, %v910
  %v1009 = vpack.c.b16 %v960, %v911
  %v1010 = vpack.c.b16 %v961, %v912
  %v1011 = vpack.c.b16 %v962, %v913
  %v1012 = vpack.c.b16 %v963, %v914
  %v1013 = vpack.c.b16 %v964, %v915
  %v1014 = vpack.c.b16 %v965, %v916
  %v1015 = vpack.c.b16 %v966, %v917
  %v1016 = vpack.c.b16 %v967, %v918
  %v1017 = vpack.c.b16 %v968, %v919
  %v1018 = vpack.c.b16 %v969, %v920
  %v1019 = vpack.c.b16 %v970, %v921
  %v1020 = vpack.c.b16 %v971, %v922
  %v1021 = vpack.c.b16 %v972, %v923
  %v1022 = vpack.c.b16 %v973, %v924
  %v1023 = vpack.c.b16 %v974, %v925
  %v1024 = vpack.c.b16 %v975, %v926
  %v1025 = vpack.c.b16 %v976, %v927
  %v1026 = vpack.c.b16 %v977, %v928
  %v1027 = vpack.c.b16 %v978, %v929
  %v1028 = vpack.c.b16 %v979, %v930
  %v1029 = vpack.c.b16 %v980, %v931
  %v1030 = vpack.c.b16 %v981, %v932
  %v1031 = vpack.c.b16 %v982, %v933
  %v1032 = vpack.c.b16 %v983, %v934
  %v1033 = vpack.c.b16 %v984, %v935
  %v1034 = vpack.c.b16 %v985, %v936
  %v1035 = vpack.c.b16 %v986, %v937
  %v1036 = vpack.c.b16 %v987, %v938
  %v1037 = vpack.c.b16 %v988, %v939
  %v1038 = vpack.c.b16 %v989, %v940
  %v1039 = vpack.c.b16 %v990, %v941
  %v1040 = vpack.c.b16 %v991, %v942
  %v1041 = vpack.c.b16 %v992, %v943
  %v1042 = vpack.c.b16 %v993, %v944
  %v1043 = vpack.c.b16 %v994, %v945
  %v1044 = vpack.c.b16 %v995, %v946
  %v1045 = vpack.c.b16 %v996, %v947
  %v1046 = vpack.c.b16 %v997, %v948
  %v1047 = vpack.c.b16 %v998, %v949
  %v1048 = vpack.c.b16 %v999, %v950
  %v1049 = vpack.c.b16 %v1000, %v951
  %v1050 = vpack.c.b16 %v1001, %v952
  %v1051 = vpack.c.b16 %v1002, %v953
  %v1052 = vpack.c.b16 %v1003, %v954
  %v1886 = vunpack.c.l.b16 %v65
  %v1887 = vunpack.c.l.b16 %v66
  %v1888 = vunpack.c.l.b16 %v67
  %v1889 = vunpack.c.l.b16 %v68
  %v1890 = vunpack.c.l.b16 %v69
  %v1891 = vunpack.c.l.b16 %v70
  %v1892 = vunpack.c.l.b16 %v71
  %v1893 = vunpack.c.l.b16 %v72
  %v1894 = vunpack.c.l.b16 %v73
  %v1895 = vunpack.c.l.b16 %v74
  %v1896 = vunpack.c.l.b16 %v75
  %v1897 = vunpack.c.l.b16 %v76
  %v1898 = vunpack.c.l.b16 %v77
  %v1899 = vunpack.c.l.b16 %v78
  %v1900 = vunpack.c.l.b16 %v79
  %v1901 = vunpack.c.l.b16 %v80
  %v1902 = vunpack.c.l.b16 %v81
  %v1903 = vunpack.c.l.b16 %v82
  %v1904 = vunpack.c.l.b16 %v83
  %v1905 = vunpack.c.l.b16 %v84
  %v1906 = vunpack.c.l.b16 %v85
  %v1907 = vunpack.c.l.b16 %v86
  %v1908 = vunpack.c.l.b16 %v87
  %v1909 = vunpack.c.l.b16 %v88
  %v1910 = vunpack.c.l.b16 %v89
  %v1911 = vunpack.c.l.b16 %v90
  %v1912 = vunpack.c.l.b16 %v91
  %v1913 = vunpack.c.l.b16 %v92
  %v1914 = vunpack.c.l.b16 %v93
  %v1915 = vunpack.c.l.b16 %v94
  %v1916 = vunpack.c.l.b16 %v95
  %v1917 = vunpack.c.l.b16 %v96
  %v1918 = vunpack.c.l.b16 %v97
  %v1919 = vunpack.c.l.b16 %v98
  %v1920 = vunpack.c.l.b16 %v99
  %v1921 = vunpack.c.l.b16 %v100
  %v1922 = vunpack.c.l.b16 %v101
  %v1923 = vunpack.c.l.b16 %v102
  %v1924 = vunpack.c.l.b16 %v103
  %v1925 = vunpack.c.l.b16 %v104
  %v1926 = vunpack.c.l.b16 %v105
  %v1927 = vunpack.c.l.b16 %v106
  %v1928 = vunpack.c.l.b16 %v107
  %v1929 = vunpack.c.l.b16 %v108
  %v1930 = vunpack.c.l.b16 %v109
  %v1931 = vunpack.c.l.b16 %v110
  %v1932 = vunpack.c.l.b16 %v111
  %v1933 = vunpack.c.l.b16 %v112
  %v1934 = vunpack.c.l.b16 %v113
  %v1935 = vunpack.c.l.b16 %v114
  %v1936 = vunpack.c.l.b16 %v115
  %v1937 = vunpack.c.l.b16 %v116
  %v1938 = vunpack.c.l.b16 %v117
  %v1939 = vunpack.c.l.b16 %v118
  %v1940 = vunpack.c.l.b16 %v119
  %v1941 = vunpack.c.l.b16 %v120
  %v1942 = vunpack.c.l.b16 %v121
  %v1943 = vunpack.c.l.b16 %v122
  %v1944 = vunpack.c.l.b16 %v123
  %v1945 = vunpack.c.l.b16 %v124
  %v1946 = vunpack.c.l.b16 %v125
  %v1947 = vunpack.c.l.b16 %v126
  %v1948 = vunpack.c.l.b16 %v127
  %v1949 = vunpack.c.l.b16 %v128
  %v1950 = vunpack.c.l.b16 %v129
  %v1951 = vunpack.c.l.b16 %v130
  %v1952 = vunpack.c.l.b16 %v131
  %v1953 = vunpack.c.l.b16 %v132
  %v1954 = vunpack.c.l.b16 %v133
  %v1955 = vunpack.c.l.b16 %v134
  %v1956 = vunpack.c.l.b16 %v135
  %v1957 = vunpack.c.l.b16 %v136
  %v1958 = vunpack.c.l.b16 %v137
  %v1959 = vunpack.c.l.b16 %v138
  %v1960 = vunpack.c.l.b16 %v139
  %v1961 = vunpack.c.l.b16 %v140
  %v1962 = vunpack.c.l.b16 %v141
  %v1963 = vunpack.c.l.b16 %v142
  %v1964 = vunpack.c.l.b16 %v143
  %v1965 = vunpack.c.l.b16 %v144
  %v1966 = vunpack.c.l.b16 %v145
  %v1967 = vunpack.c.l.b16 %v146
  %v1968 = vunpack.c.l.b16 %v147
  %v1969 = vunpack.c.l.b16 %v148
  %v1970 = vunpack.c.l.b16 %v149
  %v1971 = vunpack.c.l.b16 %v150
  %v1972 = vunpack.c.l.b16 %v151
  %v1973 = vunpack.c.l.b16 %v152
  %v1974 = vunpack.c.l.b16 %v153
  %v1975 = vunpack.c.l.b16 %v154
  %v1976 = vunpack.c.l.b16 %v155
  %v1977 = vunpack.c.l.b16 %v156
  %v1978 = vunpack.c.l.b16 %v157
  %v1979 = vunpack.c.l.b16 %v158
  %v1980 = vunpack.c.l.b16 %v159
  %v1981 = vunpack.c.l.b16 %v160
  %v1982 = vunpack.c.l.b16 %v161
  %v1983 = vunpack.c.l.b16 %v162
  %v1984 = vunpack.c.l.b16 %v163
  %v1985 = vunpack.c.l.b16 %v164
  %v1986 = vunpack.c.l.b16 %v165
  %v1987 = vunpack.c.l.b16 %v166
  %v1988 = vunpack.c.l.b16 %v167
  %v1989 = vunpack.c.l.b16 %v168
  %v1990 = vunpack.c.l.b16 %v169
  %v1991 = vunpack.c.l.b16 %v170
  %v1992 = vunpack.c.l.b16 %v171
  %v1993 = vunpack.c.l.b16 %v172
  %v1994 = vunpack.c.l.b16 %v173
  %v1995 = vunpack.c.l.b16 %v174
  %v1996 = vunpack.c.l.b16 %v175
  %v1997 = vunpack.c.l.b16 %v176
  %v1998 = vunpack.c.l.b16 %v177
  %v1999 = vunpack.c.l.b16 %v178
  %v2000 = vunpack.c.l.b16 %v179
  %v2001 = vunpack.c.l.b16 %v180
  %v2002 = vunpack.c.l.b16 %v181
  %v2003 = vunpack.c.l.b16 %v182
  %v2004 = vunpack.c.l.b16 %v183
  %v2005 = vunpack.c.l.b16 %v184
  %v2006 = vunpack.c.l.b16 %v185
  %v2007 = vunpack.c.l.b16 %v186
  %v2008 = vunpack.c.l.b16 %v187
  %v2009 = vunpack.c.l.b16 %v188
  %v2010 = vunpack.c.l.b16 %v189
  %v2011 = vunpack.c.l.b16 %v190
  %v2012 = vunpack.c.l.b16 %v191
  %v2013 = vunpack.c.l.b16 %v192
  %v2014 = vunpack.c.l.b16 %v193
  %v2015 = vunpack.c.l.b16 %v194
  %v2016 = vunpack.c.l.b16 %v195
  %v2017 = vunpack.c.l.b16 %v196
  %v2018 = vunpack.c.l.b16 %v197
  %v2019 = vunpack.c.l.b16 %v198
  %v2020 = vunpack.c.l.b16 %v199
  %v2021 = vunpack.c.l.b16 %v200
  %v2022 = vunpack.c.l.b16 %v201
  %v2023 = vunpack.c.l.b16 %v202
  %v2024 = vunpack.c.l.b16 %v203
  %v2025 = vunpack.c.l.b16 %v204
  %v2026 = vunpack.c.l.b16 %v205
  %v2027 = vunpack.c.l.b16 %v206
  %v2028 = vunpack.c.l.b16 %v207
  %v2029 = vunpack.c.l.b16 %v208
  %v2030 = vunpack.c.l.b16 %v209
  %v2031 = vunpack.c.l.b16 %v210
  %v2032 = vunpack.c.l.b16 %v211
  %v2033 = vunpack.c.l.b16 %v212
  %v2034 = vunpack.c.l.b16 %v213
  %v2035 = vunpack.c.l.b16 %v214
  %v2036 = vunpack.c.l.b16 %v215
  %v2037 = vunpack.c.l.b16 %v216
  %v2038 = vunpack.c.l.b16 %v217
  %v2039 = vunpack.c.l.b16 %v218
  %v2040 = vunpack.c.l.b16 %v219
  %v2041 = vunpack.c.l.b16 %v220
  %v2042 = vunpack.c.l.b16 %v221
  %v2043 = vunpack.c.l.b16 %v222
  %v2044 = vunpack.c.l.b16 %v223
  %v2045 = vunpack.c.l.b16 %v224
  %v2046 = vunpack.c.l.b16 %v225
  %v2047 = vunpack.c.l.b16 %v226
  %v2048 = vunpack.c.l.b16 %v227
  %v2049 = vunpack.c.l.b16 %v228
  %v2050 = vunpack.c.l.b16 %v229
  %v2051 = vunpack.c.l.b16 %v230
  %v2052 = vunpack.c.l.b16 %v231
  %v2053 = vunpack.c.l.b16 %v232
  %v2054 = vunpack.c.l.b16 %v233
  %v2055 = vunpack.c.l.b16 %v234
  %v2056 = vunpack.c.l.b16 %v235
  %v2057 = vunpack.c.l.b16 %v236
  %v2058 = vunpack.c.l.b16 %v237
  %v2059 = vunpack.c.l.b16 %v238
  %v2060 = vunpack.c.l.b16 %v239
  %v2061 = vunpack.c.l.b16 %v240
  %v2062 = vunpack.c.l.b16 %v241
  %v2063 = vunpack.c.l.b16 %v242
  %v2064 = vunpack.c.l.b16 %v243
  %v2065 = vunpack.c.l.b16 %v244
  %v2066 = vunpack.c.l.b16 %v245
  %v2067 = vunpack.c.l.b16 %v246
  %v2068 = vunpack.c.l.b16 %v247
  %v2069 = vunpack.c.l.b16 %v248
  %v2070 = vunpack.c.l.b16 %v249
  %v2071 = vunpack.c.l.b16 %v250
  %v2072 = vunpack.c.l.b16 %v251
  %v2073 = vunpack.c.l.b16 %v252
  %v2074 = vunpack.c.l.b16 %v253
  %v2075 = vunpack.c.l.b16 %v254
  %v2076 = vunpack.c.l.b16 %v255
  %v2077 = vunpack.c.l.b16 %v256
  %v2078 = vunpack.c.l.b16 %v257
  %v2079 = vunpack.c.l.b16 %v258
  %v2080 = vunpack.c.l.b16 %v259
  %v2081 = vunpack.c.l.b16 %v260
  %v2082 = vunpack.c.l.b16 %v261
  %v2083 = vunpack.c.l.b16 %v262
  %v2084 = vunpack.c.l.b16 %v263
  %v2085 = vunpack.c.l.b16 %v264
  %v2086 = vunpack.c.l.b16 %v265
  %v2087 = vunpack.c.l.b16 %v266
  %v2088 = vunpack.c.l.b16 %v267
  %v2089 = vunpack.c.l.b16 %v268
  %v2090 = vunpack.c.l.b16 %v269
  %v2091 = vunpack.c.l.b16 %v270
  %v2092 = vunpack.c.l.b16 %v271
  %v2093 = vunpack.c.l.b16 %v272
  %v2094 = vunpack.c.l.b16 %v273
  %v2095 = vunpack.c.l.b16 %v274
  %v2096 = vunpack.c.l.b16 %v275
  %v2097 = vunpack.c.l.b16 %v276
  %v2098 = vunpack.c.l.b16 %v277
  %v2099 = vunpack.c.l.b16 %v278
  %v2100 = vunpack.c.l.b16 %v279
  %v2101 = vunpack.c.l.b16 %v280
  %v2102 = vunpack.c.l.b16 %v281
  %v2103 = vunpack.c.l.b16 %v282
  %v2104 = vunpack.c.l.b16 %v283
  %v2105 = vunpack.c.l.b16 %v284
  %v2106 = vunpack.c.l.b16 %v285
  %v2107 = vunpack.c.l.b16 %v286
  %v2108 = vunpack.c.l.b16 %v287
  %v2109 = vunpack.c.l.b16 %v288
  %v2110 = vunpack.c.l.b16 %v289
  %v2111 = vunpack.c.l.b16 %v290
  %v2112 = vunpack.c.l.b16 %v291
  %v2113 = vunpack.c.l.b16 %v292
  %v2114 = vunpack.c.l.b16 %v293
  %v2115 = vunpack.c.l.b16 %v294
  %v2116 = vunpack.c.l.b16 %v295
  %v2117 = vunpack.c.l.b16 %v296
  %v2118 = vunpack.c.l.b16 %v297
  %v2119 = vunpack.c.l.b16 %v298
  %v2120 = vunpack.c.l.b16 %v299
  %v2121 = vunpack.c.l.b16 %v300
  %v2122 = vunpack.c.l.b16 %v301
  %v2123 = vunpack.c.l.b16 %v302
  %v2124 = vunpack.c.l.b16 %v303
  %v2125 = vunpack.c.l.b16 %v304
  %v2126 = vunpack.c.l.b16 %v305
  %v2127 = vunpack.c.l.b16 %v306
  %v2128 = vunpack.c.l.b16 %v307
  %v2129 = vunpack.c.l.b16 %v308
  %v2130 = vunpack.c.l.b16 %v309
  %v2131 = vunpack.c.l.b16 %v310
  %v2132 = vunpack.c.l.b16 %v311
  %v2133 = vunpack.c.l.b16 %v312
  %v2134 = vunpack.c.l.b16 %v313
  %v2135 = vunpack.c.l.b16 %v314
  %v2136 = vunpack.c.l.b16 %v315
  %v2137 = vunpack.c.l.b16 %v316
  %v2138 = vunpack.c.l.b16 %v317
  %v2139 = vunpack.c.l.b16 %v318
  %v2140 = vunpack.c.l.b16 %v319
  %v2141 = vunpack.c.l.b16 %v320
  %v2142 = vunpack.c.l.b16 %v321
  %v2143 = vunpack.c.l.b16 %v322
  %v2144 = vunpack.c.l.b16 %v323
  %v2145 = vunpack.c.l.b16 %v324
  %v2146 = vunpack.c.l.b16 %v325
  %v2147 = vunpack.c.l.b16 %v326
  %v2148 = vunpack.c.l.b16 %v327
  %v2149 = vunpack.c.l.b16 %v328
  %v2150 = vunpack.c.l.b16 %v329
  %v2151 = vunpack.c.l.b16 %v330
  %v2152 = vunpack.c.l.b16 %v331
  %v2153 = vunpack.c.l.b16 %v332
  %v2154 = vunpack.c.l.b16 %v333
  %v2155 = vunpack.c.l.b16 %v334
  %v2156 = vunpack.c.l.b16 %v335
  %v2157 = vunpack.c.l.b16 %v336
  %v2158 = vunpack.c.l.b16 %v337
  %v2159 = vunpack.c.l.b16 %v338
  %v2160 = vunpack.c.l.b16 %v339
  %v2161 = vunpack.c.l.b16 %v340
  %v2162 = vunpack.c.l.b16 %v341
  %v2163 = vunpack.c.l.b16 %v342
  %v2164 = vunpack.c.l.b16 %v343
  %v2165 = vunpack.c.l.b16 %v344
  %v2166 = vunpack.c.l.b16 %v345
  %v2167 = vunpack.c.l.b16 %v346
  %v2168 = vunpack.c.l.b16 %v347
  %v2169 = vunpack.c.l.b16 %v348
  %v2170 = vunpack.c.l.b16 %v349
  %v2171 = vunpack.c.l.b16 %v350
  %v2172 = vunpack.c.l.b16 %v351
  %v2173 = vunpack.c.l.b16 %v352
  %v2174 = vunpack.c.l.b16 %v353
  %v2175 = vunpack.c.l.b16 %v354
  %v2176 = vunpack.c.l.b16 %v355
  %v2177 = vunpack.c.l.b16 %v356
  %v2178 = vunpack.c.l.b16 %v357
  %v2179 = vunpack.c.l.b16 %v358
  %v2180 = vunpack.c.l.b16 %v359
  %v2181 = vunpack.c.l.b16 %v360
  %v2182 = vunpack.c.l.b16 %v361
  %v2183 = vunpack.c.l.b16 %v362
  %v2184 = vunpack.c.l.b16 %v363
  %v2185 = vunpack.c.l.b16 %v364
  %v2186 = vunpack.c.l.b16 %v365
  %v2187 = vunpack.c.l.b16 %v366
  %v2188 = vunpack.c.l.b16 %v367
  %v2189 = vunpack.c.l.b16 %v368
  %v2190 = vunpack.c.l.b16 %v369
  %v2191 = vunpack.c.l.b16 %v370
  %v2192 = vunpack.c.l.b16 %v371
  %v2193 = vunpack.c.l.b16 %v372
  %v2194 = vunpack.c.l.b16 %v373
  %v2195 = vunpack.c.l.b16 %v374
  %v2196 = vunpack.c.l.b16 %v375
  %v2197 = vunpack.c.l.b16 %v376
  %v2198 = vunpack.c.l.b16 %v377
  %v2199 = vunpack.c.l.b16 %v378
  %v2200 = vunpack.c.l.b16 %v379
  %v2201 = vunpack.c.l.b16 %v380
  %v2202 = vunpack.c.l.b16 %v381
  %v2203 = vunpack.c.l.b16 %v382
  %v2204 = vunpack.c.l.b16 %v383
  %v2205 = vunpack.c.l.b16 %v384
  %v2206 = vunpack.c.l.b16 %v385
  %v2207 = vunpack.c.l.b16 %v386
  %v2208 = vunpack.c.l.b16 %v387
  %v2209 = vunpack.c.l.b16 %v388
  %v2210 = vunpack.c.l.b16 %v389
  %v2211 = vunpack.c.l.b16 %v390
  %v2212 = vunpack.c.l.b16 %v391
  %v2213 = vunpack.c.l.b16 %v392
  %v2214 = vunpack.c.l.b16 %v393
  %v2215 = vunpack.c.l.b16 %v394
  %v2216 = vunpack.c.l.b16 %v395
  %v2217 = vunpack.c.l.b16 %v396
  %v2218 = vunpack.c.l.b16 %v397
  %v2219 = vunpack.c.l.b16 %v398
  %v2220 = vunpack.c.l.b16 %v399
  %v2221 = vunpack.c.l.b16 %v400
  %v2222 = vunpack.c.l.b16 %v401
  %v2223 = vunpack.c.l.b16 %v402
  %v2224 = vunpack.c.l.b16 %v403
  %v2225 = vunpack.c.l.b16 %v404
  %v2226 = vunpack.c.l.b16 %v405
  %v2227 = vunpack.c.l.b16 %v406
  %v2228 = vunpack.c.l.b16 %v407
  %v2229 = vunpack.c.l.b16 %v408
  %v2230 = vunpack.c.l.b16 %v409
  %v2231 = vunpack.c.l.b16 %v410
  %v2232 = vunpack.c.l.b16 %v411
  %v2233 = vunpack.c.l.b16 %v412
  %v2234 = vunpack.c.l.b16 %v413
  %v2235 = vunpack.c.l.b16 %v414
  %v2236 = vunpack.c.l.b16 %v415
  %v2237 = vunpack.c.l.b16 %v416
  %v2238 = vunpack.c.l.b16 %v417
  %v2239 = vunpack.c.l.b16 %v418
  %v2240 = vunpack.c.l.b16 %v419
  %v2241 = vunpack.c.l.b16 %v420
  %v2242 = vunpack.c.l.b16 %v421
  %v2243 = vunpack.c.l.b16 %v422
  %v2244 = vunpack.c.l.b16 %v423
  %v2245 = vunpack.c.l.b16 %v424
  %v2246 = vunpack.c.l.b16 %v425
  %v2247 = vunpack.c.l.b16 %v426
  %v2248 = vunpack.c.l.b16 %v427
  %v2249 = vunpack.c.l.b16 %v428
  %v2250 = vunpack.c.l.b16 %v429
  %v2251 = vunpack.c.l.b16 %v430
  %v2252 = vunpack.c.l.b16 %v431
  %v2253 = vunpack.c.l.b16 %v432
  %v2254 = vunpack.c.l.b16 %v433
  %v2255 = vunpack.c.l.b16 %v434
  %v2256 = vunpack.c.l.b16 %v435
  %v2257 = vunpack.c.l.b16 %v436
  %v2258 = vunpack.c.l.b16 %v437
  %v2259 = vunpack.c.l.b16 %v438
  %v2260 = vunpack.c.l.b16 %v439
  %v2261 = vunpack.c.l.b16 %v440
  %v2262 = vunpack.c.l.b16 %v441
  %v2263 = vunpack.c.l.b16 %v442
  %v2264 = vunpack.c.l.b16 %v443
  %v2265 = vunpack.c.l.b16 %v444
  %v2266 = vunpack.c.l.b16 %v445
  %v2267 = vunpack.c.l.b16 %v446
  %v2268 = vunpack.c.l.b16 %v447
  %v2269 = vunpack.c.l.b16 %v448
  %v2270 = vunpack.c.l.b16 %v449
  %v2271 = vunpack.c.l.b16 %v450
  %v2272 = vunpack.c.l.b16 %v451
  %v2273 = vunpack.c.l.b16 %v452
  %v2274 = vunpack.c.l.b16 %v453
  %v2275 = vunpack.c.l.b16 %v454
  %v2276 = vunpack.c.l.b16 %v455
  %v2277 = vunpack.c.l.b16 %v456
  %v2278 = vunpack.c.l.b16 %v457
  %v2279 = vunpack.c.l.b16 %v458
  %v2280 = vunpack.c.l.b16 %v459
  %v2281 = vunpack.c.l.b16 %v460
  %v2282 = vunpack.c.l.b16 %v461
  %v2283 = vunpack.c.l.b16 %v462
  %v2284 = vunpack.c.l.b16 %v463
  %v2285 = vunpack.c.l.b16 %v464
  %v2286 = vunpack.c.l.b16 %v465
  %v2287 = vunpack.c.l.b16 %v466
  %v2288 = vunpack.c.l.b16 %v467
  %v2289 = vunpack.c.l.b16 %v468
  %v2290 = vunpack.c.l.b16 %v469
  %v2291 = vunpack.c.l.b16 %v470
  %v2292 = vunpack.c.l.b16 %v471
  %v2293 = vunpack.c.l.b16 %v472
  %v2294 = vunpack.c.l.b16 %v473
  %v2295 = vunpack.c.l.b16 %v474
  %v2296 = vunpack.c.l.b16 %v475
  %v2297 = vunpack.c.l.b16 %v476
  %v2298 = vunpack.c.l.b16 %v477
  %v2299 = vunpack.c.l.b16 %v478
  %v2300 = vunpack.c.l.b16 %v479
  %v2301 = vunpack.c.l.b16 %v480
  %v2302 = vunpack.c.l.b16 %v481
  %v2303 = vunpack.c.l.b16 %v482
  %v2304 = vunpack.c.l.b16 %v483
  %v2305 = vunpack.c.l.b16 %v484
  %v2306 = vunpack.c.l.b16 %v485
  %v2307 = vunpack.c.l.b16 %v486
  %v2308 = vunpack.c.l.b16 %v487
  %v2309 = vunpack.c.l.b16 %v488
  %v2310 = vunpack.c.l.b16 %v489
  %v2311 = vunpack.c.l.b16 %v490
  %v2312 = vunpack.c.l.b16 %v491
  %v2313 = vunpack.c.l.b16 %v492
  %v2314 = vunpack.c.l.b16 %v493
  %v2315 = vunpack.c.l.b16 %v494
  %v2316 = vunpack.c.l.b16 %v495
  %v2317 = vunpack.c.l.b16 %v496
  %v2318 = vunpack.c.l.b16 %v497
  %v2319 = vunpack.c.l.b16 %v498
  %v2320 = vunpack.c.l.b16 %v499
  %v2321 = vunpack.c.l.b16 %v500
  %v2322 = vunpack.c.l.b16 %v501
  %v2323 = vunpack.c.l.b16 %v502
  %v2324 = vunpack.c.l.b16 %v503
  %v2325 = vunpack.c.l.b16 %v504
  %v2326 = vunpack.c.l.b16 %v505
  %v2327 = vunpack.c.l.b16 %v506
  %v2328 = vunpack.c.l.b16 %v507
  %v2329 = vunpack.c.l.b16 %v508
  %v2330 = vunpack.c.l.b16 %v509
  %v2331 = vunpack.c.l.b16 %v510
  %v2332 = vunpack.c.l.b16 %v511
  %v2333 = vunpack.c.l.b16 %v512
  %v2334 = vunpack.c.l.b16 %v513
  %v2335 = vunpack.c.l.b16 %v514
  %v2336 = vunpack.c.l.b16 %v515
  %v2337 = vunpack.c.l.b16 %v516
  %v2338 = vunpack.c.l.b16 %v517
  %v2339 = vunpack.c.l.b16 %v518
  %v2340 = vunpack.c.l.b16 %v519
  %v2341 = vunpack.c.l.b16 %v520
  %v2342 = vunpack.c.l.b16 %v521
  %v2343 = vunpack.c.l.b16 %v522
  %v2344 = vunpack.c.l.b16 %v523
  %v2345 = vunpack.c.l.b16 %v524
  %v2346 = vunpack.c.l.b16 %v525
  %v2347 = vunpack.c.l.b16 %v526
  %v2348 = vunpack.c.l.b16 %v527
  %v2349 = vunpack.c.l.b16 %v528
  %v2350 = vunpack.c.l.b16 %v529
  %v2351 = vunpack.c.l.b16 %v530
  %v2352 = vunpack.c.l.b16 %v531
  %v2353 = vunpack.c.l.b16 %v532
  %v2354 = vunpack.c.l.b16 %v533
  %v2355 = vunpack.c.l.b16 %v534
  %v2356 = vunpack.c.l.b16 %v535
  %v2357 = vunpack.c.l.b16 %v536
  %v2358 = vunpack.c.l.b16 %v537
  %v2359 = vunpack.c.l.b16 %v538
  %v2360 = vunpack.c.l.b16 %v539
  %v2361 = vunpack.c.l.b16 %v540
  %v2362 = vunpack.c.l.b16 %v541
  %v2363 = vunpack.c.l.b16 %v542
  %v2364 = vunpack.c.l.b16 %v543
  %v2365 = vunpack.c.l.b16 %v544
  %v2366 = vunpack.c.l.b16 %v545
  %v2367 = vunpack.c.l.b16 %v546
  %v2368 = vunpack.c.l.b16 %v547
  %v2369 = vunpack.c.l.b16 %v548
  %v2370 = vunpack.c.l.b16 %v549
  %v2371 = vunpack.c.l.b16 %v550
  %v2372 = vunpack.c.l.b16 %v551
  %v2373 = vunpack.c.l.b16 %v552
  %v2374 = vunpack.c.l.b16 %v553
  %v2375 = vunpack.c.l.b16 %v554
  %v2376 = vunpack.c.l.b16 %v555
  %v2377 = vunpack.c.l.b16 %v556
  %v2378 = vunpack.c.l.b16 %v557
  %v2379 = vunpack.c.l.b16 %v558
  %v2380 = vunpack.c.l.b16 %v559
  %v2381 = vunpack.c.l.b16 %v560
  %v2382 = vunpack.c.l.b16 %v561
  %v2383 = vunpack.c.l.b16 %v562
  %v2384 = vunpack.c.l.b16 %v563
  %v2385 = vunpack.c.l.b16 %v564
  %v2386 = vunpack.c.l.b16 %v565
  %v2387 = vunpack.c.l.b16 %v566
  %v2388 = vunpack.c.l.b16 %v567
  %v2389 = vunpack.c.l.b16 %v568
  %v2390 = vunpack.c.l.b16 %v569
  %v2391 = vunpack.c.l.b16 %v570
  %v2392 = vunpack.c.l.b16 %v571
  %v2393 = vunpack.c.l.b16 %v572
  %v2394 = vunpack.c.l.b16 %v573
  %v2395 = vunpack.c.l.b16 %v574
  %v2396 = vunpack.c.l.b16 %v575
  %v2397 = vunpack.c.l.b16 %v576
  %v2398 = vunpack.c.l.b16 %v577
  %v2399 = vunpack.c.l.b16 %v578
  %v2400 = vunpack.c.l.b16 %v579
  %v2401 = vunpack.c.l.b16 %v580
  %v2402 = vunpack.c.l.b16 %v581
  %v2403 = vunpack.c.l.b16 %v582
  %v2404 = vunpack.c.l.b16 %v583
  %v2405 = vunpack.c.l.b16 %v584
  %v2406 = vunpack.c.l.b16 %v585
  %v2407 = vunpack.c.l.b16 %v586
  %v2408 = vunpack.c.l.b16 %v587
  %v2409 = vunpack.c.l.b16 %v588
  %v2410 = vunpack.c.l.b16 %v589
  %v2411 = vunpack.c.l.b16 %v590
  %v2412 = vunpack.c.l.b16 %v591
  %v2413 = vunpack.c.l.b16 %v592
  %v2414 = vunpack.c.l.b16 %v593
  %v2415 = vunpack.c.l.b16 %v594
  %v2416 = vunpack.c.l.b16 %v595
  %v2417 = vunpack.c.l.b16 %v596
  %v2418 = vunpack.c.l.b16 %v597
  %v2419 = vunpack.c.l.b16 %v598
  %v2420 = vunpack.c.l.b16 %v599
  %v2421 = vunpack.c.l.b16 %v600
  %v2422 = vunpack.c.l.b16 %v601
  %v2423 = vunpack.c.l.b16 %v602
  %v2424 = vunpack.c.l.b16 %v603
  %v2425 = vunpack.c.l.b16 %v604
  %v2426 = vunpack.c.l.b16 %v605
  %v2427 = vunpack.c.l.b16 %v606
  %v2428 = vunpack.c.l.b16 %v607
  %v2429 = vunpack.c.l.b16 %v608
  %v2430 = vunpack.c.l.b16 %v609
  %v2431 = vunpack.c.l.b16 %v610
  %v2432 = vunpack.c.l.b16 %v611
  %v2433 = vunpack.c.l.b16 %v612
  %v2434 = vunpack.c.l.b16 %v613
  %v2435 = vunpack.c.l.b16 %v614
  %v2436 = vunpack.c.l.b16 %v615
  %v2437 = vunpack.c.l.b16 %v616
  %v2438 = vunpack.c.l.b16 %v617
  %v2439 = vunpack.c.l.b16 %v618
  %v2440 = vunpack.c.l.b16 %v619
  %v2441 = vunpack.c.l.b16 %v620
  %v2442 = vunpack.c.l.b16 %v621
  %v2443 = vunpack.c.l.b16 %v622
  %v2444 = vunpack.c.l.b16 %v623
  %v2445 = vunpack.c.l.b16 %v624
  %v2446 = vunpack.c.l.b16 %v625
  %v2447 = vunpack.c.l.b16 %v626
  %v2448 = vunpack.c.l.b16 %v627
  %v2449 = vunpack.c.l.b16 %v628
  %v2450 = vunpack.c.l.b16 %v629
  %v2451 = vunpack.c.l.b16 %v630
  %v2452 = vunpack.c.l.b16 %v631
  %v2453 = vunpack.c.l.b16 %v632
  %v2454 = vunpack.c.l.b16 %v633
  %v2455 = vunpack.c.l.b16 %v634
  %v2456 = vunpack.c.l.b16 %v635
  %v2457 = vunpack.c.l.b16 %v636
  %v2458 = vunpack.c.l.b16 %v637
  %v2459 = vunpack.c.l.b16 %v638
  %v2460 = vunpack.c.l.b16 %v639
  %v2461 = vunpack.c.l.b16 %v640
  %v2462 = vunpack.c.l.b16 %v641
  %v2463 = vunpack.c.l.b16 %v642
  %v2464 = vunpack.c.l.b16 %v643
  %v2465 = vunpack.c.l.b16 %v644
  %v2466 = vunpack.c.l.b16 %v645
  %v2467 = vunpack.c.l.b16 %v646
  %v2468 = vunpack.c.l.b16 %v647
  %v2469 = vunpack.c.l.b16 %v648
  %v2470 = vunpack.c.l.b16 %v649
  %v2471 = vunpack.c.l.b16 %v650
  %v2472 = vunpack.c.l.b16 %v651
  %v2473 = vunpack.c.l.b16 %v652
  %v2474 = vunpack.c.l.b16 %v653
  %v2475 = vunpack.c.l.b16 %v654
  %v2476 = vunpack.c.l.b16 %v655
  %v2477 = vunpack.c.l.b16 %v656
  %v2478 = vunpack.c.l.b16 %v657
  %v2479 = vunpack.c.l.b16 %v658
  %v2480 = vunpack.c.l.b16 %v659
  %v2481 = vunpack.c.l.b16 %v660
  %v2482 = vunpack.c.l.b16 %v661
  %v2483 = vunpack.c.l.b16 %v662
  %v2484 = vunpack.c.l.b16 %v663
  %v2485 = vunpack.c.l.b16 %v664
  %v2486 = vunpack.c.l.b16 %v665
  %v2487 = vunpack.c.l.b16 %v666
  %v2488 = vunpack.c.l.b16 %v667
  %v2489 = vunpack.c.l.b16 %v668
  %v2490 = vunpack.c.l.b16 %v669
  %v2491 = vunpack.c.l.b16 %v670
  %v2492 = vunpack.c.l.b16 %v671
  %v2493 = vunpack.c.l.b16 %v672
  %v2494 = vunpack.c.l.b16 %v673
  %v2495 = vunpack.c.l.b16 %v674
  %v2496 = vunpack.c.l.b16 %v675
  %v2497 = vunpack.c.l.b16 %v676
  %v2498 = vunpack.c.l.b16 %v677
  %v2499 = vunpack.c.l.b16 %v678
  %v2500 = vunpack.c.l.b16 %v679
  %v2501 = vunpack.c.l.b16 %v680
  %v2502 = vunpack.c.l.b16 %v681
  %v2503 = vunpack.c.l.b16 %v682
  %v2504 = vunpack.c.l.b16 %v683
  %v2505 = vunpack.c.l.b16 %v684
  %v2506 = vunpack.c.l.b16 %v685
  %v2507 = vunpack.c.l.b16 %v686
  %v2508 = vunpack.c.l.b16 %v687
  %v2509 = vunpack.c.l.b16 %v688
  %v2510 = vunpack.c.l.b16 %v689
  %v2511 = vunpack.c.l.b16 %v690
  %v2512 = vunpack.c.l.b16 %v691
  %v2513 = vunpack.c.l.b16 %v692
  %v2514 = vunpack.c.l.b16 %v693
  %v2515 = vunpack.c.l.b16 %v694
  %v2516 = vunpack.c.l.b16 %v695
  %v2517 = vunpack.c.l.b16 %v696
  %v2518 = vunpack.c.l.b16 %v697
  %v2519 = vunpack.c.l.b16 %v698
  %v2520 = vunpack.c.l.b16 %v699
  %v2521 = vunpack.c.l.b16 %v700
  %v2522 = vunpack.c.l.b16 %v701
  %v2523 = vunpack.c.l.b16 %v702
  %v2524 = vunpack.c.l.b16 %v703
  %v2525 = vunpack.c.l.b16 %v704
  %v2526 = vunpack.c.l.b16 %v705
  %v2527 = vunpack.c.l.b16 %v706
  %v2528 = vunpack.c.l.b16 %v707
  %v2529 = vunpack.c.l.b16 %v708
  %v2530 = vunpack.c.l.b16 %v709
  %v2531 = vunpack.c.l.b16 %v710
  %v2532 = vunpack.c.l.b16 %v711
  %v2533 = vunpack.c.l.b16 %v712
  %v2534 = vunpack.c.l.b16 %v713
  %v2535 = vunpack.c.l.b16 %v714
  %v2536 = vunpack.c.l.b16 %v715
  %v2537 = vunpack.c.l.b16 %v716
  %v2538 = vunpack.c.l.b16 %v717
  %v2539 = vunpack.c.l.b16 %v718
  %v2540 = vunpack.c.l.b16 %v719
  %v2541 = vunpack.c.l.b16 %v720
  %v2542 = vunpack.c.l.b16 %v721
  %v2543 = vunpack.c.l.b16 %v722
  %v2544 = vunpack.c.l.b16 %v723
  %v2545 = vunpack.c.l.b16 %v724
  %v2546 = vunpack.c.l.b16 %v725
  %v2547 = vunpack.c.l.b16 %v726
  %v2548 = vunpack.c.l.b16 %v727
  %v2549 = vunpack.c.l.b16 %v728
  %v2550 = vunpack.c.l.b16 %v729
  %v2551 = vunpack.c.l.b16 %v730
  %v2552 = vunpack.c.l.b16 %v731
  %v2553 = vunpack.c.l.b16 %v732
  %v2554 = vunpack.c.l.b16 %v733
  %v2555 = vunpack.c.l.b16 %v734
  %v2556 = vunpack.c.l.b16 %v735
  %v2557 = vunpack.c.l.b16 %v736
  %v2558 = vunpack.c.l.b16 %v737
  %v2559 = vunpack.c.l.b16 %v738
  %v2560 = vunpack.c.l.b16 %v739
  %v2561 = vunpack.c.l.b16 %v740
  %v2562 = vunpack.c.l.b16 %v741
  %v2563 = vunpack.c.l.b16 %v742
  %v2564 = vunpack.c.l.b16 %v743
  %v2565 = vunpack.c.l.b16 %v744
  %v2566 = vunpack.c.l.b16 %v745
  %v2567 = vunpack.c.l.b16 %v746
  %v2568 = vunpack.c.l.b16 %v747
  %v2569 = vunpack.c.l.b16 %v748
  %v2570 = vunpack.c.l.b16 %v749
  %v2571 = vunpack.c.l.b16 %v750
  %v2572 = vunpack.c.l.b16 %v751
  %v2573 = vunpack.c.l.b16 %v752
  %v2574 = vunpack.c.l.b16 %v753
  %v2575 = vunpack.c.l.b16 %v754
  %v2576 = vunpack.c.l.b16 %v755
  %v2577 = vunpack.c.l.b16 %v756
  %v2578 = vunpack.c.l.b16 %v757
  %v2579 = vunpack.c.l.b16 %v758
  %v2580 = vunpack.c.l.b16 %v759
  %v2581 = vunpack.c.l.b16 %v760
  %v2582 = vunpack.c.l.b16 %v761
  %v2583 = vunpack.c.l.b16 %v762
  %v2584 = vunpack.c.l.b16 %v763
  %v2585 = vunpack.c.l.b16 %v764
  %v2586 = vunpack.c.l.b16 %v765
  %v2587 = vunpack.c.l.b16 %v766
  %v2588 = vunpack.c.l.b16 %v767
  %v2589 = vunpack.c.l.b16 %v768
  %v2590 = vunpack.c.l.b16 %v769
  %v2591 = vunpack.c.l.b16 %v770
  %v2592 = vunpack.c.l.b16 %v771
  %v2593 = vunpack.c.l.b16 %v772
  %v2594 = vunpack.c.l.b16 %v773
  %v2595 = vunpack.c.l.b16 %v774
  %v2596 = vunpack.c.l.b16 %v775
  %v2597 = vunpack.c.l.b16 %v776
  %v2598 = vunpack.c.l.b16 %v777
  %v2599 = vunpack.c.l.b16 %v778
  %v2600 = vunpack.c.l.b16 %v779
  %v2601 = vunpack.c.l.b16 %v780
  %v2602 = vunpack.c.l.b16 %v781
  %v2603 = vunpack.c.l.b16 %v782
  %v2604 = vunpack.c.l.b16 %v783
  %v2605 = vunpack.c.l.b16 %v784
  %v2606 = vunpack.c.l.b16 %v785
  %v2607 = vunpack.c.l.b16 %v786
  %v2608 = vunpack.c.l.b16 %v787
  %v2609 = vunpack.c.l.b16 %v788
  %v2610 = vunpack.c.l.b16 %v789
  %v2611 = vunpack.c.l.b16 %v790
  %v2612 = vunpack.c.l.b16 %v791
  %v2613 = vunpack.c.l.b16 %v792
  %v2614 = vunpack.c.l.b16 %v793
  %v2615 = vunpack.c.l.b16 %v794
  %v2616 = vunpack.c.l.b16 %v795
  %v2617 = vunpack.c.l.b16 %v796
  %v2618 = vunpack.c.l.b16 %v797
  %v2619 = vunpack.c.l.b16 %v798
  %v2620 = vunpack.c.l.b16 %v799
  %v2621 = vunpack.c.l.b16 %v800
  %v2622 = vunpack.c.l.b16 %v801
  %v2623 = vunpack.c.l.b16 %v802
  %v2624 = vunpack.c.l.b16 %v803
  %v2625 = vunpack.c.l.b16 %v804
  %v2626 = vunpack.c.l.b16 %v805
  %v2627 = vunpack.c.l.b16 %v806
  %v2628 = vunpack.c.l.b16 %v807
  %v2629 = vunpack.c.l.b16 %v808
  %v2630 = vunpack.c.l.b16 %v809
  %v2631 = vunpack.c.l.b16 %v810
  %v2632 = vunpack.c.l.b16 %v811
  %v2633 = vunpack.c.l.b16 %v812
  %v2634 = vunpack.c.l.b16 %v813
  %v2635 = vunpack.c.l.b16 %v814
  %v2636 = vunpack.c.l.b16 %v815
  %v2637 = vunpack.c.l.b16 %v816
  %v2638 = vunpack.c.l.b16 %v817
  %v2639 = vunpack.c.l.b16 %v818
  %v2640 = vunpack.c.l.b16 %v819
  %v2641 = vunpack.c.l.b16 %v820
  %v2642 = vunpack.c.l.b16 %v821
  %v2643 = vunpack.c.l.b16 %v822
  %v2644 = vunpack.c.l.b16 %v823
  %v2645 = vunpack.c.l.b16 %v824
  %v2646 = vunpack.c.l.b16 %v825
  %v2647 = vunpack.c.l.b16 %v826
  %v2648 = vunpack.c.l.b16 %v827
  %v2649 = vunpack.c.l.b16 %v828
  %v2650 = vunpack.c.l.b16 %v829
  %v2651 = vunpack.c.l.b16 %v830
  %v2652 = vunpack.c.l.b16 %v831
  %v2653 = vunpack.c.l.b16 %v832
  %v2654 = vunpack.c.l.b16 %v833
  %v2655 = vunpack.c.l.b16 %v834
  %v2656 = vunpack.c.l.b16 %v835
  %v2657 = vunpack.c.l.b16 %v836
  %v2658 = vunpack.c.l.b16 %v837
  %v2659 = vunpack.c.l.b16 %v838
  %v2660 = vunpack.c.l.b16 %v839
  %v2661 = vunpack.c.l.b16 %v840
  %v2662 = vunpack.c.l.b16 %v841
  %v2663 = vunpack.c.l.b16 %v842
  %v2664 = vunpack.c.l.b16 %v843
  %v2665 = vunpack.c.l.b16 %v844
  %v2666 = vunpack.c.l.b16 %v845
  %v2667 = vunpack.c.l.b16 %v846
  %v2668 = vunpack.c.l.b16 %v847
  %v2669 = vunpack.c.l.b16 %v848
  %v2670 = vpack.c.b16 %v1887, %v1886
  %v2671 = vpack.c.b16 %v1889, %v1888
  %v2672 = vpack.c.b16 %v1891, %v1890
  %v2673 = vpack.c.b16 %v1893, %v1892
  %v2674 = vpack.c.b16 %v1895, %v1894
  %v2675 = vpack.c.b16 %v1897, %v1896
  %v2676 = vpack.c.b16 %v1899, %v1898
  %v2677 = vpack.c.b16 %v1901, %v1900
  %v2678 = vpack.c.b16 %v1903, %v1902
  %v2679 = vpack.c.b16 %v1905, %v1904
  %v2680 = vpack.c.b16 %v1907, %v1906
  %v2681 = vpack.c.b16 %v1909, %v1908
  %v2682 = vpack.c.b16 %v1911, %v1910
  %v2683 = vpack.c.b16 %v1913, %v1912
  %v2684 = vpack.c.b16 %v1915, %v1914
  %v2685 = vpack.c.b16 %v1917, %v1916
  %v2686 = vpack.c.b16 %v1919, %v1918
  %v2687 = vpack.c.b16 %v1921, %v1920
  %v2688 = vpack.c.b16 %v1923, %v1922
  %v2689 = vpack.c.b16 %v1925, %v1924
  %v2690 = vpack.c.b16 %v1927, %v1926
  %v2691 = vpack.c.b16 %v1929, %v1928
  %v2692 = vpack.c.b16 %v1931, %v1930
  %v2693 = vpack.c.b16 %v1933, %v1932
  %v2694 = vpack.c.b16 %v1935, %v1934
  %v2695 = vpack.c.b16 %v1937, %v1936
  %v2696 = vpack.c.b16 %v1939, %v1938
  %v2697 = vpack.c.b16 %v1941, %v1940
  %v2698 = vpack.c.b16 %v1943, %v1942
  %v2699 = vpack.c.b16 %v1945, %v1944
  %v2700 = vpack.c.b16 %v1947, %v1946
  %v2701 = vpack.c.b16 %v1949, %v1948
  %v2702 = vpack.c.b16 %v1951, %v1950
  %v2703 = vpack.c.b16 %v1953, %v1952
  %v2704 = vpack.c.b16 %v1955, %v1954
  %v2705 = vpack.c.b16 %v1957, %v1956
  %v2706 = vpack.c.b16 %v1959, %v1958
  %v2707 = vpack.c.b16 %v1961, %v1960
  %v2708 = vpack.c.b16 %v1963, %v1962
  %v2709 = vpack.c.b16 %v1965, %v1964
  %v2710 = vpack.c.b16 %v1967, %v1966
  %v2711 = vpack.c.b16 %v1969, %v1968
  %v2712 = vpack.c.b16 %v1971, %v1970
  %v2713 = vpack.c.b16 %v1973, %v1972
  %v2714 = vpack.c.b16 %v1975, %v1974
  %v2715 = vpack.c.b16 %v1977, %v1976
  %v2716 = vpack.c.b16 %v1979, %v1978
  %v2717 = vpack.c.b16 %v1981, %v1980
  %v2718 = vpack.c.b16 %v1983, %v1982
  %v2719 = vpack.c.b16 %v1985, %v1984
  %v2720 = vpack.c.b16 %v1987, %v1986
  %v2721 = vpack.c.b16 %v1989, %v1988
  %v2722 = vpack.c.b16 %v1991, %v1990
  %v2723 = vpack.c.b16 %v1993, %v1992
  %v2724 = vpack.c.b16 %v1995, %v1994
  %v2725 = vpack.c.b16 %v1997, %v1996
  %v2726 = vpack.c.b16 %v1999, %v1998
  %v2727 = vpack.c.b16 %v2001, %v2000
  %v2728 = vpack.c.b16 %v2003, %v2002
  %v2729 = vpack.c.b16 %v2005, %v2004
  %v2730 = vpack.c.b16 %v2007, %v2006
  %v2731 = vpack.c.b16 %v2009, %v2008
  %v2732 = vpack.c.b16 %v2011, %v2010
  %v2733 = vpack.c.b16 %v2013, %v2012
  %v2734 = vpack.c.b16 %v2015, %v2014
  %v2735 = vpack.c.b16 %v2017, %v2016
  %v2736 = vpack.c.b16 %v2019, %v2018
  %v2737 = vpack.c.b16 %v2021, %v2020
  %v2738 = vpack.c.b16 %v2023, %v2022
  %v2739 = vpack.c.b16 %v2025, %v2024
  %v2740 = vpack.c.b16 %v2027, %v2026
  %v2741 = vpack.c.b16 %v2029, %v2028
  %v2742 = vpack.c.b16 %v2031, %v2030
  %v2743 = vpack.c.b16 %v2033, %v2032
  %v2744 = vpack.c.b16 %v2035, %v2034
  %v2745 = vpack.c.b16 %v2037, %v2036
  %v2746 = vpack.c.b16 %v2039, %v2038
  %v2747 = vpack.c.b16 %v2041, %v2040
  %v2748 = vpack.c.b16 %v2043, %v2042
  %v2749 = vpack.c.b16 %v2045, %v2044
  %v2750 = vpack.c.b16 %v2047, %v2046
  %v2751 = vpack.c.b16 %v2049, %v2048
  %v2752 = vpack.c.b16 %v2051, %v2050
  %v2753 = vpack.c.b16 %v2053, %v2052
  %v2754 = vpack.c.b16 %v2055, %v2054
  %v2755 = vpack.c.b16 %v2057, %v2056
  %v2756 = vpack.c.b16 %v2059, %v2058
  %v2757 = vpack.c.b16 %v2061, %v2060
  %v2758 = vpack.c.b16 %v2063, %v2062
  %v2759 = vpack.c.b16 %v2065, %v2064
  %v2760 = vpack.c.b16 %v2067, %v2066
  %v2761 = vpack.c.b16 %v2069, %v2068
  %v2762 = vpack.c.b16 %v2071, %v2070
  %v2763 = vpack.c.b16 %v2073, %v2072
  %v2764 = vpack.c.b16 %v2075, %v2074
  %v2765 = vpack.c.b16 %v2077, %v2076
  %v2766 = vpack.c.b16 %v2079, %v2078
  %v2767 = vpack.c.b16 %v2081, %v2080
  %v2768 = vpack.c.b16 %v2083, %v2082
  %v2769 = vpack.c.b16 %v2085, %v2084
  %v2770 = vpack.c.b16 %v2087, %v2086
  %v2771 = vpack.c.b16 %v2089, %v2088
  %v2772 = vpack.c.b16 %v2091, %v2090
  %v2773 = vpack.c.b16 %v2093, %v2092
  %v2774 = vpack.c.b16 %v2095, %v2094
  %v2775 = vpack.c.b16 %v2097, %v2096
  %v2776 = vpack.c.b16 %v2099, %v2098
  %v2777 = vpack.c.b16 %v2101, %v2100
  %v2778 = vpack.c.b16 %v2103, %v2102
  %v2779 = vpack.c.b16 %v2105, %v2104
  %v2780 = vpack.c.b16 %v2107, %v2106
  %v2781 = vpack.c.b16 %v2109, %v2108
  %v2782 = vpack.c.b16 %v2111, %v2110
  %v2783 = vpack.c.b16 %v2113, %v2112
  %v2784 = vpack.c.b16 %v2115, %v2114
  %v2785 = vpack.c.b16 %v2117, %v2116
  %v2786 = vpack.c.b16 %v2119, %v2118
  %v2787 = vpack.c.b16 %v2121, %v2120
  %v2788 = vpack.c.b16 %v2123, %v2122
  %v2789 = vpack.c.b16 %v2125, %v2124
  %v2790 = vpack.c.b16 %v2127, %v2126
  %v2791 = vpack.c.b16 %v2129, %v2128
  %v2792 = vpack.c.b16 %v2131, %v2130
  %v2793 = vpack.c.b16 %v2133, %v2132
  %v2794 = vpack.c.b16 %v2135, %v2134
  %v2795 = vpack.c.b16 %v2137, %v2136
  %v2796 = vpack.c.b16 %v2139, %v2138
  %v2797 = vpack.c.b16 %v2141, %v2140
  %v2798 = vpack.c.b16 %v2143, %v2142
  %v2799 = vpack.c.b16 %v2145, %v2144
  %v2800 = vpack.c.b16 %v2147, %v2146
  %v2801 = vpack.c.b16 %v2149, %v2148
  %v2802 = vpack.c.b16 %v2151, %v2150
  %v2803 = vpack.c.b16 %v2153, %v2152
  %v2804 = vpack.c.b16 %v2155, %v2154
  %v2805 = vpack.c.b16 %v2157, %v2156
  %v2806 = vpack.c.b16 %v2159, %v2158
  %v2807 = vpack.c.b16 %v2161, %v2160
  %v2808 = vpack.c.b16 %v2163, %v2162
  %v2809 = vpack.c.b16 %v2165, %v2164
  %v2810 = vpack.c.b16 %v2167, %v2166
  %v2811 = vpack.c.b16 %v2169, %v2168
  %v2812 = vpack.c.b16 %v2171, %v2170
  %v2813 = vpack.c.b16 %v2173, %v2172
  %v2814 = vpack.c.b16 %v2175, %v2174
  %v2815 = vpack.c.b16 %v2177, %v2176
  %v2816 = vpack.c.b16 %v2179, %v2178
  %v2817 = vpack.c.b16 %v2181, %v2180
  %v2818 = vpack.c.b16 %v2183, %v2182
  %v2819 = vpack.c.b16 %v2185, %v2184
  %v2820 = vpack.c.b16 %v2187, %v2186
  %v2821 = vpack.c.b16 %v2189, %v2188
  %v2822 = vpack.c.b16 %v2191, %v2190
  %v2823 = vpack.c.b16 %v2193, %v2192
  %v2824 = vpack.c.b16 %v2195, %v2194
  %v2825 = vpack.c.b16 %v2197, %v2196
  %v2826 = vpack.c.b16 %v2199, %v2198
  %v2827 = vpack.c.b16 %v2201, %v2200
  %v2828 = vpack.c.b16 %v2203, %v2202
  %v2829 = vpack.c.b16 %v2205, %v2204
  %v2830 = vpack.c.b16 %v2207, %v2206
  %v2831 = vpack.c.b16 %v2209, %v2208
  %v2832 = vpack.c.b16 %v2211, %v2210
  %v2833 = vpack.c.b16 %v2213, %v2212
  %v2834 = vpack.c.b16 %v2215, %v2214
  %v2835 = vpack.c.b16 %v2217, %v2216
  %v2836 = vpack.c.b16 %v2219, %v2218
  %v2837 = vpack.c.b16 %v2221, %v2220
  %v2838 = vpack.c.b16 %v2223, %v2222
  %v2839 = vpack.c.b16 %v2225, %v2224
  %v2840 = vpack.c.b16 %v2227, %v2226
  %v2841 = vpack.c.b16 %v2229, %v2228
  %v2842 = vpack.c.b16 %v2231, %v2230
  %v2843 = vpack.c.b16 %v2233, %v2232
  %v2844 = vpack.c.b16 %v2235, %v2234
  %v2845 = vpack.c.b16 %v2237, %v2236
  %v2846 = vpack.c.b16 %v2239, %v2238
  %v2847 = vpack.c.b16 %v2241, %v2240
  %v2848 = vpack.c.b16 %v2243, %v2242
  %v2849 = vpack.c.b16 %v2245, %v2244
  %v2850 = vpack.c.b16 %v2247, %v2246
  %v2851 = vpack.c.b16 %v2249, %v2248
  %v2852 = vpack.c.b16 %v2251, %v2250
  %v2853 = vpack.c.b16 %v2253, %v2252
  %v2854 = vpack.c.b16 %v2255, %v2254
  %v2855 = vpack.c.b16 %v2257, %v2256
  %v2856 = vpack.c.b16 %v2259, %v2258
  %v2857 = vpack.c.b16 %v2261, %v2260
  %v2858 = vpack.c.b16 %v2263, %v2262
  %v2859 = vpack.c.b16 %v2265, %v2264
  %v2860 = vpack.c.b16 %v2267, %v2266
  %v2861 = vpack.c.b16 %v2269, %v2268
  %v2862 = vpack.c.b16 %v2271, %v2270
  %v2863 = vpack.c.b16 %v2273, %v2272
  %v2864 = vpack.c.b16 %v2275, %v2274
  %v2865 = vpack.c.b16 %v2277, %v2276
  %v2866 = vpack.c.b16 %v2279, %v2278
  %v2867 = vpack.c.b16 %v2281, %v2280
  %v2868 = vpack.c.b16 %v2283, %v2282
  %v2869 = vpack.c.b16 %v2285, %v2284
  %v2870 = vpack.c.b16 %v2287, %v2286
  %v2871 = vpack.c.b16 %v2289, %v2288
  %v2872 = vpack.c.b16 %v2291, %v2290
  %v2873 = vpack.c.b16 %v2293, %v2292
  %v2874 = vpack.c.b16 %v2295, %v2294
  %v2875 = vpack.c.b16 %v2297, %v2296
  %v2876 = vpack.c.b16 %v2299, %v2298
  %v2877 = vpack.c.b16 %v2301, %v2300
  %v2878 = vpack.c.b16 %v2303, %v2302
  %v2879 = vpack.c.b16 %v2305, %v2304
  %v2880 = vpack.c.b16 %v2307, %v2306
  %v2881 = vpack.c.b16 %v2309, %v2308
  %v2882 = vpack.c.b16 %v2311, %v2310
  %v2883 = vpack.c.b16 %v2313, %v2312
  %v2884 = vpack.c.b16 %v2315, %v2314
  %v2885 = vpack.c.b16 %v2317, %v2316
  %v2886 = vpack.c.b16 %v2319, %v2318
  %v2887 = vpack.c.b16 %v2321, %v2320
  %v2888 = vpack.c.b16 %v2323, %v2322
  %v2889 = vpack.c.b16 %v2325, %v2324
  %v2890 = vpack.c.b16 %v2327, %v2326
  %v2891 = vpack.c.b16 %v2329, %v2328
  %v2892 = vpack.c.b16 %v2331, %v2330
  %v2893 = vpack.c.b16 %v2333, %v2332
  %v2894 = vpack.c.b16 %v2335, %v2334
  %v2895 = vpack.c.b16 %v2337, %v2336
  %v2896 = vpack.c.b16 %v2339, %v2338
  %v2897 = vpack.c.b16 %v2341, %v2340
  %v2898 = vpack.c.b16 %v2343, %v2342
  %v2899 = vpack.c.b16 %v2345, %v2344
  %v2900 = vpack.c.b16 %v2347, %v2346
  %v2901 = vpack.c.b16 %v2349, %v2348
  %v2902 = vpack.c.b16 %v2351, %v2350
  %v2903 = vpack.c.b16 %v2353, %v2352
  %v2904 = vpack.c.b16 %v2355, %v2354
  %v2905 = vpack.c.b16 %v2357, %v2356
  %v2906 = vpack.c.b16 %v2359, %v2358
  %v2907 = vpack.c.b16 %v2361, %v2360
  %v2908 = vpack.c.b16 %v2363, %v2362
  %v2909 = vpack.c.b16 %v2365, %v2364
  %v2910 = vpack.c.b16 %v2367, %v2366
  %v2911 = vpack.c.b16 %v2369, %v2368
  %v2912 = vpack.c.b16 %v2371, %v2370
  %v2913 = vpack.c.b16 %v2373, %v2372
  %v2914 = vpack.c.b16 %v2375, %v2374
  %v2915 = vpack.c.b16 %v2377, %v2376
  %v2916 = vpack.c.b16 %v2379, %v2378
  %v2917 = vpack.c.b16 %v2381, %v2380
  %v2918 = vpack.c.b16 %v2383, %v2382
  %v2919 = vpack.c.b16 %v2385, %v2384
  %v2920 = vpack.c.b16 %v2387, %v2386
  %v2921 = vpack.c.b16 %v2389, %v2388
  %v2922 = vpack.c.b16 %v2391, %v2390
  %v2923 = vpack.c.b16 %v2393, %v2392
  %v2924 = vpack.c.b16 %v2395, %v2394
  %v2925 = vpack.c.b16 %v2397, %v2396
  %v2926 = vpack.c.b16 %v2399, %v2398
  %v2927 = vpack.c.b16 %v2401, %v2400
  %v2928 = vpack.c.b16 %v2403, %v2402
  %v2929 = vpack.c.b16 %v2405, %v2404
  %v2930 = vpack.c.b16 %v2407, %v2406
  %v2931 = vpack.c.b16 %v2409, %v2408
  %v2932 = vpack.c.b16 %v2411, %v2410
  %v2933 = vpack.c.b16 %v2413, %v2412
  %v2934 = vpack.c.b16 %v2415, %v2414
  %v2935 = vpack.c.b16 %v2417, %v2416
  %v2936 = vpack.c.b16 %v2419, %v2418
  %v2937 = vpack.c.b16 %v2421, %v2420
  %v2938 = vpack.c.b16 %v2423, %v2422
  %v2939 = vpack.c.b16 %v2425, %v2424
  %v2940 = vpack.c.b16 %v2427, %v2426
  %v2941 = vpack.c.b16 %v2429, %v2428
  %v2942 = vpack.c.b16 %v2431, %v2430
  %v2943 = vpack.c.b16 %v2433, %v2432
  %v2944 = vpack.c.b16 %v2435, %v2434
  %v2945 = vpack.c.b16 %v2437, %v2436
  %v2946 = vpack.c.b16 %v2439, %v2438
  %v2947 = vpack.c.b16 %v2441, %v2440
  %v2948 = vpack.c.b16 %v2443, %v2442
  %v2949 = vpack.c.b16 %v2445, %v2444
  %v2950 = vpack.c.b16 %v2447, %v2446
  %v2951 = vpack.c.b16 %v2449, %v2448
  %v2952 = vpack.c.b16 %v2451, %v2450
  %v2953 = vpack.c.b16 %v2453, %v2452
  %v2954 = vpack.c.b16 %v2455, %v2454
  %v2955 = vpack.c.b16 %v2457, %v2456
  %v2956 = vpack.c.b16 %v2459, %v2458
  %v2957 = vpack.c.b16 %v2461, %v2460
  %v2958 = vpack.c.b16 %v2463, %v2462
  %v2959 = vpack.c.b16 %v2465, %v2464
  %v2960 = vpack.c.b16 %v2467, %v2466
  %v2961 = vpack.c.b16 %v2469, %v2468
  %v2962 = vpack.c.b16 %v2471, %v2470
  %v2963 = vpack.c.b16 %v2473, %v2472
  %v2964 = vpack.c.b16 %v2475, %v2474
  %v2965 = vpack.c.b16 %v2477, %v2476
  %v2966 = vpack.c.b16 %v2479, %v2478
  %v2967 = vpack.c.b16 %v2481, %v2480
  %v2968 = vpack.c.b16 %v2483, %v2482
  %v2969 = vpack.c.b16 %v2485, %v2484
  %v2970 = vpack.c.b16 %v2487, %v2486
  %v2971 = vpack.c.b16 %v2489, %v2488
  %v2972 = vpack.c.b16 %v2491, %v2490
  %v2973 = vpack.c.b16 %v2493, %v2492
  %v2974 = vpack.c.b16 %v2495, %v2494
  %v2975 = vpack.c.b16 %v2497, %v2496
  %v2976 = vpack.c.b16 %v2499, %v2498
  %v2977 = vpack.c.b16 %v2501, %v2500
  %v2978 = vpack.c.b16 %v2503, %v2502
  %v2979 = vpack.c.b16 %v2505, %v2504
  %v2980 = vpack.c.b16 %v2507, %v2506
  %v2981 = vpack.c.b16 %v2509, %v2508
  %v2982 = vpack.c.b16 %v2511, %v2510
  %v2983 = vpack.c.b16 %v2513, %v2512
  %v2984 = vpack.c.b16 %v2515, %v2514
  %v2985 = vpack.c.b16 %v2517, %v2516
  %v2986 = vpack.c.b16 %v2519, %v2518
  %v2987 = vpack.c.b16 %v2521, %v2520
  %v2988 = vpack.c.b16 %v2523, %v2522
  %v2989 = vpack.c.b16 %v2525, %v2524
  %v2990 = vpack.c.b16 %v2527, %v2526
  %v2991 = vpack.c.b16 %v2529, %v2528
  %v2992 = vpack.c.b16 %v2531, %v2530
  %v2993 = vpack.c.b16 %v2533, %v2532
  %v2994 = vpack.c.b16 %v2535, %v2534
  %v2995 = vpack.c.b16 %v2537, %v2536
  %v2996 = vpack.c.b16 %v2539, %v2538
  %v2997 = vpack.c.b16 %v2541, %v2540
  %v2998 = vpack.c.b16 %v2543, %v2542
  %v2999 = vpack.c.b16 %v2545, %v2544
  %v3000 = vpack.c.b16 %v2547, %v2546
  %v3001 = vpack.c.b16 %v2549, %v2548
  %v3002 = vpack.c.b16 %v2551, %v2550
  %v3003 = vpack.c.b16 %v2553, %v2552
  %v3004 = vpack.c.b16 %v2555, %v2554
  %v3005 = vpack.c.b16 %v2557, %v2556
  %v3006 = vpack.c.b16 %v2559, %v2558
  %v3007 = vpack.c.b16 %v2561, %v2560
  %v3008 = vpack.c.b16 %v2563, %v2562
  %v3009 = vpack.c.b16 %v2565, %v2564
  %v3010 = vpack.c.b16 %v2567, %v2566
  %v3011 = vpack.c.b16 %v2569, %v2568
  %v3012 = vpack.c.b16 %v2571, %v2570
  %v3013 = vpack.c.b16 %v2573, %v2572
  %v3014 = vpack.c.b16 %v2575, %v2574
  %v3015 = vpack.c.b16 %v2577, %v2576
  %v3016 = vpack.c.b16 %v2579, %v2578
  %v3017 = vpack.c.b16 %v2581, %v2580
  %v3018 = vpack.c.b16 %v2583, %v2582
  %v3019 = vpack.c.b16 %v2585, %v2584
  %v3020 = vpack.c.b16 %v2587, %v2586
  %v3021 = vpack.c.b16 %v2589, %v2588
  %v3022 = vpack.c.b16 %v2591, %v2590
  %v3023 = vpack.c.b16 %v2593, %v2592
  %v3024 = vpack.c.b16 %v2595, %v2594
  %v3025 = vpack.c.b16 %v2597, %v2596
  %v3026 = vpack.c.b16 %v2599, %v2598
  %v3027 = vpack.c.b16 %v2601, %v2600
  %v3028 = vpack.c.b16 %v2603, %v2602
  %v3029 = vpack.c.b16 %v2605, %v2604
  %v3030 = vpack.c.b16 %v2607, %v2606
  %v3031 = vpack.c.b16 %v2609, %v2608
  %v3032 = vpack.c.b16 %v2611, %v2610
  %v3033 = vpack.c.b16 %v2613, %v2612
  %v3034 = vpack.c.b16 %v2615, %v2614
  %v3035 = vpack.c.b16 %v2617, %v2616
  %v3036 = vpack.c.b16 %v2619, %v2618
  %v3037 = vpack.c.b16 %v2621, %v2620
  %v3038 = vpack.c.b16 %v2623, %v2622
  %v3039 = vpack.c.b16 %v2625, %v2624
  %v3040 = vpack.c.b16 %v2627, %v2626
  %v3041 = vpack.c.b16 %v2629, %v2628
  %v3042 = vpack.c.b16 %v2631, %v2630
  %v3043 = vpack.c.b16 %v2633, %v2632
  %v3044 = vpack.c.b16 %v2635, %v2634
  %v3045 = vpack.c.b16 %v2637, %v2636
  %v3046 = vpack.c.b16 %v2639, %v2638
  %v3047 = vpack.c.b16 %v2641, %v2640
  %v3048 = vpack.c.b16 %v2643, %v2642
  %v3049 = vpack.c.b16 %v2645, %v2644
  %v3050 = vpack.c.b16 %v2647, %v2646
  %v3051 = vpack.c.b16 %v2649, %v2648
  %v3052 = vpack.c.b16 %v2651, %v2650
  %v3053 = vpack.c.b16 %v2653, %v2652
  %v3054 = vpack.c.b16 %v2655, %v2654
  %v3055 = vpack.c.b16 %v2657, %v2656
  %v3056 = vpack.c.b16 %v2659, %v2658
  %v3057 = vpack.c.b16 %v2661, %v2660
  %v3058 = vpack.c.b16 %v2663, %v2662
  %v3059 = vpack.c.b16 %v2665, %v2664
  %v3060 = vpack.c.b16 %v2667, %v2666
  %v3061 = vpack.c.b16 %v2669, %v2668
  %3454 = vmatprep.subr.bf16.mxu0 0
  %3455 = vmatpush1.bf16.msra.mxu0 %v2670
  %3456 = vmatprep.subr.bf16.mxu0 0
  %3457 = vmatpush1.bf16.msra.mxu0 %v2671
  %3458 = vmatprep.subr.bf16.mxu0 0
  %3459 = vmatpush1.bf16.msra.mxu0 %v2672
  %3460 = vmatprep.subr.bf16.mxu0 0
  %3461 = vmatpush1.bf16.msra.mxu0 %v2673
  %3462 = vmatprep.subr.bf16.mxu0 0
  %3463 = vmatpush1.bf16.msra.mxu0 %v2674
  %3464 = vmatprep.subr.bf16.mxu0 0
  %3465 = vmatpush1.bf16.msra.mxu0 %v2675
  %3466 = vmatprep.subr.bf16.mxu0 0
  %3467 = vmatpush1.bf16.msra.mxu0 %v2676
  %3468 = vmatprep.subr.bf16.mxu0 0
  %3469 = vmatpush1.bf16.msra.mxu0 %v2677
  %3470 = vmatprep.subr.bf16.mxu0 0
  %3471 = vmatpush1.bf16.msra.mxu0 %v2678
  %3472 = vmatprep.subr.bf16.mxu0 0
  %3473 = vmatpush1.bf16.msra.mxu0 %v2679
  %3474 = vmatprep.subr.bf16.mxu0 0
  %3475 = vmatpush1.bf16.msra.mxu0 %v2680
  %3476 = vmatprep.subr.bf16.mxu0 0
  %3477 = vmatpush1.bf16.msra.mxu0 %v2681
  %3478 = vmatprep.subr.bf16.mxu0 0
  %3479 = vmatpush1.bf16.msra.mxu0 %v2682
  %3480 = vmatprep.subr.bf16.mxu0 0
  %3481 = vmatpush1.bf16.msra.mxu0 %v2683
  %3482 = vmatprep.subr.bf16.mxu0 0
  %3483 = vmatpush1.bf16.msra.mxu0 %v2684
  %3484 = vmatprep.subr.bf16.mxu0 0
  %3485 = vmatpush1.bf16.msra.mxu0 %v2685
  %3486 = vmatprep.mubr.bf16.mxu0 %v1005
  %3487 = vmatmul.mubr.bf16.gmra.mrb[0].mxu0 %v1004
  %v3488 = vpop.f32.mrb[0].mxu0
  %v3489 = vadd.f32 %v854, %v3488
  %v3490 = vpop.f32.mrb[0].mxu0
  %v3491 = vpop.f32.mrb[0].mxu0
  %v3492 = vadd.f32 %v854, %v3491
  %v3493 = vpop.f32.mrb[0].mxu0
  %3494 = vdwg.mxu0
  %3495 = vmatprep.subr.bf16.mxu0 0
  %3496 = vmatpush1.bf16.msra.mxu0 %v2686
  %3497 = vmatprep.subr.bf16.mxu0 0
  %3498 = vmatpush1.bf16.msra.mxu0 %v2687
  %3499 = vmatprep.subr.bf16.mxu0 0
  %3500 = vmatpush1.bf16.msra.mxu0 %v2688
  %3501 = vmatprep.subr.bf16.mxu0 0
  %3502 = vmatpush1.bf16.msra.mxu0 %v2689
  %3503 = vmatprep.subr.bf16.mxu0 0
  %3504 = vmatpush1.bf16.msra.mxu0 %v2690
  %3505 = vmatprep.subr.bf16.mxu0 0
  %3506 = vmatpush1.bf16.msra.mxu0 %v2691
  %3507 = vmatprep.subr.bf16.mxu0 0
  %3508 = vmatpush1.bf16.msra.mxu0 %v2692
  %3509 = vmatprep.subr.bf16.mxu0 0
  %3510 = vmatpush1.bf16.msra.mxu0 %v2693
  %3511 = vmatprep.subr.bf16.mxu0 0
  %3512 = vmatpush1.bf16.msra.mxu0 %v2694
  %3513 = vmatprep.subr.bf16.mxu0 0
  %3514 = vmatpush1.bf16.msra.mxu0 %v2695
  %3515 = vmatprep.subr.bf16.mxu0 0
  %3516 = vmatpush1.bf16.msra.mxu0 %v2696
  %3517 = vmatprep.subr.bf16.mxu0 0
  %3518 = vmatpush1.bf16.msra.mxu0 %v2697
  %3519 = vmatprep.subr.bf16.mxu0 0
  %3520 = vmatpush1.bf16.msra.mxu0 %v2698
  %3521 = vmatprep.subr.bf16.mxu0 0
  %3522 = vmatpush1.bf16.msra.mxu0 %v2699
  %3523 = vmatprep.subr.bf16.mxu0 0
  %3524 = vmatpush1.bf16.msra.mxu0 %v2700
  %3525 = vmatprep.subr.bf16.mxu0 0
  %3526 = vmatpush1.bf16.msra.mxu0 %v2701
  %3527 = vmatprep.mubr.bf16.mxu0 %v1007
  %3528 = vmatmul.mubr.bf16.gmra.mrb[0].mxu0 %v1006
  %v3529 = vpop.f32.mrb[0].mxu0
  %v3530 = vadd.f32 %v3489, %v3529
  %v3531 = vpop.f32.mrb[0].mxu0
  %v3532 = vpop.f32.mrb[0].mxu0
  %v3533 = vadd.f32 %v3492, %v3532
  %v3534 = vpop.f32.mrb[0].mxu0
  %3535 = vdwg.mxu0
  %3536 = vmatprep.subr.bf16.mxu0 0
  %3537 = vmatpush1.bf16.msra.mxu0 %v2702
  %3538 = vmatprep.subr.bf16.mxu0 0
  %3539 = vmatpush1.bf16.msra.mxu0 %v2703
  %3540 = vmatprep.subr.bf16.mxu0 0
  %3541 = vmatpush1.bf16.msra.mxu0 %v2704
  %3542 = vmatprep.subr.bf16.mxu0 0
  %3543 = vmatpush1.bf16.msra.mxu0 %v2705
  %3544 = vmatprep.subr.bf16.mxu0 0
  %3545 = vmatpush1.bf16.msra.mxu0 %v2706
  %3546 = vmatprep.subr.bf16.mxu0 0
  %3547 = vmatpush1.bf16.msra.mxu0 %v2707
  %3548 = vmatprep.subr.bf16.mxu0 0
  %3549 = vmatpush1.bf16.msra.mxu0 %v2708
  %3550 = vmatprep.subr.bf16.mxu0 0
  %3551 = vmatpush1.bf16.msra.mxu0 %v2709
  %3552 = vmatprep.subr.bf16.mxu0 0
  %3553 = vmatpush1.bf16.msra.mxu0 %v2710
  %3554 = vmatprep.subr.bf16.mxu0 0
  %3555 = vmatpush1.bf16.msra.mxu0 %v2711
  %3556 = vmatprep.subr.bf16.mxu0 0
  %3557 = vmatpush1.bf16.msra.mxu0 %v2712
  %3558 = vmatprep.subr.bf16.mxu0 0
  %3559 = vmatpush1.bf16.msra.mxu0 %v2713
  %3560 = vmatprep.subr.bf16.mxu0 0
  %3561 = vmatpush1.bf16.msra.mxu0 %v2714
  %3562 = vmatprep.subr.bf16.mxu0 0
  %3563 = vmatpush1.bf16.msra.mxu0 %v2715
  %3564 = vmatprep.subr.bf16.mxu0 0
  %3565 = vmatpush1.bf16.msra.mxu0 %v2716
  %3566 = vmatprep.subr.bf16.mxu0 0
  %3567 = vmatpush1.bf16.msra.mxu0 %v2717
  %3568 = vmatprep.mubr.bf16.mxu0 %v1009
  %3569 = vmatmul.mubr.bf16.gmra.mrb[0].mxu0 %v1008
  %v3570 = vpop.f32.mrb[0].mxu0
  %v3571 = vadd.f32 %v3530, %v3570
  %v3572 = vpop.f32.mrb[0].mxu0
  %v3573 = vpop.f32.mrb[0].mxu0
  %v3574 = vadd.f32 %v3533, %v3573
  %v3575 = vpop.f32.mrb[0].mxu0
  %3576 = vdwg.mxu0
  %3577 = vmatprep.subr.bf16.mxu0 0
  %3578 = vmatpush1.bf16.msra.mxu0 %v2718
  %3579 = vmatprep.subr.bf16.mxu0 0
  %3580 = vmatpush1.bf16.msra.mxu0 %v2719
  %3581 = vmatprep.subr.bf16.mxu0 0
  %3582 = vmatpush1.bf16.msra.mxu0 %v2720
  %3583 = vmatprep.subr.bf16.mxu0 0
  %3584 = vmatpush1.bf16.msra.mxu0 %v2721
  %3585 = vmatprep.subr.bf16.mxu0 0
  %3586 = vmatpush1.bf16.msra.mxu0 %v2722
  %3587 = vmatprep.subr.bf16.mxu0 0
  %3588 = vmatpush1.bf16.msra.mxu0 %v2723
  %3589 = vmatprep.subr.bf16.mxu0 0
  %3590 = vmatpush1.bf16.msra.mxu0 %v2724
  %3591 = vmatprep.subr.bf16.mxu0 0
  %3592 = vmatpush1.bf16.msra.mxu0 %v2725
  %3593 = vmatprep.subr.bf16.mxu0 0
  %3594 = vmatpush1.bf16.msra.mxu0 %v2726
  %3595 = vmatprep.subr.bf16.mxu0 0
  %3596 = vmatpush1.bf16.msra.mxu0 %v2727
  %3597 = vmatprep.subr.bf16.mxu0 0
  %3598 = vmatpush1.bf16.msra.mxu0 %v2728
  %3599 = vmatprep.subr.bf16.mxu0 0
  %3600 = vmatpush1.bf16.msra.mxu0 %v2729
  %3601 = vmatprep.subr.bf16.mxu0 0
  %3602 = vmatpush1.bf16.msra.mxu0 %v2730
  %3603 = vmatprep.subr.bf16.mxu0 0
  %3604 = vmatpush1.bf16.msra.mxu0 %v2731
  %3605 = vmatprep.subr.bf16.mxu0 0
  %3606 = vmatpush1.bf16.msra.mxu0 %v2732
  %3607 = vmatprep.subr.bf16.mxu0 0
  %3608 = vmatpush1.bf16.msra.mxu0 %v2733
  %3609 = vmatprep.mubr.bf16.mxu0 %v1011
  %3610 = vmatmul.mubr.bf16.gmra.mrb[0].mxu0 %v1010
  %v3611 = vpop.f32.mrb[0].mxu0
  %v3612 = vadd.f32 %v3571, %v3611
  %v3613 = vpop.f32.mrb[0].mxu0
  %v3614 = vpop.f32.mrb[0].mxu0
  %v3615 = vadd.f32 %v3574, %v3614
  %v3616 = vpop.f32.mrb[0].mxu0
  %3617 = vdwg.mxu0
  %3618 = vmatprep.subr.bf16.mxu0 0
  %3619 = vmatpush1.bf16.msra.mxu0 %v2734
  %3620 = vmatprep.subr.bf16.mxu0 0
  %3621 = vmatpush1.bf16.msra.mxu0 %v2735
  %3622 = vmatprep.subr.bf16.mxu0 0
  %3623 = vmatpush1.bf16.msra.mxu0 %v2736
  %3624 = vmatprep.subr.bf16.mxu0 0
  %3625 = vmatpush1.bf16.msra.mxu0 %v2737
  %3626 = vmatprep.subr.bf16.mxu0 0
  %3627 = vmatpush1.bf16.msra.mxu0 %v2738
  %3628 = vmatprep.subr.bf16.mxu0 0
  %3629 = vmatpush1.bf16.msra.mxu0 %v2739
  %3630 = vmatprep.subr.bf16.mxu0 0
  %3631 = vmatpush1.bf16.msra.mxu0 %v2740
  %3632 = vmatprep.subr.bf16.mxu0 0
  %3633 = vmatpush1.bf16.msra.mxu0 %v2741
  %3634 = vmatprep.subr.bf16.mxu0 0
  %3635 = vmatpush1.bf16.msra.mxu0 %v2742
  %3636 = vmatprep.subr.bf16.mxu0 0
  %3637 = vmatpush1.bf16.msra.mxu0 %v2743
  %3638 = vmatprep.subr.bf16.mxu0 0
  %3639 = vmatpush1.bf16.msra.mxu0 %v2744
  %3640 = vmatprep.subr.bf16.mxu0 0
  %3641 = vmatpush1.bf16.msra.mxu0 %v2745
  %3642 = vmatprep.subr.bf16.mxu0 0
  %3643 = vmatpush1.bf16.msra.mxu0 %v2746
  %3644 = vmatprep.subr.bf16.mxu0 0
  %3645 = vmatpush1.bf16.msra.mxu0 %v2747
  %3646 = vmatprep.subr.bf16.mxu0 0
  %3647 = vmatpush1.bf16.msra.mxu0 %v2748
  %3648 = vmatprep.subr.bf16.mxu0 0
  %3649 = vmatpush1.bf16.msra.mxu0 %v2749
  %3650 = vmatprep.mubr.bf16.mxu0 %v1013
  %3651 = vmatmul.mubr.bf16.gmra.mrb[0].mxu0 %v1012
  %v3652 = vpop.f32.mrb[0].mxu0
  %v3653 = vadd.f32 %v3612, %v3652
  %v3654 = vpop.f32.mrb[0].mxu0
  %v3655 = vpop.f32.mrb[0].mxu0
  %v3656 = vadd.f32 %v3615, %v3655
  %v3657 = vpop.f32.mrb[0].mxu0
  %3658 = vdwg.mxu0
  %3659 = vmatprep.subr.bf16.mxu0 0
  %3660 = vmatpush1.bf16.msra.mxu0 %v2750
  %3661 = vmatprep.subr.bf16.mxu0 0
  %3662 = vmatpush1.bf16.msra.mxu0 %v2751
  %3663 = vmatprep.subr.bf16.mxu0 0
  %3664 = vmatpush1.bf16.msra.mxu0 %v2752
  %3665 = vmatprep.subr.bf16.mxu0 0
  %3666 = vmatpush1.bf16.msra.mxu0 %v2753
  %3667 = vmatprep.subr.bf16.mxu0 0
  %3668 = vmatpush1.bf16.msra.mxu0 %v2754
  %3669 = vmatprep.subr.bf16.mxu0 0
  %3670 = vmatpush1.bf16.msra.mxu0 %v2755
  %3671 = vmatprep.subr.bf16.mxu0 0
  %3672 = vmatpush1.bf16.msra.mxu0 %v2756
  %3673 = vmatprep.subr.bf16.mxu0 0
  %3674 = vmatpush1.bf16.msra.mxu0 %v2757
  %3675 = vmatprep.subr.bf16.mxu0 0
  %3676 = vmatpush1.bf16.msra.mxu0 %v2758
  %3677 = vmatprep.subr.bf16.mxu0 0
  %3678 = vmatpush1.bf16.msra.mxu0 %v2759
  %3679 = vmatprep.subr.bf16.mxu0 0
  %3680 = vmatpush1.bf16.msra.mxu0 %v2760
  %3681 = vmatprep.subr.bf16.mxu0 0
  %3682 = vmatpush1.bf16.msra.mxu0 %v2761
  %3683 = vmatprep.subr.bf16.mxu0 0
  %3684 = vmatpush1.bf16.msra.mxu0 %v2762
  %3685 = vmatprep.subr.bf16.mxu0 0
  %3686 = vmatpush1.bf16.msra.mxu0 %v2763
  %3687 = vmatprep.subr.bf16.mxu0 0
  %3688 = vmatpush1.bf16.msra.mxu0 %v2764
  %3689 = vmatprep.subr.bf16.mxu0 0
  %3690 = vmatpush1.bf16.msra.mxu0 %v2765
  %3691 = vmatprep.mubr.bf16.mxu0 %v1015
  %3692 = vmatmul.mubr.bf16.gmra.mrb[0].mxu0 %v1014
  %v3693 = vpop.f32.mrb[0].mxu0
  %v3694 = vadd.f32 %v3653, %v3693
  %v3695 = vpop.f32.mrb[0].mxu0
  %v3696 = vpop.f32.mrb[0].mxu0
  %v3697 = vadd.f32 %v3656, %v3696
  %v3698 = vpop.f32.mrb[0].mxu0
  %3699 = vdwg.mxu0
  %3700 = vmatprep.subr.bf16.mxu0 0
  %3701 = vmatpush1.bf16.msra.mxu0 %v2766
  %3702 = vmatprep.subr.bf16.mxu0 0
  %3703 = vmatpush1.bf16.msra.mxu0 %v2767
  %3704 = vmatprep.subr.bf16.mxu0 0
  %3705 = vmatpush1.bf16.msra.mxu0 %v2768
  %3706 = vmatprep.subr.bf16.mxu0 0
  %3707 = vmatpush1.bf16.msra.mxu0 %v2769
  %3708 = vmatprep.subr.bf16.mxu0 0
  %3709 = vmatpush1.bf16.msra.mxu0 %v2770
  %3710 = vmatprep.subr.bf16.mxu0 0
  %3711 = vmatpush1.bf16.msra.mxu0 %v2771
  %3712 = vmatprep.subr.bf16.mxu0 0
  %3713 = vmatpush1.bf16.msra.mxu0 %v2772
  %3714 = vmatprep.subr.bf16.mxu0 0
  %3715 = vmatpush1.bf16.msra.mxu0 %v2773
  %3716 = vmatprep.subr.bf16.mxu0 0
  %3717 = vmatpush1.bf16.msra.mxu0 %v2774
  %3718 = vmatprep.subr.bf16.mxu0 0
  %3719 = vmatpush1.bf16.msra.mxu0 %v2775
  %3720 = vmatprep.subr.bf16.mxu0 0
  %3721 = vmatpush1.bf16.msra.mxu0 %v2776
  %3722 = vmatprep.subr.bf16.mxu0 0
  %3723 = vmatpush1.bf16.msra.mxu0 %v2777
  %3724 = vmatprep.subr.bf16.mxu0 0
  %3725 = vmatpush1.bf16.msra.mxu0 %v2778
  %3726 = vmatprep.subr.bf16.mxu0 0
  %3727 = vmatpush1.bf16.msra.mxu0 %v2779
  %3728 = vmatprep.subr.bf16.mxu0 0
  %3729 = vmatpush1.bf16.msra.mxu0 %v2780
  %3730 = vmatprep.subr.bf16.mxu0 0
  %3731 = vmatpush1.bf16.msra.mxu0 %v2781
  %3732 = vmatprep.mubr.bf16.mxu0 %v1017
  %3733 = vmatmul.mubr.bf16.gmra.mrb[0].mxu0 %v1016
  %v3734 = vpop.f32.mrb[0].mxu0
  %v3735 = vadd.f32 %v3694, %v3734
  %v3736 = vpop.f32.mrb[0].mxu0
  %v3737 = vpop.f32.mrb[0].mxu0
  %v3738 = vadd.f32 %v3697, %v3737
  %v3739 = vpop.f32.mrb[0].mxu0
  %3740 = vdwg.mxu0
  %3741 = vmatprep.subr.bf16.mxu0 0
  %3742 = vmatpush1.bf16.msra.mxu0 %v2782
  %3743 = vmatprep.subr.bf16.mxu0 0
  %3744 = vmatpush1.bf16.msra.mxu0 %v2783
  %3745 = vmatprep.subr.bf16.mxu0 0
  %3746 = vmatpush1.bf16.msra.mxu0 %v2784
  %3747 = vmatprep.subr.bf16.mxu0 0
  %3748 = vmatpush1.bf16.msra.mxu0 %v2785
  %3749 = vmatprep.subr.bf16.mxu0 0
  %3750 = vmatpush1.bf16.msra.mxu0 %v2786
  %3751 = vmatprep.subr.bf16.mxu0 0
  %3752 = vmatpush1.bf16.msra.mxu0 %v2787
  %3753 = vmatprep.subr.bf16.mxu0 0
  %3754 = vmatpush1.bf16.msra.mxu0 %v2788
  %3755 = vmatprep.subr.bf16.mxu0 0
  %3756 = vmatpush1.bf16.msra.mxu0 %v2789
  %3757 = vmatprep.subr.bf16.mxu0 0
  %3758 = vmatpush1.bf16.msra.mxu0 %v2790
  %3759 = vmatprep.subr.bf16.mxu0 0
  %3760 = vmatpush1.bf16.msra.mxu0 %v2791
  %3761 = vmatprep.subr.bf16.mxu0 0
  %3762 = vmatpush1.bf16.msra.mxu0 %v2792
  %3763 = vmatprep.subr.bf16.mxu0 0
  %3764 = vmatpush1.bf16.msra.mxu0 %v2793
  %3765 = vmatprep.subr.bf16.mxu0 0
  %3766 = vmatpush1.bf16.msra.mxu0 %v2794
  %3767 = vmatprep.subr.bf16.mxu0 0
  %3768 = vmatpush1.bf16.msra.mxu0 %v2795
  %3769 = vmatprep.subr.bf16.mxu0 0
  %3770 = vmatpush1.bf16.msra.mxu0 %v2796
  %3771 = vmatprep.subr.bf16.mxu0 0
  %3772 = vmatpush1.bf16.msra.mxu0 %v2797
  %3773 = vmatprep.mubr.bf16.mxu0 %v1019
  %3774 = vmatmul.mubr.bf16.gmra.mrb[0].mxu0 %v1018
  %v3775 = vpop.f32.mrb[0].mxu0
  %v3776 = vadd.f32 %v3735, %v3775
  %v3777 = vpop.f32.mrb[0].mxu0
  %v3778 = vpop.f32.mrb[0].mxu0
  %v3779 = vadd.f32 %v3738, %v3778
  %v3780 = vpop.f32.mrb[0].mxu0
  %3781 = vdwg.mxu0
  %3782 = vmatprep.subr.bf16.mxu0 0
  %3783 = vmatpush1.bf16.msra.mxu0 %v2798
  %3784 = vmatprep.subr.bf16.mxu0 0
  %3785 = vmatpush1.bf16.msra.mxu0 %v2799
  %3786 = vmatprep.subr.bf16.mxu0 0
  %3787 = vmatpush1.bf16.msra.mxu0 %v2800
  %3788 = vmatprep.subr.bf16.mxu0 0
  %3789 = vmatpush1.bf16.msra.mxu0 %v2801
  %3790 = vmatprep.subr.bf16.mxu0 0
  %3791 = vmatpush1.bf16.msra.mxu0 %v2802
  %3792 = vmatprep.subr.bf16.mxu0 0
  %3793 = vmatpush1.bf16.msra.mxu0 %v2803
  %3794 = vmatprep.subr.bf16.mxu0 0
  %3795 = vmatpush1.bf16.msra.mxu0 %v2804
  %3796 = vmatprep.subr.bf16.mxu0 0
  %3797 = vmatpush1.bf16.msra.mxu0 %v2805
  %3798 = vmatprep.subr.bf16.mxu0 0
  %3799 = vmatpush1.bf16.msra.mxu0 %v2806
  %3800 = vmatprep.subr.bf16.mxu0 0
  %3801 = vmatpush1.bf16.msra.mxu0 %v2807
  %3802 = vmatprep.subr.bf16.mxu0 0
  %3803 = vmatpush1.bf16.msra.mxu0 %v2808
  %3804 = vmatprep.subr.bf16.mxu0 0
  %3805 = vmatpush1.bf16.msra.mxu0 %v2809
  %3806 = vmatprep.subr.bf16.mxu0 0
  %3807 = vmatpush1.bf16.msra.mxu0 %v2810
  %3808 = vmatprep.subr.bf16.mxu0 0
  %3809 = vmatpush1.bf16.msra.mxu0 %v2811
  %3810 = vmatprep.subr.bf16.mxu0 0
  %3811 = vmatpush1.bf16.msra.mxu0 %v2812
  %3812 = vmatprep.subr.bf16.mxu0 0
  %3813 = vmatpush1.bf16.msra.mxu0 %v2813
  %3814 = vmatprep.mubr.bf16.mxu0 %v1021
  %3815 = vmatmul.mubr.bf16.gmra.mrb[0].mxu0 %v1020
  %v3816 = vpop.f32.mrb[0].mxu0
  %v3817 = vadd.f32 %v3776, %v3816
  %v3818 = vpop.f32.mrb[0].mxu0
  %v3819 = vpop.f32.mrb[0].mxu0
  %v3820 = vadd.f32 %v3779, %v3819
  %v3821 = vpop.f32.mrb[0].mxu0
  %3822 = vdwg.mxu0
  %3823 = vmatprep.subr.bf16.mxu0 0
  %3824 = vmatpush1.bf16.msra.mxu0 %v2814
  %3825 = vmatprep.subr.bf16.mxu0 0
  %3826 = vmatpush1.bf16.msra.mxu0 %v2815
  %3827 = vmatprep.subr.bf16.mxu0 0
  %3828 = vmatpush1.bf16.msra.mxu0 %v2816
  %3829 = vmatprep.subr.bf16.mxu0 0
  %3830 = vmatpush1.bf16.msra.mxu0 %v2817
  %3831 = vmatprep.subr.bf16.mxu0 0
  %3832 = vmatpush1.bf16.msra.mxu0 %v2818
  %3833 = vmatprep.subr.bf16.mxu0 0
  %3834 = vmatpush1.bf16.msra.mxu0 %v2819
  %3835 = vmatprep.subr.bf16.mxu0 0
  %3836 = vmatpush1.bf16.msra.mxu0 %v2820
  %3837 = vmatprep.subr.bf16.mxu0 0
  %3838 = vmatpush1.bf16.msra.mxu0 %v2821
  %3839 = vmatprep.subr.bf16.mxu0 0
  %3840 = vmatpush1.bf16.msra.mxu0 %v2822
  %3841 = vmatprep.subr.bf16.mxu0 0
  %3842 = vmatpush1.bf16.msra.mxu0 %v2823
  %3843 = vmatprep.subr.bf16.mxu0 0
  %3844 = vmatpush1.bf16.msra.mxu0 %v2824
  %3845 = vmatprep.subr.bf16.mxu0 0
  %3846 = vmatpush1.bf16.msra.mxu0 %v2825
  %3847 = vmatprep.subr.bf16.mxu0 0
  %3848 = vmatpush1.bf16.msra.mxu0 %v2826
  %3849 = vmatprep.subr.bf16.mxu0 0
  %3850 = vmatpush1.bf16.msra.mxu0 %v2827
  %3851 = vmatprep.subr.bf16.mxu0 0
  %3852 = vmatpush1.bf16.msra.mxu0 %v2828
  %3853 = vmatprep.subr.bf16.mxu0 0
  %3854 = vmatpush1.bf16.msra.mxu0 %v2829
  %3855 = vmatprep.mubr.bf16.mxu0 %v1023
  %3856 = vmatmul.mubr.bf16.gmra.mrb[0].mxu0 %v1022
  %v3857 = vpop.f32.mrb[0].mxu0
  %v3858 = vadd.f32 %v3817, %v3857
  %v3859 = vpop.f32.mrb[0].mxu0
  %v3860 = vpop.f32.mrb[0].mxu0
  %v3861 = vadd.f32 %v3820, %v3860
  %v3862 = vpop.f32.mrb[0].mxu0
  %3863 = vdwg.mxu0
  %3864 = vmatprep.subr.bf16.mxu0 0
  %3865 = vmatpush1.bf16.msra.mxu0 %v2830
  %3866 = vmatprep.subr.bf16.mxu0 0
  %3867 = vmatpush1.bf16.msra.mxu0 %v2831
  %3868 = vmatprep.subr.bf16.mxu0 0
  %3869 = vmatpush1.bf16.msra.mxu0 %v2832
  %3870 = vmatprep.subr.bf16.mxu0 0
  %3871 = vmatpush1.bf16.msra.mxu0 %v2833
  %3872 = vmatprep.subr.bf16.mxu0 0
  %3873 = vmatpush1.bf16.msra.mxu0 %v2834
  %3874 = vmatprep.subr.bf16.mxu0 0
  %3875 = vmatpush1.bf16.msra.mxu0 %v2835
  %3876 = vmatprep.subr.bf16.mxu0 0
  %3877 = vmatpush1.bf16.msra.mxu0 %v2836
  %3878 = vmatprep.subr.bf16.mxu0 0
  %3879 = vmatpush1.bf16.msra.mxu0 %v2837
  %3880 = vmatprep.subr.bf16.mxu0 0
  %3881 = vmatpush1.bf16.msra.mxu0 %v2838
  %3882 = vmatprep.subr.bf16.mxu0 0
  %3883 = vmatpush1.bf16.msra.mxu0 %v2839
  %3884 = vmatprep.subr.bf16.mxu0 0
  %3885 = vmatpush1.bf16.msra.mxu0 %v2840
  %3886 = vmatprep.subr.bf16.mxu0 0
  %3887 = vmatpush1.bf16.msra.mxu0 %v2841
  %3888 = vmatprep.subr.bf16.mxu0 0
  %3889 = vmatpush1.bf16.msra.mxu0 %v2842
  %3890 = vmatprep.subr.bf16.mxu0 0
  %3891 = vmatpush1.bf16.msra.mxu0 %v2843
  %3892 = vmatprep.subr.bf16.mxu0 0
  %3893 = vmatpush1.bf16.msra.mxu0 %v2844
  %3894 = vmatprep.subr.bf16.mxu0 0
  %3895 = vmatpush1.bf16.msra.mxu0 %v2845
  %3896 = vmatprep.mubr.bf16.mxu0 %v1025
  %3897 = vmatmul.mubr.bf16.gmra.mrb[0].mxu0 %v1024
  %v3898 = vpop.f32.mrb[0].mxu0
  %v3899 = vadd.f32 %v3858, %v3898
  %v3900 = vpop.f32.mrb[0].mxu0
  %v3901 = vpop.f32.mrb[0].mxu0
  %v3902 = vadd.f32 %v3861, %v3901
  %v3903 = vpop.f32.mrb[0].mxu0
  %3904 = vdwg.mxu0
  %3905 = vmatprep.subr.bf16.mxu0 0
  %3906 = vmatpush1.bf16.msra.mxu0 %v2846
  %3907 = vmatprep.subr.bf16.mxu0 0
  %3908 = vmatpush1.bf16.msra.mxu0 %v2847
  %3909 = vmatprep.subr.bf16.mxu0 0
  %3910 = vmatpush1.bf16.msra.mxu0 %v2848
  %3911 = vmatprep.subr.bf16.mxu0 0
  %3912 = vmatpush1.bf16.msra.mxu0 %v2849
  %3913 = vmatprep.subr.bf16.mxu0 0
  %3914 = vmatpush1.bf16.msra.mxu0 %v2850
  %3915 = vmatprep.subr.bf16.mxu0 0
  %3916 = vmatpush1.bf16.msra.mxu0 %v2851
  %3917 = vmatprep.subr.bf16.mxu0 0
  %3918 = vmatpush1.bf16.msra.mxu0 %v2852
  %3919 = vmatprep.subr.bf16.mxu0 0
  %3920 = vmatpush1.bf16.msra.mxu0 %v2853
  %3921 = vmatprep.subr.bf16.mxu0 0
  %3922 = vmatpush1.bf16.msra.mxu0 %v2854
  %3923 = vmatprep.subr.bf16.mxu0 0
  %3924 = vmatpush1.bf16.msra.mxu0 %v2855
  %3925 = vmatprep.subr.bf16.mxu0 0
  %3926 = vmatpush1.bf16.msra.mxu0 %v2856
  %3927 = vmatprep.subr.bf16.mxu0 0
  %3928 = vmatpush1.bf16.msra.mxu0 %v2857
  %3929 = vmatprep.subr.bf16.mxu0 0
  %3930 = vmatpush1.bf16.msra.mxu0 %v2858
  %3931 = vmatprep.subr.bf16.mxu0 0
  %3932 = vmatpush1.bf16.msra.mxu0 %v2859
  %3933 = vmatprep.subr.bf16.mxu0 0
  %3934 = vmatpush1.bf16.msra.mxu0 %v2860
  %3935 = vmatprep.subr.bf16.mxu0 0
  %3936 = vmatpush1.bf16.msra.mxu0 %v2861
  %3937 = vmatprep.mubr.bf16.mxu0 %v1027
  %3938 = vmatmul.mubr.bf16.gmra.mrb[0].mxu0 %v1026
  %v3939 = vpop.f32.mrb[0].mxu0
  %v3940 = vadd.f32 %v3899, %v3939
  %v3941 = vpop.f32.mrb[0].mxu0
  %v3942 = vpop.f32.mrb[0].mxu0
  %v3943 = vadd.f32 %v3902, %v3942
  %v3944 = vpop.f32.mrb[0].mxu0
  %3945 = vdwg.mxu0
  %3946 = vmatprep.subr.bf16.mxu0 0
  %3947 = vmatpush1.bf16.msra.mxu0 %v2862
  %3948 = vmatprep.subr.bf16.mxu0 0
  %3949 = vmatpush1.bf16.msra.mxu0 %v2863
  %3950 = vmatprep.subr.bf16.mxu0 0
  %3951 = vmatpush1.bf16.msra.mxu0 %v2864
  %3952 = vmatprep.subr.bf16.mxu0 0
  %3953 = vmatpush1.bf16.msra.mxu0 %v2865
  %3954 = vmatprep.subr.bf16.mxu0 0
  %3955 = vmatpush1.bf16.msra.mxu0 %v2866
  %3956 = vmatprep.subr.bf16.mxu0 0
  %3957 = vmatpush1.bf16.msra.mxu0 %v2867
  %3958 = vmatprep.subr.bf16.mxu0 0
  %3959 = vmatpush1.bf16.msra.mxu0 %v2868
  %3960 = vmatprep.subr.bf16.mxu0 0
  %3961 = vmatpush1.bf16.msra.mxu0 %v2869
  %3962 = vmatprep.subr.bf16.mxu0 0
  %3963 = vmatpush1.bf16.msra.mxu0 %v2870
  %3964 = vmatprep.subr.bf16.mxu0 0
  %3965 = vmatpush1.bf16.msra.mxu0 %v2871
  %3966 = vmatprep.subr.bf16.mxu0 0
  %3967 = vmatpush1.bf16.msra.mxu0 %v2872
  %3968 = vmatprep.subr.bf16.mxu0 0
  %3969 = vmatpush1.bf16.msra.mxu0 %v2873
  %3970 = vmatprep.subr.bf16.mxu0 0
  %3971 = vmatpush1.bf16.msra.mxu0 %v2874
  %3972 = vmatprep.subr.bf16.mxu0 0
  %3973 = vmatpush1.bf16.msra.mxu0 %v2875
  %3974 = vmatprep.subr.bf16.mxu0 0
  %3975 = vmatpush1.bf16.msra.mxu0 %v2876
  %3976 = vmatprep.subr.bf16.mxu0 0
  %3977 = vmatpush1.bf16.msra.mxu0 %v2877
  %3978 = vmatprep.mubr.bf16.mxu0 %v1029
  %3979 = vmatmul.mubr.bf16.gmra.mrb[0].mxu0 %v1028
  %v3980 = vpop.f32.mrb[0].mxu0
  %v3981 = vadd.f32 %v3940, %v3980
  %v3982 = vpop.f32.mrb[0].mxu0
  %v3983 = vpop.f32.mrb[0].mxu0
  %v3984 = vadd.f32 %v3943, %v3983
  %v3985 = vpop.f32.mrb[0].mxu0
  %3986 = vdwg.mxu0
  %3987 = vmatprep.subr.bf16.mxu0 0
  %3988 = vmatpush1.bf16.msra.mxu0 %v2878
  %3989 = vmatprep.subr.bf16.mxu0 0
  %3990 = vmatpush1.bf16.msra.mxu0 %v2879
  %3991 = vmatprep.subr.bf16.mxu0 0
  %3992 = vmatpush1.bf16.msra.mxu0 %v2880
  %3993 = vmatprep.subr.bf16.mxu0 0
  %3994 = vmatpush1.bf16.msra.mxu0 %v2881
  %3995 = vmatprep.subr.bf16.mxu0 0
  %3996 = vmatpush1.bf16.msra.mxu0 %v2882
  %3997 = vmatprep.subr.bf16.mxu0 0
  %3998 = vmatpush1.bf16.msra.mxu0 %v2883
  %3999 = vmatprep.subr.bf16.mxu0 0
  %4000 = vmatpush1.bf16.msra.mxu0 %v2884
  %4001 = vmatprep.subr.bf16.mxu0 0
  %4002 = vmatpush1.bf16.msra.mxu0 %v2885
  %4003 = vmatprep.subr.bf16.mxu0 0
  %4004 = vmatpush1.bf16.msra.mxu0 %v2886
  %4005 = vmatprep.subr.bf16.mxu0 0
  %4006 = vmatpush1.bf16.msra.mxu0 %v2887
  %4007 = vmatprep.subr.bf16.mxu0 0
  %4008 = vmatpush1.bf16.msra.mxu0 %v2888
  %4009 = vmatprep.subr.bf16.mxu0 0
  %4010 = vmatpush1.bf16.msra.mxu0 %v2889
  %4011 = vmatprep.subr.bf16.mxu0 0
  %4012 = vmatpush1.bf16.msra.mxu0 %v2890
  %4013 = vmatprep.subr.bf16.mxu0 0
  %4014 = vmatpush1.bf16.msra.mxu0 %v2891
  %4015 = vmatprep.subr.bf16.mxu0 0
  %4016 = vmatpush1.bf16.msra.mxu0 %v2892
  %4017 = vmatprep.subr.bf16.mxu0 0
  %4018 = vmatpush1.bf16.msra.mxu0 %v2893
  %4019 = vmatprep.mubr.bf16.mxu0 %v1031
  %4020 = vmatmul.mubr.bf16.gmra.mrb[0].mxu0 %v1030
  %v4021 = vpop.f32.mrb[0].mxu0
  %v4022 = vadd.f32 %v3981, %v4021
  %v4023 = vpop.f32.mrb[0].mxu0
  %v4024 = vpop.f32.mrb[0].mxu0
  %v4025 = vadd.f32 %v3984, %v4024
  %v4026 = vpop.f32.mrb[0].mxu0
  %4027 = vdwg.mxu0
  %4028 = vmatprep.subr.bf16.mxu0 0
  %4029 = vmatpush1.bf16.msra.mxu0 %v2894
  %4030 = vmatprep.subr.bf16.mxu0 0
  %4031 = vmatpush1.bf16.msra.mxu0 %v2895
  %4032 = vmatprep.subr.bf16.mxu0 0
  %4033 = vmatpush1.bf16.msra.mxu0 %v2896
  %4034 = vmatprep.subr.bf16.mxu0 0
  %4035 = vmatpush1.bf16.msra.mxu0 %v2897
  %4036 = vmatprep.subr.bf16.mxu0 0
  %4037 = vmatpush1.bf16.msra.mxu0 %v2898
  %4038 = vmatprep.subr.bf16.mxu0 0
  %4039 = vmatpush1.bf16.msra.mxu0 %v2899
  %4040 = vmatprep.subr.bf16.mxu0 0
  %4041 = vmatpush1.bf16.msra.mxu0 %v2900
  %4042 = vmatprep.subr.bf16.mxu0 0
  %4043 = vmatpush1.bf16.msra.mxu0 %v2901
  %4044 = vmatprep.subr.bf16.mxu0 0
  %4045 = vmatpush1.bf16.msra.mxu0 %v2902
  %4046 = vmatprep.subr.bf16.mxu0 0
  %4047 = vmatpush1.bf16.msra.mxu0 %v2903
  %4048 = vmatprep.subr.bf16.mxu0 0
  %4049 = vmatpush1.bf16.msra.mxu0 %v2904
  %4050 = vmatprep.subr.bf16.mxu0 0
  %4051 = vmatpush1.bf16.msra.mxu0 %v2905
  %4052 = vmatprep.subr.bf16.mxu0 0
  %4053 = vmatpush1.bf16.msra.mxu0 %v2906
  %4054 = vmatprep.subr.bf16.mxu0 0
  %4055 = vmatpush1.bf16.msra.mxu0 %v2907
  %4056 = vmatprep.subr.bf16.mxu0 0
  %4057 = vmatpush1.bf16.msra.mxu0 %v2908
  %4058 = vmatprep.subr.bf16.mxu0 0
  %4059 = vmatpush1.bf16.msra.mxu0 %v2909
  %4060 = vmatprep.mubr.bf16.mxu0 %v1033
  %4061 = vmatmul.mubr.bf16.gmra.mrb[0].mxu0 %v1032
  %v4062 = vpop.f32.mrb[0].mxu0
  %v4063 = vadd.f32 %v4022, %v4062
  %v4064 = vpop.f32.mrb[0].mxu0
  %v4065 = vpop.f32.mrb[0].mxu0
  %v4066 = vadd.f32 %v4025, %v4065
  %v4067 = vpop.f32.mrb[0].mxu0
  %4068 = vdwg.mxu0
  %4069 = vmatprep.subr.bf16.mxu0 0
  %4070 = vmatpush1.bf16.msra.mxu0 %v2910
  %4071 = vmatprep.subr.bf16.mxu0 0
  %4072 = vmatpush1.bf16.msra.mxu0 %v2911
  %4073 = vmatprep.subr.bf16.mxu0 0
  %4074 = vmatpush1.bf16.msra.mxu0 %v2912
  %4075 = vmatprep.subr.bf16.mxu0 0
  %4076 = vmatpush1.bf16.msra.mxu0 %v2913
  %4077 = vmatprep.subr.bf16.mxu0 0
  %4078 = vmatpush1.bf16.msra.mxu0 %v2914
  %4079 = vmatprep.subr.bf16.mxu0 0
  %4080 = vmatpush1.bf16.msra.mxu0 %v2915
  %4081 = vmatprep.subr.bf16.mxu0 0
  %4082 = vmatpush1.bf16.msra.mxu0 %v2916
  %4083 = vmatprep.subr.bf16.mxu0 0
  %4084 = vmatpush1.bf16.msra.mxu0 %v2917
  %4085 = vmatprep.subr.bf16.mxu0 0
  %4086 = vmatpush1.bf16.msra.mxu0 %v2918
  %4087 = vmatprep.subr.bf16.mxu0 0
  %4088 = vmatpush1.bf16.msra.mxu0 %v2919
  %4089 = vmatprep.subr.bf16.mxu0 0
  %4090 = vmatpush1.bf16.msra.mxu0 %v2920
  %4091 = vmatprep.subr.bf16.mxu0 0
  %4092 = vmatpush1.bf16.msra.mxu0 %v2921
  %4093 = vmatprep.subr.bf16.mxu0 0
  %4094 = vmatpush1.bf16.msra.mxu0 %v2922
  %4095 = vmatprep.subr.bf16.mxu0 0
  %4096 = vmatpush1.bf16.msra.mxu0 %v2923
  %4097 = vmatprep.subr.bf16.mxu0 0
  %4098 = vmatpush1.bf16.msra.mxu0 %v2924
  %4099 = vmatprep.subr.bf16.mxu0 0
  %4100 = vmatpush1.bf16.msra.mxu0 %v2925
  %4101 = vmatprep.mubr.bf16.mxu0 %v1035
  %4102 = vmatmul.mubr.bf16.gmra.mrb[0].mxu0 %v1034
  %v4103 = vpop.f32.mrb[0].mxu0
  %v4104 = vadd.f32 %v4063, %v4103
  %v4105 = vpop.f32.mrb[0].mxu0
  %v4106 = vpop.f32.mrb[0].mxu0
  %v4107 = vadd.f32 %v4066, %v4106
  %v4108 = vpop.f32.mrb[0].mxu0
  %4109 = vdwg.mxu0
  %4110 = vmatprep.subr.bf16.mxu0 0
  %4111 = vmatpush1.bf16.msra.mxu0 %v2926
  %4112 = vmatprep.subr.bf16.mxu0 0
  %4113 = vmatpush1.bf16.msra.mxu0 %v2927
  %4114 = vmatprep.subr.bf16.mxu0 0
  %4115 = vmatpush1.bf16.msra.mxu0 %v2928
  %4116 = vmatprep.subr.bf16.mxu0 0
  %4117 = vmatpush1.bf16.msra.mxu0 %v2929
  %4118 = vmatprep.subr.bf16.mxu0 0
  %4119 = vmatpush1.bf16.msra.mxu0 %v2930
  %4120 = vmatprep.subr.bf16.mxu0 0
  %4121 = vmatpush1.bf16.msra.mxu0 %v2931
  %4122 = vmatprep.subr.bf16.mxu0 0
  %4123 = vmatpush1.bf16.msra.mxu0 %v2932
  %4124 = vmatprep.subr.bf16.mxu0 0
  %4125 = vmatpush1.bf16.msra.mxu0 %v2933
  %4126 = vmatprep.subr.bf16.mxu0 0
  %4127 = vmatpush1.bf16.msra.mxu0 %v2934
  %4128 = vmatprep.subr.bf16.mxu0 0
  %4129 = vmatpush1.bf16.msra.mxu0 %v2935
  %4130 = vmatprep.subr.bf16.mxu0 0
  %4131 = vmatpush1.bf16.msra.mxu0 %v2936
  %4132 = vmatprep.subr.bf16.mxu0 0
  %4133 = vmatpush1.bf16.msra.mxu0 %v2937
  %4134 = vmatprep.subr.bf16.mxu0 0
  %4135 = vmatpush1.bf16.msra.mxu0 %v2938
  %4136 = vmatprep.subr.bf16.mxu0 0
  %4137 = vmatpush1.bf16.msra.mxu0 %v2939
  %4138 = vmatprep.subr.bf16.mxu0 0
  %4139 = vmatpush1.bf16.msra.mxu0 %v2940
  %4140 = vmatprep.subr.bf16.mxu0 0
  %4141 = vmatpush1.bf16.msra.mxu0 %v2941
  %4142 = vmatprep.mubr.bf16.mxu0 %v1037
  %4143 = vmatmul.mubr.bf16.gmra.mrb[0].mxu0 %v1036
  %v4144 = vpop.f32.mrb[0].mxu0
  %v4145 = vadd.f32 %v4104, %v4144
  %v4146 = vpop.f32.mrb[0].mxu0
  %v4147 = vpop.f32.mrb[0].mxu0
  %v4148 = vadd.f32 %v4107, %v4147
  %v4149 = vpop.f32.mrb[0].mxu0
  %4150 = vdwg.mxu0
  %4151 = vmatprep.subr.bf16.mxu0 0
  %4152 = vmatpush1.bf16.msra.mxu0 %v2942
  %4153 = vmatprep.subr.bf16.mxu0 0
  %4154 = vmatpush1.bf16.msra.mxu0 %v2943
  %4155 = vmatprep.subr.bf16.mxu0 0
  %4156 = vmatpush1.bf16.msra.mxu0 %v2944
  %4157 = vmatprep.subr.bf16.mxu0 0
  %4158 = vmatpush1.bf16.msra.mxu0 %v2945
  %4159 = vmatprep.subr.bf16.mxu0 0
  %4160 = vmatpush1.bf16.msra.mxu0 %v2946
  %4161 = vmatprep.subr.bf16.mxu0 0
  %4162 = vmatpush1.bf16.msra.mxu0 %v2947
  %4163 = vmatprep.subr.bf16.mxu0 0
  %4164 = vmatpush1.bf16.msra.mxu0 %v2948
  %4165 = vmatprep.subr.bf16.mxu0 0
  %4166 = vmatpush1.bf16.msra.mxu0 %v2949
  %4167 = vmatprep.subr.bf16.mxu0 0
  %4168 = vmatpush1.bf16.msra.mxu0 %v2950
  %4169 = vmatprep.subr.bf16.mxu0 0
  %4170 = vmatpush1.bf16.msra.mxu0 %v2951
  %4171 = vmatprep.subr.bf16.mxu0 0
  %4172 = vmatpush1.bf16.msra.mxu0 %v2952
  %4173 = vmatprep.subr.bf16.mxu0 0
  %4174 = vmatpush1.bf16.msra.mxu0 %v2953
  %4175 = vmatprep.subr.bf16.mxu0 0
  %4176 = vmatpush1.bf16.msra.mxu0 %v2954
  %4177 = vmatprep.subr.bf16.mxu0 0
  %4178 = vmatpush1.bf16.msra.mxu0 %v2955
  %4179 = vmatprep.subr.bf16.mxu0 0
  %4180 = vmatpush1.bf16.msra.mxu0 %v2956
  %4181 = vmatprep.subr.bf16.mxu0 0
  %4182 = vmatpush1.bf16.msra.mxu0 %v2957
  %4183 = vmatprep.mubr.bf16.mxu0 %v1039
  %4184 = vmatmul.mubr.bf16.gmra.mrb[0].mxu0 %v1038
  %v4185 = vpop.f32.mrb[0].mxu0
  %v4186 = vadd.f32 %v4145, %v4185
  %v4187 = vpop.f32.mrb[0].mxu0
  %v4188 = vpop.f32.mrb[0].mxu0
  %v4189 = vadd.f32 %v4148, %v4188
  %v4190 = vpop.f32.mrb[0].mxu0
  %4191 = vdwg.mxu0
  %4192 = vmatprep.subr.bf16.mxu0 0
  %4193 = vmatpush1.bf16.msra.mxu0 %v2958
  %4194 = vmatprep.subr.bf16.mxu0 0
  %4195 = vmatpush1.bf16.msra.mxu0 %v2959
  %4196 = vmatprep.subr.bf16.mxu0 0
  %4197 = vmatpush1.bf16.msra.mxu0 %v2960
  %4198 = vmatprep.subr.bf16.mxu0 0
  %4199 = vmatpush1.bf16.msra.mxu0 %v2961
  %4200 = vmatprep.subr.bf16.mxu0 0
  %4201 = vmatpush1.bf16.msra.mxu0 %v2962
  %4202 = vmatprep.subr.bf16.mxu0 0
  %4203 = vmatpush1.bf16.msra.mxu0 %v2963
  %4204 = vmatprep.subr.bf16.mxu0 0
  %4205 = vmatpush1.bf16.msra.mxu0 %v2964
  %4206 = vmatprep.subr.bf16.mxu0 0
  %4207 = vmatpush1.bf16.msra.mxu0 %v2965
  %4208 = vmatprep.subr.bf16.mxu0 0
  %4209 = vmatpush1.bf16.msra.mxu0 %v2966
  %4210 = vmatprep.subr.bf16.mxu0 0
  %4211 = vmatpush1.bf16.msra.mxu0 %v2967
  %4212 = vmatprep.subr.bf16.mxu0 0
  %4213 = vmatpush1.bf16.msra.mxu0 %v2968
  %4214 = vmatprep.subr.bf16.mxu0 0
  %4215 = vmatpush1.bf16.msra.mxu0 %v2969
  %4216 = vmatprep.subr.bf16.mxu0 0
  %4217 = vmatpush1.bf16.msra.mxu0 %v2970
  %4218 = vmatprep.subr.bf16.mxu0 0
  %4219 = vmatpush1.bf16.msra.mxu0 %v2971
  %4220 = vmatprep.subr.bf16.mxu0 0
  %4221 = vmatpush1.bf16.msra.mxu0 %v2972
  %4222 = vmatprep.subr.bf16.mxu0 0
  %4223 = vmatpush1.bf16.msra.mxu0 %v2973
  %4224 = vmatprep.mubr.bf16.mxu0 %v1041
  %4225 = vmatmul.mubr.bf16.gmra.mrb[0].mxu0 %v1040
  %v4226 = vpop.f32.mrb[0].mxu0
  %v4227 = vadd.f32 %v4186, %v4226
  %v4228 = vpop.f32.mrb[0].mxu0
  %v4229 = vpop.f32.mrb[0].mxu0
  %v4230 = vadd.f32 %v4189, %v4229
  %v4231 = vpop.f32.mrb[0].mxu0
  %4232 = vdwg.mxu0
  %4233 = vmatprep.subr.bf16.mxu0 0
  %4234 = vmatpush1.bf16.msra.mxu0 %v2974
  %4235 = vmatprep.subr.bf16.mxu0 0
  %4236 = vmatpush1.bf16.msra.mxu0 %v2975
  %4237 = vmatprep.subr.bf16.mxu0 0
  %4238 = vmatpush1.bf16.msra.mxu0 %v2976
  %4239 = vmatprep.subr.bf16.mxu0 0
  %4240 = vmatpush1.bf16.msra.mxu0 %v2977
  %4241 = vmatprep.subr.bf16.mxu0 0
  %4242 = vmatpush1.bf16.msra.mxu0 %v2978
  %4243 = vmatprep.subr.bf16.mxu0 0
  %4244 = vmatpush1.bf16.msra.mxu0 %v2979
  %4245 = vmatprep.subr.bf16.mxu0 0
  %4246 = vmatpush1.bf16.msra.mxu0 %v2980
  %4247 = vmatprep.subr.bf16.mxu0 0
  %4248 = vmatpush1.bf16.msra.mxu0 %v2981
  %4249 = vmatprep.subr.bf16.mxu0 0
  %4250 = vmatpush1.bf16.msra.mxu0 %v2982
  %4251 = vmatprep.subr.bf16.mxu0 0
  %4252 = vmatpush1.bf16.msra.mxu0 %v2983
  %4253 = vmatprep.subr.bf16.mxu0 0
  %4254 = vmatpush1.bf16.msra.mxu0 %v2984
  %4255 = vmatprep.subr.bf16.mxu0 0
  %4256 = vmatpush1.bf16.msra.mxu0 %v2985
  %4257 = vmatprep.subr.bf16.mxu0 0
  %4258 = vmatpush1.bf16.msra.mxu0 %v2986
  %4259 = vmatprep.subr.bf16.mxu0 0
  %4260 = vmatpush1.bf16.msra.mxu0 %v2987
  %4261 = vmatprep.subr.bf16.mxu0 0
  %4262 = vmatpush1.bf16.msra.mxu0 %v2988
  %4263 = vmatprep.subr.bf16.mxu0 0
  %4264 = vmatpush1.bf16.msra.mxu0 %v2989
  %4265 = vmatprep.mubr.bf16.mxu0 %v1043
  %4266 = vmatmul.mubr.bf16.gmra.mrb[0].mxu0 %v1042
  %v4267 = vpop.f32.mrb[0].mxu0
  %v4268 = vadd.f32 %v4227, %v4267
  %v4269 = vpop.f32.mrb[0].mxu0
  %v4270 = vpop.f32.mrb[0].mxu0
  %v4271 = vadd.f32 %v4230, %v4270
  %v4272 = vpop.f32.mrb[0].mxu0
  %4273 = vdwg.mxu0
  %4274 = vmatprep.subr.bf16.mxu0 0
  %4275 = vmatpush1.bf16.msra.mxu0 %v2990
  %4276 = vmatprep.subr.bf16.mxu0 0
  %4277 = vmatpush1.bf16.msra.mxu0 %v2991
  %4278 = vmatprep.subr.bf16.mxu0 0
  %4279 = vmatpush1.bf16.msra.mxu0 %v2992
  %4280 = vmatprep.subr.bf16.mxu0 0
  %4281 = vmatpush1.bf16.msra.mxu0 %v2993
  %4282 = vmatprep.subr.bf16.mxu0 0
  %4283 = vmatpush1.bf16.msra.mxu0 %v2994
  %4284 = vmatprep.subr.bf16.mxu0 0
  %4285 = vmatpush1.bf16.msra.mxu0 %v2995
  %4286 = vmatprep.subr.bf16.mxu0 0
  %4287 = vmatpush1.bf16.msra.mxu0 %v2996
  %4288 = vmatprep.subr.bf16.mxu0 0
  %4289 = vmatpush1.bf16.msra.mxu0 %v2997
  %4290 = vmatprep.subr.bf16.mxu0 0
  %4291 = vmatpush1.bf16.msra.mxu0 %v2998
  %4292 = vmatprep.subr.bf16.mxu0 0
  %4293 = vmatpush1.bf16.msra.mxu0 %v2999
  %4294 = vmatprep.subr.bf16.mxu0 0
  %4295 = vmatpush1.bf16.msra.mxu0 %v3000
  %4296 = vmatprep.subr.bf16.mxu0 0
  %4297 = vmatpush1.bf16.msra.mxu0 %v3001
  %4298 = vmatprep.subr.bf16.mxu0 0
  %4299 = vmatpush1.bf16.msra.mxu0 %v3002
  %4300 = vmatprep.subr.bf16.mxu0 0
  %4301 = vmatpush1.bf16.msra.mxu0 %v3003
  %4302 = vmatprep.subr.bf16.mxu0 0
  %4303 = vmatpush1.bf16.msra.mxu0 %v3004
  %4304 = vmatprep.subr.bf16.mxu0 0
  %4305 = vmatpush1.bf16.msra.mxu0 %v3005
  %4306 = vmatprep.mubr.bf16.mxu0 %v1045
  %4307 = vmatmul.mubr.bf16.gmra.mrb[0].mxu0 %v1044
  %v4308 = vpop.f32.mrb[0].mxu0
  %v4309 = vadd.f32 %v4268, %v4308
  %v4310 = vpop.f32.mrb[0].mxu0
  %v4311 = vpop.f32.mrb[0].mxu0
  %v4312 = vadd.f32 %v4271, %v4311
  %v4313 = vpop.f32.mrb[0].mxu0
  %4314 = vdwg.mxu0
  %4315 = vmatprep.subr.bf16.mxu0 0
  %4316 = vmatpush1.bf16.msra.mxu0 %v3006
  %4317 = vmatprep.subr.bf16.mxu0 0
  %4318 = vmatpush1.bf16.msra.mxu0 %v3007
  %4319 = vmatprep.subr.bf16.mxu0 0
  %4320 = vmatpush1.bf16.msra.mxu0 %v3008
  %4321 = vmatprep.subr.bf16.mxu0 0
  %4322 = vmatpush1.bf16.msra.mxu0 %v3009
  %4323 = vmatprep.subr.bf16.mxu0 0
  %4324 = vmatpush1.bf16.msra.mxu0 %v3010
  %4325 = vmatprep.subr.bf16.mxu0 0
  %4326 = vmatpush1.bf16.msra.mxu0 %v3011
  %4327 = vmatprep.subr.bf16.mxu0 0
  %4328 = vmatpush1.bf16.msra.mxu0 %v3012
  %4329 = vmatprep.subr.bf16.mxu0 0
  %4330 = vmatpush1.bf16.msra.mxu0 %v3013
  %4331 = vmatprep.subr.bf16.mxu0 0
  %4332 = vmatpush1.bf16.msra.mxu0 %v3014
  %4333 = vmatprep.subr.bf16.mxu0 0
  %4334 = vmatpush1.bf16.msra.mxu0 %v3015
  %4335 = vmatprep.subr.bf16.mxu0 0
  %4336 = vmatpush1.bf16.msra.mxu0 %v3016
  %4337 = vmatprep.subr.bf16.mxu0 0
  %4338 = vmatpush1.bf16.msra.mxu0 %v3017
  %4339 = vmatprep.subr.bf16.mxu0 0
  %4340 = vmatpush1.bf16.msra.mxu0 %v3018
  %4341 = vmatprep.subr.bf16.mxu0 0
  %4342 = vmatpush1.bf16.msra.mxu0 %v3019
  %4343 = vmatprep.subr.bf16.mxu0 0
  %4344 = vmatpush1.bf16.msra.mxu0 %v3020
  %4345 = vmatprep.subr.bf16.mxu0 0
  %4346 = vmatpush1.bf16.msra.mxu0 %v3021
  %4347 = vmatprep.mubr.bf16.mxu0 %v1047
  %4348 = vmatmul.mubr.bf16.gmra.mrb[0].mxu0 %v1046
  %v4349 = vpop.f32.mrb[0].mxu0
  %v4350 = vadd.f32 %v4309, %v4349
  %v4351 = vpop.f32.mrb[0].mxu0
  %v4352 = vpop.f32.mrb[0].mxu0
  %v4353 = vadd.f32 %v4312, %v4352
  %v4354 = vpop.f32.mrb[0].mxu0
  %4355 = vdwg.mxu0
  %4356 = vmatprep.subr.bf16.mxu0 0
  %4357 = vmatpush1.bf16.msra.mxu0 %v3022
  %4358 = vmatprep.subr.bf16.mxu0 0
  %4359 = vmatpush1.bf16.msra.mxu0 %v3023
  %4360 = vmatprep.subr.bf16.mxu0 0
  %4361 = vmatpush1.bf16.msra.mxu0 %v3024
  %4362 = vmatprep.subr.bf16.mxu0 0
  %4363 = vmatpush1.bf16.msra.mxu0 %v3025
  %4364 = vmatprep.subr.bf16.mxu0 0
  %4365 = vmatpush1.bf16.msra.mxu0 %v3026
  %4366 = vmatprep.subr.bf16.mxu0 0
  %4367 = vmatpush1.bf16.msra.mxu0 %v3027
  %4368 = vmatprep.subr.bf16.mxu0 0
  %4369 = vmatpush1.bf16.msra.mxu0 %v3028
  %4370 = vmatprep.subr.bf16.mxu0 0
  %4371 = vmatpush1.bf16.msra.mxu0 %v3029
  %4372 = vmatprep.subr.bf16.mxu0 0
  %4373 = vmatpush1.bf16.msra.mxu0 %v3030
  %4374 = vmatprep.subr.bf16.mxu0 0
  %4375 = vmatpush1.bf16.msra.mxu0 %v3031
  %4376 = vmatprep.subr.bf16.mxu0 0
  %4377 = vmatpush1.bf16.msra.mxu0 %v3032
  %4378 = vmatprep.subr.bf16.mxu0 0
  %4379 = vmatpush1.bf16.msra.mxu0 %v3033
  %4380 = vmatprep.subr.bf16.mxu0 0
  %4381 = vmatpush1.bf16.msra.mxu0 %v3034
  %4382 = vmatprep.subr.bf16.mxu0 0
  %4383 = vmatpush1.bf16.msra.mxu0 %v3035
  %4384 = vmatprep.subr.bf16.mxu0 0
  %4385 = vmatpush1.bf16.msra.mxu0 %v3036
  %4386 = vmatprep.subr.bf16.mxu0 0
  %4387 = vmatpush1.bf16.msra.mxu0 %v3037
  %4388 = vmatprep.mubr.bf16.mxu0 %v1049
  %4389 = vmatmul.mubr.bf16.gmra.mrb[0].mxu0 %v1048
  %v4390 = vpop.f32.mrb[0].mxu0
  %v4391 = vadd.f32 %v4350, %v4390
  %v4392 = vpop.f32.mrb[0].mxu0
  %v4393 = vpop.f32.mrb[0].mxu0
  %v4394 = vadd.f32 %v4353, %v4393
  %v4395 = vpop.f32.mrb[0].mxu0
  %4396 = vdwg.mxu0
  %4397 = vmatprep.subr.bf16.mxu0 0
  %4398 = vmatpush1.bf16.msra.mxu0 %v3038
  %4399 = vmatprep.subr.bf16.mxu0 0
  %4400 = vmatpush1.bf16.msra.mxu0 %v3039
  %4401 = vmatprep.subr.bf16.mxu0 0
  %4402 = vmatpush1.bf16.msra.mxu0 %v3040
  %4403 = vmatprep.subr.bf16.mxu0 0
  %4404 = vmatpush1.bf16.msra.mxu0 %v3041
  %4405 = vmatprep.subr.bf16.mxu0 0
  %4406 = vmatpush1.bf16.msra.mxu0 %v3042
  %4407 = vmatprep.subr.bf16.mxu0 0
  %4408 = vmatpush1.bf16.msra.mxu0 %v3043
  %4409 = vmatprep.subr.bf16.mxu0 0
  %4410 = vmatpush1.bf16.msra.mxu0 %v3044
  %4411 = vmatprep.subr.bf16.mxu0 0
  %4412 = vmatpush1.bf16.msra.mxu0 %v3045
  %4413 = vmatprep.subr.bf16.mxu0 0
  %4414 = vmatpush1.bf16.msra.mxu0 %v3046
  %4415 = vmatprep.subr.bf16.mxu0 0
  %4416 = vmatpush1.bf16.msra.mxu0 %v3047
  %4417 = vmatprep.subr.bf16.mxu0 0
  %4418 = vmatpush1.bf16.msra.mxu0 %v3048
  %4419 = vmatprep.subr.bf16.mxu0 0
  %4420 = vmatpush1.bf16.msra.mxu0 %v3049
  %4421 = vmatprep.subr.bf16.mxu0 0
  %4422 = vmatpush1.bf16.msra.mxu0 %v3050
  %4423 = vmatprep.subr.bf16.mxu0 0
  %4424 = vmatpush1.bf16.msra.mxu0 %v3051
  %4425 = vmatprep.subr.bf16.mxu0 0
  %4426 = vmatpush1.bf16.msra.mxu0 %v3052
  %4427 = vmatprep.subr.bf16.mxu0 0
  %4428 = vmatpush1.bf16.msra.mxu0 %v3053
  %4429 = vmatprep.mubr.bf16.mxu0 %v1051
  %4430 = vmatmul.mubr.bf16.gmra.mrb[0].mxu0 %v1050
  %v4431 = vpop.f32.mrb[0].mxu0
  %v4432 = vadd.f32 %v4391, %v4431
  %v4433 = vpop.f32.mrb[0].mxu0
  %v4434 = vpop.f32.mrb[0].mxu0
  %v4435 = vadd.f32 %v4394, %v4434
  %v4436 = vpop.f32.mrb[0].mxu0
  %4437 = vdwg.mxu0
  %4438 = vmatprep.subr.bf16.mxu0 0
  %4439 = vmatpush1.bf16.msra.mxu0 %v3054
  %4440 = vmatprep.subr.bf16.mxu0 0
  %4441 = vmatpush1.bf16.msra.mxu0 %v3055
  %4442 = vmatprep.subr.bf16.mxu0 0
  %4443 = vmatpush1.bf16.msra.mxu0 %v3056
  %4444 = vmatprep.subr.bf16.mxu0 0
  %4445 = vmatpush1.bf16.msra.mxu0 %v3057
  %4446 = vmatprep.subr.bf16.mxu0 0
  %4447 = vmatpush1.bf16.msra.mxu0 %v3058
  %4448 = vmatprep.subr.bf16.mxu0 0
  %4449 = vmatpush1.bf16.msra.mxu0 %v3059
  %4450 = vmatprep.subr.bf16.mxu0 0
  %4451 = vmatpush1.bf16.msra.mxu0 %v3060
  %4452 = vmatprep.subr.bf16.mxu0 0
  %4453 = vmatpush1.bf16.msra.mxu0 %v3061
  %4454 = vmatprep.subr.bf16.mxu0 0
  %4455 = vmatpush1.bf16.msra.mxu0 0
  %4456 = vmatprep.subr.bf16.mxu0 0
  %4457 = vmatpush1.bf16.msra.mxu0 0
  %4458 = vmatprep.subr.bf16.mxu0 0
  %4459 = vmatpush1.bf16.msra.mxu0 0
  %4460 = vmatprep.subr.bf16.mxu0 0
  %4461 = vmatpush1.bf16.msra.mxu0 0
  %4462 = vmatprep.subr.bf16.mxu0 0
  %4463 = vmatpush1.bf16.msra.mxu0 0
  %4464 = vmatprep.subr.bf16.mxu0 0
  %4465 = vmatpush1.bf16.msra.mxu0 0
  %4466 = vmatprep.subr.bf16.mxu0 0
  %4467 = vmatpush1.bf16.msra.mxu0 0
  %4468 = vmatprep.subr.bf16.mxu0 0
  %4469 = vmatpush1.bf16.msra.mxu0 0
  %4470 = vmatprep.mubr.bf16.mxu0 0
  %4471 = vmatmul.mubr.bf16.gmra.mrb[0].mxu0 %v1052
  %v4472 = vpop.f32.mrb[0].mxu0
  %v4473 = vadd.f32 %v4432, %v4472
  %v4474 = vpop.f32.mrb[0].mxu0
  %v4475 = vpop.f32.mrb[0].mxu0
  %v4476 = vadd.f32 %v4435, %v4475
  %v4477 = vpop.f32.mrb[0].mxu0
  %4478 = vdwg.mxu0
  %4479 = vst [vmem:[%s3] sm:$0xff] %v4473
  %4480 = vst [vmem:[%s3 + $0x8] sm:$0xff] %v4476
  // Predicated region
  $region14: #{convnet_forward.5} parent=0 // pred_check
    _
  $region15: #{convnet_forward.5} parent=0 // pred_check_branch
    %4482 = sbr.rel (0) target = $region17
  $region16: #{convnet_forward.5} parent=0 // pred_region
    _
  $region17: #{convnet_forward.5} parent=0 // pred_fallthru
    _
  // Predicated region
  $region18: #{convnet_forward.5} parent=0 // pred_check
    _
  $region19: #{convnet_forward.5} parent=0 // pred_check_branch
    %4484 = sbr.rel (0) target = $region21
  $region20: #{convnet_forward.5} parent=0 // pred_region
    _
  $region21: #{convnet_forward.5} parent=0 // pred_fallthru
    _

</llo_original>
